<compile_context>
chip_gen: v7x
topology: tpu7x:2x2x1
jax: 0.10.0
libtpu: 0.0.40
codegen_flags: <defaults>
</compile_context>

<pallas_src>
import math
import jax
import jax.numpy as jnp
from jax.experimental import pallas as pl
from jax.experimental.pallas import tpu as pltpu

INPUT_DIM = 128      # module default input_dim
HIDDEN_DIM = 256     # module default hidden_dim
NUM_HEADS = 8        # module default num_heads
HEAD_DIM = HIDDEN_DIM // NUM_HEADS
NUM_STATES = 8       # len(MarketState)
LN_EPS = 1e-5

HEAD_SIZES = (3, 3, 4, NUM_STATES)   # trend, volatility, momentum, regime
HEAD_TOTAL = sum(HEAD_SIZES)         # 18
CLS_HIDDEN = 128                     # hidden width of each state classifier
SMALL_OUT = 128                      # lane-dense packed small-output width
MAX_BATCH_TILE = 32                  # batches per grid step (>=16 v5e, ~32 v6e/v7x)
VMEM_LIMIT_BYTES = 48 * 1024 * 1024  # explicit scoped-VMEM budget (all generations)


# ---------------- in-kernel helpers ----------------
def _gelu(x):
    # exact (erf) GELU, matching torch.nn.GELU() default
    return 0.5 * x * (1.0 + jax.lax.erf(x * (1.0 / math.sqrt(2.0))))


def _layernorm(x, g, b):
    mu = jnp.mean(x, axis=-1, keepdims=True)
    var = jnp.mean((x - mu) ** 2, axis=-1, keepdims=True)
    return (x - mu) * jax.lax.rsqrt(var + LN_EPS) * g + b


def _softmax_exact(x):
    m = jnp.max(x, axis=-1, keepdims=True)
    e = jnp.exp(x - m)
    return e / jnp.sum(e, axis=-1, keepdims=True)


# ---------------- fused forward kernel (grid over batch tiles) ----------------
def _fused_forward_kernel(
        x_ref,
        fe_w1, fe_b1, fe_g1, fe_be1, fe_w2, fe_b2, fe_g2, fe_be2,
        wqkv, bqkv, wo, bo, hmask, negblk, bsel,
        hd_w1, hd_b1, hd_w2, hd_b2, gsame, gneg,
        fw1p, fw1m, fb1, fg1, fbe1, fw2, fb2, fw3, fb3,
        cw1, cb1, cw2, cb2,
        small_ref, attnw_ref, feat_ref):
    BT, S, D = x_ref.shape
    H = HIDDEN_DIM
    NH = NUM_HEADS
    N = NH * S

    # ---- feature extractor: Linear+LN+GELU+[Dropout=id]+Linear+LN+GELU ----
    x = x_ref[...].reshape(BT * S, D)
    h = jnp.dot(x, fe_w1[...], preferred_element_type=jnp.float32) + fe_b1[...]
    h = _gelu(_layernorm(h, fe_g1[...], fe_be1[...]))
    f = jnp.dot(h, fe_w2[...], preferred_element_type=jnp.float32) + fe_b2[...]
    f = _gelu(_layernorm(f, fe_g2[...], fe_be2[...]))            # (BT*S, H)

    # ---- multi-head self-attention (block-diagonal stacked-head form) ----
    # 1/sqrt(head_dim) scale is pre-folded into the Q columns of wqkv/bqkv.
    qkv = jnp.dot(f, wqkv[...], preferred_element_type=jnp.float32) + bqkv[...]
    m4 = hmask[...][None, :, None, :]                            # (1, NH, 1, H)
    q = qkv[:, 0:H].reshape(BT, 1, S, H)
    k = qkv[:, H:2 * H].reshape(BT, 1, S, H)
    v = qkv[:, 2 * H:3 * H].reshape(BT, 1, S, H)
    q_st = (q * m4).reshape(BT, N, H)                            # head-masked Q stack
    v_st = (v * m4).reshape(BT, N, H)                            # head-masked V stack
    k_st = jnp.broadcast_to(k, (BT, NH, S, H)).reshape(BT, N, H)  # K needs no mask

    # (BT, N, N) block-diagonal scores; off-block entries -> -1e30 via precomputed mask.
    scores = (jnp.einsum('bnd,bmd->bnm', q_st, k_st,
                         preferred_element_type=jnp.float32)
              + negblk[...][None, :, :])
    p = _softmax_exact(scores)                                   # off-block exactly 0
    ctx_st = jnp.einsum('bnm,bmd->bnd', p, v_st,
                        preferred_element_type=jnp.float32)      # (BT, N, H)
    ctx = jnp.sum(ctx_st.reshape(BT, NH, S, H), axis=1)          # (BT, S, H) concat-heads
    att = (jnp.dot(ctx.reshape(BT * S, H), wo[...],
                   preferred_element_type=jnp.float32)
           + bo[...]).reshape(BT, S, H)                          # single out-projection

    # ---- head-averaged attention weights (torch default), lane-padded store ----
    # bsel[m, t] = 1 if (m mod S) == t: pulls per-head rows out of block-diagonal p.
    ph = jnp.dot(p.reshape(BT * N, N), bsel[...],
                 preferred_element_type=jnp.float32)             # (BT*N, S)
    aw = jnp.sum(ph.reshape(BT, NH, S, S), axis=1) * (1.0 / NH)  # (BT, S, S)
    lane_pad = attnw_ref.shape[2] - S
    if lane_pad:
        aw = jnp.concatenate([aw, jnp.zeros((BT, S, lane_pad), jnp.float32)], axis=-1)
    attnw_ref[...] = aw

    # ---- pooling ----
    pooled = jnp.mean(att, axis=1)                               # (BT, H)
    maxed = jnp.max(att, axis=1)                                 # (BT, H)
    feat_ref[...] = pooled

    # ---- four classifier heads packed into two matmuls + grouped softmax (exact) ----
    hh = _gelu(jnp.dot(pooled, hd_w1[...], preferred_element_type=jnp.float32)
               + hd_b1[...])                                     # (BT, 4*128)
    logits = jnp.dot(hh, hd_w2[...], preferred_element_type=jnp.float32) + hd_b2[...]
    gmax = jnp.max(logits[:, None, :] + gneg[...][None, :, :], axis=-1)  # per-group max
    e = jnp.exp(logits - gmax)
    denom = jnp.dot(e, gsame[...], preferred_element_type=jnp.float32)
    cls_probs = e / denom                                        # (BT, 18)

    # ---- state fusion on concat([pooled, maxed], -1) as a split matmul ----
    fus = (jnp.dot(pooled, fw1p[...], preferred_element_type=jnp.float32)
           + jnp.dot(maxed, fw1m[...], preferred_element_type=jnp.float32)
           + fb1[...])
    fus = _gelu(_layernorm(fus, fg1[...], fbe1[...]))
    fus = _gelu(jnp.dot(fus, fw2[...], preferred_element_type=jnp.float32) + fb2[...])
    state = _softmax_exact(jnp.dot(fus, fw3[...], preferred_element_type=jnp.float32)
                           + fb3[...])                           # (BT, 8)

    # ---- confidence ----
    c = _gelu(jnp.dot(pooled, cw1[...], preferred_element_type=jnp.float32) + cb1[...])
    conf = jax.nn.sigmoid(jnp.dot(c, cw2[...], preferred_element_type=jnp.float32)
                          + cb2[...])                            # (BT, 1)

    # ---- one full-width lane-dense store: [state(8) | heads(18) | conf(1) | pad] ----
    pad_w = small_ref.shape[1] - (NUM_STATES + HEAD_TOTAL + 1)
    small_ref[...] = jnp.concatenate(
        [state, cls_probs, conf, jnp.zeros((BT, pad_w), jnp.float32)], axis=-1)


# ---------------- parameters (deterministic synthetic init) ----------------
def init_params(key):
    keys = iter(jax.random.split(key, 64))

    def w(shape, scale=0.05):
        return (scale * jax.random.normal(next(keys), shape)).astype(jnp.float32)

    H, D = HIDDEN_DIM, INPUT_DIM
    p = {}
    # feature extractor: Linear(D,H)+LN+GELU+Dropout+Linear(H,H)+LN+GELU
    p['fe_w1'] = w((D, H)); p['fe_b1'] = w((1, H))
    p['fe_g1'] = jnp.ones((1, H), jnp.float32); p['fe_be1'] = jnp.zeros((1, H), jnp.float32)
    p['fe_w2'] = w((H, H)); p['fe_b2'] = w((1, H))
    p['fe_g2'] = jnp.ones((1, H), jnp.float32); p['fe_be2'] = jnp.zeros((1, H), jnp.float32)
    # MultiheadAttention(H, 8): in_proj (q,k,v) + out_proj
    p['wq'] = w((H, H)); p['wk'] = w((H, H)); p['wv'] = w((H, H))
    p['bq'] = w((1, H)); p['bk'] = w((1, H)); p['bv'] = w((1, H))
    p['wo'] = w((H, H)); p['bo'] = w((1, H))
    # state classifiers: Linear(H,128)+GELU+Linear(128,n)+Softmax
    for name, out in (('t', 3), ('v', 3), ('m', 4), ('r', NUM_STATES)):
        p[f'{name}_w1'] = w((H, CLS_HIDDEN)); p[f'{name}_b1'] = w((1, CLS_HIDDEN))
        p[f'{name}_w2'] = w((CLS_HIDDEN, out)); p[f'{name}_b2'] = w((1, out))
    # state fusion: Linear(2H,H)+LN+GELU+Linear(H,H/2)+GELU+Linear(H/2,8)+Softmax
    p['f_w1'] = w((2 * H, H)); p['f_b1'] = w((1, H))
    p['f_g1'] = jnp.ones((1, H), jnp.float32); p['f_be1'] = jnp.zeros((1, H), jnp.float32)
    p['f_w2'] = w((H, H // 2)); p['f_b2'] = w((1, H // 2))
    p['f_w3'] = w((H // 2, NUM_STATES)); p['f_b3'] = w((1, NUM_STATES))
    # confidence: Linear(H,64)+GELU+Linear(64,1)+Sigmoid
    p['c_w1'] = w((H, 64)); p['c_b1'] = w((1, 64))
    p['c_w2'] = w((64, 1)); p['c_b2'] = w((1, 1))
    return p


def _pack_params(p, seq_len):
    """Build packed / fused / hoisted weight forms consumed by the kernel."""
    H = HIDDEN_DIM
    S = seq_len
    N = NUM_HEADS * S
    scale = 1.0 / math.sqrt(HEAD_DIM)
    out = {}
    # fused QKV projection; softmax scale folded into the Q columns (free, host-side)
    out['wqkv'] = jnp.concatenate([p['wq'] * scale, p['wk'], p['wv']], axis=1)   # (H,3H)
    out['bqkv'] = jnp.concatenate([p['bq'] * scale, p['bk'], p['bv']], axis=1)   # (1,3H)
    # packed classifier heads: one (H, 4*128) first layer, block-diagonal (512, 18) second
    out['hd_w1'] = jnp.concatenate([p['t_w1'], p['v_w1'], p['m_w1'], p['r_w1']], axis=1)
    out['hd_b1'] = jnp.concatenate([p['t_b1'], p['v_b1'], p['m_b1'], p['r_b1']], axis=1)
    blocks = (p['t_w2'], p['v_w2'], p['m_w2'], p['r_w2'])
    hd_w2 = jnp.zeros((4 * CLS_HIDDEN, HEAD_TOTAL), jnp.float32)
    col = 0
    for i, (blk, sz) in enumerate(zip(blocks, HEAD_SIZES)):
        hd_w2 = hd_w2.at[i * CLS_HIDDEN:(i + 1) * CLS_HIDDEN, col:col + sz].set(blk)
        col += sz
    out['hd_w2'] = hd_w2
    out['hd_b2'] = jnp.concatenate([p['t_b2'], p['v_b2'], p['m_b2'], p['r_b2']], axis=1)
    # split fusion first layer so concat([pooled, maxed]) becomes a split matmul
    out['f_w1p'] = p['f_w1'][:H, :]
    out['f_w1m'] = p['f_w1'][H:, :]
    # head mask (NUM_HEADS, H): 1 where the lane belongs to the head
    out['hmask'] = (jnp.arange(H)[None, :] // HEAD_DIM
                    == jnp.arange(NUM_HEADS)[:, None]).astype(jnp.float32)
    # additive block-diagonal mask for stacked-head scores (N, N): 0 same head, -1e30 off
    hid = jnp.arange(N) // S
    out['negblk'] = jnp.where(hid[:, None] == hid[None, :], 0.0, -1e30).astype(jnp.float32)
    # column selector (N, S): bsel[m, t] = 1 if (m mod S) == t  (per-head prob extraction)
    out['bsel'] = (jnp.arange(N)[:, None] % S == jnp.arange(S)[None, :]).astype(jnp.float32)
    # grouped-softmax helpers for the packed classifier heads (hoisted out of the kernel)
    gid = []
    for i, s in enumerate(HEAD_SIZES):
        gid += [i] * s
    gid = jnp.asarray(gid, jnp.int32)
    gsame = (gid[:, None] == gid[None, :]).astype(jnp.float32)
    out['gsame'] = gsame
    out['gneg'] = (gsame - 1.0) * 1e30
    return out


def _const_spec(shape):
    n = len(shape)
    return pl.BlockSpec(tuple(shape), lambda i, _n=n: (0,) * _n)


# ---------------- wrapper ----------------
def market_state_classifier_forward(params, market_data):
    if market_data.ndim == 2:
        market_data = market_data[:, None, :]
    market_data = market_data.astype(jnp.float32)
    B, S, D = market_data.shape
    H = HIDDEN_DIM

    # Batch tile: sublane-aligned (multiple of 8), capped at MAX_BATCH_TILE, and the grid
    # always has >= 2 steps so the "parallel" axis can shard across v7x's 2 TensorCores.
    half = (B + 1) // 2
    BT = max(8, min(MAX_BATCH_TILE, ((half + 7) // 8) * 8))
    Bp = ((B + BT - 1) // BT) * BT
    if Bp // BT < 2:
        Bp = 2 * BT
    if Bp != B:
        market_data = jnp.pad(market_data, ((0, Bp - B), (0, 0), (0, 0)))
    num_tiles = Bp // BT

    attn_w_pad = ((S + 127) // 128) * 128   # lane-dense attention-weights row width

    pk = _pack_params(params, S)
    weights = (params['fe_w1'], params['fe_b1'], params['fe_g1'], params['fe_be1'],
               params['fe_w2'], params['fe_b2'], params['fe_g2'], params['fe_be2'],
               pk['wqkv'], pk['bqkv'], params['wo'], params['bo'],
               pk['hmask'], pk['negblk'], pk['bsel'],
               pk['hd_w1'], pk['hd_b1'], pk['hd_w2'], pk['hd_b2'], pk['gsame'], pk['gneg'],
               pk['f_w1p'], pk['f_w1m'], params['f_b1'], params['f_g1'], params['f_be1'],
               params['f_w2'], params['f_b2'], params['f_w3'], params['f_b3'],
               params['c_w1'], params['c_b1'], params['c_w2'], params['c_b2'])

    in_specs = ([pl.BlockSpec((BT, S, D), lambda i: (i, 0, 0))]
                + [_const_spec(w.shape) for w in weights])       # weights stay resident
    out_specs = (pl.BlockSpec((BT, SMALL_OUT), lambda i: (i, 0)),
                 pl.BlockSpec((BT, S, attn_w_pad), lambda i: (i, 0, 0)),
                 pl.BlockSpec((BT, H), lambda i: (i, 0)))
    out_shape = (jax.ShapeDtypeStruct((Bp, SMALL_OUT), jnp.float32),     # packed small
                 jax.ShapeDtypeStruct((Bp, S, attn_w_pad), jnp.float32),  # attn weights
                 jax.ShapeDtypeStruct((Bp, H), jnp.float32))             # pooled features

    small, attn, pooled = pl.pallas_call(
        _fused_forward_kernel,
        grid=(num_tiles,),
        out_shape=out_shape,
        in_specs=in_specs,
        out_specs=out_specs,
        compiler_params=pltpu.CompilerParams(
            dimension_semantics=("parallel",),
            vmem_limit_bytes=VMEM_LIMIT_BYTES),
    )(market_data, *weights)

    small = small[:B]
    attn = attn[:B, :, :S]
    pooled = pooled[:B]

    o = NUM_STATES
    return {
        'state_probabilities': small[:, 0:NUM_STATES],
        'trend_probs': small[:, o:o + 3],
        'volatility_probs': small[:, o + 3:o + 6],
        'momentum_probs': small[:, o + 6:o + 10],
        'regime_probs': small[:, o + 10:o + 18],
        'confidence': small[:, o + 18:o + 19],
        'attention_weights': attn,
        'features': pooled,
    }


if __name__ == "__main__":
    key = jax.random.PRNGKey(0)
    pkey, xkey = jax.random.split(key)
    params = init_params(pkey)
    # market_data: [batch=2, seq=8, input_dim=128]
    x = jax.random.normal(xkey, (2, 8, INPUT_DIM), dtype=jnp.float32)
    fwd = jax.jit(market_state_classifier_forward)
    out = fwd(params, x)
    jax.tree_util.tree_map(jax.block_until_ready, out)
    assert out['state_probabilities'].shape == (2, NUM_STATES)
    assert out['trend_probs'].shape == (2, 3)
    assert out['volatility_probs'].shape == (2, 3)
    assert out['momentum_probs'].shape == (2, 4)
    assert out['regime_probs'].shape == (2, NUM_STATES)
    assert out['attention_weights'].shape == (2, 8, 8)
    assert out['confidence'].shape == (2, 1)
    assert out['features'].shape == (2, HIDDEN_DIM)
    # light numeric sanity: returned distributions must sum to 1 (exact softmax path)
    assert abs(float(jnp.sum(out['state_probabilities'][0])) - 1.0) < 1e-3
    assert abs(float(jnp.sum(out['trend_probs'][0])) - 1.0) < 1e-3
    assert abs(float(jnp.sum(out['attention_weights'][0, 0])) - 1.0) < 1e-3
    print("KERNEL_OK")
</pallas_src>

<mosaic_0001>
module attributes {stable_mosaic.version = 11 : i64} {
  func.func @_fused_forward_kernel(%arg0: i32, %arg1: memref<8x8x128xf32, #tpu.memory_space<vmem>>, %arg2: memref<128x256xf32, #tpu.memory_space<vmem>>, %arg3: memref<1x256xf32, #tpu.memory_space<vmem>>, %arg4: memref<1x256xf32, #tpu.memory_space<vmem>>, %arg5: memref<1x256xf32, #tpu.memory_space<vmem>>, %arg6: memref<256x256xf32, #tpu.memory_space<vmem>>, %arg7: memref<1x256xf32, #tpu.memory_space<vmem>>, %arg8: memref<1x256xf32, #tpu.memory_space<vmem>>, %arg9: memref<1x256xf32, #tpu.memory_space<vmem>>, %arg10: memref<256x768xf32, #tpu.memory_space<vmem>>, %arg11: memref<1x768xf32, #tpu.memory_space<vmem>>, %arg12: memref<256x256xf32, #tpu.memory_space<vmem>>, %arg13: memref<1x256xf32, #tpu.memory_space<vmem>>, %arg14: memref<8x256xf32, #tpu.memory_space<vmem>>, %arg15: memref<64x64xf32, #tpu.memory_space<vmem>>, %arg16: memref<64x8xf32, #tpu.memory_space<vmem>>, %arg17: memref<256x512xf32, #tpu.memory_space<vmem>>, %arg18: memref<1x512xf32, #tpu.memory_space<vmem>>, %arg19: memref<512x18xf32, #tpu.memory_space<vmem>>, %arg20: memref<1x18xf32, #tpu.memory_space<vmem>>, %arg21: memref<18x18xf32, #tpu.memory_space<vmem>>, %arg22: memref<18x18xf32, #tpu.memory_space<vmem>>, %arg23: memref<256x256xf32, #tpu.memory_space<vmem>>, %arg24: memref<256x256xf32, #tpu.memory_space<vmem>>, %arg25: memref<1x256xf32, #tpu.memory_space<vmem>>, %arg26: memref<1x256xf32, #tpu.memory_space<vmem>>, %arg27: memref<1x256xf32, #tpu.memory_space<vmem>>, %arg28: memref<256x128xf32, #tpu.memory_space<vmem>>, %arg29: memref<1x128xf32, #tpu.memory_space<vmem>>, %arg30: memref<128x8xf32, #tpu.memory_space<vmem>>, %arg31: memref<1x8xf32, #tpu.memory_space<vmem>>, %arg32: memref<256x64xf32, #tpu.memory_space<vmem>>, %arg33: memref<1x64xf32, #tpu.memory_space<vmem>>, %arg34: memref<64x1xf32, #tpu.memory_space<vmem>>, %arg35: memref<1x1xf32, #tpu.memory_space<vmem>>, %arg36: memref<8x128xf32, #tpu.memory_space<vmem>>, %arg37: memref<8x8x128xf32, #tpu.memory_space<vmem>>, %arg38: memref<8x256xf32, #tpu.memory_space<vmem>>) attributes {dimension_semantics = [#tpu.dimension_semantics<parallel>], iteration_bounds = array<i64: 2>, scalar_prefetch = 0 : i64, scratch_operands = 0 : i64, tpu.core_type = #tpu.core_type<tc>, window_params = [{transform_indices = @transform_0, window_bounds = array<i64: 8, 8, 128>}, {pipeline_mode = #tpu.pipeline_mode<synchronous>, transform_indices = @transform_1, window_bounds = array<i64: 128, 256>}, {pipeline_mode = #tpu.pipeline_mode<synchronous>, transform_indices = @transform_2, window_bounds = array<i64: 1, 256>}, {pipeline_mode = #tpu.pipeline_mode<synchronous>, transform_indices = @transform_3, window_bounds = array<i64: 1, 256>}, {pipeline_mode = #tpu.pipeline_mode<synchronous>, transform_indices = @transform_4, window_bounds = array<i64: 1, 256>}, {pipeline_mode = #tpu.pipeline_mode<synchronous>, transform_indices = @transform_5, window_bounds = array<i64: 256, 256>}, {pipeline_mode = #tpu.pipeline_mode<synchronous>, transform_indices = @transform_6, window_bounds = array<i64: 1, 256>}, {pipeline_mode = #tpu.pipeline_mode<synchronous>, transform_indices = @transform_7, window_bounds = array<i64: 1, 256>}, {pipeline_mode = #tpu.pipeline_mode<synchronous>, transform_indices = @transform_8, window_bounds = array<i64: 1, 256>}, {pipeline_mode = #tpu.pipeline_mode<synchronous>, transform_indices = @transform_9, window_bounds = array<i64: 256, 768>}, {pipeline_mode = #tpu.pipeline_mode<synchronous>, transform_indices = @transform_10, window_bounds = array<i64: 1, 768>}, {pipeline_mode = #tpu.pipeline_mode<synchronous>, transform_indices = @transform_11, window_bounds = array<i64: 256, 256>}, {pipeline_mode = #tpu.pipeline_mode<synchronous>, transform_indices = @transform_12, window_bounds = array<i64: 1, 256>}, {pipeline_mode = #tpu.pipeline_mode<synchronous>, transform_indices = @transform_13, window_bounds = array<i64: 8, 256>}, {pipeline_mode = #tpu.pipeline_mode<synchronous>, transform_indices = @transform_14, window_bounds = array<i64: 64, 64>}, {pipeline_mode = #tpu.pipeline_mode<synchronous>, transform_indices = @transform_15, window_bounds = array<i64: 64, 8>}, {pipeline_mode = #tpu.pipeline_mode<synchronous>, transform_indices = @transform_16, window_bounds = array<i64: 256, 512>}, {pipeline_mode = #tpu.pipeline_mode<synchronous>, transform_indices = @transform_17, window_bounds = array<i64: 1, 512>}, {pipeline_mode = #tpu.pipeline_mode<synchronous>, transform_indices = @transform_18, window_bounds = array<i64: 512, 18>}, {pipeline_mode = #tpu.pipeline_mode<synchronous>, transform_indices = @transform_19, window_bounds = array<i64: 1, 18>}, {pipeline_mode = #tpu.pipeline_mode<synchronous>, transform_indices = @transform_20, window_bounds = array<i64: 18, 18>}, {pipeline_mode = #tpu.pipeline_mode<synchronous>, transform_indices = @transform_21, window_bounds = array<i64: 18, 18>}, {pipeline_mode = #tpu.pipeline_mode<synchronous>, transform_indices = @transform_22, window_bounds = array<i64: 256, 256>}, {pipeline_mode = #tpu.pipeline_mode<synchronous>, transform_indices = @transform_23, window_bounds = array<i64: 256, 256>}, {pipeline_mode = #tpu.pipeline_mode<synchronous>, transform_indices = @transform_24, window_bounds = array<i64: 1, 256>}, {pipeline_mode = #tpu.pipeline_mode<synchronous>, transform_indices = @transform_25, window_bounds = array<i64: 1, 256>}, {pipeline_mode = #tpu.pipeline_mode<synchronous>, transform_indices = @transform_26, window_bounds = array<i64: 1, 256>}, {pipeline_mode = #tpu.pipeline_mode<synchronous>, transform_indices = @transform_27, window_bounds = array<i64: 256, 128>}, {pipeline_mode = #tpu.pipeline_mode<synchronous>, transform_indices = @transform_28, window_bounds = array<i64: 1, 128>}, {pipeline_mode = #tpu.pipeline_mode<synchronous>, transform_indices = @transform_29, window_bounds = array<i64: 128, 8>}, {pipeline_mode = #tpu.pipeline_mode<synchronous>, transform_indices = @transform_30, window_bounds = array<i64: 1, 8>}, {pipeline_mode = #tpu.pipeline_mode<synchronous>, transform_indices = @transform_31, window_bounds = array<i64: 256, 64>}, {pipeline_mode = #tpu.pipeline_mode<synchronous>, transform_indices = @transform_32, window_bounds = array<i64: 1, 64>}, {pipeline_mode = #tpu.pipeline_mode<synchronous>, transform_indices = @transform_33, window_bounds = array<i64: 64, 1>}, {pipeline_mode = #tpu.pipeline_mode<synchronous>, transform_indices = @transform_34, window_bounds = array<i64: 1, 1>}, {transform_indices = @transform_35, window_bounds = array<i64: 8, 128>}, {transform_indices = @transform_36, window_bounds = array<i64: 8, 8, 128>}, {transform_indices = @transform_37, window_bounds = array<i64: 8, 256>}]} {
    %c0 = arith.constant 0 : index
    %c0_0 = arith.constant 0 : index
    %c0_1 = arith.constant 0 : index
    %0 = vector.load %arg1[%c0, %c0_0, %c0_1] : memref<8x8x128xf32, #tpu.memory_space<vmem>>, vector<8x8x128xf32>
    %1 = vector.shape_cast %0 : vector<8x8x128xf32> to vector<64x128xf32>
    %c0_2 = arith.constant 0 : index
    %c0_3 = arith.constant 0 : index
    %2 = vector.load %arg2[%c0_2, %c0_3] : memref<128x256xf32, #tpu.memory_space<vmem>>, vector<128x256xf32>
    %cst = arith.constant dense<0.000000e+00> : vector<64x256xf32>
    %3 = tpu.matmul %1, %2, %cst {dimension_numbers = #tpu.dot_dimension_numbers<[1], [0], [0], [1], [0, 0, 1, 1], [], []>} : vector<64x128xf32>, vector<128x256xf32>, vector<64x256xf32> -> vector<64x256xf32>
    %c0_4 = arith.constant 0 : index
    %c0_5 = arith.constant 0 : index
    %4 = vector.load %arg3[%c0_4, %c0_5] : memref<1x256xf32, #tpu.memory_space<vmem>>, vector<1x256xf32>
    %5 = vector.broadcast %4 : vector<1x256xf32> to vector<64x256xf32>
    %6 = arith.addf %3, %5 : vector<64x256xf32>
    %c0_6 = arith.constant 0 : index
    %c0_7 = arith.constant 0 : index
    %7 = vector.load %arg4[%c0_6, %c0_7] : memref<1x256xf32, #tpu.memory_space<vmem>>, vector<1x256xf32>
    %c0_8 = arith.constant 0 : index
    %c0_9 = arith.constant 0 : index
    %8 = vector.load %arg5[%c0_8, %c0_9] : memref<1x256xf32, #tpu.memory_space<vmem>>, vector<1x256xf32>
    %cst_10 = arith.constant dense<0.000000e+00> : vector<64xf32>
    %9 = vector.multi_reduction <add>, %6, %cst_10 [1] : vector<64x256xf32> to vector<64xf32>
    %10 = vector.shape_cast %9 : vector<64xf32> to vector<64x1xf32>
    %cst_11 = arith.constant 2.560000e+02 : f32
    %11 = vector.broadcast %cst_11 : f32 to vector<64x1xf32>
    %12 = arith.divf %10, %11 : vector<64x1xf32>
    %13 = vector.broadcast %12 : vector<64x1xf32> to vector<64x256xf32>
    %14 = arith.subf %6, %13 : vector<64x256xf32>
    %15 = arith.mulf %14, %14 : vector<64x256xf32>
    %cst_12 = arith.constant dense<0.000000e+00> : vector<64xf32>
    %16 = vector.multi_reduction <add>, %15, %cst_12 [1] : vector<64x256xf32> to vector<64xf32>
    %17 = vector.shape_cast %16 : vector<64xf32> to vector<64x1xf32>
    %cst_13 = arith.constant 2.560000e+02 : f32
    %18 = vector.broadcast %cst_13 : f32 to vector<64x1xf32>
    %19 = arith.divf %17, %18 : vector<64x1xf32>
    %20 = vector.broadcast %12 : vector<64x1xf32> to vector<64x256xf32>
    %21 = arith.subf %6, %20 : vector<64x256xf32>
    %cst_14 = arith.constant 9.99999974E-6 : f32
    %22 = vector.broadcast %cst_14 : f32 to vector<64x1xf32>
    %23 = arith.addf %19, %22 : vector<64x1xf32>
    %24 = math.rsqrt %23 : vector<64x1xf32>
    %25 = vector.broadcast %24 : vector<64x1xf32> to vector<64x256xf32>
    %26 = arith.mulf %21, %25 : vector<64x256xf32>
    %27 = vector.broadcast %7 : vector<1x256xf32> to vector<64x256xf32>
    %28 = arith.mulf %26, %27 : vector<64x256xf32>
    %29 = vector.broadcast %8 : vector<1x256xf32> to vector<64x256xf32>
    %30 = arith.addf %28, %29 : vector<64x256xf32>
    %cst_15 = arith.constant 5.000000e-01 : f32
    %31 = vector.broadcast %cst_15 : f32 to vector<64x256xf32>
    %32 = arith.mulf %31, %30 : vector<64x256xf32>
    %cst_16 = arith.constant 0.707106769 : f32
    %33 = vector.broadcast %cst_16 : f32 to vector<64x256xf32>
    %34 = arith.mulf %30, %33 : vector<64x256xf32>
    %35 = math.erf %34 : vector<64x256xf32>
    %cst_17 = arith.constant 1.000000e+00 : f32
    %36 = vector.broadcast %cst_17 : f32 to vector<64x256xf32>
    %37 = arith.addf %36, %35 : vector<64x256xf32>
    %38 = arith.mulf %32, %37 : vector<64x256xf32>
    %c0_18 = arith.constant 0 : index
    %c0_19 = arith.constant 0 : index
    %39 = vector.load %arg6[%c0_18, %c0_19] : memref<256x256xf32, #tpu.memory_space<vmem>>, vector<256x256xf32>
    %cst_20 = arith.constant dense<0.000000e+00> : vector<64x256xf32>
    %40 = tpu.matmul %38, %39, %cst_20 {dimension_numbers = #tpu.dot_dimension_numbers<[1], [0], [0], [1], [0, 0, 1, 1], [], []>} : vector<64x256xf32>, vector<256x256xf32>, vector<64x256xf32> -> vector<64x256xf32>
    %c0_21 = arith.constant 0 : index
    %c0_22 = arith.constant 0 : index
    %41 = vector.load %arg7[%c0_21, %c0_22] : memref<1x256xf32, #tpu.memory_space<vmem>>, vector<1x256xf32>
    %42 = vector.broadcast %41 : vector<1x256xf32> to vector<64x256xf32>
    %43 = arith.addf %40, %42 : vector<64x256xf32>
    %c0_23 = arith.constant 0 : index
    %c0_24 = arith.constant 0 : index
    %44 = vector.load %arg8[%c0_23, %c0_24] : memref<1x256xf32, #tpu.memory_space<vmem>>, vector<1x256xf32>
    %c0_25 = arith.constant 0 : index
    %c0_26 = arith.constant 0 : index
    %45 = vector.load %arg9[%c0_25, %c0_26] : memref<1x256xf32, #tpu.memory_space<vmem>>, vector<1x256xf32>
    %cst_27 = arith.constant dense<0.000000e+00> : vector<64xf32>
    %46 = vector.multi_reduction <add>, %43, %cst_27 [1] : vector<64x256xf32> to vector<64xf32>
    %47 = vector.shape_cast %46 : vector<64xf32> to vector<64x1xf32>
    %cst_28 = arith.constant 2.560000e+02 : f32
    %48 = vector.broadcast %cst_28 : f32 to vector<64x1xf32>
    %49 = arith.divf %47, %48 : vector<64x1xf32>
    %50 = vector.broadcast %49 : vector<64x1xf32> to vector<64x256xf32>
    %51 = arith.subf %43, %50 : vector<64x256xf32>
    %52 = arith.mulf %51, %51 : vector<64x256xf32>
    %cst_29 = arith.constant dense<0.000000e+00> : vector<64xf32>
    %53 = vector.multi_reduction <add>, %52, %cst_29 [1] : vector<64x256xf32> to vector<64xf32>
    %54 = vector.shape_cast %53 : vector<64xf32> to vector<64x1xf32>
    %cst_30 = arith.constant 2.560000e+02 : f32
    %55 = vector.broadcast %cst_30 : f32 to vector<64x1xf32>
    %56 = arith.divf %54, %55 : vector<64x1xf32>
    %57 = vector.broadcast %49 : vector<64x1xf32> to vector<64x256xf32>
    %58 = arith.subf %43, %57 : vector<64x256xf32>
    %cst_31 = arith.constant 9.99999974E-6 : f32
    %59 = vector.broadcast %cst_31 : f32 to vector<64x1xf32>
    %60 = arith.addf %56, %59 : vector<64x1xf32>
    %61 = math.rsqrt %60 : vector<64x1xf32>
    %62 = vector.broadcast %61 : vector<64x1xf32> to vector<64x256xf32>
    %63 = arith.mulf %58, %62 : vector<64x256xf32>
    %64 = vector.broadcast %44 : vector<1x256xf32> to vector<64x256xf32>
    %65 = arith.mulf %63, %64 : vector<64x256xf32>
    %66 = vector.broadcast %45 : vector<1x256xf32> to vector<64x256xf32>
    %67 = arith.addf %65, %66 : vector<64x256xf32>
    %cst_32 = arith.constant 5.000000e-01 : f32
    %68 = vector.broadcast %cst_32 : f32 to vector<64x256xf32>
    %69 = arith.mulf %68, %67 : vector<64x256xf32>
    %cst_33 = arith.constant 0.707106769 : f32
    %70 = vector.broadcast %cst_33 : f32 to vector<64x256xf32>
    %71 = arith.mulf %67, %70 : vector<64x256xf32>
    %72 = math.erf %71 : vector<64x256xf32>
    %cst_34 = arith.constant 1.000000e+00 : f32
    %73 = vector.broadcast %cst_34 : f32 to vector<64x256xf32>
    %74 = arith.addf %73, %72 : vector<64x256xf32>
    %75 = arith.mulf %69, %74 : vector<64x256xf32>
    %c0_35 = arith.constant 0 : index
    %c0_36 = arith.constant 0 : index
    %76 = vector.load %arg10[%c0_35, %c0_36] : memref<256x768xf32, #tpu.memory_space<vmem>>, vector<256x768xf32>
    %cst_37 = arith.constant dense<0.000000e+00> : vector<64x768xf32>
    %77 = tpu.matmul %75, %76, %cst_37 {dimension_numbers = #tpu.dot_dimension_numbers<[1], [0], [0], [1], [0, 0, 1, 1], [], []>} : vector<64x256xf32>, vector<256x768xf32>, vector<64x768xf32> -> vector<64x768xf32>
    %c0_38 = arith.constant 0 : index
    %c0_39 = arith.constant 0 : index
    %78 = vector.load %arg11[%c0_38, %c0_39] : memref<1x768xf32, #tpu.memory_space<vmem>>, vector<1x768xf32>
    %79 = vector.broadcast %78 : vector<1x768xf32> to vector<64x768xf32>
    %80 = arith.addf %77, %79 : vector<64x768xf32>
    %c0_40 = arith.constant 0 : index
    %c0_41 = arith.constant 0 : index
    %81 = vector.load %arg14[%c0_40, %c0_41] : memref<8x256xf32, #tpu.memory_space<vmem>>, vector<8x256xf32>
    %82 = vector.shape_cast %81 : vector<8x256xf32> to vector<1x8x1x256xf32>
    %83 = vector.extract_strided_slice %80 {offsets = [0, 0], sizes = [64, 256], strides = [1, 1]} : vector<64x768xf32> to vector<64x256xf32>
    %84 = vector.shape_cast %83 : vector<64x256xf32> to vector<8x1x8x256xf32>
    %85 = vector.extract_strided_slice %80 {offsets = [0, 256], sizes = [64, 256], strides = [1, 1]} : vector<64x768xf32> to vector<64x256xf32>
    %86 = vector.shape_cast %85 : vector<64x256xf32> to vector<8x1x8x256xf32>
    %87 = vector.extract_strided_slice %80 {offsets = [0, 512], sizes = [64, 256], strides = [1, 1]} : vector<64x768xf32> to vector<64x256xf32>
    %88 = vector.shape_cast %87 : vector<64x256xf32> to vector<8x1x8x256xf32>
    %89 = vector.broadcast %84 : vector<8x1x8x256xf32> to vector<8x8x8x256xf32>
    %90 = vector.broadcast %82 : vector<1x8x1x256xf32> to vector<8x8x8x256xf32>
    %91 = arith.mulf %89, %90 : vector<8x8x8x256xf32>
    %92 = vector.shape_cast %91 : vector<8x8x8x256xf32> to vector<8x64x256xf32>
    %93 = vector.broadcast %88 : vector<8x1x8x256xf32> to vector<8x8x8x256xf32>
    %94 = vector.broadcast %82 : vector<1x8x1x256xf32> to vector<8x8x8x256xf32>
    %95 = arith.mulf %93, %94 : vector<8x8x8x256xf32>
    %96 = vector.shape_cast %95 : vector<8x8x8x256xf32> to vector<8x64x256xf32>
    %97 = vector.shape_cast %86 : vector<8x1x8x256xf32> to vector<8x1x8x256xf32>
    %98 = vector.broadcast %97 : vector<8x1x8x256xf32> to vector<8x8x8x256xf32>
    %99 = vector.shape_cast %98 : vector<8x8x8x256xf32> to vector<8x64x256xf32>
    "tpu.trace_start"() <{level = 10 : i32, message = "bnd,bmd->bnm"}> : () -> ()
    %cst_42 = arith.constant dense<0.000000e+00> : vector<8x64x64xf32>
    %100 = tpu.matmul %92, %99, %cst_42 {dimension_numbers = #tpu.dot_dimension_numbers<[2], [2], [1], [1], [0, 0, 0, 1, 1, 1], [0], [0]>} : vector<8x64x256xf32>, vector<8x64x256xf32>, vector<8x64x64xf32> -> vector<8x64x64xf32>
    "tpu.trace_stop"() : () -> ()
    %c0_43 = arith.constant 0 : index
    %c0_44 = arith.constant 0 : index
    %101 = vector.load %arg15[%c0_43, %c0_44] : memref<64x64xf32, #tpu.memory_space<vmem>>, vector<64x64xf32>
    %102 = vector.shape_cast %101 : vector<64x64xf32> to vector<1x64x64xf32>
    %103 = vector.broadcast %102 : vector<1x64x64xf32> to vector<8x64x64xf32>
    %104 = arith.addf %100, %103 : vector<8x64x64xf32>
    %cst_45 = arith.constant dense<0xFF800000> : vector<8x64xf32>
    %105 = vector.multi_reduction <maximumf>, %104, %cst_45 [2] : vector<8x64x64xf32> to vector<8x64xf32>
    %106 = vector.shape_cast %105 : vector<8x64xf32> to vector<8x64x1xf32>
    %107 = vector.broadcast %106 : vector<8x64x1xf32> to vector<8x64x64xf32>
    %108 = arith.subf %104, %107 : vector<8x64x64xf32>
    %109 = math.exp %108 : vector<8x64x64xf32>
    %cst_46 = arith.constant dense<0.000000e+00> : vector<8x64xf32>
    %110 = vector.multi_reduction <add>, %109, %cst_46 [2] : vector<8x64x64xf32> to vector<8x64xf32>
    %111 = vector.shape_cast %110 : vector<8x64xf32> to vector<8x64x1xf32>
    %112 = vector.broadcast %111 : vector<8x64x1xf32> to vector<8x64x64xf32>
    %113 = arith.divf %109, %112 : vector<8x64x64xf32>
    "tpu.trace_start"() <{level = 10 : i32, message = "bnm,bmd->bnd"}> : () -> ()
    %cst_47 = arith.constant dense<0.000000e+00> : vector<8x64x256xf32>
    %114 = tpu.matmul %113, %96, %cst_47 {dimension_numbers = #tpu.dot_dimension_numbers<[2], [1], [1], [2], [0, 0, 0, 1, 1, 2], [0], [0]>} : vector<8x64x64xf32>, vector<8x64x256xf32>, vector<8x64x256xf32> -> vector<8x64x256xf32>
    "tpu.trace_stop"() : () -> ()
    %115 = vector.shape_cast %114 : vector<8x64x256xf32> to vector<8x8x8x256xf32>
    %cst_48 = arith.constant dense<0.000000e+00> : vector<8x8x256xf32>
    %116 = vector.multi_reduction <add>, %115, %cst_48 [1] : vector<8x8x8x256xf32> to vector<8x8x256xf32>
    %117 = vector.shape_cast %116 : vector<8x8x256xf32> to vector<64x256xf32>
    %c0_49 = arith.constant 0 : index
    %c0_50 = arith.constant 0 : index
    %118 = vector.load %arg12[%c0_49, %c0_50] : memref<256x256xf32, #tpu.memory_space<vmem>>, vector<256x256xf32>
    %cst_51 = arith.constant dense<0.000000e+00> : vector<64x256xf32>
    %119 = tpu.matmul %117, %118, %cst_51 {dimension_numbers = #tpu.dot_dimension_numbers<[1], [0], [0], [1], [0, 0, 1, 1], [], []>} : vector<64x256xf32>, vector<256x256xf32>, vector<64x256xf32> -> vector<64x256xf32>
    %c0_52 = arith.constant 0 : index
    %c0_53 = arith.constant 0 : index
    %120 = vector.load %arg13[%c0_52, %c0_53] : memref<1x256xf32, #tpu.memory_space<vmem>>, vector<1x256xf32>
    %121 = vector.broadcast %120 : vector<1x256xf32> to vector<64x256xf32>
    %122 = arith.addf %119, %121 : vector<64x256xf32>
    %123 = vector.shape_cast %122 : vector<64x256xf32> to vector<8x8x256xf32>
    %124 = vector.shape_cast %113 : vector<8x64x64xf32> to vector<512x64xf32>
    %c0_54 = arith.constant 0 : index
    %c0_55 = arith.constant 0 : index
    %125 = vector.load %arg16[%c0_54, %c0_55] : memref<64x8xf32, #tpu.memory_space<vmem>>, vector<64x8xf32>
    %cst_56 = arith.constant dense<0.000000e+00> : vector<512x8xf32>
    %126 = tpu.matmul %124, %125, %cst_56 {dimension_numbers = #tpu.dot_dimension_numbers<[1], [0], [0], [1], [0, 0, 1, 1], [], []>} : vector<512x64xf32>, vector<64x8xf32>, vector<512x8xf32> -> vector<512x8xf32>
    %127 = vector.shape_cast %126 : vector<512x8xf32> to vector<8x8x8x8xf32>
    %cst_57 = arith.constant dense<0.000000e+00> : vector<8x8x8xf32>
    %128 = vector.multi_reduction <add>, %127, %cst_57 [1] : vector<8x8x8x8xf32> to vector<8x8x8xf32>
    %cst_58 = arith.constant 1.250000e-01 : f32
    %129 = vector.broadcast %cst_58 : f32 to vector<8x8x8xf32>
    %130 = arith.mulf %128, %129 : vector<8x8x8xf32>
    %cst_59 = arith.constant 0.000000e+00 : f32
    %131 = vector.broadcast %cst_59 : f32 to vector<8x8x120xf32>
    %132 = tpu.concatenate %130, %131 in 2 : vector<8x8x8xf32>, vector<8x8x120xf32> -> vector<8x8x128xf32>
    %c0_60 = arith.constant 0 : index
    %c0_61 = arith.constant 0 : index
    %c0_62 = arith.constant 0 : index
    %133 = vector.load %arg37[%c0_60, %c0_61, %c0_62] : memref<8x8x128xf32, #tpu.memory_space<vmem>>, vector<8x8x128xf32>
    tpu.vector_store %arg37[%c0_60, %c0_61, %c0_62], %132 {strides = array<i32>} : memref<8x8x128xf32, #tpu.memory_space<vmem>>, vector<8x8x128xf32>,
    %cst_63 = arith.constant dense<0.000000e+00> : vector<8x256xf32>
    %134 = vector.multi_reduction <add>, %123, %cst_63 [1] : vector<8x8x256xf32> to vector<8x256xf32>
    %cst_64 = arith.constant 8.000000e+00 : f32
    %135 = vector.broadcast %cst_64 : f32 to vector<8x256xf32>
    %136 = arith.divf %134, %135 : vector<8x256xf32>
    %cst_65 = arith.constant dense<0xFF800000> : vector<8x256xf32>
    %137 = vector.multi_reduction <maximumf>, %123, %cst_65 [1] : vector<8x8x256xf32> to vector<8x256xf32>
    %c0_66 = arith.constant 0 : index
    %c0_67 = arith.constant 0 : index
    %138 = vector.load %arg38[%c0_66, %c0_67] : memref<8x256xf32, #tpu.memory_space<vmem>>, vector<8x256xf32>
    tpu.vector_store %arg38[%c0_66, %c0_67], %136 {strides = array<i32>} : memref<8x256xf32, #tpu.memory_space<vmem>>, vector<8x256xf32>,
    %c0_68 = arith.constant 0 : index
    %c0_69 = arith.constant 0 : index
    %139 = vector.load %arg17[%c0_68, %c0_69] : memref<256x512xf32, #tpu.memory_space<vmem>>, vector<256x512xf32>
    %cst_70 = arith.constant dense<0.000000e+00> : vector<8x512xf32>
    %140 = tpu.matmul %136, %139, %cst_70 {dimension_numbers = #tpu.dot_dimension_numbers<[1], [0], [0], [1], [0, 0, 1, 1], [], []>} : vector<8x256xf32>, vector<256x512xf32>, vector<8x512xf32> -> vector<8x512xf32>
    %c0_71 = arith.constant 0 : index
    %c0_72 = arith.constant 0 : index
    %141 = vector.load %arg18[%c0_71, %c0_72] : memref<1x512xf32, #tpu.memory_space<vmem>>, vector<1x512xf32>
    %142 = vector.broadcast %141 : vector<1x512xf32> to vector<8x512xf32>
    %143 = arith.addf %140, %142 : vector<8x512xf32>
    %cst_73 = arith.constant 5.000000e-01 : f32
    %144 = vector.broadcast %cst_73 : f32 to vector<8x512xf32>
    %145 = arith.mulf %144, %143 : vector<8x512xf32>
    %cst_74 = arith.constant 0.707106769 : f32
    %146 = vector.broadcast %cst_74 : f32 to vector<8x512xf32>
    %147 = arith.mulf %143, %146 : vector<8x512xf32>
    %148 = math.erf %147 : vector<8x512xf32>
    %cst_75 = arith.constant 1.000000e+00 : f32
    %149 = vector.broadcast %cst_75 : f32 to vector<8x512xf32>
    %150 = arith.addf %149, %148 : vector<8x512xf32>
    %151 = arith.mulf %145, %150 : vector<8x512xf32>
    %c0_76 = arith.constant 0 : index
    %c0_77 = arith.constant 0 : index
    %152 = vector.load %arg19[%c0_76, %c0_77] : memref<512x18xf32, #tpu.memory_space<vmem>>, vector<512x18xf32>
    %cst_78 = arith.constant dense<0.000000e+00> : vector<8x18xf32>
    %153 = tpu.matmul %151, %152, %cst_78 {dimension_numbers = #tpu.dot_dimension_numbers<[1], [0], [0], [1], [0, 0, 1, 1], [], []>} : vector<8x512xf32>, vector<512x18xf32>, vector<8x18xf32> -> vector<8x18xf32>
    %c0_79 = arith.constant 0 : index
    %c0_80 = arith.constant 0 : index
    %154 = vector.load %arg20[%c0_79, %c0_80] : memref<1x18xf32, #tpu.memory_space<vmem>>, vector<1x18xf32>
    %155 = vector.broadcast %154 : vector<1x18xf32> to vector<8x18xf32>
    %156 = arith.addf %153, %155 : vector<8x18xf32>
    %157 = vector.shape_cast %156 : vector<8x18xf32> to vector<8x1x18xf32>
    %c0_81 = arith.constant 0 : index
    %c0_82 = arith.constant 0 : index
    %158 = vector.load %arg22[%c0_81, %c0_82] : memref<18x18xf32, #tpu.memory_space<vmem>>, vector<18x18xf32>
    %159 = vector.shape_cast %158 : vector<18x18xf32> to vector<1x18x18xf32>
    %160 = vector.broadcast %157 : vector<8x1x18xf32> to vector<8x18x18xf32>
    %161 = vector.broadcast %159 : vector<1x18x18xf32> to vector<8x18x18xf32>
    %162 = arith.addf %160, %161 : vector<8x18x18xf32>
    %cst_83 = arith.constant dense<0xFF800000> : vector<8x18xf32>
    %163 = vector.multi_reduction <maximumf>, %162, %cst_83 [2] : vector<8x18x18xf32> to vector<8x18xf32>
    %164 = arith.subf %156, %163 : vector<8x18xf32>
    %165 = math.exp %164 : vector<8x18xf32>
    %c0_84 = arith.constant 0 : index
    %c0_85 = arith.constant 0 : index
    %166 = vector.load %arg21[%c0_84, %c0_85] : memref<18x18xf32, #tpu.memory_space<vmem>>, vector<18x18xf32>
    %cst_86 = arith.constant dense<0.000000e+00> : vector<8x18xf32>
    %167 = tpu.matmul %165, %166, %cst_86 {dimension_numbers = #tpu.dot_dimension_numbers<[1], [0], [0], [1], [0, 0, 1, 1], [], []>} : vector<8x18xf32>, vector<18x18xf32>, vector<8x18xf32> -> vector<8x18xf32>
    %168 = arith.divf %165, %167 : vector<8x18xf32>
    %c0_87 = arith.constant 0 : index
    %c0_88 = arith.constant 0 : index
    %169 = vector.load %arg23[%c0_87, %c0_88] : memref<256x256xf32, #tpu.memory_space<vmem>>, vector<256x256xf32>
    %cst_89 = arith.constant dense<0.000000e+00> : vector<8x256xf32>
    %170 = tpu.matmul %136, %169, %cst_89 {dimension_numbers = #tpu.dot_dimension_numbers<[1], [0], [0], [1], [0, 0, 1, 1], [], []>} : vector<8x256xf32>, vector<256x256xf32>, vector<8x256xf32> -> vector<8x256xf32>
    %c0_90 = arith.constant 0 : index
    %c0_91 = arith.constant 0 : index
    %171 = vector.load %arg24[%c0_90, %c0_91] : memref<256x256xf32, #tpu.memory_space<vmem>>, vector<256x256xf32>
    %cst_92 = arith.constant dense<0.000000e+00> : vector<8x256xf32>
    %172 = tpu.matmul %137, %171, %cst_92 {dimension_numbers = #tpu.dot_dimension_numbers<[1], [0], [0], [1], [0, 0, 1, 1], [], []>} : vector<8x256xf32>, vector<256x256xf32>, vector<8x256xf32> -> vector<8x256xf32>
    %173 = arith.addf %170, %172 : vector<8x256xf32>
    %c0_93 = arith.constant 0 : index
    %c0_94 = arith.constant 0 : index
    %174 = vector.load %arg25[%c0_93, %c0_94] : memref<1x256xf32, #tpu.memory_space<vmem>>, vector<1x256xf32>
    %175 = vector.broadcast %174 : vector<1x256xf32> to vector<8x256xf32>
    %176 = arith.addf %173, %175 : vector<8x256xf32>
    %c0_95 = arith.constant 0 : index
    %c0_96 = arith.constant 0 : index
    %177 = vector.load %arg26[%c0_95, %c0_96] : memref<1x256xf32, #tpu.memory_space<vmem>>, vector<1x256xf32>
    %c0_97 = arith.constant 0 : index
    %c0_98 = arith.constant 0 : index
    %178 = vector.load %arg27[%c0_97, %c0_98] : memref<1x256xf32, #tpu.memory_space<vmem>>, vector<1x256xf32>
    %cst_99 = arith.constant dense<0.000000e+00> : vector<8xf32>
    %179 = vector.multi_reduction <add>, %176, %cst_99 [1] : vector<8x256xf32> to vector<8xf32>
    %180 = vector.shape_cast %179 : vector<8xf32> to vector<8x1xf32>
    %cst_100 = arith.constant 2.560000e+02 : f32
    %181 = vector.broadcast %cst_100 : f32 to vector<8x1xf32>
    %182 = arith.divf %180, %181 : vector<8x1xf32>
    %183 = vector.broadcast %182 : vector<8x1xf32> to vector<8x256xf32>
    %184 = arith.subf %176, %183 : vector<8x256xf32>
    %185 = arith.mulf %184, %184 : vector<8x256xf32>
    %cst_101 = arith.constant dense<0.000000e+00> : vector<8xf32>
    %186 = vector.multi_reduction <add>, %185, %cst_101 [1] : vector<8x256xf32> to vector<8xf32>
    %187 = vector.shape_cast %186 : vector<8xf32> to vector<8x1xf32>
    %cst_102 = arith.constant 2.560000e+02 : f32
    %188 = vector.broadcast %cst_102 : f32 to vector<8x1xf32>
    %189 = arith.divf %187, %188 : vector<8x1xf32>
    %190 = vector.broadcast %182 : vector<8x1xf32> to vector<8x256xf32>
    %191 = arith.subf %176, %190 : vector<8x256xf32>
    %cst_103 = arith.constant 9.99999974E-6 : f32
    %192 = vector.broadcast %cst_103 : f32 to vector<8x1xf32>
    %193 = arith.addf %189, %192 : vector<8x1xf32>
    %194 = math.rsqrt %193 : vector<8x1xf32>
    %195 = vector.broadcast %194 : vector<8x1xf32> to vector<8x256xf32>
    %196 = arith.mulf %191, %195 : vector<8x256xf32>
    %197 = vector.broadcast %177 : vector<1x256xf32> to vector<8x256xf32>
    %198 = arith.mulf %196, %197 : vector<8x256xf32>
    %199 = vector.broadcast %178 : vector<1x256xf32> to vector<8x256xf32>
    %200 = arith.addf %198, %199 : vector<8x256xf32>
    %cst_104 = arith.constant 5.000000e-01 : f32
    %201 = vector.broadcast %cst_104 : f32 to vector<8x256xf32>
    %202 = arith.mulf %201, %200 : vector<8x256xf32>
    %cst_105 = arith.constant 0.707106769 : f32
    %203 = vector.broadcast %cst_105 : f32 to vector<8x256xf32>
    %204 = arith.mulf %200, %203 : vector<8x256xf32>
    %205 = math.erf %204 : vector<8x256xf32>
    %cst_106 = arith.constant 1.000000e+00 : f32
    %206 = vector.broadcast %cst_106 : f32 to vector<8x256xf32>
    %207 = arith.addf %206, %205 : vector<8x256xf32>
    %208 = arith.mulf %202, %207 : vector<8x256xf32>
    %c0_107 = arith.constant 0 : index
    %c0_108 = arith.constant 0 : index
    %209 = vector.load %arg28[%c0_107, %c0_108] : memref<256x128xf32, #tpu.memory_space<vmem>>, vector<256x128xf32>
    %cst_109 = arith.constant dense<0.000000e+00> : vector<8x128xf32>
    %210 = tpu.matmul %208, %209, %cst_109 {dimension_numbers = #tpu.dot_dimension_numbers<[1], [0], [0], [1], [0, 0, 1, 1], [], []>} : vector<8x256xf32>, vector<256x128xf32>, vector<8x128xf32> -> vector<8x128xf32>
    %c0_110 = arith.constant 0 : index
    %c0_111 = arith.constant 0 : index
    %211 = vector.load %arg29[%c0_110, %c0_111] : memref<1x128xf32, #tpu.memory_space<vmem>>, vector<1x128xf32>
    %212 = vector.broadcast %211 : vector<1x128xf32> to vector<8x128xf32>
    %213 = arith.addf %210, %212 : vector<8x128xf32>
    %cst_112 = arith.constant 5.000000e-01 : f32
    %214 = vector.broadcast %cst_112 : f32 to vector<8x128xf32>
    %215 = arith.mulf %214, %213 : vector<8x128xf32>
    %cst_113 = arith.constant 0.707106769 : f32
    %216 = vector.broadcast %cst_113 : f32 to vector<8x128xf32>
    %217 = arith.mulf %213, %216 : vector<8x128xf32>
    %218 = math.erf %217 : vector<8x128xf32>
    %cst_114 = arith.constant 1.000000e+00 : f32
    %219 = vector.broadcast %cst_114 : f32 to vector<8x128xf32>
    %220 = arith.addf %219, %218 : vector<8x128xf32>
    %221 = arith.mulf %215, %220 : vector<8x128xf32>
    %c0_115 = arith.constant 0 : index
    %c0_116 = arith.constant 0 : index
    %222 = vector.load %arg30[%c0_115, %c0_116] : memref<128x8xf32, #tpu.memory_space<vmem>>, vector<128x8xf32>
    %cst_117 = arith.constant dense<0.000000e+00> : vector<8x8xf32>
    %223 = tpu.matmul %221, %222, %cst_117 {dimension_numbers = #tpu.dot_dimension_numbers<[1], [0], [0], [1], [0, 0, 1, 1], [], []>} : vector<8x128xf32>, vector<128x8xf32>, vector<8x8xf32> -> vector<8x8xf32>
    %c0_118 = arith.constant 0 : index
    %c0_119 = arith.constant 0 : index
    %224 = vector.load %arg31[%c0_118, %c0_119] : memref<1x8xf32, #tpu.memory_space<vmem>>, vector<1x8xf32>
    %225 = vector.broadcast %224 : vector<1x8xf32> to vector<8x8xf32>
    %226 = arith.addf %223, %225 : vector<8x8xf32>
    %cst_120 = arith.constant dense<0xFF800000> : vector<8xf32>
    %227 = vector.multi_reduction <maximumf>, %226, %cst_120 [1] : vector<8x8xf32> to vector<8xf32>
    %228 = vector.shape_cast %227 : vector<8xf32> to vector<8x1xf32>
    %229 = vector.broadcast %228 : vector<8x1xf32> to vector<8x8xf32>
    %230 = arith.subf %226, %229 : vector<8x8xf32>
    %231 = math.exp %230 : vector<8x8xf32>
    %cst_121 = arith.constant dense<0.000000e+00> : vector<8xf32>
    %232 = vector.multi_reduction <add>, %231, %cst_121 [1] : vector<8x8xf32> to vector<8xf32>
    %233 = vector.shape_cast %232 : vector<8xf32> to vector<8x1xf32>
    %234 = vector.broadcast %233 : vector<8x1xf32> to vector<8x8xf32>
    %235 = arith.divf %231, %234 : vector<8x8xf32>
    %c0_122 = arith.constant 0 : index
    %c0_123 = arith.constant 0 : index
    %236 = vector.load %arg32[%c0_122, %c0_123] : memref<256x64xf32, #tpu.memory_space<vmem>>, vector<256x64xf32>
    %cst_124 = arith.constant dense<0.000000e+00> : vector<8x64xf32>
    %237 = tpu.matmul %136, %236, %cst_124 {dimension_numbers = #tpu.dot_dimension_numbers<[1], [0], [0], [1], [0, 0, 1, 1], [], []>} : vector<8x256xf32>, vector<256x64xf32>, vector<8x64xf32> -> vector<8x64xf32>
    %c0_125 = arith.constant 0 : index
    %c0_126 = arith.constant 0 : index
    %238 = vector.load %arg33[%c0_125, %c0_126] : memref<1x64xf32, #tpu.memory_space<vmem>>, vector<1x64xf32>
    %239 = vector.broadcast %238 : vector<1x64xf32> to vector<8x64xf32>
    %240 = arith.addf %237, %239 : vector<8x64xf32>
    %cst_127 = arith.constant 5.000000e-01 : f32
    %241 = vector.broadcast %cst_127 : f32 to vector<8x64xf32>
    %242 = arith.mulf %241, %240 : vector<8x64xf32>
    %cst_128 = arith.constant 0.707106769 : f32
    %243 = vector.broadcast %cst_128 : f32 to vector<8x64xf32>
    %244 = arith.mulf %240, %243 : vector<8x64xf32>
    %245 = math.erf %244 : vector<8x64xf32>
    %cst_129 = arith.constant 1.000000e+00 : f32
    %246 = vector.broadcast %cst_129 : f32 to vector<8x64xf32>
    %247 = arith.addf %246, %245 : vector<8x64xf32>
    %248 = arith.mulf %242, %247 : vector<8x64xf32>
    %c0_130 = arith.constant 0 : index
    %c0_131 = arith.constant 0 : index
    %249 = vector.load %arg34[%c0_130, %c0_131] : memref<64x1xf32, #tpu.memory_space<vmem>>, vector<64x1xf32>
    %cst_132 = arith.constant dense<0.000000e+00> : vector<8x1xf32>
    %250 = tpu.matmul %248, %249, %cst_132 {dimension_numbers = #tpu.dot_dimension_numbers<[1], [0], [0], [1], [0, 0, 1, 1], [], []>} : vector<8x64xf32>, vector<64x1xf32>, vector<8x1xf32> -> vector<8x1xf32>
    %c0_133 = arith.constant 0 : index
    %c0_134 = arith.constant 0 : index
    %251 = vector.load %arg35[%c0_133, %c0_134] : memref<1x1xf32, #tpu.memory_space<vmem>>, vector<1x1xf32>
    %252 = vector.broadcast %251 : vector<1x1xf32> to vector<8x1xf32>
    %253 = arith.addf %250, %252 : vector<8x1xf32>
    %254 = arith.negf %253 : vector<8x1xf32>
    %255 = math.exp %254 : vector<8x1xf32>
    %cst_135 = arith.constant 1.000000e+00 : f32
    %256 = vector.broadcast %cst_135 : f32 to vector<8x1xf32>
    %257 = arith.addf %256, %255 : vector<8x1xf32>
    %258 = arith.divf %256, %257 : vector<8x1xf32>
    %cst_136 = arith.constant 0.000000e+00 : f32
    %259 = vector.broadcast %cst_136 : f32 to vector<8x101xf32>
    %260 = tpu.concatenate %235, %168, %258, %259 in 1 : vector<8x8xf32>, vector<8x18xf32>, vector<8x1xf32>, vector<8x101xf32> -> vector<8x128xf32>
    %c0_137 = arith.constant 0 : index
    %c0_138 = arith.constant 0 : index
    %261 = vector.load %arg36[%c0_137, %c0_138] : memref<8x128xf32, #tpu.memory_space<vmem>>, vector<8x128xf32>
    tpu.vector_store %arg36[%c0_137, %c0_138], %260 {strides = array<i32>} : memref<8x128xf32, #tpu.memory_space<vmem>>, vector<8x128xf32>,
    return
  }
  func.func @transform_0(%arg0: i32) -> (i32, i32, i32) {
    %c0_i32 = arith.constant 0 : i32
    %c0_i32_0 = arith.constant 0 : i32
    %c0_i32_1 = arith.constant 0 : i32
    return %arg0, %c0_i32, %c0_i32_0 : i32, i32, i32
  }
  func.func @transform_1(%arg0: i32) -> (i32, i32) {
    %c0_i32 = arith.constant 0 : i32
    %c0_i32_0 = arith.constant 0 : i32
    %c0_i32_1 = arith.constant 0 : i32
    return %c0_i32, %c0_i32_0 : i32, i32
  }
  func.func @transform_2(%arg0: i32) -> (i32, i32) {
    %c0_i32 = arith.constant 0 : i32
    %c0_i32_0 = arith.constant 0 : i32
    %c0_i32_1 = arith.constant 0 : i32
    return %c0_i32, %c0_i32_0 : i32, i32
  }
  func.func @transform_3(%arg0: i32) -> (i32, i32) {
    %c0_i32 = arith.constant 0 : i32
    %c0_i32_0 = arith.constant 0 : i32
    %c0_i32_1 = arith.constant 0 : i32
    return %c0_i32, %c0_i32_0 : i32, i32
  }
  func.func @transform_4(%arg0: i32) -> (i32, i32) {
    %c0_i32 = arith.constant 0 : i32
    %c0_i32_0 = arith.constant 0 : i32
    %c0_i32_1 = arith.constant 0 : i32
    return %c0_i32, %c0_i32_0 : i32, i32
  }
  func.func @transform_5(%arg0: i32) -> (i32, i32) {
    %c0_i32 = arith.constant 0 : i32
    %c0_i32_0 = arith.constant 0 : i32
    %c0_i32_1 = arith.constant 0 : i32
    return %c0_i32, %c0_i32_0 : i32, i32
  }
  func.func @transform_6(%arg0: i32) -> (i32, i32) {
    %c0_i32 = arith.constant 0 : i32
    %c0_i32_0 = arith.constant 0 : i32
    %c0_i32_1 = arith.constant 0 : i32
    return %c0_i32, %c0_i32_0 : i32, i32
  }
  func.func @transform_7(%arg0: i32) -> (i32, i32) {
    %c0_i32 = arith.constant 0 : i32
    %c0_i32_0 = arith.constant 0 : i32
    %c0_i32_1 = arith.constant 0 : i32
    return %c0_i32, %c0_i32_0 : i32, i32
  }
  func.func @transform_8(%arg0: i32) -> (i32, i32) {
    %c0_i32 = arith.constant 0 : i32
    %c0_i32_0 = arith.constant 0 : i32
    %c0_i32_1 = arith.constant 0 : i32
    return %c0_i32, %c0_i32_0 : i32, i32
  }
  func.func @transform_9(%arg0: i32) -> (i32, i32) {
    %c0_i32 = arith.constant 0 : i32
    %c0_i32_0 = arith.constant 0 : i32
    %c0_i32_1 = arith.constant 0 : i32
    return %c0_i32, %c0_i32_0 : i32, i32
  }
  func.func @transform_10(%arg0: i32) -> (i32, i32) {
    %c0_i32 = arith.constant 0 : i32
    %c0_i32_0 = arith.constant 0 : i32
    %c0_i32_1 = arith.constant 0 : i32
    return %c0_i32, %c0_i32_0 : i32, i32
  }
  func.func @transform_11(%arg0: i32) -> (i32, i32) {
    %c0_i32 = arith.constant 0 : i32
    %c0_i32_0 = arith.constant 0 : i32
    %c0_i32_1 = arith.constant 0 : i32
    return %c0_i32, %c0_i32_0 : i32, i32
  }
  func.func @transform_12(%arg0: i32) -> (i32, i32) {
    %c0_i32 = arith.constant 0 : i32
    %c0_i32_0 = arith.constant 0 : i32
    %c0_i32_1 = arith.constant 0 : i32
    return %c0_i32, %c0_i32_0 : i32, i32
  }
  func.func @transform_13(%arg0: i32) -> (i32, i32) {
    %c0_i32 = arith.constant 0 : i32
    %c0_i32_0 = arith.constant 0 : i32
    %c0_i32_1 = arith.constant 0 : i32
    return %c0_i32, %c0_i32_0 : i32, i32
  }
  func.func @transform_14(%arg0: i32) -> (i32, i32) {
    %c0_i32 = arith.constant 0 : i32
    %c0_i32_0 = arith.constant 0 : i32
    %c0_i32_1 = arith.constant 0 : i32
    return %c0_i32, %c0_i32_0 : i32, i32
  }
  func.func @transform_15(%arg0: i32) -> (i32, i32) {
    %c0_i32 = arith.constant 0 : i32
    %c0_i32_0 = arith.constant 0 : i32
    %c0_i32_1 = arith.constant 0 : i32
    return %c0_i32, %c0_i32_0 : i32, i32
  }
  func.func @transform_16(%arg0: i32) -> (i32, i32) {
    %c0_i32 = arith.constant 0 : i32
    %c0_i32_0 = arith.constant 0 : i32
    %c0_i32_1 = arith.constant 0 : i32
    return %c0_i32, %c0_i32_0 : i32, i32
  }
  func.func @transform_17(%arg0: i32) -> (i32, i32) {
    %c0_i32 = arith.constant 0 : i32
    %c0_i32_0 = arith.constant 0 : i32
    %c0_i32_1 = arith.constant 0 : i32
    return %c0_i32, %c0_i32_0 : i32, i32
  }
  func.func @transform_18(%arg0: i32) -> (i32, i32) {
    %c0_i32 = arith.constant 0 : i32
    %c0_i32_0 = arith.constant 0 : i32
    %c0_i32_1 = arith.constant 0 : i32
    return %c0_i32, %c0_i32_0 : i32, i32
  }
  func.func @transform_19(%arg0: i32) -> (i32, i32) {
    %c0_i32 = arith.constant 0 : i32
    %c0_i32_0 = arith.constant 0 : i32
    %c0_i32_1 = arith.constant 0 : i32
    return %c0_i32, %c0_i32_0 : i32, i32
  }
  func.func @transform_20(%arg0: i32) -> (i32, i32) {
    %c0_i32 = arith.constant 0 : i32
    %c0_i32_0 = arith.constant 0 : i32
    %c0_i32_1 = arith.constant 0 : i32
    return %c0_i32, %c0_i32_0 : i32, i32
  }
  func.func @transform_21(%arg0: i32) -> (i32, i32) {
    %c0_i32 = arith.constant 0 : i32
    %c0_i32_0 = arith.constant 0 : i32
    %c0_i32_1 = arith.constant 0 : i32
    return %c0_i32, %c0_i32_0 : i32, i32
  }
  func.func @transform_22(%arg0: i32) -> (i32, i32) {
    %c0_i32 = arith.constant 0 : i32
    %c0_i32_0 = arith.constant 0 : i32
    %c0_i32_1 = arith.constant 0 : i32
    return %c0_i32, %c0_i32_0 : i32, i32
  }
  func.func @transform_23(%arg0: i32) -> (i32, i32) {
    %c0_i32 = arith.constant 0 : i32
    %c0_i32_0 = arith.constant 0 : i32
    %c0_i32_1 = arith.constant 0 : i32
    return %c0_i32, %c0_i32_0 : i32, i32
  }
  func.func @transform_24(%arg0: i32) -> (i32, i32) {
    %c0_i32 = arith.constant 0 : i32
    %c0_i32_0 = arith.constant 0 : i32
    %c0_i32_1 = arith.constant 0 : i32
    return %c0_i32, %c0_i32_0 : i32, i32
  }
  func.func @transform_25(%arg0: i32) -> (i32, i32) {
    %c0_i32 = arith.constant 0 : i32
    %c0_i32_0 = arith.constant 0 : i32
    %c0_i32_1 = arith.constant 0 : i32
    return %c0_i32, %c0_i32_0 : i32, i32
  }
  func.func @transform_26(%arg0: i32) -> (i32, i32) {
    %c0_i32 = arith.constant 0 : i32
    %c0_i32_0 = arith.constant 0 : i32
    %c0_i32_1 = arith.constant 0 : i32
    return %c0_i32, %c0_i32_0 : i32, i32
  }
  func.func @transform_27(%arg0: i32) -> (i32, i32) {
    %c0_i32 = arith.constant 0 : i32
    %c0_i32_0 = arith.constant 0 : i32
    %c0_i32_1 = arith.constant 0 : i32
    return %c0_i32, %c0_i32_0 : i32, i32
  }
  func.func @transform_28(%arg0: i32) -> (i32, i32) {
    %c0_i32 = arith.constant 0 : i32
    %c0_i32_0 = arith.constant 0 : i32
    %c0_i32_1 = arith.constant 0 : i32
    return %c0_i32, %c0_i32_0 : i32, i32
  }
  func.func @transform_29(%arg0: i32) -> (i32, i32) {
    %c0_i32 = arith.constant 0 : i32
    %c0_i32_0 = arith.constant 0 : i32
    %c0_i32_1 = arith.constant 0 : i32
    return %c0_i32, %c0_i32_0 : i32, i32
  }
  func.func @transform_30(%arg0: i32) -> (i32, i32) {
    %c0_i32 = arith.constant 0 : i32
    %c0_i32_0 = arith.constant 0 : i32
    %c0_i32_1 = arith.constant 0 : i32
    return %c0_i32, %c0_i32_0 : i32, i32
  }
  func.func @transform_31(%arg0: i32) -> (i32, i32) {
    %c0_i32 = arith.constant 0 : i32
    %c0_i32_0 = arith.constant 0 : i32
    %c0_i32_1 = arith.constant 0 : i32
    return %c0_i32, %c0_i32_0 : i32, i32
  }
  func.func @transform_32(%arg0: i32) -> (i32, i32) {
    %c0_i32 = arith.constant 0 : i32
    %c0_i32_0 = arith.constant 0 : i32
    %c0_i32_1 = arith.constant 0 : i32
    return %c0_i32, %c0_i32_0 : i32, i32
  }
  func.func @transform_33(%arg0: i32) -> (i32, i32) {
    %c0_i32 = arith.constant 0 : i32
    %c0_i32_0 = arith.constant 0 : i32
    %c0_i32_1 = arith.constant 0 : i32
    return %c0_i32, %c0_i32_0 : i32, i32
  }
  func.func @transform_34(%arg0: i32) -> (i32, i32) {
    %c0_i32 = arith.constant 0 : i32
    %c0_i32_0 = arith.constant 0 : i32
    %c0_i32_1 = arith.constant 0 : i32
    return %c0_i32, %c0_i32_0 : i32, i32
  }
  func.func @transform_35(%arg0: i32) -> (i32, i32) {
    %c0_i32 = arith.constant 0 : i32
    %c0_i32_0 = arith.constant 0 : i32
    return %arg0, %c0_i32 : i32, i32
  }
  func.func @transform_36(%arg0: i32) -> (i32, i32, i32) {
    %c0_i32 = arith.constant 0 : i32
    %c0_i32_0 = arith.constant 0 : i32
    %c0_i32_1 = arith.constant 0 : i32
    return %arg0, %c0_i32, %c0_i32_0 : i32, i32, i32
  }
  func.func @transform_37(%arg0: i32) -> (i32, i32) {
    %c0_i32 = arith.constant 0 : i32
    %c0_i32_0 = arith.constant 0 : i32
    return %arg0, %c0_i32 : i32, i32
  }
}

</mosaic_0001>

<llo_original>
// kernel: market_state_classifier_forward.1
$region0: #{market_state_classifier_forward.1}
  #allocation0 [shape = 'u32[]', space=smem, size = 0x4, offset = 0x4, fixed_abs, tag = 'smem constant byte address 0x4 - core index']
  #allocation1 [shape = 'u32[144,128]{1,0:T(1,128)}', space=vmem, size = 0x12000, scoped, tag = 'internal scratch']
  #allocation2 [shape = 'f32[1,1]{1,0:T(1,128)S(1)}', space=vmem, size = 0x200, scoped, tag = 'scoped memory for market_state_classifier_forward.1']
  %s0 = inlined_call_operand.smem [shape: u32[38], index: -1, kind: input, shape index: {}]
  %s1 = sld [smem:[%s0]]
  %s2 = scalar_lea.smem %s0, 1
  %s3 = sld [smem:[%s2]]
  %s4 = scalar_lea.smem %s0, 2
  %s5 = sld [smem:[%s4]]
  %s6 = scalar_lea.smem %s0, 3
  %s7 = sld [smem:[%s6]]
  %s8 = scalar_lea.smem %s0, 4
  %s9 = sld [smem:[%s8]]
  %s10 = scalar_lea.smem %s0, 5
  %s11 = sld [smem:[%s10]]
  %s12 = scalar_lea.smem %s0, 6
  %s13 = sld [smem:[%s12]]
  %s14 = scalar_lea.smem %s0, 7
  %s15 = sld [smem:[%s14]]
  %s16 = scalar_lea.smem %s0, 8
  %s17 = sld [smem:[%s16]]
  %s18 = scalar_lea.smem %s0, 9
  %s19 = sld [smem:[%s18]]
  %s20 = scalar_lea.smem %s0, 10
  %s21 = sld [smem:[%s20]]
  %s22 = scalar_lea.smem %s0, 11
  %s23 = sld [smem:[%s22]]
  %s24 = scalar_lea.smem %s0, 12
  %s25 = sld [smem:[%s24]]
  %s26 = scalar_lea.smem %s0, 13
  %s27 = sld [smem:[%s26]]
  %s28 = scalar_lea.smem %s0, 14
  %s29 = sld [smem:[%s28]]
  %s30 = scalar_lea.smem %s0, 15
  %s31 = sld [smem:[%s30]]
  %s32 = scalar_lea.smem %s0, 16
  %s33 = sld [smem:[%s32]]
  %s34 = scalar_lea.smem %s0, 17
  %s35 = sld [smem:[%s34]]
  %s36 = scalar_lea.smem %s0, 18
  %s37 = sld [smem:[%s36]]
  %s38 = scalar_lea.smem %s0, 19
  %s39 = sld [smem:[%s38]]
  %s40 = scalar_lea.smem %s0, 20
  %s41 = sld [smem:[%s40]]
  %s42 = scalar_lea.smem %s0, 21
  %s43 = sld [smem:[%s42]]
  %s44 = scalar_lea.smem %s0, 22
  %s45 = sld [smem:[%s44]]
  %s46 = scalar_lea.smem %s0, 23
  %s47 = sld [smem:[%s46]]
  %s48 = scalar_lea.smem %s0, 24
  %s49 = sld [smem:[%s48]]
  %s50 = scalar_lea.smem %s0, 25
  %s51 = sld [smem:[%s50]]
  %s52 = scalar_lea.smem %s0, 26
  %s53 = sld [smem:[%s52]]
  %s54 = scalar_lea.smem %s0, 27
  %s55 = sld [smem:[%s54]]
  %s56 = scalar_lea.smem %s0, 28
  %s57 = sld [smem:[%s56]]
  %s58 = scalar_lea.smem %s0, 29
  %s59 = sld [smem:[%s58]]
  %s60 = scalar_lea.smem %s0, 30
  %s61 = sld [smem:[%s60]]
  %s62 = scalar_lea.smem %s0, 31
  %s63 = sld [smem:[%s62]]
  %s64 = scalar_lea.smem %s0, 32
  %s65 = sld [smem:[%s64]]
  %s66 = scalar_lea.smem %s0, 33
  %s67 = sld [smem:[%s66]]
  %s68 = scalar_lea.smem %s0, 34
  %s69 = sld [smem:[%s68]]
  %s70 = scalar_lea.smem %s0, 35
  %s71 = sld [smem:[%s70]]
  %s72 = scalar_lea.smem %s0, 36
  %s73 = sld [smem:[%s72]]
  %s74 = scalar_lea.smem %s0, 37
  %s75 = sld [smem:[%s74]]
  %76 = xla_tuple %s71, %s73, %s75
  %s77 = sld [smem:[#allocation0]]
  $region189: #{market_state_classifier_forward.1} parent=0
    _
  %s79 = ssub.s32 1, %s77
  %s80 = scalar_select 0, %s79, %s77
  %v81 = vstv %s69
  %82 = vst [vmem:[#allocation2] sm:$0x1] %v81
  loop: start=0, step=1, limit=4
  $region2: #{market_state_classifier_forward.1} parent=0 // loop_pre_header
    _
  $region3: #{market_state_classifier_forward.1} parent=0 // loop_header
    %s84 = sphi 0, %s88
    %p85 = scmp.ge.s32.totalorder %s84, 4
    %s94 = sphi 0, %s96
    %s97 = sphi 0, %s94
    %s98 = sphi 0, %s97
    %s114 = sphi 0, %s98
    %s118 = sphi 0, %s118
    %s120 = sphi 0, %s118
    %s121 = sphi 0, %s120
    %s135 = sphi 0, %s121
    %s139 = sphi 0, %s139
    %s141 = sphi 0, %s139
    %s142 = sphi 0, %s141
    %s156 = sphi 0, %s142
    %s160 = sphi 0, %s160
    %s162 = sphi 0, %s160
    %s163 = sphi 0, %s162
    %s177 = sphi 0, %s163
    %s181 = sphi 0, %s181
    %s183 = sphi 0, %s181
    %s184 = sphi 0, %s183
    %s198 = sphi 0, %s184
    %s202 = sphi 0, %s202
    %s204 = sphi 0, %s202
    %s205 = sphi 0, %s204
    %s219 = sphi 0, %s205
    %s223 = sphi 0, %s223
    %s225 = sphi 0, %s223
    %s226 = sphi 0, %s225
    %s240 = sphi 0, %s226
    %s244 = sphi 0, %s244
    %s246 = sphi 0, %s244
    %s247 = sphi 0, %s246
    %s261 = sphi 0, %s247
    %s265 = sphi 0, %s265
    %s267 = sphi 0, %s265
    %s268 = sphi 0, %s267
    %s282 = sphi 0, %s268
    %s286 = sphi 0, %s286
    %s288 = sphi 0, %s286
    %s289 = sphi 0, %s288
    %s303 = sphi 0, %s289
    %s307 = sphi 0, %s307
    %s309 = sphi 0, %s307
    %s310 = sphi 0, %s309
    %s324 = sphi 0, %s310
    %s328 = sphi 0, %s328
    %s330 = sphi 0, %s328
    %s331 = sphi 0, %s330
    %s345 = sphi 0, %s331
    %s349 = sphi 0, %s349
    %s351 = sphi 0, %s349
    %s352 = sphi 0, %s351
    %s366 = sphi 0, %s352
    %s370 = sphi 0, %s370
    %s372 = sphi 0, %s370
    %s373 = sphi 0, %s372
    %s387 = sphi 0, %s373
    %s391 = sphi 0, %s391
    %s393 = sphi 0, %s391
    %s394 = sphi 0, %s393
    %s408 = sphi 0, %s394
    %s412 = sphi 0, %s412
    %s414 = sphi 0, %s412
    %s415 = sphi 0, %s414
    %s429 = sphi 0, %s415
    %s433 = sphi 0, %s433
    %s435 = sphi 0, %s433
    %s436 = sphi 0, %s435
    %s450 = sphi 0, %s436
    %s454 = sphi 0, %s454
    %s456 = sphi 0, %s454
    %s457 = sphi 0, %s456
    %s471 = sphi 0, %s457
    %s475 = sphi 0, %s475
    %s477 = sphi 0, %s475
    %s478 = sphi 0, %s477
    %s492 = sphi 0, %s478
    %s496 = sphi 0, %s496
    %s498 = sphi 0, %s496
    %s499 = sphi 0, %s498
    %s513 = sphi 0, %s499
    %s517 = sphi 0, %s517
    %s519 = sphi 0, %s517
    %s520 = sphi 0, %s519
    %s534 = sphi 0, %s520
    %s538 = sphi 0, %s538
    %s540 = sphi 0, %s538
    %s541 = sphi 0, %s540
    %s555 = sphi 0, %s541
    %s559 = sphi 0, %s559
    %s561 = sphi 0, %s559
    %s562 = sphi 0, %s561
    %s576 = sphi 0, %s562
    %s580 = sphi 0, %s580
    %s582 = sphi 0, %s580
    %s583 = sphi 0, %s582
    %s597 = sphi 0, %s583
    %s601 = sphi 0, %s601
    %s603 = sphi 0, %s601
    %s604 = sphi 0, %s603
    %s618 = sphi 0, %s604
    %s622 = sphi 0, %s622
    %s624 = sphi 0, %s622
    %s625 = sphi 0, %s624
    %s639 = sphi 0, %s625
    %s643 = sphi 0, %s643
    %s645 = sphi 0, %s643
    %s646 = sphi 0, %s645
    %s660 = sphi 0, %s646
    %s664 = sphi 0, %s664
    %s666 = sphi 0, %s664
    %s667 = sphi 0, %s666
    %s681 = sphi 0, %s667
    %s685 = sphi 0, %s685
    %s687 = sphi 0, %s685
    %s688 = sphi 0, %s687
    %s702 = sphi 0, %s688
    %s706 = sphi 0, %s706
    %s708 = sphi 0, %s706
    %s709 = sphi 0, %s708
    %s723 = sphi 0, %s709
    %s727 = sphi 0, %s727
    %s729 = sphi 0, %s727
    %s730 = sphi 0, %s729
    %s744 = sphi 0, %s730
    %s748 = sphi 0, %s748
    %s750 = sphi 0, %s748
    %s751 = sphi 0, %s750
    %s765 = sphi 0, %s751
    %s769 = sphi 0, %s769
    %s771 = sphi 0, %s769
    %s772 = sphi 0, %s771
    %s786 = sphi 0, %s772
    %s790 = sphi 0, %s790
    %s792 = sphi 0, %s790
    %s793 = sphi 0, %s792
    %s807 = sphi 0, %s793
    %s811 = sphi 0, %s811
    %s813 = sphi 0, %s811
    %s814 = sphi 0, %s813
    %s828 = sphi 0, %s814
    %s834 = sphi 0, %s836
    %s837 = sphi 0, %s834
    %s838 = sphi 0, %s837
    %s854 = sphi 0, %s838
    %s860 = sphi 0, %s862
    %s863 = sphi 0, %s860
    %s864 = sphi 0, %s863
    %s880 = sphi 0, %s864
    %s886 = sphi 0, %s888
    %s889 = sphi 0, %s886
    %s890 = sphi 0, %s889
    %s906 = sphi 0, %s890
  $region4: #{market_state_classifier_forward.1} parent=0 // loop_header_branch
    %87 = sbr.rel (%p85) target = $region8
  $region5: #{market_state_classifier_forward.1} parent=0 // loop_body
    %s89 = ssub.s32 %s84, 1
    %s90 = ssub.s32 %s84, 2
    %s91 = sadd.s32 %s84, 1
    %s92 = ssub.s32 %s84, %s91
    %p93 = scmp.eq.s32.totalorder %s92, 0
    %s95 = sadd.s32 %s94, 1
    %s96 = scalar_select %p93, %s94, %s95
    %p99 = pneg %p93
    %p100 = scmp.eq.s32.totalorder %s84, 1
    %p101 = por %p99, %p100
    %p102 = scmp.ne.s32.totalorder %s94, %s97
    %p103 = scmp.eq.s32.totalorder %s84, 0
    %p104 = por %p102, %p103
    %p105 = scmp.ne.s32.totalorder %s94, %s97
    %p106 = scmp.eq.s32.totalorder %s89, 1
    %p107 = por %p105, %p106
    %p108 = scmp.ne.s32.totalorder %s97, %s98
    %p109 = scmp.eq.s32.totalorder %s89, 0
    %p110 = por %p108, %p109
    %p111 = scmp.ne.s32.totalorder %s97, %s98
    %p112 = scmp.eq.s32.totalorder %s90, 1
    %p113 = por %p111, %p112
    %p115 = scmp.ne.s32.totalorder %s98, %s114
    %p116 = scmp.eq.s32.totalorder %s90, 0
    %p117 = por %p115, %p116
    %s119 = sadd.s32 %s118, 1
    %p122 = scmp.eq.s32.totalorder %s84, 1
    %p123 = scmp.ne.s32.totalorder %s118, %s120
    %p124 = scmp.eq.s32.totalorder %s84, 0
    %p125 = por %p123, %p124
    %p126 = scmp.ne.s32.totalorder %s118, %s120
    %p127 = scmp.eq.s32.totalorder %s89, 1
    %p128 = por %p126, %p127
    %p129 = scmp.ne.s32.totalorder %s120, %s121
    %p130 = scmp.eq.s32.totalorder %s89, 0
    %p131 = por %p129, %p130
    %p132 = scmp.ne.s32.totalorder %s120, %s121
    %p133 = scmp.eq.s32.totalorder %s90, 1
    %p134 = por %p132, %p133
    %p136 = scmp.ne.s32.totalorder %s121, %s135
    %p137 = scmp.eq.s32.totalorder %s90, 0
    %p138 = por %p136, %p137
    %s140 = sadd.s32 %s139, 1
    %p143 = scmp.eq.s32.totalorder %s84, 1
    %p144 = scmp.ne.s32.totalorder %s139, %s141
    %p145 = scmp.eq.s32.totalorder %s84, 0
    %p146 = por %p144, %p145
    %p147 = scmp.ne.s32.totalorder %s139, %s141
    %p148 = scmp.eq.s32.totalorder %s89, 1
    %p149 = por %p147, %p148
    %p150 = scmp.ne.s32.totalorder %s141, %s142
    %p151 = scmp.eq.s32.totalorder %s89, 0
    %p152 = por %p150, %p151
    %p153 = scmp.ne.s32.totalorder %s141, %s142
    %p154 = scmp.eq.s32.totalorder %s90, 1
    %p155 = por %p153, %p154
    %p157 = scmp.ne.s32.totalorder %s142, %s156
    %p158 = scmp.eq.s32.totalorder %s90, 0
    %p159 = por %p157, %p158
    %s161 = sadd.s32 %s160, 1
    %p164 = scmp.eq.s32.totalorder %s84, 1
    %p165 = scmp.ne.s32.totalorder %s160, %s162
    %p166 = scmp.eq.s32.totalorder %s84, 0
    %p167 = por %p165, %p166
    %p168 = scmp.ne.s32.totalorder %s160, %s162
    %p169 = scmp.eq.s32.totalorder %s89, 1
    %p170 = por %p168, %p169
    %p171 = scmp.ne.s32.totalorder %s162, %s163
    %p172 = scmp.eq.s32.totalorder %s89, 0
    %p173 = por %p171, %p172
    %p174 = scmp.ne.s32.totalorder %s162, %s163
    %p175 = scmp.eq.s32.totalorder %s90, 1
    %p176 = por %p174, %p175
    %p178 = scmp.ne.s32.totalorder %s163, %s177
    %p179 = scmp.eq.s32.totalorder %s90, 0
    %p180 = por %p178, %p179
    %s182 = sadd.s32 %s181, 1
    %p185 = scmp.eq.s32.totalorder %s84, 1
    %p186 = scmp.ne.s32.totalorder %s181, %s183
    %p187 = scmp.eq.s32.totalorder %s84, 0
    %p188 = por %p186, %p187
    %p189 = scmp.ne.s32.totalorder %s181, %s183
    %p190 = scmp.eq.s32.totalorder %s89, 1
    %p191 = por %p189, %p190
    %p192 = scmp.ne.s32.totalorder %s183, %s184
    %p193 = scmp.eq.s32.totalorder %s89, 0
    %p194 = por %p192, %p193
    %p195 = scmp.ne.s32.totalorder %s183, %s184
    %p196 = scmp.eq.s32.totalorder %s90, 1
    %p197 = por %p195, %p196
    %p199 = scmp.ne.s32.totalorder %s184, %s198
    %p200 = scmp.eq.s32.totalorder %s90, 0
    %p201 = por %p199, %p200
    %s203 = sadd.s32 %s202, 1
    %p206 = scmp.eq.s32.totalorder %s84, 1
    %p207 = scmp.ne.s32.totalorder %s202, %s204
    %p208 = scmp.eq.s32.totalorder %s84, 0
    %p209 = por %p207, %p208
    %p210 = scmp.ne.s32.totalorder %s202, %s204
    %p211 = scmp.eq.s32.totalorder %s89, 1
    %p212 = por %p210, %p211
    %p213 = scmp.ne.s32.totalorder %s204, %s205
    %p214 = scmp.eq.s32.totalorder %s89, 0
    %p215 = por %p213, %p214
    %p216 = scmp.ne.s32.totalorder %s204, %s205
    %p217 = scmp.eq.s32.totalorder %s90, 1
    %p218 = por %p216, %p217
    %p220 = scmp.ne.s32.totalorder %s205, %s219
    %p221 = scmp.eq.s32.totalorder %s90, 0
    %p222 = por %p220, %p221
    %s224 = sadd.s32 %s223, 1
    %p227 = scmp.eq.s32.totalorder %s84, 1
    %p228 = scmp.ne.s32.totalorder %s223, %s225
    %p229 = scmp.eq.s32.totalorder %s84, 0
    %p230 = por %p228, %p229
    %p231 = scmp.ne.s32.totalorder %s223, %s225
    %p232 = scmp.eq.s32.totalorder %s89, 1
    %p233 = por %p231, %p232
    %p234 = scmp.ne.s32.totalorder %s225, %s226
    %p235 = scmp.eq.s32.totalorder %s89, 0
    %p236 = por %p234, %p235
    %p237 = scmp.ne.s32.totalorder %s225, %s226
    %p238 = scmp.eq.s32.totalorder %s90, 1
    %p239 = por %p237, %p238
    %p241 = scmp.ne.s32.totalorder %s226, %s240
    %p242 = scmp.eq.s32.totalorder %s90, 0
    %p243 = por %p241, %p242
    %s245 = sadd.s32 %s244, 1
    %p248 = scmp.eq.s32.totalorder %s84, 1
    %p249 = scmp.ne.s32.totalorder %s244, %s246
    %p250 = scmp.eq.s32.totalorder %s84, 0
    %p251 = por %p249, %p250
    %p252 = scmp.ne.s32.totalorder %s244, %s246
    %p253 = scmp.eq.s32.totalorder %s89, 1
    %p254 = por %p252, %p253
    %p255 = scmp.ne.s32.totalorder %s246, %s247
    %p256 = scmp.eq.s32.totalorder %s89, 0
    %p257 = por %p255, %p256
    %p258 = scmp.ne.s32.totalorder %s246, %s247
    %p259 = scmp.eq.s32.totalorder %s90, 1
    %p260 = por %p258, %p259
    %p262 = scmp.ne.s32.totalorder %s247, %s261
    %p263 = scmp.eq.s32.totalorder %s90, 0
    %p264 = por %p262, %p263
    %s266 = sadd.s32 %s265, 1
    %p269 = scmp.eq.s32.totalorder %s84, 1
    %p270 = scmp.ne.s32.totalorder %s265, %s267
    %p271 = scmp.eq.s32.totalorder %s84, 0
    %p272 = por %p270, %p271
    %p273 = scmp.ne.s32.totalorder %s265, %s267
    %p274 = scmp.eq.s32.totalorder %s89, 1
    %p275 = por %p273, %p274
    %p276 = scmp.ne.s32.totalorder %s267, %s268
    %p277 = scmp.eq.s32.totalorder %s89, 0
    %p278 = por %p276, %p277
    %p279 = scmp.ne.s32.totalorder %s267, %s268
    %p280 = scmp.eq.s32.totalorder %s90, 1
    %p281 = por %p279, %p280
    %p283 = scmp.ne.s32.totalorder %s268, %s282
    %p284 = scmp.eq.s32.totalorder %s90, 0
    %p285 = por %p283, %p284
    %s287 = sadd.s32 %s286, 1
    %p290 = scmp.eq.s32.totalorder %s84, 1
    %p291 = scmp.ne.s32.totalorder %s286, %s288
    %p292 = scmp.eq.s32.totalorder %s84, 0
    %p293 = por %p291, %p292
    %p294 = scmp.ne.s32.totalorder %s286, %s288
    %p295 = scmp.eq.s32.totalorder %s89, 1
    %p296 = por %p294, %p295
    %p297 = scmp.ne.s32.totalorder %s288, %s289
    %p298 = scmp.eq.s32.totalorder %s89, 0
    %p299 = por %p297, %p298
    %p300 = scmp.ne.s32.totalorder %s288, %s289
    %p301 = scmp.eq.s32.totalorder %s90, 1
    %p302 = por %p300, %p301
    %p304 = scmp.ne.s32.totalorder %s289, %s303
    %p305 = scmp.eq.s32.totalorder %s90, 0
    %p306 = por %p304, %p305
    %s308 = sadd.s32 %s307, 1
    %p311 = scmp.eq.s32.totalorder %s84, 1
    %p312 = scmp.ne.s32.totalorder %s307, %s309
    %p313 = scmp.eq.s32.totalorder %s84, 0
    %p314 = por %p312, %p313
    %p315 = scmp.ne.s32.totalorder %s307, %s309
    %p316 = scmp.eq.s32.totalorder %s89, 1
    %p317 = por %p315, %p316
    %p318 = scmp.ne.s32.totalorder %s309, %s310
    %p319 = scmp.eq.s32.totalorder %s89, 0
    %p320 = por %p318, %p319
    %p321 = scmp.ne.s32.totalorder %s309, %s310
    %p322 = scmp.eq.s32.totalorder %s90, 1
    %p323 = por %p321, %p322
    %p325 = scmp.ne.s32.totalorder %s310, %s324
    %p326 = scmp.eq.s32.totalorder %s90, 0
    %p327 = por %p325, %p326
    %s329 = sadd.s32 %s328, 1
    %p332 = scmp.eq.s32.totalorder %s84, 1
    %p333 = scmp.ne.s32.totalorder %s328, %s330
    %p334 = scmp.eq.s32.totalorder %s84, 0
    %p335 = por %p333, %p334
    %p336 = scmp.ne.s32.totalorder %s328, %s330
    %p337 = scmp.eq.s32.totalorder %s89, 1
    %p338 = por %p336, %p337
    %p339 = scmp.ne.s32.totalorder %s330, %s331
    %p340 = scmp.eq.s32.totalorder %s89, 0
    %p341 = por %p339, %p340
    %p342 = scmp.ne.s32.totalorder %s330, %s331
    %p343 = scmp.eq.s32.totalorder %s90, 1
    %p344 = por %p342, %p343
    %p346 = scmp.ne.s32.totalorder %s331, %s345
    %p347 = scmp.eq.s32.totalorder %s90, 0
    %p348 = por %p346, %p347
    %s350 = sadd.s32 %s349, 1
    %p353 = scmp.eq.s32.totalorder %s84, 1
    %p354 = scmp.ne.s32.totalorder %s349, %s351
    %p355 = scmp.eq.s32.totalorder %s84, 0
    %p356 = por %p354, %p355
    %p357 = scmp.ne.s32.totalorder %s349, %s351
    %p358 = scmp.eq.s32.totalorder %s89, 1
    %p359 = por %p357, %p358
    %p360 = scmp.ne.s32.totalorder %s351, %s352
    %p361 = scmp.eq.s32.totalorder %s89, 0
    %p362 = por %p360, %p361
    %p363 = scmp.ne.s32.totalorder %s351, %s352
    %p364 = scmp.eq.s32.totalorder %s90, 1
    %p365 = por %p363, %p364
    %p367 = scmp.ne.s32.totalorder %s352, %s366
    %p368 = scmp.eq.s32.totalorder %s90, 0
    %p369 = por %p367, %p368
    %s371 = sadd.s32 %s370, 1
    %p374 = scmp.eq.s32.totalorder %s84, 1
    %p375 = scmp.ne.s32.totalorder %s370, %s372
    %p376 = scmp.eq.s32.totalorder %s84, 0
    %p377 = por %p375, %p376
    %p378 = scmp.ne.s32.totalorder %s370, %s372
    %p379 = scmp.eq.s32.totalorder %s89, 1
    %p380 = por %p378, %p379
    %p381 = scmp.ne.s32.totalorder %s372, %s373
    %p382 = scmp.eq.s32.totalorder %s89, 0
    %p383 = por %p381, %p382
    %p384 = scmp.ne.s32.totalorder %s372, %s373
    %p385 = scmp.eq.s32.totalorder %s90, 1
    %p386 = por %p384, %p385
    %p388 = scmp.ne.s32.totalorder %s373, %s387
    %p389 = scmp.eq.s32.totalorder %s90, 0
    %p390 = por %p388, %p389
    %s392 = sadd.s32 %s391, 1
    %p395 = scmp.eq.s32.totalorder %s84, 1
    %p396 = scmp.ne.s32.totalorder %s391, %s393
    %p397 = scmp.eq.s32.totalorder %s84, 0
    %p398 = por %p396, %p397
    %p399 = scmp.ne.s32.totalorder %s391, %s393
    %p400 = scmp.eq.s32.totalorder %s89, 1
    %p401 = por %p399, %p400
    %p402 = scmp.ne.s32.totalorder %s393, %s394
    %p403 = scmp.eq.s32.totalorder %s89, 0
    %p404 = por %p402, %p403
    %p405 = scmp.ne.s32.totalorder %s393, %s394
    %p406 = scmp.eq.s32.totalorder %s90, 1
    %p407 = por %p405, %p406
    %p409 = scmp.ne.s32.totalorder %s394, %s408
    %p410 = scmp.eq.s32.totalorder %s90, 0
    %p411 = por %p409, %p410
    %s413 = sadd.s32 %s412, 1
    %p416 = scmp.eq.s32.totalorder %s84, 1
    %p417 = scmp.ne.s32.totalorder %s412, %s414
    %p418 = scmp.eq.s32.totalorder %s84, 0
    %p419 = por %p417, %p418
    %p420 = scmp.ne.s32.totalorder %s412, %s414
    %p421 = scmp.eq.s32.totalorder %s89, 1
    %p422 = por %p420, %p421
    %p423 = scmp.ne.s32.totalorder %s414, %s415
    %p424 = scmp.eq.s32.totalorder %s89, 0
    %p425 = por %p423, %p424
    %p426 = scmp.ne.s32.totalorder %s414, %s415
    %p427 = scmp.eq.s32.totalorder %s90, 1
    %p428 = por %p426, %p427
    %p430 = scmp.ne.s32.totalorder %s415, %s429
    %p431 = scmp.eq.s32.totalorder %s90, 0
    %p432 = por %p430, %p431
    %s434 = sadd.s32 %s433, 1
    %p437 = scmp.eq.s32.totalorder %s84, 1
    %p438 = scmp.ne.s32.totalorder %s433, %s435
    %p439 = scmp.eq.s32.totalorder %s84, 0
    %p440 = por %p438, %p439
    %p441 = scmp.ne.s32.totalorder %s433, %s435
    %p442 = scmp.eq.s32.totalorder %s89, 1
    %p443 = por %p441, %p442
    %p444 = scmp.ne.s32.totalorder %s435, %s436
    %p445 = scmp.eq.s32.totalorder %s89, 0
    %p446 = por %p444, %p445
    %p447 = scmp.ne.s32.totalorder %s435, %s436
    %p448 = scmp.eq.s32.totalorder %s90, 1
    %p449 = por %p447, %p448
    %p451 = scmp.ne.s32.totalorder %s436, %s450
    %p452 = scmp.eq.s32.totalorder %s90, 0
    %p453 = por %p451, %p452
    %s455 = sadd.s32 %s454, 1
    %p458 = scmp.eq.s32.totalorder %s84, 1
    %p459 = scmp.ne.s32.totalorder %s454, %s456
    %p460 = scmp.eq.s32.totalorder %s84, 0
    %p461 = por %p459, %p460
    %p462 = scmp.ne.s32.totalorder %s454, %s456
    %p463 = scmp.eq.s32.totalorder %s89, 1
    %p464 = por %p462, %p463
    %p465 = scmp.ne.s32.totalorder %s456, %s457
    %p466 = scmp.eq.s32.totalorder %s89, 0
    %p467 = por %p465, %p466
    %p468 = scmp.ne.s32.totalorder %s456, %s457
    %p469 = scmp.eq.s32.totalorder %s90, 1
    %p470 = por %p468, %p469
    %p472 = scmp.ne.s32.totalorder %s457, %s471
    %p473 = scmp.eq.s32.totalorder %s90, 0
    %p474 = por %p472, %p473
    %s476 = sadd.s32 %s475, 1
    %p479 = scmp.eq.s32.totalorder %s84, 1
    %p480 = scmp.ne.s32.totalorder %s475, %s477
    %p481 = scmp.eq.s32.totalorder %s84, 0
    %p482 = por %p480, %p481
    %p483 = scmp.ne.s32.totalorder %s475, %s477
    %p484 = scmp.eq.s32.totalorder %s89, 1
    %p485 = por %p483, %p484
    %p486 = scmp.ne.s32.totalorder %s477, %s478
    %p487 = scmp.eq.s32.totalorder %s89, 0
    %p488 = por %p486, %p487
    %p489 = scmp.ne.s32.totalorder %s477, %s478
    %p490 = scmp.eq.s32.totalorder %s90, 1
    %p491 = por %p489, %p490
    %p493 = scmp.ne.s32.totalorder %s478, %s492
    %p494 = scmp.eq.s32.totalorder %s90, 0
    %p495 = por %p493, %p494
    %s497 = sadd.s32 %s496, 1
    %p500 = scmp.eq.s32.totalorder %s84, 1
    %p501 = scmp.ne.s32.totalorder %s496, %s498
    %p502 = scmp.eq.s32.totalorder %s84, 0
    %p503 = por %p501, %p502
    %p504 = scmp.ne.s32.totalorder %s496, %s498
    %p505 = scmp.eq.s32.totalorder %s89, 1
    %p506 = por %p504, %p505
    %p507 = scmp.ne.s32.totalorder %s498, %s499
    %p508 = scmp.eq.s32.totalorder %s89, 0
    %p509 = por %p507, %p508
    %p510 = scmp.ne.s32.totalorder %s498, %s499
    %p511 = scmp.eq.s32.totalorder %s90, 1
    %p512 = por %p510, %p511
    %p514 = scmp.ne.s32.totalorder %s499, %s513
    %p515 = scmp.eq.s32.totalorder %s90, 0
    %p516 = por %p514, %p515
    %s518 = sadd.s32 %s517, 1
    %p521 = scmp.eq.s32.totalorder %s84, 1
    %p522 = scmp.ne.s32.totalorder %s517, %s519
    %p523 = scmp.eq.s32.totalorder %s84, 0
    %p524 = por %p522, %p523
    %p525 = scmp.ne.s32.totalorder %s517, %s519
    %p526 = scmp.eq.s32.totalorder %s89, 1
    %p527 = por %p525, %p526
    %p528 = scmp.ne.s32.totalorder %s519, %s520
    %p529 = scmp.eq.s32.totalorder %s89, 0
    %p530 = por %p528, %p529
    %p531 = scmp.ne.s32.totalorder %s519, %s520
    %p532 = scmp.eq.s32.totalorder %s90, 1
    %p533 = por %p531, %p532
    %p535 = scmp.ne.s32.totalorder %s520, %s534
    %p536 = scmp.eq.s32.totalorder %s90, 0
    %p537 = por %p535, %p536
    %s539 = sadd.s32 %s538, 1
    %p542 = scmp.eq.s32.totalorder %s84, 1
    %p543 = scmp.ne.s32.totalorder %s538, %s540
    %p544 = scmp.eq.s32.totalorder %s84, 0
    %p545 = por %p543, %p544
    %p546 = scmp.ne.s32.totalorder %s538, %s540
    %p547 = scmp.eq.s32.totalorder %s89, 1
    %p548 = por %p546, %p547
    %p549 = scmp.ne.s32.totalorder %s540, %s541
    %p550 = scmp.eq.s32.totalorder %s89, 0
    %p551 = por %p549, %p550
    %p552 = scmp.ne.s32.totalorder %s540, %s541
    %p553 = scmp.eq.s32.totalorder %s90, 1
    %p554 = por %p552, %p553
    %p556 = scmp.ne.s32.totalorder %s541, %s555
    %p557 = scmp.eq.s32.totalorder %s90, 0
    %p558 = por %p556, %p557
    %s560 = sadd.s32 %s559, 1
    %p563 = scmp.eq.s32.totalorder %s84, 1
    %p564 = scmp.ne.s32.totalorder %s559, %s561
    %p565 = scmp.eq.s32.totalorder %s84, 0
    %p566 = por %p564, %p565
    %p567 = scmp.ne.s32.totalorder %s559, %s561
    %p568 = scmp.eq.s32.totalorder %s89, 1
    %p569 = por %p567, %p568
    %p570 = scmp.ne.s32.totalorder %s561, %s562
    %p571 = scmp.eq.s32.totalorder %s89, 0
    %p572 = por %p570, %p571
    %p573 = scmp.ne.s32.totalorder %s561, %s562
    %p574 = scmp.eq.s32.totalorder %s90, 1
    %p575 = por %p573, %p574
    %p577 = scmp.ne.s32.totalorder %s562, %s576
    %p578 = scmp.eq.s32.totalorder %s90, 0
    %p579 = por %p577, %p578
    %s581 = sadd.s32 %s580, 1
    %p584 = scmp.eq.s32.totalorder %s84, 1
    %p585 = scmp.ne.s32.totalorder %s580, %s582
    %p586 = scmp.eq.s32.totalorder %s84, 0
    %p587 = por %p585, %p586
    %p588 = scmp.ne.s32.totalorder %s580, %s582
    %p589 = scmp.eq.s32.totalorder %s89, 1
    %p590 = por %p588, %p589
    %p591 = scmp.ne.s32.totalorder %s582, %s583
    %p592 = scmp.eq.s32.totalorder %s89, 0
    %p593 = por %p591, %p592
    %p594 = scmp.ne.s32.totalorder %s582, %s583
    %p595 = scmp.eq.s32.totalorder %s90, 1
    %p596 = por %p594, %p595
    %p598 = scmp.ne.s32.totalorder %s583, %s597
    %p599 = scmp.eq.s32.totalorder %s90, 0
    %p600 = por %p598, %p599
    %s602 = sadd.s32 %s601, 1
    %p605 = scmp.eq.s32.totalorder %s84, 1
    %p606 = scmp.ne.s32.totalorder %s601, %s603
    %p607 = scmp.eq.s32.totalorder %s84, 0
    %p608 = por %p606, %p607
    %p609 = scmp.ne.s32.totalorder %s601, %s603
    %p610 = scmp.eq.s32.totalorder %s89, 1
    %p611 = por %p609, %p610
    %p612 = scmp.ne.s32.totalorder %s603, %s604
    %p613 = scmp.eq.s32.totalorder %s89, 0
    %p614 = por %p612, %p613
    %p615 = scmp.ne.s32.totalorder %s603, %s604
    %p616 = scmp.eq.s32.totalorder %s90, 1
    %p617 = por %p615, %p616
    %p619 = scmp.ne.s32.totalorder %s604, %s618
    %p620 = scmp.eq.s32.totalorder %s90, 0
    %p621 = por %p619, %p620
    %s623 = sadd.s32 %s622, 1
    %p626 = scmp.eq.s32.totalorder %s84, 1
    %p627 = scmp.ne.s32.totalorder %s622, %s624
    %p628 = scmp.eq.s32.totalorder %s84, 0
    %p629 = por %p627, %p628
    %p630 = scmp.ne.s32.totalorder %s622, %s624
    %p631 = scmp.eq.s32.totalorder %s89, 1
    %p632 = por %p630, %p631
    %p633 = scmp.ne.s32.totalorder %s624, %s625
    %p634 = scmp.eq.s32.totalorder %s89, 0
    %p635 = por %p633, %p634
    %p636 = scmp.ne.s32.totalorder %s624, %s625
    %p637 = scmp.eq.s32.totalorder %s90, 1
    %p638 = por %p636, %p637
    %p640 = scmp.ne.s32.totalorder %s625, %s639
    %p641 = scmp.eq.s32.totalorder %s90, 0
    %p642 = por %p640, %p641
    %s644 = sadd.s32 %s643, 1
    %p647 = scmp.eq.s32.totalorder %s84, 1
    %p648 = scmp.ne.s32.totalorder %s643, %s645
    %p649 = scmp.eq.s32.totalorder %s84, 0
    %p650 = por %p648, %p649
    %p651 = scmp.ne.s32.totalorder %s643, %s645
    %p652 = scmp.eq.s32.totalorder %s89, 1
    %p653 = por %p651, %p652
    %p654 = scmp.ne.s32.totalorder %s645, %s646
    %p655 = scmp.eq.s32.totalorder %s89, 0
    %p656 = por %p654, %p655
    %p657 = scmp.ne.s32.totalorder %s645, %s646
    %p658 = scmp.eq.s32.totalorder %s90, 1
    %p659 = por %p657, %p658
    %p661 = scmp.ne.s32.totalorder %s646, %s660
    %p662 = scmp.eq.s32.totalorder %s90, 0
    %p663 = por %p661, %p662
    %s665 = sadd.s32 %s664, 1
    %p668 = scmp.eq.s32.totalorder %s84, 1
    %p669 = scmp.ne.s32.totalorder %s664, %s666
    %p670 = scmp.eq.s32.totalorder %s84, 0
    %p671 = por %p669, %p670
    %p672 = scmp.ne.s32.totalorder %s664, %s666
    %p673 = scmp.eq.s32.totalorder %s89, 1
    %p674 = por %p672, %p673
    %p675 = scmp.ne.s32.totalorder %s666, %s667
    %p676 = scmp.eq.s32.totalorder %s89, 0
    %p677 = por %p675, %p676
    %p678 = scmp.ne.s32.totalorder %s666, %s667
    %p679 = scmp.eq.s32.totalorder %s90, 1
    %p680 = por %p678, %p679
    %p682 = scmp.ne.s32.totalorder %s667, %s681
    %p683 = scmp.eq.s32.totalorder %s90, 0
    %p684 = por %p682, %p683
    %s686 = sadd.s32 %s685, 1
    %p689 = scmp.eq.s32.totalorder %s84, 1
    %p690 = scmp.ne.s32.totalorder %s685, %s687
    %p691 = scmp.eq.s32.totalorder %s84, 0
    %p692 = por %p690, %p691
    %p693 = scmp.ne.s32.totalorder %s685, %s687
    %p694 = scmp.eq.s32.totalorder %s89, 1
    %p695 = por %p693, %p694
    %p696 = scmp.ne.s32.totalorder %s687, %s688
    %p697 = scmp.eq.s32.totalorder %s89, 0
    %p698 = por %p696, %p697
    %p699 = scmp.ne.s32.totalorder %s687, %s688
    %p700 = scmp.eq.s32.totalorder %s90, 1
    %p701 = por %p699, %p700
    %p703 = scmp.ne.s32.totalorder %s688, %s702
    %p704 = scmp.eq.s32.totalorder %s90, 0
    %p705 = por %p703, %p704
    %s707 = sadd.s32 %s706, 1
    %p710 = scmp.eq.s32.totalorder %s84, 1
    %p711 = scmp.ne.s32.totalorder %s706, %s708
    %p712 = scmp.eq.s32.totalorder %s84, 0
    %p713 = por %p711, %p712
    %p714 = scmp.ne.s32.totalorder %s706, %s708
    %p715 = scmp.eq.s32.totalorder %s89, 1
    %p716 = por %p714, %p715
    %p717 = scmp.ne.s32.totalorder %s708, %s709
    %p718 = scmp.eq.s32.totalorder %s89, 0
    %p719 = por %p717, %p718
    %p720 = scmp.ne.s32.totalorder %s708, %s709
    %p721 = scmp.eq.s32.totalorder %s90, 1
    %p722 = por %p720, %p721
    %p724 = scmp.ne.s32.totalorder %s709, %s723
    %p725 = scmp.eq.s32.totalorder %s90, 0
    %p726 = por %p724, %p725
    %s728 = sadd.s32 %s727, 1
    %p731 = scmp.eq.s32.totalorder %s84, 1
    %p732 = scmp.ne.s32.totalorder %s727, %s729
    %p733 = scmp.eq.s32.totalorder %s84, 0
    %p734 = por %p732, %p733
    %p735 = scmp.ne.s32.totalorder %s727, %s729
    %p736 = scmp.eq.s32.totalorder %s89, 1
    %p737 = por %p735, %p736
    %p738 = scmp.ne.s32.totalorder %s729, %s730
    %p739 = scmp.eq.s32.totalorder %s89, 0
    %p740 = por %p738, %p739
    %p741 = scmp.ne.s32.totalorder %s729, %s730
    %p742 = scmp.eq.s32.totalorder %s90, 1
    %p743 = por %p741, %p742
    %p745 = scmp.ne.s32.totalorder %s730, %s744
    %p746 = scmp.eq.s32.totalorder %s90, 0
    %p747 = por %p745, %p746
    %s749 = sadd.s32 %s748, 1
    %p752 = scmp.eq.s32.totalorder %s84, 1
    %p753 = scmp.ne.s32.totalorder %s748, %s750
    %p754 = scmp.eq.s32.totalorder %s84, 0
    %p755 = por %p753, %p754
    %p756 = scmp.ne.s32.totalorder %s748, %s750
    %p757 = scmp.eq.s32.totalorder %s89, 1
    %p758 = por %p756, %p757
    %p759 = scmp.ne.s32.totalorder %s750, %s751
    %p760 = scmp.eq.s32.totalorder %s89, 0
    %p761 = por %p759, %p760
    %p762 = scmp.ne.s32.totalorder %s750, %s751
    %p763 = scmp.eq.s32.totalorder %s90, 1
    %p764 = por %p762, %p763
    %p766 = scmp.ne.s32.totalorder %s751, %s765
    %p767 = scmp.eq.s32.totalorder %s90, 0
    %p768 = por %p766, %p767
    %s770 = sadd.s32 %s769, 1
    %p773 = scmp.eq.s32.totalorder %s84, 1
    %p774 = scmp.ne.s32.totalorder %s769, %s771
    %p775 = scmp.eq.s32.totalorder %s84, 0
    %p776 = por %p774, %p775
    %p777 = scmp.ne.s32.totalorder %s769, %s771
    %p778 = scmp.eq.s32.totalorder %s89, 1
    %p779 = por %p777, %p778
    %p780 = scmp.ne.s32.totalorder %s771, %s772
    %p781 = scmp.eq.s32.totalorder %s89, 0
    %p782 = por %p780, %p781
    %p783 = scmp.ne.s32.totalorder %s771, %s772
    %p784 = scmp.eq.s32.totalorder %s90, 1
    %p785 = por %p783, %p784
    %p787 = scmp.ne.s32.totalorder %s772, %s786
    %p788 = scmp.eq.s32.totalorder %s90, 0
    %p789 = por %p787, %p788
    %s791 = sadd.s32 %s790, 1
    %p794 = scmp.eq.s32.totalorder %s84, 1
    %p795 = scmp.ne.s32.totalorder %s790, %s792
    %p796 = scmp.eq.s32.totalorder %s84, 0
    %p797 = por %p795, %p796
    %p798 = scmp.ne.s32.totalorder %s790, %s792
    %p799 = scmp.eq.s32.totalorder %s89, 1
    %p800 = por %p798, %p799
    %p801 = scmp.ne.s32.totalorder %s792, %s793
    %p802 = scmp.eq.s32.totalorder %s89, 0
    %p803 = por %p801, %p802
    %p804 = scmp.ne.s32.totalorder %s792, %s793
    %p805 = scmp.eq.s32.totalorder %s90, 1
    %p806 = por %p804, %p805
    %p808 = scmp.ne.s32.totalorder %s793, %s807
    %p809 = scmp.eq.s32.totalorder %s90, 0
    %p810 = por %p808, %p809
    %s812 = sadd.s32 %s811, 1
    %p815 = scmp.eq.s32.totalorder %s84, 1
    %p816 = scmp.ne.s32.totalorder %s811, %s813
    %p817 = scmp.eq.s32.totalorder %s84, 0
    %p818 = por %p816, %p817
    %p819 = scmp.ne.s32.totalorder %s811, %s813
    %p820 = scmp.eq.s32.totalorder %s89, 1
    %p821 = por %p819, %p820
    %p822 = scmp.ne.s32.totalorder %s813, %s814
    %p823 = scmp.eq.s32.totalorder %s89, 0
    %p824 = por %p822, %p823
    %p825 = scmp.ne.s32.totalorder %s813, %s814
    %p826 = scmp.eq.s32.totalorder %s90, 1
    %p827 = por %p825, %p826
    %p829 = scmp.ne.s32.totalorder %s814, %s828
    %p830 = scmp.eq.s32.totalorder %s90, 0
    %p831 = por %p829, %p830
    %s832 = ssub.s32 %s84, %s91
    %p833 = scmp.eq.s32.totalorder %s832, 0
    %s835 = sadd.s32 %s834, 1
    %s836 = scalar_select %p833, %s834, %s835
    %p839 = pneg %p833
    %p840 = scmp.eq.s32.totalorder %s84, 1
    %p841 = por %p839, %p840
    %p842 = scmp.ne.s32.totalorder %s834, %s837
    %p843 = scmp.eq.s32.totalorder %s84, 0
    %p844 = por %p842, %p843
    %p845 = scmp.ne.s32.totalorder %s834, %s837
    %p846 = scmp.eq.s32.totalorder %s89, 1
    %p847 = por %p845, %p846
    %p848 = scmp.ne.s32.totalorder %s837, %s838
    %p849 = scmp.eq.s32.totalorder %s89, 0
    %p850 = por %p848, %p849
    %p851 = scmp.ne.s32.totalorder %s837, %s838
    %p852 = scmp.eq.s32.totalorder %s90, 1
    %p853 = por %p851, %p852
    %p855 = scmp.ne.s32.totalorder %s838, %s854
    %p856 = scmp.eq.s32.totalorder %s90, 0
    %p857 = por %p855, %p856
    %s858 = ssub.s32 %s84, %s91
    %p859 = scmp.eq.s32.totalorder %s858, 0
    %s861 = sadd.s32 %s860, 1
    %s862 = scalar_select %p859, %s860, %s861
    %p865 = pneg %p859
    %p866 = scmp.eq.s32.totalorder %s84, 1
    %p867 = por %p865, %p866
    %p868 = scmp.ne.s32.totalorder %s860, %s863
    %p869 = scmp.eq.s32.totalorder %s84, 0
    %p870 = por %p868, %p869
    %p871 = scmp.ne.s32.totalorder %s860, %s863
    %p872 = scmp.eq.s32.totalorder %s89, 1
    %p873 = por %p871, %p872
    %p874 = scmp.ne.s32.totalorder %s863, %s864
    %p875 = scmp.eq.s32.totalorder %s89, 0
    %p876 = por %p874, %p875
    %p877 = scmp.ne.s32.totalorder %s863, %s864
    %p878 = scmp.eq.s32.totalorder %s90, 1
    %p879 = por %p877, %p878
    %p881 = scmp.ne.s32.totalorder %s864, %s880
    %p882 = scmp.eq.s32.totalorder %s90, 0
    %p883 = por %p881, %p882
    %s884 = ssub.s32 %s84, %s91
    %p885 = scmp.eq.s32.totalorder %s884, 0
    %s887 = sadd.s32 %s886, 1
    %s888 = scalar_select %p885, %s886, %s887
    %p891 = pneg %p885
    %p892 = scmp.eq.s32.totalorder %s84, 1
    %p893 = por %p891, %p892
    %p894 = scmp.ne.s32.totalorder %s886, %s889
    %p895 = scmp.eq.s32.totalorder %s84, 0
    %p896 = por %p894, %p895
    %p897 = scmp.ne.s32.totalorder %s886, %s889
    %p898 = scmp.eq.s32.totalorder %s89, 1
    %p899 = por %p897, %p898
    %p900 = scmp.ne.s32.totalorder %s889, %s890
    %p901 = scmp.eq.s32.totalorder %s89, 0
    %p902 = por %p900, %p901
    %p903 = scmp.ne.s32.totalorder %s889, %s890
    %p904 = scmp.eq.s32.totalorder %s90, 1
    %p905 = por %p903, %p904
    %p907 = scmp.ne.s32.totalorder %s890, %s906
    %p908 = scmp.eq.s32.totalorder %s90, 0
    %p909 = por %p907, %p908
    %p910 = scmp.le.s32.totalorder 1, %s84
    %p911 = scmp.lt.s32.totalorder %s84, 3
    %p912 = pnand %p910, %p911
    %p913 = pneg %p912
    // Predicated region
    $region9: #{market_state_classifier_forward.1} parent=5 // pred_check
      _
    $region10: #{market_state_classifier_forward.1} parent=5 // pred_check_branch
      %915 = sbr.rel (%p912) target = $region12
    $region11: #{market_state_classifier_forward.1} parent=5 // pred_region
      %s916 = ssub.s32 %s84, 1
      // Predicated region
      $region13: #{market_state_classifier_forward.1} parent=11 // pred_check
        %p917 = pneg %p131
      $region14: #{market_state_classifier_forward.1} parent=11 // pred_check_branch
        %919 = sbr.rel (%p917) target = $region16
      $region15: #{market_state_classifier_forward.1} parent=11 // pred_region
        _
      $region16: #{market_state_classifier_forward.1} parent=11 // pred_fallthru
        _
      // Predicated region
      $region17: #{market_state_classifier_forward.1} parent=11 // pred_check
        %p920 = pneg %p152
      $region18: #{market_state_classifier_forward.1} parent=11 // pred_check_branch
        %922 = sbr.rel (%p920) target = $region20
      $region19: #{market_state_classifier_forward.1} parent=11 // pred_region
        _
      $region20: #{market_state_classifier_forward.1} parent=11 // pred_fallthru
        _
      // Predicated region
      $region21: #{market_state_classifier_forward.1} parent=11 // pred_check
        %p923 = pneg %p173
      $region22: #{market_state_classifier_forward.1} parent=11 // pred_check_branch
        %925 = sbr.rel (%p923) target = $region24
      $region23: #{market_state_classifier_forward.1} parent=11 // pred_region
        _
      $region24: #{market_state_classifier_forward.1} parent=11 // pred_fallthru
        _
      // Predicated region
      $region25: #{market_state_classifier_forward.1} parent=11 // pred_check
        %p926 = pneg %p194
      $region26: #{market_state_classifier_forward.1} parent=11 // pred_check_branch
        %928 = sbr.rel (%p926) target = $region28
      $region27: #{market_state_classifier_forward.1} parent=11 // pred_region
        _
      $region28: #{market_state_classifier_forward.1} parent=11 // pred_fallthru
        _
      // Predicated region
      $region29: #{market_state_classifier_forward.1} parent=11 // pred_check
        %p929 = pneg %p215
      $region30: #{market_state_classifier_forward.1} parent=11 // pred_check_branch
        %931 = sbr.rel (%p929) target = $region32
      $region31: #{market_state_classifier_forward.1} parent=11 // pred_region
        _
      $region32: #{market_state_classifier_forward.1} parent=11 // pred_fallthru
        _
      // Predicated region
      $region33: #{market_state_classifier_forward.1} parent=11 // pred_check
        %p932 = pneg %p236
      $region34: #{market_state_classifier_forward.1} parent=11 // pred_check_branch
        %934 = sbr.rel (%p932) target = $region36
      $region35: #{market_state_classifier_forward.1} parent=11 // pred_region
        _
      $region36: #{market_state_classifier_forward.1} parent=11 // pred_fallthru
        _
      // Predicated region
      $region37: #{market_state_classifier_forward.1} parent=11 // pred_check
        %p935 = pneg %p257
      $region38: #{market_state_classifier_forward.1} parent=11 // pred_check_branch
        %937 = sbr.rel (%p935) target = $region40
      $region39: #{market_state_classifier_forward.1} parent=11 // pred_region
        _
      $region40: #{market_state_classifier_forward.1} parent=11 // pred_fallthru
        _
      // Predicated region
      $region41: #{market_state_classifier_forward.1} parent=11 // pred_check
        %p938 = pneg %p278
      $region42: #{market_state_classifier_forward.1} parent=11 // pred_check_branch
        %940 = sbr.rel (%p938) target = $region44
      $region43: #{market_state_classifier_forward.1} parent=11 // pred_region
        _
      $region44: #{market_state_classifier_forward.1} parent=11 // pred_fallthru
        _
      // Predicated region
      $region45: #{market_state_classifier_forward.1} parent=11 // pred_check
        %p941 = pneg %p299
      $region46: #{market_state_classifier_forward.1} parent=11 // pred_check_branch
        %943 = sbr.rel (%p941) target = $region48
      $region47: #{market_state_classifier_forward.1} parent=11 // pred_region
        _
      $region48: #{market_state_classifier_forward.1} parent=11 // pred_fallthru
        _
      // Predicated region
      $region49: #{market_state_classifier_forward.1} parent=11 // pred_check
        %p944 = pneg %p320
      $region50: #{market_state_classifier_forward.1} parent=11 // pred_check_branch
        %946 = sbr.rel (%p944) target = $region52
      $region51: #{market_state_classifier_forward.1} parent=11 // pred_region
        _
      $region52: #{market_state_classifier_forward.1} parent=11 // pred_fallthru
        _
      // Predicated region
      $region53: #{market_state_classifier_forward.1} parent=11 // pred_check
        %p947 = pneg %p341
      $region54: #{market_state_classifier_forward.1} parent=11 // pred_check_branch
        %949 = sbr.rel (%p947) target = $region56
      $region55: #{market_state_classifier_forward.1} parent=11 // pred_region
        _
      $region56: #{market_state_classifier_forward.1} parent=11 // pred_fallthru
        _
      // Predicated region
      $region57: #{market_state_classifier_forward.1} parent=11 // pred_check
        %p950 = pneg %p362
      $region58: #{market_state_classifier_forward.1} parent=11 // pred_check_branch
        %952 = sbr.rel (%p950) target = $region60
      $region59: #{market_state_classifier_forward.1} parent=11 // pred_region
        _
      $region60: #{market_state_classifier_forward.1} parent=11 // pred_fallthru
        _
      // Predicated region
      $region61: #{market_state_classifier_forward.1} parent=11 // pred_check
        %p953 = pneg %p383
      $region62: #{market_state_classifier_forward.1} parent=11 // pred_check_branch
        %955 = sbr.rel (%p953) target = $region64
      $region63: #{market_state_classifier_forward.1} parent=11 // pred_region
        _
      $region64: #{market_state_classifier_forward.1} parent=11 // pred_fallthru
        _
      // Predicated region
      $region65: #{market_state_classifier_forward.1} parent=11 // pred_check
        %p956 = pneg %p404
      $region66: #{market_state_classifier_forward.1} parent=11 // pred_check_branch
        %958 = sbr.rel (%p956) target = $region68
      $region67: #{market_state_classifier_forward.1} parent=11 // pred_region
        _
      $region68: #{market_state_classifier_forward.1} parent=11 // pred_fallthru
        _
      // Predicated region
      $region69: #{market_state_classifier_forward.1} parent=11 // pred_check
        %p959 = pneg %p425
      $region70: #{market_state_classifier_forward.1} parent=11 // pred_check_branch
        %961 = sbr.rel (%p959) target = $region72
      $region71: #{market_state_classifier_forward.1} parent=11 // pred_region
        _
      $region72: #{market_state_classifier_forward.1} parent=11 // pred_fallthru
        _
      // Predicated region
      $region73: #{market_state_classifier_forward.1} parent=11 // pred_check
        %p962 = pneg %p446
      $region74: #{market_state_classifier_forward.1} parent=11 // pred_check_branch
        %964 = sbr.rel (%p962) target = $region76
      $region75: #{market_state_classifier_forward.1} parent=11 // pred_region
        _
      $region76: #{market_state_classifier_forward.1} parent=11 // pred_fallthru
        _
      // Predicated region
      $region77: #{market_state_classifier_forward.1} parent=11 // pred_check
        %p965 = pneg %p467
      $region78: #{market_state_classifier_forward.1} parent=11 // pred_check_branch
        %967 = sbr.rel (%p965) target = $region80
      $region79: #{market_state_classifier_forward.1} parent=11 // pred_region
        _
      $region80: #{market_state_classifier_forward.1} parent=11 // pred_fallthru
        _
      // Predicated region
      $region81: #{market_state_classifier_forward.1} parent=11 // pred_check
        %p968 = pneg %p488
      $region82: #{market_state_classifier_forward.1} parent=11 // pred_check_branch
        %970 = sbr.rel (%p968) target = $region84
      $region83: #{market_state_classifier_forward.1} parent=11 // pred_region
        _
      $region84: #{market_state_classifier_forward.1} parent=11 // pred_fallthru
        _
      // Predicated region
      $region85: #{market_state_classifier_forward.1} parent=11 // pred_check
        %p971 = pneg %p509
      $region86: #{market_state_classifier_forward.1} parent=11 // pred_check_branch
        %973 = sbr.rel (%p971) target = $region88
      $region87: #{market_state_classifier_forward.1} parent=11 // pred_region
        _
      $region88: #{market_state_classifier_forward.1} parent=11 // pred_fallthru
        _
      // Predicated region
      $region89: #{market_state_classifier_forward.1} parent=11 // pred_check
        %p974 = pneg %p530
      $region90: #{market_state_classifier_forward.1} parent=11 // pred_check_branch
        %976 = sbr.rel (%p974) target = $region92
      $region91: #{market_state_classifier_forward.1} parent=11 // pred_region
        _
      $region92: #{market_state_classifier_forward.1} parent=11 // pred_fallthru
        _
      // Predicated region
      $region93: #{market_state_classifier_forward.1} parent=11 // pred_check
        %p977 = pneg %p551
      $region94: #{market_state_classifier_forward.1} parent=11 // pred_check_branch
        %979 = sbr.rel (%p977) target = $region96
      $region95: #{market_state_classifier_forward.1} parent=11 // pred_region
        _
      $region96: #{market_state_classifier_forward.1} parent=11 // pred_fallthru
        _
      // Predicated region
      $region97: #{market_state_classifier_forward.1} parent=11 // pred_check
        %p980 = pneg %p572
      $region98: #{market_state_classifier_forward.1} parent=11 // pred_check_branch
        %982 = sbr.rel (%p980) target = $region100
      $region99: #{market_state_classifier_forward.1} parent=11 // pred_region
        _
      $region100: #{market_state_classifier_forward.1} parent=11 // pred_fallthru
        _
      // Predicated region
      $region101: #{market_state_classifier_forward.1} parent=11 // pred_check
        %p983 = pneg %p593
      $region102: #{market_state_classifier_forward.1} parent=11 // pred_check_branch
        %985 = sbr.rel (%p983) target = $region104
      $region103: #{market_state_classifier_forward.1} parent=11 // pred_region
        _
      $region104: #{market_state_classifier_forward.1} parent=11 // pred_fallthru
        _
      // Predicated region
      $region105: #{market_state_classifier_forward.1} parent=11 // pred_check
        %p986 = pneg %p614
      $region106: #{market_state_classifier_forward.1} parent=11 // pred_check_branch
        %988 = sbr.rel (%p986) target = $region108
      $region107: #{market_state_classifier_forward.1} parent=11 // pred_region
        _
      $region108: #{market_state_classifier_forward.1} parent=11 // pred_fallthru
        _
      // Predicated region
      $region109: #{market_state_classifier_forward.1} parent=11 // pred_check
        %p989 = pneg %p635
      $region110: #{market_state_classifier_forward.1} parent=11 // pred_check_branch
        %991 = sbr.rel (%p989) target = $region112
      $region111: #{market_state_classifier_forward.1} parent=11 // pred_region
        _
      $region112: #{market_state_classifier_forward.1} parent=11 // pred_fallthru
        _
      // Predicated region
      $region113: #{market_state_classifier_forward.1} parent=11 // pred_check
        %p992 = pneg %p656
      $region114: #{market_state_classifier_forward.1} parent=11 // pred_check_branch
        %994 = sbr.rel (%p992) target = $region116
      $region115: #{market_state_classifier_forward.1} parent=11 // pred_region
        _
      $region116: #{market_state_classifier_forward.1} parent=11 // pred_fallthru
        _
      // Predicated region
      $region117: #{market_state_classifier_forward.1} parent=11 // pred_check
        %p995 = pneg %p677
      $region118: #{market_state_classifier_forward.1} parent=11 // pred_check_branch
        %997 = sbr.rel (%p995) target = $region120
      $region119: #{market_state_classifier_forward.1} parent=11 // pred_region
        _
      $region120: #{market_state_classifier_forward.1} parent=11 // pred_fallthru
        _
      // Predicated region
      $region121: #{market_state_classifier_forward.1} parent=11 // pred_check
        %p998 = pneg %p698
      $region122: #{market_state_classifier_forward.1} parent=11 // pred_check_branch
        %1000 = sbr.rel (%p998) target = $region124
      $region123: #{market_state_classifier_forward.1} parent=11 // pred_region
        _
      $region124: #{market_state_classifier_forward.1} parent=11 // pred_fallthru
        _
      // Predicated region
      $region125: #{market_state_classifier_forward.1} parent=11 // pred_check
        %p1001 = pneg %p719
      $region126: #{market_state_classifier_forward.1} parent=11 // pred_check_branch
        %1003 = sbr.rel (%p1001) target = $region128
      $region127: #{market_state_classifier_forward.1} parent=11 // pred_region
        _
      $region128: #{market_state_classifier_forward.1} parent=11 // pred_fallthru
        _
      // Predicated region
      $region129: #{market_state_classifier_forward.1} parent=11 // pred_check
        %p1004 = pneg %p740
      $region130: #{market_state_classifier_forward.1} parent=11 // pred_check_branch
        %1006 = sbr.rel (%p1004) target = $region132
      $region131: #{market_state_classifier_forward.1} parent=11 // pred_region
        _
      $region132: #{market_state_classifier_forward.1} parent=11 // pred_fallthru
        _
      // Predicated region
      $region133: #{market_state_classifier_forward.1} parent=11 // pred_check
        %p1007 = pneg %p761
      $region134: #{market_state_classifier_forward.1} parent=11 // pred_check_branch
        %1009 = sbr.rel (%p1007) target = $region136
      $region135: #{market_state_classifier_forward.1} parent=11 // pred_region
        _
      $region136: #{market_state_classifier_forward.1} parent=11 // pred_fallthru
        _
      // Predicated region
      $region137: #{market_state_classifier_forward.1} parent=11 // pred_check
        %p1010 = pneg %p782
      $region138: #{market_state_classifier_forward.1} parent=11 // pred_check_branch
        %1012 = sbr.rel (%p1010) target = $region140
      $region139: #{market_state_classifier_forward.1} parent=11 // pred_region
        _
      $region140: #{market_state_classifier_forward.1} parent=11 // pred_fallthru
        _
      // Predicated region
      $region141: #{market_state_classifier_forward.1} parent=11 // pred_check
        %p1013 = pneg %p803
      $region142: #{market_state_classifier_forward.1} parent=11 // pred_check_branch
        %1015 = sbr.rel (%p1013) target = $region144
      $region143: #{market_state_classifier_forward.1} parent=11 // pred_region
        _
      $region144: #{market_state_classifier_forward.1} parent=11 // pred_fallthru
        _
      // Predicated region
      $region145: #{market_state_classifier_forward.1} parent=11 // pred_check
        %p1016 = pneg %p824
      $region146: #{market_state_classifier_forward.1} parent=11 // pred_check_branch
        %1018 = sbr.rel (%p1016) target = $region148
      $region147: #{market_state_classifier_forward.1} parent=11 // pred_region
        _
      $region148: #{market_state_classifier_forward.1} parent=11 // pred_fallthru
        _
    $region12: #{market_state_classifier_forward.1} parent=5 // pred_fallthru
      _
    %p1019 = scmp.lt.s32.totalorder %s84, 2
    // Predicated region
    $region149: #{market_state_classifier_forward.1} parent=5 // pred_check
      %p1020 = pneg %p1019
    $region150: #{market_state_classifier_forward.1} parent=5 // pred_check_branch
      %1022 = sbr.rel (%p1020) target = $region152
    $region151: #{market_state_classifier_forward.1} parent=5 // pred_region
      // Predicated region
      $region153: #{market_state_classifier_forward.1} parent=151 // pred_check
        %p1023 = pneg %p104
      $region154: #{market_state_classifier_forward.1} parent=151 // pred_check_branch
        %1025 = sbr.rel (%p1023) target = $region156
      $region155: #{market_state_classifier_forward.1} parent=151 // pred_region
        %s1026 = smul.u32 8, %s84
        %p1027 = scmp.lt.s32.totalorder %s1026, 15
        %s1028 = scalar_select %p1027, %s1026, 15
        %s1029 = smul.addr %s1028, 8
        %s1030 = scalar_lea.vmem %s1, %s1029
        %s1031 = smul.u32 8, %s84
      $region156: #{market_state_classifier_forward.1} parent=151 // pred_fallthru
        _
    $region152: #{market_state_classifier_forward.1} parent=5 // pred_fallthru
      _
    %p1032 = scmp.le.s32.totalorder 1, %s84
    %p1033 = scmp.lt.s32.totalorder %s84, 3
    %p1034 = pnand %p1032, %p1033
    %p1035 = pneg %p1034
    // Predicated region
    $region157: #{market_state_classifier_forward.1} parent=5 // pred_check
      _
    $region158: #{market_state_classifier_forward.1} parent=5 // pred_check_branch
      %1037 = sbr.rel (%p1034) target = $region160
    $region159: #{market_state_classifier_forward.1} parent=5 // pred_region
      %s1038 = ssub.s32 %s84, 1
      %s1039 = smul.u32 8, %s89
      %p1040 = scmp.lt.s32.totalorder %s1039, 15
      %s1041 = scalar_select %p1040, %s1039, 15
      %s1042 = smul.addr %s1041, 8
      %s1043 = scalar_lea.vmem %s1, %s1042
      %p1044 = pneg %p110
      %p1045 = pneg %p107
      %p1046 = pneg %p131
      %p1047 = pneg %p128
      %p1048 = pneg %p152
      %p1049 = pneg %p149
      %p1050 = pneg %p173
      %p1051 = pneg %p170
      %p1052 = pneg %p194
      %p1053 = pneg %p191
      %p1054 = pneg %p215
      %p1055 = pneg %p212
      %p1056 = pneg %p236
      %p1057 = pneg %p233
      %p1058 = pneg %p257
      %p1059 = pneg %p254
      %p1060 = pneg %p278
      %p1061 = pneg %p275
      %p1062 = pneg %p299
      %p1063 = pneg %p296
      %p1064 = pneg %p320
      %p1065 = pneg %p317
      %p1066 = pneg %p341
      %p1067 = pneg %p338
      %p1068 = pneg %p362
      %p1069 = pneg %p359
      %p1070 = pneg %p383
      %p1071 = pneg %p380
      %p1072 = pneg %p404
      %p1073 = pneg %p401
      %p1074 = pneg %p425
      %p1075 = pneg %p422
      %p1076 = pneg %p446
      %p1077 = pneg %p443
      %p1078 = pneg %p467
      %p1079 = pneg %p464
      %p1080 = pneg %p488
      %p1081 = pneg %p485
      %p1082 = pneg %p509
      %p1083 = pneg %p506
      %p1084 = pneg %p530
      %p1085 = pneg %p527
      %p1086 = pneg %p551
      %p1087 = pneg %p548
      %p1088 = pneg %p572
      %p1089 = pneg %p569
      %p1090 = pneg %p593
      %p1091 = pneg %p590
      %p1092 = pneg %p614
      %p1093 = pneg %p611
      %p1094 = pneg %p635
      %p1095 = pneg %p632
      %p1096 = pneg %p656
      %p1097 = pneg %p653
      %p1098 = pneg %p677
      %p1099 = pneg %p674
      %p1100 = pneg %p698
      %p1101 = pneg %p695
      %p1102 = pneg %p719
      %p1103 = pneg %p716
      %p1104 = pneg %p740
      %p1105 = pneg %p737
      %p1106 = pneg %p761
      %p1107 = pneg %p758
      %p1108 = pneg %p782
      %p1109 = pneg %p779
      %p1110 = pneg %p803
      %p1111 = pneg %p800
      %p1112 = pneg %p824
      %p1113 = pneg %p821
      %p1114 = pneg %p850
      %p1115 = pneg %p847
      %p1116 = scmp.lt.s32.totalorder %s89, 1
      %s1117 = scalar_select %p1116, %s89, 1
      %s1118 = smul.addr %s1117, 8
      %s1119 = scalar_lea.vmem %s71, %s1118
      %p1120 = pneg %p876
      %p1121 = pneg %p873
      %s1122 = smul.u32 8, %s89
      %p1123 = scmp.lt.s32.totalorder %s1122, 15
      %s1124 = scalar_select %p1123, %s1122, 15
      %s1125 = smul.addr %s1124, 8
      %s1126 = scalar_lea.vmem %s73, %s1125
      %p1127 = pneg %p902
      %p1128 = pneg %p899
      %p1129 = scmp.lt.s32.totalorder %s89, 1
      %s1130 = scalar_select %p1129, %s89, 1
      %s1131 = smul.addr %s1130, 2
      %s1132 = smul.addr %s1131, 8
      %s1133 = scalar_lea.vmem %s75, %s1132
      %s1134 = smul.u32 8, %s89
      %p1135 = scmp.lt.s32.totalorder %s1134, 15
      %s1136 = scalar_select %p1135, %s1134, 15
      %s1137 = smul.addr %s1136, 8
      %s1138 = scalar_lea.vmem %s1, %s1137
      %s1139 = smul.u32 8, %s89
      %p1140 = scmp.lt.s32.totalorder %s89, 1
      %s1141 = scalar_select %p1140, %s89, 1
      %s1142 = smul.addr %s1141, 8
      %s1143 = scalar_lea.vmem %s71, %s1142
      %s1144 = smul.u32 8, %s89
      %p1145 = scmp.lt.s32.totalorder %s1144, 15
      %s1146 = scalar_select %p1145, %s1144, 15
      %s1147 = smul.addr %s1146, 8
      %s1148 = scalar_lea.vmem %s73, %s1147
      %s1149 = smul.u32 8, %s89
      %p1150 = scmp.lt.s32.totalorder %s89, 1
      %s1151 = scalar_select %p1150, %s89, 1
      %s1152 = smul.addr %s1151, 2
      %s1153 = smul.addr %s1152, 8
      %s1154 = scalar_lea.vmem %s75, %s1153
      %v1155 = vld [vmem:[%s1138] sm:$0xff]
      %v1156 = vld [vmem:[%s1138 + $0x8] sm:$0xff]
      %v1157 = vld [vmem:[%s1138 + $0x10] sm:$0xff]
      %v1158 = vld [vmem:[%s1138 + $0x18] sm:$0xff]
      %v1159 = vld [vmem:[%s1138 + $0x20] sm:$0xff]
      %v1160 = vld [vmem:[%s1138 + $0x28] sm:$0xff]
      %v1161 = vld [vmem:[%s1138 + $0x30] sm:$0xff]
      %v1162 = vld [vmem:[%s1138 + $0x38] sm:$0xff]
      %v1163 = vld [vmem:[%s3] sm:$0xff]
      %v1164 = vld [vmem:[%s3 + $0x8] sm:$0xff]
      %v1165 = vld [vmem:[%s3 + $0x10] sm:$0xff]
      %v1166 = vld [vmem:[%s3 + $0x18] sm:$0xff]
      %v1167 = vld [vmem:[%s3 + $0x20] sm:$0xff]
      %v1168 = vld [vmem:[%s3 + $0x28] sm:$0xff]
      %v1169 = vld [vmem:[%s3 + $0x30] sm:$0xff]
      %v1170 = vld [vmem:[%s3 + $0x38] sm:$0xff]
      %v1171 = vld [vmem:[%s3 + $0x40] sm:$0xff]
      %v1172 = vld [vmem:[%s3 + $0x48] sm:$0xff]
      %v1173 = vld [vmem:[%s3 + $0x50] sm:$0xff]
      %v1174 = vld [vmem:[%s3 + $0x58] sm:$0xff]
      %v1175 = vld [vmem:[%s3 + $0x60] sm:$0xff]
      %v1176 = vld [vmem:[%s3 + $0x68] sm:$0xff]
      %v1177 = vld [vmem:[%s3 + $0x70] sm:$0xff]
      %v1178 = vld [vmem:[%s3 + $0x78] sm:$0xff]
      %v1179 = vld [vmem:[%s3 + $0x80] sm:$0xff]
      %v1180 = vld [vmem:[%s3 + $0x88] sm:$0xff]
      %v1181 = vld [vmem:[%s3 + $0x90] sm:$0xff]
      %v1182 = vld [vmem:[%s3 + $0x98] sm:$0xff]
      %v1183 = vld [vmem:[%s3 + $0xa0] sm:$0xff]
      %v1184 = vld [vmem:[%s3 + $0xa8] sm:$0xff]
      %v1185 = vld [vmem:[%s3 + $0xb0] sm:$0xff]
      %v1186 = vld [vmem:[%s3 + $0xb8] sm:$0xff]
      %v1187 = vld [vmem:[%s3 + $0xc0] sm:$0xff]
      %v1188 = vld [vmem:[%s3 + $0xc8] sm:$0xff]
      %v1189 = vld [vmem:[%s3 + $0xd0] sm:$0xff]
      %v1190 = vld [vmem:[%s3 + $0xd8] sm:$0xff]
      %v1191 = vld [vmem:[%s3 + $0xe0] sm:$0xff]
      %v1192 = vld [vmem:[%s3 + $0xe8] sm:$0xff]
      %v1193 = vld [vmem:[%s3 + $0xf0] sm:$0xff]
      %v1194 = vld [vmem:[%s3 + $0xf8] sm:$0xff]
      %v1195 = vld [vmem:[%s5] sm:$0x3]
      %v1197 = vlaneseq
      %v1198 = vshrl.u32 %v1197, 7
      %v1199 = vsub.s32 0, %v1198
      %v1200 = vrot.slane %v1195, %v1199
      %v1201 = vlaneseq
      %v1202 = vshrl.u32 %v1201, 7
      %v1203 = vsub.s32 1, %v1202
      %v1204 = vrot.slane %v1195, %v1203
      %1207 = vmatprep.subr.mxu0 %v1164
      %1208 = vmatpush1.msra.mxu0 %v1163
      %1209 = vmatprep.subr.mxu0 %v1166
      %1210 = vmatpush1.msra.mxu0 %v1165
      %1211 = vmatprep.subr.mxu0 %v1168
      %1212 = vmatpush1.msra.mxu0 %v1167
      %1213 = vmatprep.subr.mxu0 %v1170
      %1214 = vmatpush1.msra.mxu0 %v1169
      %1215 = vmatprep.subr.mxu0 %v1172
      %1216 = vmatpush1.msra.mxu0 %v1171
      %1217 = vmatprep.subr.mxu0 %v1174
      %1218 = vmatpush1.msra.mxu0 %v1173
      %1219 = vmatprep.subr.mxu0 %v1176
      %1220 = vmatpush1.msra.mxu0 %v1175
      %1221 = vmatprep.subr.mxu0 %v1178
      %1222 = vmatpush1.msra.mxu0 %v1177
      %1223 = vmatprep.subr.mxu0 %v1180
      %1224 = vmatpush1.msra.mxu0 %v1179
      %1225 = vmatprep.subr.mxu0 %v1182
      %1226 = vmatpush1.msra.mxu0 %v1181
      %1227 = vmatprep.subr.mxu0 %v1184
      %1228 = vmatpush1.msra.mxu0 %v1183
      %1229 = vmatprep.subr.mxu0 %v1186
      %1230 = vmatpush1.msra.mxu0 %v1185
      %1231 = vmatprep.subr.mxu0 %v1188
      %1232 = vmatpush1.msra.mxu0 %v1187
      %1233 = vmatprep.subr.mxu0 %v1190
      %1234 = vmatpush1.msra.mxu0 %v1189
      %1235 = vmatprep.subr.mxu0 %v1192
      %1236 = vmatpush1.msra.mxu0 %v1191
      %1237 = vmatprep.subr.mxu0 %v1194
      %1238 = vmatpush1.msra.mxu0 %v1193
      %1239 = vmatprep.subr.mxu0 0.0
      %1240 = vmatpush1.msra.mxu0 0.0
      %1241 = vmatprep.subr.mxu0 0.0
      %1242 = vmatpush1.msra.mxu0 0.0
      %1243 = vmatprep.subr.mxu0 0.0
      %1244 = vmatpush1.msra.mxu0 0.0
      %1245 = vmatprep.subr.mxu0 0.0
      %1246 = vmatpush1.msra.mxu0 0.0
      %1247 = vmatprep.subr.mxu0 0.0
      %1248 = vmatpush1.msra.mxu0 0.0
      %1249 = vmatprep.subr.mxu0 0.0
      %1250 = vmatpush1.msra.mxu0 0.0
      %1251 = vmatprep.subr.mxu0 0.0
      %1252 = vmatpush1.msra.mxu0 0.0
      %1253 = vmatprep.subr.mxu0 0.0
      %1254 = vmatpush1.msra.mxu0 0.0
      %1255 = vmatprep.subr.mxu0 0.0
      %1256 = vmatpush1.msra.mxu0 0.0
      %1257 = vmatprep.subr.mxu0 0.0
      %1258 = vmatpush1.msra.mxu0 0.0
      %1259 = vmatprep.subr.mxu0 0.0
      %1260 = vmatpush1.msra.mxu0 0.0
      %1261 = vmatprep.subr.mxu0 0.0
      %1262 = vmatpush1.msra.mxu0 0.0
      %1263 = vmatprep.subr.mxu0 0.0
      %1264 = vmatpush1.msra.mxu0 0.0
      %1265 = vmatprep.subr.mxu0 0.0
      %1266 = vmatpush1.msra.mxu0 0.0
      %1267 = vmatprep.subr.mxu0 0.0
      %1268 = vmatpush1.msra.mxu0 0.0
      %1269 = vmatprep.subr.mxu0 0.0
      %1270 = vmatpush1.msra.mxu0 0.0
      %1271 = vmatprep.mubr.f32.mxu0 0.0
      %1272 = vmatmul.mubr.f32.gmra.mrb[0].mxu0 %v1155
      %v1273 = vpop.f32.mrb[0].mxu0
      %v1274 = vadd.f32 %v1200, %v1273
      %v1275 = vpop.f32.mrb[0].mxu0
      %v1276 = vadd.f32 %v1204, %v1275
      %1277 = vmatprep.mubr.f32.mxu0 0.0
      %1278 = vmatmul.mubr.f32.gmra.mrb[0].mxu0 %v1156
      %v1279 = vpop.f32.mrb[0].mxu0
      %v1280 = vadd.f32 %v1200, %v1279
      %v1281 = vpop.f32.mrb[0].mxu0
      %v1282 = vadd.f32 %v1204, %v1281
      %1283 = vmatprep.mubr.f32.mxu0 0.0
      %1284 = vmatmul.mubr.f32.gmra.mrb[0].mxu0 %v1157
      %v1285 = vpop.f32.mrb[0].mxu0
      %v1286 = vadd.f32 %v1200, %v1285
      %v1287 = vpop.f32.mrb[0].mxu0
      %v1288 = vadd.f32 %v1204, %v1287
      %1289 = vmatprep.mubr.f32.mxu0 0.0
      %1290 = vmatmul.mubr.f32.gmra.mrb[0].mxu0 %v1158
      %v1291 = vpop.f32.mrb[0].mxu0
      %v1292 = vadd.f32 %v1200, %v1291
      %v1293 = vpop.f32.mrb[0].mxu0
      %v1294 = vadd.f32 %v1204, %v1293
      %1295 = vmatprep.mubr.f32.mxu0 0.0
      %1296 = vmatmul.mubr.f32.gmra.mrb[0].mxu0 %v1159
      %v1297 = vpop.f32.mrb[0].mxu0
      %v1298 = vadd.f32 %v1200, %v1297
      %v1299 = vpop.f32.mrb[0].mxu0
      %v1300 = vadd.f32 %v1204, %v1299
      %1301 = vmatprep.mubr.f32.mxu0 0.0
      %1302 = vmatmul.mubr.f32.gmra.mrb[0].mxu0 %v1160
      %v1303 = vpop.f32.mrb[0].mxu0
      %v1304 = vadd.f32 %v1200, %v1303
      %v1305 = vpop.f32.mrb[0].mxu0
      %v1306 = vadd.f32 %v1204, %v1305
      %1307 = vmatprep.mubr.f32.mxu0 0.0
      %1308 = vmatmul.mubr.f32.gmra.mrb[0].mxu0 %v1161
      %v1309 = vpop.f32.mrb[0].mxu0
      %v1310 = vadd.f32 %v1200, %v1309
      %v1311 = vpop.f32.mrb[0].mxu0
      %v1312 = vadd.f32 %v1204, %v1311
      %1313 = vmatprep.mubr.f32.mxu0 0.0
      %1314 = vmatmul.mubr.f32.gmra.mrb[0].mxu0 %v1162
      %v1315 = vpop.f32.mrb[0].mxu0
      %v1316 = vadd.f32 %v1200, %v1315
      %v1317 = vpop.f32.mrb[0].mxu0
      %v1318 = vadd.f32 %v1204, %v1317
      %1319 = vdwg.mxu0
      %v1320 = vld [vmem:[%s7] sm:$0x3]
      %v1321 = vld [vmem:[%s9] sm:$0x3]
      %v1322 = vadd.f32 %v1274, %v1276
      %1323 = vadd.xlane.f32.xlu0 %v1322
      %v1324 = vpop.xlane.xlu0 %1323
      %v1325 = vadd.f32 %v1280, %v1282
      %1326 = vadd.xlane.f32.xlu0 %v1325
      %v1327 = vpop.xlane.xlu0 %1326
      %v1328 = vadd.f32 %v1286, %v1288
      %1329 = vadd.xlane.f32.xlu0 %v1328
      %v1330 = vpop.xlane.xlu0 %1329
      %v1331 = vadd.f32 %v1292, %v1294
      %1332 = vadd.xlane.f32.xlu0 %v1331
      %v1333 = vpop.xlane.xlu0 %1332
      %v1334 = vadd.f32 %v1298, %v1300
      %1335 = vadd.xlane.f32.xlu0 %v1334
      %v1336 = vpop.xlane.xlu0 %1335
      %v1337 = vadd.f32 %v1304, %v1306
      %1338 = vadd.xlane.f32.xlu0 %v1337
      %v1339 = vpop.xlane.xlu0 %1338
      %v1340 = vadd.f32 %v1310, %v1312
      %1341 = vadd.xlane.f32.xlu0 %v1340
      %v1342 = vpop.xlane.xlu0 %1341
      %v1343 = vadd.f32 %v1316, %v1318
      %1344 = vadd.xlane.f32.xlu0 %v1343
      %v1345 = vpop.xlane.xlu0 %1344
      %v1346 = vrcp.pop 256.0
      %v1347 = vmul.f32 %v1324, %v1346
      %v1348 = vmul.f32 %v1327, %v1346
      %v1349 = vmul.f32 %v1330, %v1346
      %v1350 = vmul.f32 %v1333, %v1346
      %v1351 = vmul.f32 %v1336, %v1346
      %v1352 = vmul.f32 %v1339, %v1346
      %v1353 = vmul.f32 %v1342, %v1346
      %v1354 = vmul.f32 %v1345, %v1346
      %v1355 = vsub.f32 %v1274, %v1347
      %v1356 = vsub.f32 %v1276, %v1347
      %v1357 = vsub.f32 %v1280, %v1348
      %v1358 = vsub.f32 %v1282, %v1348
      %v1359 = vsub.f32 %v1286, %v1349
      %v1360 = vsub.f32 %v1288, %v1349
      %v1361 = vsub.f32 %v1292, %v1350
      %v1362 = vsub.f32 %v1294, %v1350
      %v1363 = vsub.f32 %v1298, %v1351
      %v1364 = vsub.f32 %v1300, %v1351
      %v1365 = vsub.f32 %v1304, %v1352
      %v1366 = vsub.f32 %v1306, %v1352
      %v1367 = vsub.f32 %v1310, %v1353
      %v1368 = vsub.f32 %v1312, %v1353
      %v1369 = vsub.f32 %v1316, %v1354
      %v1370 = vsub.f32 %v1318, %v1354
      %v1371 = vmul.f32 %v1355, %v1355
      %v1372 = vmul.f32 %v1356, %v1356
      %v1373 = vmul.f32 %v1357, %v1357
      %v1374 = vmul.f32 %v1358, %v1358
      %v1375 = vmul.f32 %v1359, %v1359
      %v1376 = vmul.f32 %v1360, %v1360
      %v1377 = vmul.f32 %v1361, %v1361
      %v1378 = vmul.f32 %v1362, %v1362
      %v1379 = vmul.f32 %v1363, %v1363
      %v1380 = vmul.f32 %v1364, %v1364
      %v1381 = vmul.f32 %v1365, %v1365
      %v1382 = vmul.f32 %v1366, %v1366
      %v1383 = vmul.f32 %v1367, %v1367
      %v1384 = vmul.f32 %v1368, %v1368
      %v1385 = vmul.f32 %v1369, %v1369
      %v1386 = vmul.f32 %v1370, %v1370
      %v1387 = vadd.f32 %v1371, %v1372
      %1388 = vadd.xlane.f32.xlu0 %v1387
      %v1389 = vpop.xlane.xlu0 %1388
      %v1390 = vadd.f32 %v1373, %v1374
      %1391 = vadd.xlane.f32.xlu0 %v1390
      %v1392 = vpop.xlane.xlu0 %1391
      %v1393 = vadd.f32 %v1375, %v1376
      %1394 = vadd.xlane.f32.xlu0 %v1393
      %v1395 = vpop.xlane.xlu0 %1394
      %v1396 = vadd.f32 %v1377, %v1378
      %1397 = vadd.xlane.f32.xlu0 %v1396
      %v1398 = vpop.xlane.xlu0 %1397
      %v1399 = vadd.f32 %v1379, %v1380
      %1400 = vadd.xlane.f32.xlu0 %v1399
      %v1401 = vpop.xlane.xlu0 %1400
      %v1402 = vadd.f32 %v1381, %v1382
      %1403 = vadd.xlane.f32.xlu0 %v1402
      %v1404 = vpop.xlane.xlu0 %1403
      %v1405 = vadd.f32 %v1383, %v1384
      %1406 = vadd.xlane.f32.xlu0 %v1405
      %v1407 = vpop.xlane.xlu0 %1406
      %v1408 = vadd.f32 %v1385, %v1386
      %1409 = vadd.xlane.f32.xlu0 %v1408
      %v1410 = vpop.xlane.xlu0 %1409
      %v1411 = vmul.f32 %v1389, %v1346
      %v1412 = vmul.f32 %v1392, %v1346
      %v1413 = vmul.f32 %v1395, %v1346
      %v1414 = vmul.f32 %v1398, %v1346
      %v1415 = vmul.f32 %v1401, %v1346
      %v1416 = vmul.f32 %v1404, %v1346
      %v1417 = vmul.f32 %v1407, %v1346
      %v1418 = vmul.f32 %v1410, %v1346
      %v1419 = vadd.f32 %v1411, 1e-05
      %v1420 = vadd.f32 %v1412, 1e-05
      %v1421 = vadd.f32 %v1413, 1e-05
      %v1422 = vadd.f32 %v1414, 1e-05
      %v1423 = vadd.f32 %v1415, 1e-05
      %v1424 = vadd.f32 %v1416, 1e-05
      %v1425 = vadd.f32 %v1417, 1e-05
      %v1426 = vadd.f32 %v1418, 1e-05
      %v1427 = vrsqrt.pop %v1419
      %v1428 = vrsqrt.pop %v1420
      %v1429 = vrsqrt.pop %v1421
      %v1430 = vrsqrt.pop %v1422
      %v1431 = vrsqrt.pop %v1423
      %v1432 = vrsqrt.pop %v1424
      %v1433 = vrsqrt.pop %v1425
      %v1434 = vrsqrt.pop %v1426
      %v1435 = vmul.f32 %v1355, %v1427
      %v1436 = vmul.f32 %v1356, %v1427
      %v1437 = vmul.f32 %v1357, %v1428
      %v1438 = vmul.f32 %v1358, %v1428
      %v1439 = vmul.f32 %v1359, %v1429
      %v1440 = vmul.f32 %v1360, %v1429
      %v1441 = vmul.f32 %v1361, %v1430
      %v1442 = vmul.f32 %v1362, %v1430
      %v1443 = vmul.f32 %v1363, %v1431
      %v1444 = vmul.f32 %v1364, %v1431
      %v1445 = vmul.f32 %v1365, %v1432
      %v1446 = vmul.f32 %v1366, %v1432
      %v1447 = vmul.f32 %v1367, %v1433
      %v1448 = vmul.f32 %v1368, %v1433
      %v1449 = vmul.f32 %v1369, %v1434
      %v1450 = vmul.f32 %v1370, %v1434
      %v1452 = vlaneseq
      %v1453 = vshrl.u32 %v1452, 7
      %v1454 = vsub.s32 0, %v1453
      %v1455 = vrot.slane %v1320, %v1454
      %v1456 = vlaneseq
      %v1457 = vshrl.u32 %v1456, 7
      %v1458 = vsub.s32 1, %v1457
      %v1459 = vrot.slane %v1320, %v1458
      %v1462 = vmul.f32 %v1435, %v1455
      %v1463 = vmul.f32 %v1436, %v1459
      %v1464 = vmul.f32 %v1437, %v1455
      %v1465 = vmul.f32 %v1438, %v1459
      %v1466 = vmul.f32 %v1439, %v1455
      %v1467 = vmul.f32 %v1440, %v1459
      %v1468 = vmul.f32 %v1441, %v1455
      %v1469 = vmul.f32 %v1442, %v1459
      %v1470 = vmul.f32 %v1443, %v1455
      %v1471 = vmul.f32 %v1444, %v1459
      %v1472 = vmul.f32 %v1445, %v1455
      %v1473 = vmul.f32 %v1446, %v1459
      %v1474 = vmul.f32 %v1447, %v1455
      %v1475 = vmul.f32 %v1448, %v1459
      %v1476 = vmul.f32 %v1449, %v1455
      %v1477 = vmul.f32 %v1450, %v1459
      %v1479 = vlaneseq
      %v1480 = vshrl.u32 %v1479, 7
      %v1481 = vsub.s32 0, %v1480
      %v1482 = vrot.slane %v1321, %v1481
      %v1483 = vlaneseq
      %v1484 = vshrl.u32 %v1483, 7
      %v1485 = vsub.s32 1, %v1484
      %v1486 = vrot.slane %v1321, %v1485
      %v1489 = vadd.f32 %v1462, %v1482
      %v1490 = vadd.f32 %v1463, %v1486
      %v1491 = vadd.f32 %v1464, %v1482
      %v1492 = vadd.f32 %v1465, %v1486
      %v1493 = vadd.f32 %v1466, %v1482
      %v1494 = vadd.f32 %v1467, %v1486
      %v1495 = vadd.f32 %v1468, %v1482
      %v1496 = vadd.f32 %v1469, %v1486
      %v1497 = vadd.f32 %v1470, %v1482
      %v1498 = vadd.f32 %v1471, %v1486
      %v1499 = vadd.f32 %v1472, %v1482
      %v1500 = vadd.f32 %v1473, %v1486
      %v1501 = vadd.f32 %v1474, %v1482
      %v1502 = vadd.f32 %v1475, %v1486
      %v1503 = vadd.f32 %v1476, %v1482
      %v1504 = vadd.f32 %v1477, %v1486
      %v1505 = vmul.f32 %v1489, 0.5
      %v1506 = vmul.f32 %v1490, 0.5
      %v1507 = vmul.f32 %v1491, 0.5
      %v1508 = vmul.f32 %v1492, 0.5
      %v1509 = vmul.f32 %v1493, 0.5
      %v1510 = vmul.f32 %v1494, 0.5
      %v1511 = vmul.f32 %v1495, 0.5
      %v1512 = vmul.f32 %v1496, 0.5
      %v1513 = vmul.f32 %v1497, 0.5
      %v1514 = vmul.f32 %v1498, 0.5
      %v1515 = vmul.f32 %v1499, 0.5
      %v1516 = vmul.f32 %v1500, 0.5
      %v1517 = vmul.f32 %v1501, 0.5
      %v1518 = vmul.f32 %v1502, 0.5
      %v1519 = vmul.f32 %v1503, 0.5
      %v1520 = vmul.f32 %v1504, 0.5
      %v1521 = vmul.f32 %v1489, 0.70710677
      %v1522 = vmul.f32 %v1490, 0.70710677
      %v1523 = vmul.f32 %v1491, 0.70710677
      %v1524 = vmul.f32 %v1492, 0.70710677
      %v1525 = vmul.f32 %v1493, 0.70710677
      %v1526 = vmul.f32 %v1494, 0.70710677
      %v1527 = vmul.f32 %v1495, 0.70710677
      %v1528 = vmul.f32 %v1496, 0.70710677
      %v1529 = vmul.f32 %v1497, 0.70710677
      %v1530 = vmul.f32 %v1498, 0.70710677
      %v1531 = vmul.f32 %v1499, 0.70710677
      %v1532 = vmul.f32 %v1500, 0.70710677
      %v1533 = vmul.f32 %v1501, 0.70710677
      %v1534 = vmul.f32 %v1502, 0.70710677
      %v1535 = vmul.f32 %v1503, 0.70710677
      %v1536 = vmul.f32 %v1504, 0.70710677
      %v1537 = verf.f32.pop %v1521
      %v1538 = verf.f32.pop %v1522
      %v1539 = verf.f32.pop %v1523
      %v1540 = verf.f32.pop %v1524
      %v1541 = verf.f32.pop %v1525
      %v1542 = verf.f32.pop %v1526
      %v1543 = verf.f32.pop %v1527
      %v1544 = verf.f32.pop %v1528
      %v1545 = verf.f32.pop %v1529
      %v1546 = verf.f32.pop %v1530
      %v1547 = verf.f32.pop %v1531
      %v1548 = verf.f32.pop %v1532
      %v1549 = verf.f32.pop %v1533
      %v1550 = verf.f32.pop %v1534
      %v1551 = verf.f32.pop %v1535
      %v1552 = verf.f32.pop %v1536
      %v1553 = vadd.f32 %v1537, 1.0
      %v1554 = vadd.f32 %v1538, 1.0
      %v1555 = vadd.f32 %v1539, 1.0
      %v1556 = vadd.f32 %v1540, 1.0
      %v1557 = vadd.f32 %v1541, 1.0
      %v1558 = vadd.f32 %v1542, 1.0
      %v1559 = vadd.f32 %v1543, 1.0
      %v1560 = vadd.f32 %v1544, 1.0
      %v1561 = vadd.f32 %v1545, 1.0
      %v1562 = vadd.f32 %v1546, 1.0
      %v1563 = vadd.f32 %v1547, 1.0
      %v1564 = vadd.f32 %v1548, 1.0
      %v1565 = vadd.f32 %v1549, 1.0
      %v1566 = vadd.f32 %v1550, 1.0
      %v1567 = vadd.f32 %v1551, 1.0
      %v1568 = vadd.f32 %v1552, 1.0
      %v1569 = vmul.f32 %v1505, %v1553
      %v1570 = vmul.f32 %v1506, %v1554
      %v1571 = vmul.f32 %v1507, %v1555
      %v1572 = vmul.f32 %v1508, %v1556
      %v1573 = vmul.f32 %v1509, %v1557
      %v1574 = vmul.f32 %v1510, %v1558
      %v1575 = vmul.f32 %v1511, %v1559
      %v1576 = vmul.f32 %v1512, %v1560
      %v1577 = vmul.f32 %v1513, %v1561
      %v1578 = vmul.f32 %v1514, %v1562
      %v1579 = vmul.f32 %v1515, %v1563
      %v1580 = vmul.f32 %v1516, %v1564
      %v1581 = vmul.f32 %v1517, %v1565
      %v1582 = vmul.f32 %v1518, %v1566
      %v1583 = vmul.f32 %v1519, %v1567
      %v1584 = vmul.f32 %v1520, %v1568
      %v1585 = vld [vmem:[%s11] sm:$0xff]
      %v1586 = vld [vmem:[%s11 + $0x8] sm:$0xff]
      %v1587 = vld [vmem:[%s11 + $0x10] sm:$0xff]
      %v1588 = vld [vmem:[%s11 + $0x18] sm:$0xff]
      %v1589 = vld [vmem:[%s11 + $0x20] sm:$0xff]
      %v1590 = vld [vmem:[%s11 + $0x28] sm:$0xff]
      %v1591 = vld [vmem:[%s11 + $0x30] sm:$0xff]
      %v1592 = vld [vmem:[%s11 + $0x38] sm:$0xff]
      %v1593 = vld [vmem:[%s11 + $0x40] sm:$0xff]
      %v1594 = vld [vmem:[%s11 + $0x48] sm:$0xff]
      %v1595 = vld [vmem:[%s11 + $0x50] sm:$0xff]
      %v1596 = vld [vmem:[%s11 + $0x58] sm:$0xff]
      %v1597 = vld [vmem:[%s11 + $0x60] sm:$0xff]
      %v1598 = vld [vmem:[%s11 + $0x68] sm:$0xff]
      %v1599 = vld [vmem:[%s11 + $0x70] sm:$0xff]
      %v1600 = vld [vmem:[%s11 + $0x78] sm:$0xff]
      %v1601 = vld [vmem:[%s11 + $0x80] sm:$0xff]
      %v1602 = vld [vmem:[%s11 + $0x88] sm:$0xff]
      %v1603 = vld [vmem:[%s11 + $0x90] sm:$0xff]
      %v1604 = vld [vmem:[%s11 + $0x98] sm:$0xff]
      %v1605 = vld [vmem:[%s11 + $0xa0] sm:$0xff]
      %v1606 = vld [vmem:[%s11 + $0xa8] sm:$0xff]
      %v1607 = vld [vmem:[%s11 + $0xb0] sm:$0xff]
      %v1608 = vld [vmem:[%s11 + $0xb8] sm:$0xff]
      %v1609 = vld [vmem:[%s11 + $0xc0] sm:$0xff]
      %v1610 = vld [vmem:[%s11 + $0xc8] sm:$0xff]
      %v1611 = vld [vmem:[%s11 + $0xd0] sm:$0xff]
      %v1612 = vld [vmem:[%s11 + $0xd8] sm:$0xff]
      %v1613 = vld [vmem:[%s11 + $0xe0] sm:$0xff]
      %v1614 = vld [vmem:[%s11 + $0xe8] sm:$0xff]
      %v1615 = vld [vmem:[%s11 + $0xf0] sm:$0xff]
      %v1616 = vld [vmem:[%s11 + $0xf8] sm:$0xff]
      %v1617 = vld [vmem:[%s11 + $0x100] sm:$0xff]
      %v1618 = vld [vmem:[%s11 + $0x108] sm:$0xff]
      %v1619 = vld [vmem:[%s11 + $0x110] sm:$0xff]
      %v1620 = vld [vmem:[%s11 + $0x118] sm:$0xff]
      %v1621 = vld [vmem:[%s11 + $0x120] sm:$0xff]
      %v1622 = vld [vmem:[%s11 + $0x128] sm:$0xff]
      %v1623 = vld [vmem:[%s11 + $0x130] sm:$0xff]
      %v1624 = vld [vmem:[%s11 + $0x138] sm:$0xff]
      %v1625 = vld [vmem:[%s11 + $0x140] sm:$0xff]
      %v1626 = vld [vmem:[%s11 + $0x148] sm:$0xff]
      %v1627 = vld [vmem:[%s11 + $0x150] sm:$0xff]
      %v1628 = vld [vmem:[%s11 + $0x158] sm:$0xff]
      %v1629 = vld [vmem:[%s11 + $0x160] sm:$0xff]
      %v1630 = vld [vmem:[%s11 + $0x168] sm:$0xff]
      %v1631 = vld [vmem:[%s11 + $0x170] sm:$0xff]
      %v1632 = vld [vmem:[%s11 + $0x178] sm:$0xff]
      %v1633 = vld [vmem:[%s11 + $0x180] sm:$0xff]
      %v1634 = vld [vmem:[%s11 + $0x188] sm:$0xff]
      %v1635 = vld [vmem:[%s11 + $0x190] sm:$0xff]
      %v1636 = vld [vmem:[%s11 + $0x198] sm:$0xff]
      %v1637 = vld [vmem:[%s11 + $0x1a0] sm:$0xff]
      %v1638 = vld [vmem:[%s11 + $0x1a8] sm:$0xff]
      %v1639 = vld [vmem:[%s11 + $0x1b0] sm:$0xff]
      %v1640 = vld [vmem:[%s11 + $0x1b8] sm:$0xff]
      %v1641 = vld [vmem:[%s11 + $0x1c0] sm:$0xff]
      %v1642 = vld [vmem:[%s11 + $0x1c8] sm:$0xff]
      %v1643 = vld [vmem:[%s11 + $0x1d0] sm:$0xff]
      %v1644 = vld [vmem:[%s11 + $0x1d8] sm:$0xff]
      %v1645 = vld [vmem:[%s11 + $0x1e0] sm:$0xff]
      %v1646 = vld [vmem:[%s11 + $0x1e8] sm:$0xff]
      %v1647 = vld [vmem:[%s11 + $0x1f0] sm:$0xff]
      %v1648 = vld [vmem:[%s11 + $0x1f8] sm:$0xff]
      %v1649 = vld [vmem:[%s13] sm:$0x3]
      %v1651 = vlaneseq
      %v1652 = vshrl.u32 %v1651, 7
      %v1653 = vsub.s32 0, %v1652
      %v1654 = vrot.slane %v1649, %v1653
      %v1655 = vlaneseq
      %v1656 = vshrl.u32 %v1655, 7
      %v1657 = vsub.s32 1, %v1656
      %v1658 = vrot.slane %v1649, %v1657
      %1661 = vmatprep.subr.mxu0 %v1586
      %1662 = vmatpush1.msra.mxu0 %v1585
      %1663 = vmatprep.subr.mxu0 %v1588
      %1664 = vmatpush1.msra.mxu0 %v1587
      %1665 = vmatprep.subr.mxu0 %v1590
      %1666 = vmatpush1.msra.mxu0 %v1589
      %1667 = vmatprep.subr.mxu0 %v1592
      %1668 = vmatpush1.msra.mxu0 %v1591
      %1669 = vmatprep.subr.mxu0 %v1594
      %1670 = vmatpush1.msra.mxu0 %v1593
      %1671 = vmatprep.subr.mxu0 %v1596
      %1672 = vmatpush1.msra.mxu0 %v1595
      %1673 = vmatprep.subr.mxu0 %v1598
      %1674 = vmatpush1.msra.mxu0 %v1597
      %1675 = vmatprep.subr.mxu0 %v1600
      %1676 = vmatpush1.msra.mxu0 %v1599
      %1677 = vmatprep.subr.mxu0 %v1602
      %1678 = vmatpush1.msra.mxu0 %v1601
      %1679 = vmatprep.subr.mxu0 %v1604
      %1680 = vmatpush1.msra.mxu0 %v1603
      %1681 = vmatprep.subr.mxu0 %v1606
      %1682 = vmatpush1.msra.mxu0 %v1605
      %1683 = vmatprep.subr.mxu0 %v1608
      %1684 = vmatpush1.msra.mxu0 %v1607
      %1685 = vmatprep.subr.mxu0 %v1610
      %1686 = vmatpush1.msra.mxu0 %v1609
      %1687 = vmatprep.subr.mxu0 %v1612
      %1688 = vmatpush1.msra.mxu0 %v1611
      %1689 = vmatprep.subr.mxu0 %v1614
      %1690 = vmatpush1.msra.mxu0 %v1613
      %1691 = vmatprep.subr.mxu0 %v1616
      %1692 = vmatpush1.msra.mxu0 %v1615
      %1693 = vmatprep.subr.mxu0 %v1618
      %1694 = vmatpush1.msra.mxu0 %v1617
      %1695 = vmatprep.subr.mxu0 %v1620
      %1696 = vmatpush1.msra.mxu0 %v1619
      %1697 = vmatprep.subr.mxu0 %v1622
      %1698 = vmatpush1.msra.mxu0 %v1621
      %1699 = vmatprep.subr.mxu0 %v1624
      %1700 = vmatpush1.msra.mxu0 %v1623
      %1701 = vmatprep.subr.mxu0 %v1626
      %1702 = vmatpush1.msra.mxu0 %v1625
      %1703 = vmatprep.subr.mxu0 %v1628
      %1704 = vmatpush1.msra.mxu0 %v1627
      %1705 = vmatprep.subr.mxu0 %v1630
      %1706 = vmatpush1.msra.mxu0 %v1629
      %1707 = vmatprep.subr.mxu0 %v1632
      %1708 = vmatpush1.msra.mxu0 %v1631
      %1709 = vmatprep.subr.mxu0 %v1634
      %1710 = vmatpush1.msra.mxu0 %v1633
      %1711 = vmatprep.subr.mxu0 %v1636
      %1712 = vmatpush1.msra.mxu0 %v1635
      %1713 = vmatprep.subr.mxu0 %v1638
      %1714 = vmatpush1.msra.mxu0 %v1637
      %1715 = vmatprep.subr.mxu0 %v1640
      %1716 = vmatpush1.msra.mxu0 %v1639
      %1717 = vmatprep.subr.mxu0 %v1642
      %1718 = vmatpush1.msra.mxu0 %v1641
      %1719 = vmatprep.subr.mxu0 %v1644
      %1720 = vmatpush1.msra.mxu0 %v1643
      %1721 = vmatprep.subr.mxu0 %v1646
      %1722 = vmatpush1.msra.mxu0 %v1645
      %1723 = vmatprep.subr.mxu0 %v1648
      %1724 = vmatpush1.msra.mxu0 %v1647
      %1725 = vmatprep.mubr.f32.mxu0 %v1570
      %1726 = vmatmul.mubr.f32.gmra.mrb[0].mxu0 %v1569
      %v1727 = vpop.f32.mrb[0].mxu0
      %v1728 = vadd.f32 %v1654, %v1727
      %v1729 = vpop.f32.mrb[0].mxu0
      %v1730 = vadd.f32 %v1658, %v1729
      %1731 = vmatprep.mubr.f32.mxu0 %v1572
      %1732 = vmatmul.mubr.f32.gmra.mrb[0].mxu0 %v1571
      %v1733 = vpop.f32.mrb[0].mxu0
      %v1734 = vadd.f32 %v1654, %v1733
      %v1735 = vpop.f32.mrb[0].mxu0
      %v1736 = vadd.f32 %v1658, %v1735
      %1737 = vmatprep.mubr.f32.mxu0 %v1574
      %1738 = vmatmul.mubr.f32.gmra.mrb[0].mxu0 %v1573
      %v1739 = vpop.f32.mrb[0].mxu0
      %v1740 = vadd.f32 %v1654, %v1739
      %v1741 = vpop.f32.mrb[0].mxu0
      %v1742 = vadd.f32 %v1658, %v1741
      %1743 = vmatprep.mubr.f32.mxu0 %v1576
      %1744 = vmatmul.mubr.f32.gmra.mrb[0].mxu0 %v1575
      %v1745 = vpop.f32.mrb[0].mxu0
      %v1746 = vadd.f32 %v1654, %v1745
      %v1747 = vpop.f32.mrb[0].mxu0
      %v1748 = vadd.f32 %v1658, %v1747
      %1749 = vmatprep.mubr.f32.mxu0 %v1578
      %1750 = vmatmul.mubr.f32.gmra.mrb[0].mxu0 %v1577
      %v1751 = vpop.f32.mrb[0].mxu0
      %v1752 = vadd.f32 %v1654, %v1751
      %v1753 = vpop.f32.mrb[0].mxu0
      %v1754 = vadd.f32 %v1658, %v1753
      %1755 = vmatprep.mubr.f32.mxu0 %v1580
      %1756 = vmatmul.mubr.f32.gmra.mrb[0].mxu0 %v1579
      %v1757 = vpop.f32.mrb[0].mxu0
      %v1758 = vadd.f32 %v1654, %v1757
      %v1759 = vpop.f32.mrb[0].mxu0
      %v1760 = vadd.f32 %v1658, %v1759
      %1761 = vmatprep.mubr.f32.mxu0 %v1582
      %1762 = vmatmul.mubr.f32.gmra.mrb[0].mxu0 %v1581
      %v1763 = vpop.f32.mrb[0].mxu0
      %v1764 = vadd.f32 %v1654, %v1763
      %v1765 = vpop.f32.mrb[0].mxu0
      %v1766 = vadd.f32 %v1658, %v1765
      %1767 = vmatprep.mubr.f32.mxu0 %v1584
      %1768 = vmatmul.mubr.f32.gmra.mrb[0].mxu0 %v1583
      %v1769 = vpop.f32.mrb[0].mxu0
      %v1770 = vadd.f32 %v1654, %v1769
      %v1771 = vpop.f32.mrb[0].mxu0
      %v1772 = vadd.f32 %v1658, %v1771
      %1773 = vdwg.mxu0
      %v1774 = vld [vmem:[%s15] sm:$0x3]
      %v1775 = vld [vmem:[%s17] sm:$0x3]
      %v1776 = vadd.f32 %v1728, %v1730
      %1777 = vadd.xlane.f32.xlu0 %v1776
      %v1778 = vpop.xlane.xlu0 %1777
      %v1779 = vadd.f32 %v1734, %v1736
      %1780 = vadd.xlane.f32.xlu0 %v1779
      %v1781 = vpop.xlane.xlu0 %1780
      %v1782 = vadd.f32 %v1740, %v1742
      %1783 = vadd.xlane.f32.xlu0 %v1782
      %v1784 = vpop.xlane.xlu0 %1783
      %v1785 = vadd.f32 %v1746, %v1748
      %1786 = vadd.xlane.f32.xlu0 %v1785
      %v1787 = vpop.xlane.xlu0 %1786
      %v1788 = vadd.f32 %v1752, %v1754
      %1789 = vadd.xlane.f32.xlu0 %v1788
      %v1790 = vpop.xlane.xlu0 %1789
      %v1791 = vadd.f32 %v1758, %v1760
      %1792 = vadd.xlane.f32.xlu0 %v1791
      %v1793 = vpop.xlane.xlu0 %1792
      %v1794 = vadd.f32 %v1764, %v1766
      %1795 = vadd.xlane.f32.xlu0 %v1794
      %v1796 = vpop.xlane.xlu0 %1795
      %v1797 = vadd.f32 %v1770, %v1772
      %1798 = vadd.xlane.f32.xlu0 %v1797
      %v1799 = vpop.xlane.xlu0 %1798
      %v1800 = vmul.f32 %v1778, %v1346
      %v1801 = vmul.f32 %v1781, %v1346
      %v1802 = vmul.f32 %v1784, %v1346
      %v1803 = vmul.f32 %v1787, %v1346
      %v1804 = vmul.f32 %v1790, %v1346
      %v1805 = vmul.f32 %v1793, %v1346
      %v1806 = vmul.f32 %v1796, %v1346
      %v1807 = vmul.f32 %v1799, %v1346
      %v1808 = vsub.f32 %v1728, %v1800
      %v1809 = vsub.f32 %v1730, %v1800
      %v1810 = vsub.f32 %v1734, %v1801
      %v1811 = vsub.f32 %v1736, %v1801
      %v1812 = vsub.f32 %v1740, %v1802
      %v1813 = vsub.f32 %v1742, %v1802
      %v1814 = vsub.f32 %v1746, %v1803
      %v1815 = vsub.f32 %v1748, %v1803
      %v1816 = vsub.f32 %v1752, %v1804
      %v1817 = vsub.f32 %v1754, %v1804
      %v1818 = vsub.f32 %v1758, %v1805
      %v1819 = vsub.f32 %v1760, %v1805
      %v1820 = vsub.f32 %v1764, %v1806
      %v1821 = vsub.f32 %v1766, %v1806
      %v1822 = vsub.f32 %v1770, %v1807
      %v1823 = vsub.f32 %v1772, %v1807
      %v1824 = vmul.f32 %v1808, %v1808
      %v1825 = vmul.f32 %v1809, %v1809
      %v1826 = vmul.f32 %v1810, %v1810
      %v1827 = vmul.f32 %v1811, %v1811
      %v1828 = vmul.f32 %v1812, %v1812
      %v1829 = vmul.f32 %v1813, %v1813
      %v1830 = vmul.f32 %v1814, %v1814
      %v1831 = vmul.f32 %v1815, %v1815
      %v1832 = vmul.f32 %v1816, %v1816
      %v1833 = vmul.f32 %v1817, %v1817
      %v1834 = vmul.f32 %v1818, %v1818
      %v1835 = vmul.f32 %v1819, %v1819
      %v1836 = vmul.f32 %v1820, %v1820
      %v1837 = vmul.f32 %v1821, %v1821
      %v1838 = vmul.f32 %v1822, %v1822
      %v1839 = vmul.f32 %v1823, %v1823
      %v1840 = vadd.f32 %v1824, %v1825
      %1841 = vadd.xlane.f32.xlu0 %v1840
      %v1842 = vpop.xlane.xlu0 %1841
      %v1843 = vadd.f32 %v1826, %v1827
      %1844 = vadd.xlane.f32.xlu0 %v1843
      %v1845 = vpop.xlane.xlu0 %1844
      %v1846 = vadd.f32 %v1828, %v1829
      %1847 = vadd.xlane.f32.xlu0 %v1846
      %v1848 = vpop.xlane.xlu0 %1847
      %v1849 = vadd.f32 %v1830, %v1831
      %1850 = vadd.xlane.f32.xlu0 %v1849
      %v1851 = vpop.xlane.xlu0 %1850
      %v1852 = vadd.f32 %v1832, %v1833
      %1853 = vadd.xlane.f32.xlu0 %v1852
      %v1854 = vpop.xlane.xlu0 %1853
      %v1855 = vadd.f32 %v1834, %v1835
      %1856 = vadd.xlane.f32.xlu0 %v1855
      %v1857 = vpop.xlane.xlu0 %1856
      %v1858 = vadd.f32 %v1836, %v1837
      %1859 = vadd.xlane.f32.xlu0 %v1858
      %v1860 = vpop.xlane.xlu0 %1859
      %v1861 = vadd.f32 %v1838, %v1839
      %1862 = vadd.xlane.f32.xlu0 %v1861
      %v1863 = vpop.xlane.xlu0 %1862
      %v1864 = vmul.f32 %v1842, %v1346
      %v1865 = vmul.f32 %v1845, %v1346
      %v1866 = vmul.f32 %v1848, %v1346
      %v1867 = vmul.f32 %v1851, %v1346
      %v1868 = vmul.f32 %v1854, %v1346
      %v1869 = vmul.f32 %v1857, %v1346
      %v1870 = vmul.f32 %v1860, %v1346
      %v1871 = vmul.f32 %v1863, %v1346
      %v1872 = vadd.f32 %v1864, 1e-05
      %v1873 = vadd.f32 %v1865, 1e-05
      %v1874 = vadd.f32 %v1866, 1e-05
      %v1875 = vadd.f32 %v1867, 1e-05
      %v1876 = vadd.f32 %v1868, 1e-05
      %v1877 = vadd.f32 %v1869, 1e-05
      %v1878 = vadd.f32 %v1870, 1e-05
      %v1879 = vadd.f32 %v1871, 1e-05
      %v1880 = vrsqrt.pop %v1872
      %v1881 = vrsqrt.pop %v1873
      %v1882 = vrsqrt.pop %v1874
      %v1883 = vrsqrt.pop %v1875
      %v1884 = vrsqrt.pop %v1876
      %v1885 = vrsqrt.pop %v1877
      %v1886 = vrsqrt.pop %v1878
      %v1887 = vrsqrt.pop %v1879
      %v1888 = vmul.f32 %v1808, %v1880
      %v1889 = vmul.f32 %v1809, %v1880
      %v1890 = vmul.f32 %v1810, %v1881
      %v1891 = vmul.f32 %v1811, %v1881
      %v1892 = vmul.f32 %v1812, %v1882
      %v1893 = vmul.f32 %v1813, %v1882
      %v1894 = vmul.f32 %v1814, %v1883
      %v1895 = vmul.f32 %v1815, %v1883
      %v1896 = vmul.f32 %v1816, %v1884
      %v1897 = vmul.f32 %v1817, %v1884
      %v1898 = vmul.f32 %v1818, %v1885
      %v1899 = vmul.f32 %v1819, %v1885
      %v1900 = vmul.f32 %v1820, %v1886
      %v1901 = vmul.f32 %v1821, %v1886
      %v1902 = vmul.f32 %v1822, %v1887
      %v1903 = vmul.f32 %v1823, %v1887
      %v1905 = vlaneseq
      %v1906 = vshrl.u32 %v1905, 7
      %v1907 = vsub.s32 0, %v1906
      %v1908 = vrot.slane %v1774, %v1907
      %v1909 = vlaneseq
      %v1910 = vshrl.u32 %v1909, 7
      %v1911 = vsub.s32 1, %v1910
      %v1912 = vrot.slane %v1774, %v1911
      %v1915 = vmul.f32 %v1888, %v1908
      %v1916 = vmul.f32 %v1889, %v1912
      %v1917 = vmul.f32 %v1890, %v1908
      %v1918 = vmul.f32 %v1891, %v1912
      %v1919 = vmul.f32 %v1892, %v1908
      %v1920 = vmul.f32 %v1893, %v1912
      %v1921 = vmul.f32 %v1894, %v1908
      %v1922 = vmul.f32 %v1895, %v1912
      %v1923 = vmul.f32 %v1896, %v1908
      %v1924 = vmul.f32 %v1897, %v1912
      %v1925 = vmul.f32 %v1898, %v1908
      %v1926 = vmul.f32 %v1899, %v1912
      %v1927 = vmul.f32 %v1900, %v1908
      %v1928 = vmul.f32 %v1901, %v1912
      %v1929 = vmul.f32 %v1902, %v1908
      %v1930 = vmul.f32 %v1903, %v1912
      %v1932 = vlaneseq
      %v1933 = vshrl.u32 %v1932, 7
      %v1934 = vsub.s32 0, %v1933
      %v1935 = vrot.slane %v1775, %v1934
      %v1936 = vlaneseq
      %v1937 = vshrl.u32 %v1936, 7
      %v1938 = vsub.s32 1, %v1937
      %v1939 = vrot.slane %v1775, %v1938
      %v1942 = vadd.f32 %v1915, %v1935
      %v1943 = vadd.f32 %v1916, %v1939
      %v1944 = vadd.f32 %v1917, %v1935
      %v1945 = vadd.f32 %v1918, %v1939
      %v1946 = vadd.f32 %v1919, %v1935
      %v1947 = vadd.f32 %v1920, %v1939
      %v1948 = vadd.f32 %v1921, %v1935
      %v1949 = vadd.f32 %v1922, %v1939
      %v1950 = vadd.f32 %v1923, %v1935
      %v1951 = vadd.f32 %v1924, %v1939
      %v1952 = vadd.f32 %v1925, %v1935
      %v1953 = vadd.f32 %v1926, %v1939
      %v1954 = vadd.f32 %v1927, %v1935
      %v1955 = vadd.f32 %v1928, %v1939
      %v1956 = vadd.f32 %v1929, %v1935
      %v1957 = vadd.f32 %v1930, %v1939
      %v1958 = vmul.f32 %v1942, 0.5
      %v1959 = vmul.f32 %v1943, 0.5
      %v1960 = vmul.f32 %v1944, 0.5
      %v1961 = vmul.f32 %v1945, 0.5
      %v1962 = vmul.f32 %v1946, 0.5
      %v1963 = vmul.f32 %v1947, 0.5
      %v1964 = vmul.f32 %v1948, 0.5
      %v1965 = vmul.f32 %v1949, 0.5
      %v1966 = vmul.f32 %v1950, 0.5
      %v1967 = vmul.f32 %v1951, 0.5
      %v1968 = vmul.f32 %v1952, 0.5
      %v1969 = vmul.f32 %v1953, 0.5
      %v1970 = vmul.f32 %v1954, 0.5
      %v1971 = vmul.f32 %v1955, 0.5
      %v1972 = vmul.f32 %v1956, 0.5
      %v1973 = vmul.f32 %v1957, 0.5
      %v1974 = vmul.f32 %v1942, 0.70710677
      %v1975 = vmul.f32 %v1943, 0.70710677
      %v1976 = vmul.f32 %v1944, 0.70710677
      %v1977 = vmul.f32 %v1945, 0.70710677
      %v1978 = vmul.f32 %v1946, 0.70710677
      %v1979 = vmul.f32 %v1947, 0.70710677
      %v1980 = vmul.f32 %v1948, 0.70710677
      %v1981 = vmul.f32 %v1949, 0.70710677
      %v1982 = vmul.f32 %v1950, 0.70710677
      %v1983 = vmul.f32 %v1951, 0.70710677
      %v1984 = vmul.f32 %v1952, 0.70710677
      %v1985 = vmul.f32 %v1953, 0.70710677
      %v1986 = vmul.f32 %v1954, 0.70710677
      %v1987 = vmul.f32 %v1955, 0.70710677
      %v1988 = vmul.f32 %v1956, 0.70710677
      %v1989 = vmul.f32 %v1957, 0.70710677
      %v1990 = verf.f32.pop %v1974
      %v1991 = verf.f32.pop %v1975
      %v1992 = verf.f32.pop %v1976
      %v1993 = verf.f32.pop %v1977
      %v1994 = verf.f32.pop %v1978
      %v1995 = verf.f32.pop %v1979
      %v1996 = verf.f32.pop %v1980
      %v1997 = verf.f32.pop %v1981
      %v1998 = verf.f32.pop %v1982
      %v1999 = verf.f32.pop %v1983
      %v2000 = verf.f32.pop %v1984
      %v2001 = verf.f32.pop %v1985
      %v2002 = verf.f32.pop %v1986
      %v2003 = verf.f32.pop %v1987
      %v2004 = verf.f32.pop %v1988
      %v2005 = verf.f32.pop %v1989
      %v2006 = vadd.f32 %v1990, 1.0
      %v2007 = vadd.f32 %v1991, 1.0
      %v2008 = vadd.f32 %v1992, 1.0
      %v2009 = vadd.f32 %v1993, 1.0
      %v2010 = vadd.f32 %v1994, 1.0
      %v2011 = vadd.f32 %v1995, 1.0
      %v2012 = vadd.f32 %v1996, 1.0
      %v2013 = vadd.f32 %v1997, 1.0
      %v2014 = vadd.f32 %v1998, 1.0
      %v2015 = vadd.f32 %v1999, 1.0
      %v2016 = vadd.f32 %v2000, 1.0
      %v2017 = vadd.f32 %v2001, 1.0
      %v2018 = vadd.f32 %v2002, 1.0
      %v2019 = vadd.f32 %v2003, 1.0
      %v2020 = vadd.f32 %v2004, 1.0
      %v2021 = vadd.f32 %v2005, 1.0
      %v2022 = vmul.f32 %v1958, %v2006
      %v2023 = vmul.f32 %v1959, %v2007
      %v2024 = vmul.f32 %v1960, %v2008
      %v2025 = vmul.f32 %v1961, %v2009
      %v2026 = vmul.f32 %v1962, %v2010
      %v2027 = vmul.f32 %v1963, %v2011
      %v2028 = vmul.f32 %v1964, %v2012
      %v2029 = vmul.f32 %v1965, %v2013
      %v2030 = vmul.f32 %v1966, %v2014
      %v2031 = vmul.f32 %v1967, %v2015
      %v2032 = vmul.f32 %v1968, %v2016
      %v2033 = vmul.f32 %v1969, %v2017
      %v2034 = vmul.f32 %v1970, %v2018
      %v2035 = vmul.f32 %v1971, %v2019
      %v2036 = vmul.f32 %v1972, %v2020
      %v2037 = vmul.f32 %v1973, %v2021
      %v2038 = vld [vmem:[%s19] sm:$0xff]
      %v2039 = vld [vmem:[%s19 + $0x8] sm:$0xff]
      %v2040 = vld [vmem:[%s19 + $0x10] sm:$0xff]
      %v2041 = vld [vmem:[%s19 + $0x18] sm:$0xff]
      %v2042 = vld [vmem:[%s19 + $0x20] sm:$0xff]
      %v2043 = vld [vmem:[%s19 + $0x28] sm:$0xff]
      %v2044 = vld [vmem:[%s19 + $0x30] sm:$0xff]
      %v2045 = vld [vmem:[%s19 + $0x38] sm:$0xff]
      %v2046 = vld [vmem:[%s19 + $0x40] sm:$0xff]
      %v2047 = vld [vmem:[%s19 + $0x48] sm:$0xff]
      %v2048 = vld [vmem:[%s19 + $0x50] sm:$0xff]
      %v2049 = vld [vmem:[%s19 + $0x58] sm:$0xff]
      %v2050 = vld [vmem:[%s19 + $0x60] sm:$0xff]
      %v2051 = vld [vmem:[%s19 + $0x68] sm:$0xff]
      %v2052 = vld [vmem:[%s19 + $0x70] sm:$0xff]
      %v2053 = vld [vmem:[%s19 + $0x78] sm:$0xff]
      %v2054 = vld [vmem:[%s19 + $0x80] sm:$0xff]
      %v2055 = vld [vmem:[%s19 + $0x88] sm:$0xff]
      %v2056 = vld [vmem:[%s19 + $0x90] sm:$0xff]
      %v2057 = vld [vmem:[%s19 + $0x98] sm:$0xff]
      %v2058 = vld [vmem:[%s19 + $0xa0] sm:$0xff]
      %v2059 = vld [vmem:[%s19 + $0xa8] sm:$0xff]
      %v2060 = vld [vmem:[%s19 + $0xb0] sm:$0xff]
      %v2061 = vld [vmem:[%s19 + $0xb8] sm:$0xff]
      %v2062 = vld [vmem:[%s19 + $0xc0] sm:$0xff]
      %v2063 = vld [vmem:[%s19 + $0xc8] sm:$0xff]
      %v2064 = vld [vmem:[%s19 + $0xd0] sm:$0xff]
      %v2065 = vld [vmem:[%s19 + $0xd8] sm:$0xff]
      %v2066 = vld [vmem:[%s19 + $0xe0] sm:$0xff]
      %v2067 = vld [vmem:[%s19 + $0xe8] sm:$0xff]
      %v2068 = vld [vmem:[%s19 + $0xf0] sm:$0xff]
      %v2069 = vld [vmem:[%s19 + $0xf8] sm:$0xff]
      %v2070 = vld [vmem:[%s19 + $0x100] sm:$0xff]
      %v2071 = vld [vmem:[%s19 + $0x108] sm:$0xff]
      %v2072 = vld [vmem:[%s19 + $0x110] sm:$0xff]
      %v2073 = vld [vmem:[%s19 + $0x118] sm:$0xff]
      %v2074 = vld [vmem:[%s19 + $0x120] sm:$0xff]
      %v2075 = vld [vmem:[%s19 + $0x128] sm:$0xff]
      %v2076 = vld [vmem:[%s19 + $0x130] sm:$0xff]
      %v2077 = vld [vmem:[%s19 + $0x138] sm:$0xff]
      %v2078 = vld [vmem:[%s19 + $0x140] sm:$0xff]
      %v2079 = vld [vmem:[%s19 + $0x148] sm:$0xff]
      %v2080 = vld [vmem:[%s19 + $0x150] sm:$0xff]
      %v2081 = vld [vmem:[%s19 + $0x158] sm:$0xff]
      %v2082 = vld [vmem:[%s19 + $0x160] sm:$0xff]
      %v2083 = vld [vmem:[%s19 + $0x168] sm:$0xff]
      %v2084 = vld [vmem:[%s19 + $0x170] sm:$0xff]
      %v2085 = vld [vmem:[%s19 + $0x178] sm:$0xff]
      %v2086 = vld [vmem:[%s19 + $0x180] sm:$0xff]
      %v2087 = vld [vmem:[%s19 + $0x188] sm:$0xff]
      %v2088 = vld [vmem:[%s19 + $0x190] sm:$0xff]
      %v2089 = vld [vmem:[%s19 + $0x198] sm:$0xff]
      %v2090 = vld [vmem:[%s19 + $0x1a0] sm:$0xff]
      %v2091 = vld [vmem:[%s19 + $0x1a8] sm:$0xff]
      %v2092 = vld [vmem:[%s19 + $0x1b0] sm:$0xff]
      %v2093 = vld [vmem:[%s19 + $0x1b8] sm:$0xff]
      %v2094 = vld [vmem:[%s19 + $0x1c0] sm:$0xff]
      %v2095 = vld [vmem:[%s19 + $0x1c8] sm:$0xff]
      %v2096 = vld [vmem:[%s19 + $0x1d0] sm:$0xff]
      %v2097 = vld [vmem:[%s19 + $0x1d8] sm:$0xff]
      %v2098 = vld [vmem:[%s19 + $0x1e0] sm:$0xff]
      %v2099 = vld [vmem:[%s19 + $0x1e8] sm:$0xff]
      %v2100 = vld [vmem:[%s19 + $0x1f0] sm:$0xff]
      %v2101 = vld [vmem:[%s19 + $0x1f8] sm:$0xff]
      %v2102 = vld [vmem:[%s19 + $0x200] sm:$0xff]
      %v2103 = vld [vmem:[%s19 + $0x208] sm:$0xff]
      %v2104 = vld [vmem:[%s19 + $0x210] sm:$0xff]
      %v2105 = vld [vmem:[%s19 + $0x218] sm:$0xff]
      %v2106 = vld [vmem:[%s19 + $0x220] sm:$0xff]
      %v2107 = vld [vmem:[%s19 + $0x228] sm:$0xff]
      %v2108 = vld [vmem:[%s19 + $0x230] sm:$0xff]
      %v2109 = vld [vmem:[%s19 + $0x238] sm:$0xff]
      %v2110 = vld [vmem:[%s19 + $0x240] sm:$0xff]
      %v2111 = vld [vmem:[%s19 + $0x248] sm:$0xff]
      %v2112 = vld [vmem:[%s19 + $0x250] sm:$0xff]
      %v2113 = vld [vmem:[%s19 + $0x258] sm:$0xff]
      %v2114 = vld [vmem:[%s19 + $0x260] sm:$0xff]
      %v2115 = vld [vmem:[%s19 + $0x268] sm:$0xff]
      %v2116 = vld [vmem:[%s19 + $0x270] sm:$0xff]
      %v2117 = vld [vmem:[%s19 + $0x278] sm:$0xff]
      %v2118 = vld [vmem:[%s19 + $0x280] sm:$0xff]
      %v2119 = vld [vmem:[%s19 + $0x288] sm:$0xff]
      %v2120 = vld [vmem:[%s19 + $0x290] sm:$0xff]
      %v2121 = vld [vmem:[%s19 + $0x298] sm:$0xff]
      %v2122 = vld [vmem:[%s19 + $0x2a0] sm:$0xff]
      %v2123 = vld [vmem:[%s19 + $0x2a8] sm:$0xff]
      %v2124 = vld [vmem:[%s19 + $0x2b0] sm:$0xff]
      %v2125 = vld [vmem:[%s19 + $0x2b8] sm:$0xff]
      %v2126 = vld [vmem:[%s19 + $0x2c0] sm:$0xff]
      %v2127 = vld [vmem:[%s19 + $0x2c8] sm:$0xff]
      %v2128 = vld [vmem:[%s19 + $0x2d0] sm:$0xff]
      %v2129 = vld [vmem:[%s19 + $0x2d8] sm:$0xff]
      %v2130 = vld [vmem:[%s19 + $0x2e0] sm:$0xff]
      %v2131 = vld [vmem:[%s19 + $0x2e8] sm:$0xff]
      %v2132 = vld [vmem:[%s19 + $0x2f0] sm:$0xff]
      %v2133 = vld [vmem:[%s19 + $0x2f8] sm:$0xff]
      %v2134 = vld [vmem:[%s19 + $0x300] sm:$0xff]
      %v2135 = vld [vmem:[%s19 + $0x308] sm:$0xff]
      %v2136 = vld [vmem:[%s19 + $0x310] sm:$0xff]
      %v2137 = vld [vmem:[%s19 + $0x318] sm:$0xff]
      %v2138 = vld [vmem:[%s19 + $0x320] sm:$0xff]
      %v2139 = vld [vmem:[%s19 + $0x328] sm:$0xff]
      %v2140 = vld [vmem:[%s19 + $0x330] sm:$0xff]
      %v2141 = vld [vmem:[%s19 + $0x338] sm:$0xff]
      %v2142 = vld [vmem:[%s19 + $0x340] sm:$0xff]
      %v2143 = vld [vmem:[%s19 + $0x348] sm:$0xff]
      %v2144 = vld [vmem:[%s19 + $0x350] sm:$0xff]
      %v2145 = vld [vmem:[%s19 + $0x358] sm:$0xff]
      %v2146 = vld [vmem:[%s19 + $0x360] sm:$0xff]
      %v2147 = vld [vmem:[%s19 + $0x368] sm:$0xff]
      %v2148 = vld [vmem:[%s19 + $0x370] sm:$0xff]
      %v2149 = vld [vmem:[%s19 + $0x378] sm:$0xff]
      %v2150 = vld [vmem:[%s19 + $0x380] sm:$0xff]
      %v2151 = vld [vmem:[%s19 + $0x388] sm:$0xff]
      %v2152 = vld [vmem:[%s19 + $0x390] sm:$0xff]
      %v2153 = vld [vmem:[%s19 + $0x398] sm:$0xff]
      %v2154 = vld [vmem:[%s19 + $0x3a0] sm:$0xff]
      %v2155 = vld [vmem:[%s19 + $0x3a8] sm:$0xff]
      %v2156 = vld [vmem:[%s19 + $0x3b0] sm:$0xff]
      %v2157 = vld [vmem:[%s19 + $0x3b8] sm:$0xff]
      %v2158 = vld [vmem:[%s19 + $0x3c0] sm:$0xff]
      %v2159 = vld [vmem:[%s19 + $0x3c8] sm:$0xff]
      %v2160 = vld [vmem:[%s19 + $0x3d0] sm:$0xff]
      %v2161 = vld [vmem:[%s19 + $0x3d8] sm:$0xff]
      %v2162 = vld [vmem:[%s19 + $0x3e0] sm:$0xff]
      %v2163 = vld [vmem:[%s19 + $0x3e8] sm:$0xff]
      %v2164 = vld [vmem:[%s19 + $0x3f0] sm:$0xff]
      %v2165 = vld [vmem:[%s19 + $0x3f8] sm:$0xff]
      %v2166 = vld [vmem:[%s19 + $0x400] sm:$0xff]
      %v2167 = vld [vmem:[%s19 + $0x408] sm:$0xff]
      %v2168 = vld [vmem:[%s19 + $0x410] sm:$0xff]
      %v2169 = vld [vmem:[%s19 + $0x418] sm:$0xff]
      %v2170 = vld [vmem:[%s19 + $0x420] sm:$0xff]
      %v2171 = vld [vmem:[%s19 + $0x428] sm:$0xff]
      %v2172 = vld [vmem:[%s19 + $0x430] sm:$0xff]
      %v2173 = vld [vmem:[%s19 + $0x438] sm:$0xff]
      %v2174 = vld [vmem:[%s19 + $0x440] sm:$0xff]
      %v2175 = vld [vmem:[%s19 + $0x448] sm:$0xff]
      %v2176 = vld [vmem:[%s19 + $0x450] sm:$0xff]
      %v2177 = vld [vmem:[%s19 + $0x458] sm:$0xff]
      %v2178 = vld [vmem:[%s19 + $0x460] sm:$0xff]
      %v2179 = vld [vmem:[%s19 + $0x468] sm:$0xff]
      %v2180 = vld [vmem:[%s19 + $0x470] sm:$0xff]
      %v2181 = vld [vmem:[%s19 + $0x478] sm:$0xff]
      %v2182 = vld [vmem:[%s19 + $0x480] sm:$0xff]
      %v2183 = vld [vmem:[%s19 + $0x488] sm:$0xff]
      %v2184 = vld [vmem:[%s19 + $0x490] sm:$0xff]
      %v2185 = vld [vmem:[%s19 + $0x498] sm:$0xff]
      %v2186 = vld [vmem:[%s19 + $0x4a0] sm:$0xff]
      %v2187 = vld [vmem:[%s19 + $0x4a8] sm:$0xff]
      %v2188 = vld [vmem:[%s19 + $0x4b0] sm:$0xff]
      %v2189 = vld [vmem:[%s19 + $0x4b8] sm:$0xff]
      %v2190 = vld [vmem:[%s19 + $0x4c0] sm:$0xff]
      %v2191 = vld [vmem:[%s19 + $0x4c8] sm:$0xff]
      %v2192 = vld [vmem:[%s19 + $0x4d0] sm:$0xff]
      %v2193 = vld [vmem:[%s19 + $0x4d8] sm:$0xff]
      %v2194 = vld [vmem:[%s19 + $0x4e0] sm:$0xff]
      %v2195 = vld [vmem:[%s19 + $0x4e8] sm:$0xff]
      %v2196 = vld [vmem:[%s19 + $0x4f0] sm:$0xff]
      %v2197 = vld [vmem:[%s19 + $0x4f8] sm:$0xff]
      %v2198 = vld [vmem:[%s19 + $0x500] sm:$0xff]
      %v2199 = vld [vmem:[%s19 + $0x508] sm:$0xff]
      %v2200 = vld [vmem:[%s19 + $0x510] sm:$0xff]
      %v2201 = vld [vmem:[%s19 + $0x518] sm:$0xff]
      %v2202 = vld [vmem:[%s19 + $0x520] sm:$0xff]
      %v2203 = vld [vmem:[%s19 + $0x528] sm:$0xff]
      %v2204 = vld [vmem:[%s19 + $0x530] sm:$0xff]
      %v2205 = vld [vmem:[%s19 + $0x538] sm:$0xff]
      %v2206 = vld [vmem:[%s19 + $0x540] sm:$0xff]
      %v2207 = vld [vmem:[%s19 + $0x548] sm:$0xff]
      %v2208 = vld [vmem:[%s19 + $0x550] sm:$0xff]
      %v2209 = vld [vmem:[%s19 + $0x558] sm:$0xff]
      %v2210 = vld [vmem:[%s19 + $0x560] sm:$0xff]
      %v2211 = vld [vmem:[%s19 + $0x568] sm:$0xff]
      %v2212 = vld [vmem:[%s19 + $0x570] sm:$0xff]
      %v2213 = vld [vmem:[%s19 + $0x578] sm:$0xff]
      %v2214 = vld [vmem:[%s19 + $0x580] sm:$0xff]
      %v2215 = vld [vmem:[%s19 + $0x588] sm:$0xff]
      %v2216 = vld [vmem:[%s19 + $0x590] sm:$0xff]
      %v2217 = vld [vmem:[%s19 + $0x598] sm:$0xff]
      %v2218 = vld [vmem:[%s19 + $0x5a0] sm:$0xff]
      %v2219 = vld [vmem:[%s19 + $0x5a8] sm:$0xff]
      %v2220 = vld [vmem:[%s19 + $0x5b0] sm:$0xff]
      %v2221 = vld [vmem:[%s19 + $0x5b8] sm:$0xff]
      %v2222 = vld [vmem:[%s19 + $0x5c0] sm:$0xff]
      %v2223 = vld [vmem:[%s19 + $0x5c8] sm:$0xff]
      %v2224 = vld [vmem:[%s19 + $0x5d0] sm:$0xff]
      %v2225 = vld [vmem:[%s19 + $0x5d8] sm:$0xff]
      %v2226 = vld [vmem:[%s19 + $0x5e0] sm:$0xff]
      %v2227 = vld [vmem:[%s19 + $0x5e8] sm:$0xff]
      %v2228 = vld [vmem:[%s19 + $0x5f0] sm:$0xff]
      %v2229 = vld [vmem:[%s19 + $0x5f8] sm:$0xff]
      %v2230 = vld [vmem:[%s21] sm:$0x3f]
      %v2232 = vlaneseq
      %v2233 = vshrl.u32 %v2232, 7
      %v2234 = vsub.s32 0, %v2233
      %v2235 = vrot.slane %v2230, %v2234
      %v2236 = vlaneseq
      %v2237 = vshrl.u32 %v2236, 7
      %v2238 = vsub.s32 1, %v2237
      %v2239 = vrot.slane %v2230, %v2238
      %v2240 = vlaneseq
      %v2241 = vshrl.u32 %v2240, 7
      %v2242 = vsub.s32 2, %v2241
      %v2243 = vrot.slane %v2230, %v2242
      %v2244 = vlaneseq
      %v2245 = vshrl.u32 %v2244, 7
      %v2246 = vsub.s32 3, %v2245
      %v2247 = vrot.slane %v2230, %v2246
      %v2248 = vlaneseq
      %v2249 = vshrl.u32 %v2248, 7
      %v2250 = vsub.s32 4, %v2249
      %v2251 = vrot.slane %v2230, %v2250
      %v2252 = vlaneseq
      %v2253 = vshrl.u32 %v2252, 7
      %v2254 = vsub.s32 5, %v2253
      %v2255 = vrot.slane %v2230, %v2254
      %2262 = vmatprep.subr.mxu0 %v2039
      %2263 = vmatpush1.msra.mxu0 %v2038
      %2264 = vmatprep.subr.mxu0 %v2045
      %2265 = vmatpush1.msra.mxu0 %v2044
      %2266 = vmatprep.subr.mxu0 %v2051
      %2267 = vmatpush1.msra.mxu0 %v2050
      %2268 = vmatprep.subr.mxu0 %v2057
      %2269 = vmatpush1.msra.mxu0 %v2056
      %2270 = vmatprep.subr.mxu0 %v2063
      %2271 = vmatpush1.msra.mxu0 %v2062
      %2272 = vmatprep.subr.mxu0 %v2069
      %2273 = vmatpush1.msra.mxu0 %v2068
      %2274 = vmatprep.subr.mxu0 %v2075
      %2275 = vmatpush1.msra.mxu0 %v2074
      %2276 = vmatprep.subr.mxu0 %v2081
      %2277 = vmatpush1.msra.mxu0 %v2080
      %2278 = vmatprep.subr.mxu0 %v2087
      %2279 = vmatpush1.msra.mxu0 %v2086
      %2280 = vmatprep.subr.mxu0 %v2093
      %2281 = vmatpush1.msra.mxu0 %v2092
      %2282 = vmatprep.subr.mxu0 %v2099
      %2283 = vmatpush1.msra.mxu0 %v2098
      %2284 = vmatprep.subr.mxu0 %v2105
      %2285 = vmatpush1.msra.mxu0 %v2104
      %2286 = vmatprep.subr.mxu0 %v2111
      %2287 = vmatpush1.msra.mxu0 %v2110
      %2288 = vmatprep.subr.mxu0 %v2117
      %2289 = vmatpush1.msra.mxu0 %v2116
      %2290 = vmatprep.subr.mxu0 %v2123
      %2291 = vmatpush1.msra.mxu0 %v2122
      %2292 = vmatprep.subr.mxu0 %v2129
      %2293 = vmatpush1.msra.mxu0 %v2128
      %2294 = vmatprep.subr.mxu0 %v2135
      %2295 = vmatpush1.msra.mxu0 %v2134
      %2296 = vmatprep.subr.mxu0 %v2141
      %2297 = vmatpush1.msra.mxu0 %v2140
      %2298 = vmatprep.subr.mxu0 %v2147
      %2299 = vmatpush1.msra.mxu0 %v2146
      %2300 = vmatprep.subr.mxu0 %v2153
      %2301 = vmatpush1.msra.mxu0 %v2152
      %2302 = vmatprep.subr.mxu0 %v2159
      %2303 = vmatpush1.msra.mxu0 %v2158
      %2304 = vmatprep.subr.mxu0 %v2165
      %2305 = vmatpush1.msra.mxu0 %v2164
      %2306 = vmatprep.subr.mxu0 %v2171
      %2307 = vmatpush1.msra.mxu0 %v2170
      %2308 = vmatprep.subr.mxu0 %v2177
      %2309 = vmatpush1.msra.mxu0 %v2176
      %2310 = vmatprep.subr.mxu0 %v2183
      %2311 = vmatpush1.msra.mxu0 %v2182
      %2312 = vmatprep.subr.mxu0 %v2189
      %2313 = vmatpush1.msra.mxu0 %v2188
      %2314 = vmatprep.subr.mxu0 %v2195
      %2315 = vmatpush1.msra.mxu0 %v2194
      %2316 = vmatprep.subr.mxu0 %v2201
      %2317 = vmatpush1.msra.mxu0 %v2200
      %2318 = vmatprep.subr.mxu0 %v2207
      %2319 = vmatpush1.msra.mxu0 %v2206
      %2320 = vmatprep.subr.mxu0 %v2213
      %2321 = vmatpush1.msra.mxu0 %v2212
      %2322 = vmatprep.subr.mxu0 %v2219
      %2323 = vmatpush1.msra.mxu0 %v2218
      %2324 = vmatprep.subr.mxu0 %v2225
      %2325 = vmatpush1.msra.mxu0 %v2224
      %2326 = vmatprep.mubr.f32.mxu0 %v2023
      %2327 = vmatmul.mubr.f32.gmra.mrb[0].mxu0 %v2022
      %v2328 = vpop.f32.mrb[0].mxu0
      %v2329 = vadd.f32 %v2235, %v2328
      %v2330 = vpop.f32.mrb[0].mxu0
      %v2331 = vadd.f32 %v2239, %v2330
      %2332 = vmatprep.mubr.f32.mxu0 %v2025
      %2333 = vmatmul.mubr.f32.gmra.mrb[0].mxu0 %v2024
      %v2334 = vpop.f32.mrb[0].mxu0
      %v2335 = vadd.f32 %v2235, %v2334
      %v2336 = vpop.f32.mrb[0].mxu0
      %v2337 = vadd.f32 %v2239, %v2336
      %2338 = vmatprep.mubr.f32.mxu0 %v2027
      %2339 = vmatmul.mubr.f32.gmra.mrb[0].mxu0 %v2026
      %v2340 = vpop.f32.mrb[0].mxu0
      %v2341 = vadd.f32 %v2235, %v2340
      %v2342 = vpop.f32.mrb[0].mxu0
      %v2343 = vadd.f32 %v2239, %v2342
      %2344 = vmatprep.mubr.f32.mxu0 %v2029
      %2345 = vmatmul.mubr.f32.gmra.mrb[0].mxu0 %v2028
      %v2346 = vpop.f32.mrb[0].mxu0
      %v2347 = vadd.f32 %v2235, %v2346
      %v2348 = vpop.f32.mrb[0].mxu0
      %v2349 = vadd.f32 %v2239, %v2348
      %2350 = vmatprep.mubr.f32.mxu0 %v2031
      %2351 = vmatmul.mubr.f32.gmra.mrb[0].mxu0 %v2030
      %v2352 = vpop.f32.mrb[0].mxu0
      %v2353 = vadd.f32 %v2235, %v2352
      %v2354 = vpop.f32.mrb[0].mxu0
      %v2355 = vadd.f32 %v2239, %v2354
      %2356 = vmatprep.mubr.f32.mxu0 %v2033
      %2357 = vmatmul.mubr.f32.gmra.mrb[0].mxu0 %v2032
      %v2358 = vpop.f32.mrb[0].mxu0
      %v2359 = vadd.f32 %v2235, %v2358
      %v2360 = vpop.f32.mrb[0].mxu0
      %v2361 = vadd.f32 %v2239, %v2360
      %2362 = vmatprep.mubr.f32.mxu0 %v2035
      %2363 = vmatmul.mubr.f32.gmra.mrb[0].mxu0 %v2034
      %v2364 = vpop.f32.mrb[0].mxu0
      %v2365 = vadd.f32 %v2235, %v2364
      %v2366 = vpop.f32.mrb[0].mxu0
      %v2367 = vadd.f32 %v2239, %v2366
      %2368 = vmatprep.mubr.f32.mxu0 %v2037
      %2369 = vmatmul.mubr.f32.gmra.mrb[0].mxu0 %v2036
      %v2370 = vpop.f32.mrb[0].mxu0
      %v2371 = vadd.f32 %v2235, %v2370
      %v2372 = vpop.f32.mrb[0].mxu0
      %v2373 = vadd.f32 %v2239, %v2372
      %2374 = vdwg.mxu0
      %2375 = vmatprep.subr.mxu0 %v2041
      %2376 = vmatpush1.msra.mxu0 %v2040
      %2377 = vmatprep.subr.mxu0 %v2047
      %2378 = vmatpush1.msra.mxu0 %v2046
      %2379 = vmatprep.subr.mxu0 %v2053
      %2380 = vmatpush1.msra.mxu0 %v2052
      %2381 = vmatprep.subr.mxu0 %v2059
      %2382 = vmatpush1.msra.mxu0 %v2058
      %2383 = vmatprep.subr.mxu0 %v2065
      %2384 = vmatpush1.msra.mxu0 %v2064
      %2385 = vmatprep.subr.mxu0 %v2071
      %2386 = vmatpush1.msra.mxu0 %v2070
      %2387 = vmatprep.subr.mxu0 %v2077
      %2388 = vmatpush1.msra.mxu0 %v2076
      %2389 = vmatprep.subr.mxu0 %v2083
      %2390 = vmatpush1.msra.mxu0 %v2082
      %2391 = vmatprep.subr.mxu0 %v2089
      %2392 = vmatpush1.msra.mxu0 %v2088
      %2393 = vmatprep.subr.mxu0 %v2095
      %2394 = vmatpush1.msra.mxu0 %v2094
      %2395 = vmatprep.subr.mxu0 %v2101
      %2396 = vmatpush1.msra.mxu0 %v2100
      %2397 = vmatprep.subr.mxu0 %v2107
      %2398 = vmatpush1.msra.mxu0 %v2106
      %2399 = vmatprep.subr.mxu0 %v2113
      %2400 = vmatpush1.msra.mxu0 %v2112
      %2401 = vmatprep.subr.mxu0 %v2119
      %2402 = vmatpush1.msra.mxu0 %v2118
      %2403 = vmatprep.subr.mxu0 %v2125
      %2404 = vmatpush1.msra.mxu0 %v2124
      %2405 = vmatprep.subr.mxu0 %v2131
      %2406 = vmatpush1.msra.mxu0 %v2130
      %2407 = vmatprep.subr.mxu0 %v2137
      %2408 = vmatpush1.msra.mxu0 %v2136
      %2409 = vmatprep.subr.mxu0 %v2143
      %2410 = vmatpush1.msra.mxu0 %v2142
      %2411 = vmatprep.subr.mxu0 %v2149
      %2412 = vmatpush1.msra.mxu0 %v2148
      %2413 = vmatprep.subr.mxu0 %v2155
      %2414 = vmatpush1.msra.mxu0 %v2154
      %2415 = vmatprep.subr.mxu0 %v2161
      %2416 = vmatpush1.msra.mxu0 %v2160
      %2417 = vmatprep.subr.mxu0 %v2167
      %2418 = vmatpush1.msra.mxu0 %v2166
      %2419 = vmatprep.subr.mxu0 %v2173
      %2420 = vmatpush1.msra.mxu0 %v2172
      %2421 = vmatprep.subr.mxu0 %v2179
      %2422 = vmatpush1.msra.mxu0 %v2178
      %2423 = vmatprep.subr.mxu0 %v2185
      %2424 = vmatpush1.msra.mxu0 %v2184
      %2425 = vmatprep.subr.mxu0 %v2191
      %2426 = vmatpush1.msra.mxu0 %v2190
      %2427 = vmatprep.subr.mxu0 %v2197
      %2428 = vmatpush1.msra.mxu0 %v2196
      %2429 = vmatprep.subr.mxu0 %v2203
      %2430 = vmatpush1.msra.mxu0 %v2202
      %2431 = vmatprep.subr.mxu0 %v2209
      %2432 = vmatpush1.msra.mxu0 %v2208
      %2433 = vmatprep.subr.mxu0 %v2215
      %2434 = vmatpush1.msra.mxu0 %v2214
      %2435 = vmatprep.subr.mxu0 %v2221
      %2436 = vmatpush1.msra.mxu0 %v2220
      %2437 = vmatprep.subr.mxu0 %v2227
      %2438 = vmatpush1.msra.mxu0 %v2226
      %2439 = vmatprep.mubr.f32.mxu0 %v2023
      %2440 = vmatmul.mubr.f32.gmra.mrb[0].mxu0 %v2022
      %v2441 = vpop.f32.mrb[0].mxu0
      %v2442 = vadd.f32 %v2243, %v2441
      %v2443 = vpop.f32.mrb[0].mxu0
      %v2444 = vadd.f32 %v2247, %v2443
      %2445 = vmatprep.mubr.f32.mxu0 %v2025
      %2446 = vmatmul.mubr.f32.gmra.mrb[0].mxu0 %v2024
      %v2447 = vpop.f32.mrb[0].mxu0
      %v2448 = vadd.f32 %v2243, %v2447
      %v2449 = vpop.f32.mrb[0].mxu0
      %v2450 = vadd.f32 %v2247, %v2449
      %2451 = vmatprep.mubr.f32.mxu0 %v2027
      %2452 = vmatmul.mubr.f32.gmra.mrb[0].mxu0 %v2026
      %v2453 = vpop.f32.mrb[0].mxu0
      %v2454 = vadd.f32 %v2243, %v2453
      %v2455 = vpop.f32.mrb[0].mxu0
      %v2456 = vadd.f32 %v2247, %v2455
      %2457 = vmatprep.mubr.f32.mxu0 %v2029
      %2458 = vmatmul.mubr.f32.gmra.mrb[0].mxu0 %v2028
      %v2459 = vpop.f32.mrb[0].mxu0
      %v2460 = vadd.f32 %v2243, %v2459
      %v2461 = vpop.f32.mrb[0].mxu0
      %v2462 = vadd.f32 %v2247, %v2461
      %2463 = vmatprep.mubr.f32.mxu0 %v2031
      %2464 = vmatmul.mubr.f32.gmra.mrb[0].mxu0 %v2030
      %v2465 = vpop.f32.mrb[0].mxu0
      %v2466 = vadd.f32 %v2243, %v2465
      %v2467 = vpop.f32.mrb[0].mxu0
      %v2468 = vadd.f32 %v2247, %v2467
      %2469 = vmatprep.mubr.f32.mxu0 %v2033
      %2470 = vmatmul.mubr.f32.gmra.mrb[0].mxu0 %v2032
      %v2471 = vpop.f32.mrb[0].mxu0
      %v2472 = vadd.f32 %v2243, %v2471
      %v2473 = vpop.f32.mrb[0].mxu0
      %v2474 = vadd.f32 %v2247, %v2473
      %2475 = vmatprep.mubr.f32.mxu0 %v2035
      %2476 = vmatmul.mubr.f32.gmra.mrb[0].mxu0 %v2034
      %v2477 = vpop.f32.mrb[0].mxu0
      %v2478 = vadd.f32 %v2243, %v2477
      %v2479 = vpop.f32.mrb[0].mxu0
      %v2480 = vadd.f32 %v2247, %v2479
      %2481 = vmatprep.mubr.f32.mxu0 %v2037
      %2482 = vmatmul.mubr.f32.gmra.mrb[0].mxu0 %v2036
      %v2483 = vpop.f32.mrb[0].mxu0
      %v2484 = vadd.f32 %v2243, %v2483
      %v2485 = vpop.f32.mrb[0].mxu0
      %v2486 = vadd.f32 %v2247, %v2485
      %2487 = vdwg.mxu0
      %2488 = vmatprep.subr.mxu0 %v2043
      %2489 = vmatpush1.msra.mxu0 %v2042
      %2490 = vmatprep.subr.mxu0 %v2049
      %2491 = vmatpush1.msra.mxu0 %v2048
      %2492 = vmatprep.subr.mxu0 %v2055
      %2493 = vmatpush1.msra.mxu0 %v2054
      %2494 = vmatprep.subr.mxu0 %v2061
      %2495 = vmatpush1.msra.mxu0 %v2060
      %2496 = vmatprep.subr.mxu0 %v2067
      %2497 = vmatpush1.msra.mxu0 %v2066
      %2498 = vmatprep.subr.mxu0 %v2073
      %2499 = vmatpush1.msra.mxu0 %v2072
      %2500 = vmatprep.subr.mxu0 %v2079
      %2501 = vmatpush1.msra.mxu0 %v2078
      %2502 = vmatprep.subr.mxu0 %v2085
      %2503 = vmatpush1.msra.mxu0 %v2084
      %2504 = vmatprep.subr.mxu0 %v2091
      %2505 = vmatpush1.msra.mxu0 %v2090
      %2506 = vmatprep.subr.mxu0 %v2097
      %2507 = vmatpush1.msra.mxu0 %v2096
      %2508 = vmatprep.subr.mxu0 %v2103
      %2509 = vmatpush1.msra.mxu0 %v2102
      %2510 = vmatprep.subr.mxu0 %v2109
      %2511 = vmatpush1.msra.mxu0 %v2108
      %2512 = vmatprep.subr.mxu0 %v2115
      %2513 = vmatpush1.msra.mxu0 %v2114
      %2514 = vmatprep.subr.mxu0 %v2121
      %2515 = vmatpush1.msra.mxu0 %v2120
      %2516 = vmatprep.subr.mxu0 %v2127
      %2517 = vmatpush1.msra.mxu0 %v2126
      %2518 = vmatprep.subr.mxu0 %v2133
      %2519 = vmatpush1.msra.mxu0 %v2132
      %2520 = vmatprep.subr.mxu0 %v2139
      %2521 = vmatpush1.msra.mxu0 %v2138
      %2522 = vmatprep.subr.mxu0 %v2145
      %2523 = vmatpush1.msra.mxu0 %v2144
      %2524 = vmatprep.subr.mxu0 %v2151
      %2525 = vmatpush1.msra.mxu0 %v2150
      %2526 = vmatprep.subr.mxu0 %v2157
      %2527 = vmatpush1.msra.mxu0 %v2156
      %2528 = vmatprep.subr.mxu0 %v2163
      %2529 = vmatpush1.msra.mxu0 %v2162
      %2530 = vmatprep.subr.mxu0 %v2169
      %2531 = vmatpush1.msra.mxu0 %v2168
      %2532 = vmatprep.subr.mxu0 %v2175
      %2533 = vmatpush1.msra.mxu0 %v2174
      %2534 = vmatprep.subr.mxu0 %v2181
      %2535 = vmatpush1.msra.mxu0 %v2180
      %2536 = vmatprep.subr.mxu0 %v2187
      %2537 = vmatpush1.msra.mxu0 %v2186
      %2538 = vmatprep.subr.mxu0 %v2193
      %2539 = vmatpush1.msra.mxu0 %v2192
      %2540 = vmatprep.subr.mxu0 %v2199
      %2541 = vmatpush1.msra.mxu0 %v2198
      %2542 = vmatprep.subr.mxu0 %v2205
      %2543 = vmatpush1.msra.mxu0 %v2204
      %2544 = vmatprep.subr.mxu0 %v2211
      %2545 = vmatpush1.msra.mxu0 %v2210
      %2546 = vmatprep.subr.mxu0 %v2217
      %2547 = vmatpush1.msra.mxu0 %v2216
      %2548 = vmatprep.subr.mxu0 %v2223
      %2549 = vmatpush1.msra.mxu0 %v2222
      %2550 = vmatprep.subr.mxu0 %v2229
      %2551 = vmatpush1.msra.mxu0 %v2228
      %2552 = vmatprep.mubr.f32.mxu0 %v2023
      %2553 = vmatmul.mubr.f32.gmra.mrb[0].mxu0 %v2022
      %v2554 = vpop.f32.mrb[0].mxu0
      %v2555 = vadd.f32 %v2251, %v2554
      %v2556 = vpop.f32.mrb[0].mxu0
      %v2557 = vadd.f32 %v2255, %v2556
      %2558 = vmatprep.mubr.f32.mxu0 %v2025
      %2559 = vmatmul.mubr.f32.gmra.mrb[0].mxu0 %v2024
      %v2560 = vpop.f32.mrb[0].mxu0
      %v2561 = vadd.f32 %v2251, %v2560
      %v2562 = vpop.f32.mrb[0].mxu0
      %v2563 = vadd.f32 %v2255, %v2562
      %2564 = vmatprep.mubr.f32.mxu0 %v2027
      %2565 = vmatmul.mubr.f32.gmra.mrb[0].mxu0 %v2026
      %v2566 = vpop.f32.mrb[0].mxu0
      %v2567 = vadd.f32 %v2251, %v2566
      %v2568 = vpop.f32.mrb[0].mxu0
      %v2569 = vadd.f32 %v2255, %v2568
      %2570 = vmatprep.mubr.f32.mxu0 %v2029
      %2571 = vmatmul.mubr.f32.gmra.mrb[0].mxu0 %v2028
      %v2572 = vpop.f32.mrb[0].mxu0
      %v2573 = vadd.f32 %v2251, %v2572
      %v2574 = vpop.f32.mrb[0].mxu0
      %v2575 = vadd.f32 %v2255, %v2574
      %2576 = vmatprep.mubr.f32.mxu0 %v2031
      %2577 = vmatmul.mubr.f32.gmra.mrb[0].mxu0 %v2030
      %v2578 = vpop.f32.mrb[0].mxu0
      %v2579 = vadd.f32 %v2251, %v2578
      %v2580 = vpop.f32.mrb[0].mxu0
      %v2581 = vadd.f32 %v2255, %v2580
      %2582 = vmatprep.mubr.f32.mxu0 %v2033
      %2583 = vmatmul.mubr.f32.gmra.mrb[0].mxu0 %v2032
      %v2584 = vpop.f32.mrb[0].mxu0
      %v2585 = vadd.f32 %v2251, %v2584
      %v2586 = vpop.f32.mrb[0].mxu0
      %v2587 = vadd.f32 %v2255, %v2586
      %2588 = vmatprep.mubr.f32.mxu0 %v2035
      %2589 = vmatmul.mubr.f32.gmra.mrb[0].mxu0 %v2034
      %v2590 = vpop.f32.mrb[0].mxu0
      %v2591 = vadd.f32 %v2251, %v2590
      %v2592 = vpop.f32.mrb[0].mxu0
      %v2593 = vadd.f32 %v2255, %v2592
      %2594 = vmatprep.mubr.f32.mxu0 %v2037
      %2595 = vmatmul.mubr.f32.gmra.mrb[0].mxu0 %v2036
      %v2596 = vpop.f32.mrb[0].mxu0
      %v2597 = vadd.f32 %v2251, %v2596
      %v2598 = vpop.f32.mrb[0].mxu0
      %v2599 = vadd.f32 %v2255, %v2598
      %2600 = vdwg.mxu0
      %v2601 = vld [vmem:[%s27] sm:$0xff]
      %v2602 = vld [vmem:[%s27 + $0x8] sm:$0xff]
      %v2605 = vcombine.low %v2601, %v2602
      %v2606 = vcombine.high %v2601, %v2602
      %v2608 = vunpack.c.l.s4 1966171168
      %v2609 = vunpack.c.0.s8 %v2608
      %v2610 = vlaneseq
      %v2611 = vshrl.u32 %v2610, 7
      %v2612 = vsub.s32 %v2609, %v2611
      %v2613 = vrot.slane %v2605, %v2612
      %v2615 = vunpack.c.l.s4 1966171168
      %v2616 = vunpack.c.0.s8 %v2615
      %v2617 = vlaneseq
      %v2618 = vshrl.u32 %v2617, 7
      %v2619 = vsub.s32 %v2616, %v2618
      %v2620 = vrot.slane %v2606, %v2619
      %v2621 = vcombine.high %v2613, %v2613
      %v2622 = vcombine.high %v2620, %v2620
      %v2624 = vunpack.c.l.s4 1966171168
      %v2625 = vunpack.c.0.s8 %v2624
      %v2626 = vlaneseq
      %v2627 = vshrl.u32 %v2626, 7
      %v2628 = vsub.s32 %v2625, %v2627
      %v2629 = vrot.slane %v2613, %v2628
      %v2631 = vunpack.c.l.s4 1966171168
      %v2632 = vunpack.c.0.s8 %v2631
      %v2633 = vlaneseq
      %v2634 = vshrl.u32 %v2633, 7
      %v2635 = vsub.s32 %v2632, %v2634
      %v2636 = vrot.slane %v2620, %v2635
      %v2638 = vunpack.c.l.s4 1966171168
      %v2639 = vunpack.c.0.s8 %v2638
      %v2640 = vlaneseq
      %v2641 = vshrl.u32 %v2640, 7
      %v2642 = vsub.s32 %v2639, %v2641
      %v2643 = vrot.slane %v2621, %v2642
      %v2645 = vunpack.c.l.s4 1966171168
      %v2646 = vunpack.c.0.s8 %v2645
      %v2647 = vlaneseq
      %v2648 = vshrl.u32 %v2647, 7
      %v2649 = vsub.s32 %v2646, %v2648
      %v2650 = vrot.slane %v2622, %v2649
      %v2651 = vcombine.high %v2629, %v2629
      %v2652 = vcombine.high %v2636, %v2636
      %v2653 = vcombine.high %v2643, %v2643
      %v2654 = vcombine.high %v2650, %v2650
      %v2655 = vlaneseq
      %v2656 = vshrl.u32 %v2655, 7
      %v2657 = vsub.s32 0, %v2656
      %v2658 = vrot.slane %v2629, %v2657
      %v2659 = vlaneseq
      %v2660 = vshrl.u32 %v2659, 7
      %v2661 = vsub.s32 1, %v2660
      %v2662 = vrot.slane %v2629, %v2661
      %v2663 = vlaneseq
      %v2664 = vshrl.u32 %v2663, 7
      %v2665 = vsub.s32 0, %v2664
      %v2666 = vrot.slane %v2643, %v2665
      %v2667 = vlaneseq
      %v2668 = vshrl.u32 %v2667, 7
      %v2669 = vsub.s32 1, %v2668
      %v2670 = vrot.slane %v2643, %v2669
      %v2671 = vlaneseq
      %v2672 = vshrl.u32 %v2671, 7
      %v2673 = vsub.s32 0, %v2672
      %v2674 = vrot.slane %v2651, %v2673
      %v2675 = vlaneseq
      %v2676 = vshrl.u32 %v2675, 7
      %v2677 = vsub.s32 1, %v2676
      %v2678 = vrot.slane %v2651, %v2677
      %v2679 = vlaneseq
      %v2680 = vshrl.u32 %v2679, 7
      %v2681 = vsub.s32 0, %v2680
      %v2682 = vrot.slane %v2653, %v2681
      %v2683 = vlaneseq
      %v2684 = vshrl.u32 %v2683, 7
      %v2685 = vsub.s32 1, %v2684
      %v2686 = vrot.slane %v2653, %v2685
      %v2687 = vlaneseq
      %v2688 = vshrl.u32 %v2687, 7
      %v2689 = vsub.s32 0, %v2688
      %v2690 = vrot.slane %v2636, %v2689
      %v2691 = vlaneseq
      %v2692 = vshrl.u32 %v2691, 7
      %v2693 = vsub.s32 1, %v2692
      %v2694 = vrot.slane %v2636, %v2693
      %v2695 = vlaneseq
      %v2696 = vshrl.u32 %v2695, 7
      %v2697 = vsub.s32 0, %v2696
      %v2698 = vrot.slane %v2650, %v2697
      %v2699 = vlaneseq
      %v2700 = vshrl.u32 %v2699, 7
      %v2701 = vsub.s32 1, %v2700
      %v2702 = vrot.slane %v2650, %v2701
      %v2703 = vlaneseq
      %v2704 = vshrl.u32 %v2703, 7
      %v2705 = vsub.s32 0, %v2704
      %v2706 = vrot.slane %v2652, %v2705
      %v2707 = vlaneseq
      %v2708 = vshrl.u32 %v2707, 7
      %v2709 = vsub.s32 1, %v2708
      %v2710 = vrot.slane %v2652, %v2709
      %v2711 = vlaneseq
      %v2712 = vshrl.u32 %v2711, 7
      %v2713 = vsub.s32 0, %v2712
      %v2714 = vrot.slane %v2654, %v2713
      %v2715 = vlaneseq
      %v2716 = vshrl.u32 %v2715, 7
      %v2717 = vsub.s32 1, %v2716
      %v2718 = vrot.slane %v2654, %v2717
      %v2735 = vmul.f32 %v2329, %v2658
      %v2736 = vmul.f32 %v2331, %v2662
      %v2737 = vmul.f32 %v2329, %v2666
      %v2738 = vmul.f32 %v2331, %v2670
      %v2739 = vmul.f32 %v2329, %v2674
      %v2740 = vmul.f32 %v2331, %v2678
      %v2741 = vmul.f32 %v2329, %v2682
      %v2742 = vmul.f32 %v2331, %v2686
      %v2743 = vmul.f32 %v2329, %v2690
      %v2744 = vmul.f32 %v2331, %v2694
      %v2745 = vmul.f32 %v2329, %v2698
      %v2746 = vmul.f32 %v2331, %v2702
      %v2747 = vmul.f32 %v2329, %v2706
      %v2748 = vmul.f32 %v2331, %v2710
      %v2749 = vmul.f32 %v2329, %v2714
      %v2750 = vmul.f32 %v2331, %v2718
      %v2751 = vmul.f32 %v2335, %v2658
      %v2752 = vmul.f32 %v2337, %v2662
      %v2753 = vmul.f32 %v2335, %v2666
      %v2754 = vmul.f32 %v2337, %v2670
      %v2755 = vmul.f32 %v2335, %v2674
      %v2756 = vmul.f32 %v2337, %v2678
      %v2757 = vmul.f32 %v2335, %v2682
      %v2758 = vmul.f32 %v2337, %v2686
      %v2759 = vmul.f32 %v2335, %v2690
      %v2760 = vmul.f32 %v2337, %v2694
      %v2761 = vmul.f32 %v2335, %v2698
      %v2762 = vmul.f32 %v2337, %v2702
      %v2763 = vmul.f32 %v2335, %v2706
      %v2764 = vmul.f32 %v2337, %v2710
      %v2765 = vmul.f32 %v2335, %v2714
      %v2766 = vmul.f32 %v2337, %v2718
      %v2767 = vmul.f32 %v2341, %v2658
      %v2768 = vmul.f32 %v2343, %v2662
      %v2769 = vmul.f32 %v2341, %v2666
      %v2770 = vmul.f32 %v2343, %v2670
      %v2771 = vmul.f32 %v2341, %v2674
      %v2772 = vmul.f32 %v2343, %v2678
      %v2773 = vmul.f32 %v2341, %v2682
      %v2774 = vmul.f32 %v2343, %v2686
      %v2775 = vmul.f32 %v2341, %v2690
      %v2776 = vmul.f32 %v2343, %v2694
      %v2777 = vmul.f32 %v2341, %v2698
      %v2778 = vmul.f32 %v2343, %v2702
      %v2779 = vmul.f32 %v2341, %v2706
      %v2780 = vmul.f32 %v2343, %v2710
      %v2781 = vmul.f32 %v2341, %v2714
      %v2782 = vmul.f32 %v2343, %v2718
      %v2783 = vmul.f32 %v2347, %v2658
      %v2784 = vmul.f32 %v2349, %v2662
      %v2785 = vmul.f32 %v2347, %v2666
      %v2786 = vmul.f32 %v2349, %v2670
      %v2787 = vmul.f32 %v2347, %v2674
      %v2788 = vmul.f32 %v2349, %v2678
      %v2789 = vmul.f32 %v2347, %v2682
      %v2790 = vmul.f32 %v2349, %v2686
      %v2791 = vmul.f32 %v2347, %v2690
      %v2792 = vmul.f32 %v2349, %v2694
      %v2793 = vmul.f32 %v2347, %v2698
      %v2794 = vmul.f32 %v2349, %v2702
      %v2795 = vmul.f32 %v2347, %v2706
      %v2796 = vmul.f32 %v2349, %v2710
      %v2797 = vmul.f32 %v2347, %v2714
      %v2798 = vmul.f32 %v2349, %v2718
      %v2799 = vmul.f32 %v2353, %v2658
      %v2800 = vmul.f32 %v2355, %v2662
      %v2801 = vmul.f32 %v2353, %v2666
      %v2802 = vmul.f32 %v2355, %v2670
      %v2803 = vmul.f32 %v2353, %v2674
      %v2804 = vmul.f32 %v2355, %v2678
      %v2805 = vmul.f32 %v2353, %v2682
      %v2806 = vmul.f32 %v2355, %v2686
      %v2807 = vmul.f32 %v2353, %v2690
      %v2808 = vmul.f32 %v2355, %v2694
      %v2809 = vmul.f32 %v2353, %v2698
      %v2810 = vmul.f32 %v2355, %v2702
      %v2811 = vmul.f32 %v2353, %v2706
      %v2812 = vmul.f32 %v2355, %v2710
      %v2813 = vmul.f32 %v2353, %v2714
      %v2814 = vmul.f32 %v2355, %v2718
      %v2815 = vmul.f32 %v2359, %v2658
      %v2816 = vmul.f32 %v2361, %v2662
      %v2817 = vmul.f32 %v2359, %v2666
      %v2818 = vmul.f32 %v2361, %v2670
      %v2819 = vmul.f32 %v2359, %v2674
      %v2820 = vmul.f32 %v2361, %v2678
      %v2821 = vmul.f32 %v2359, %v2682
      %v2822 = vmul.f32 %v2361, %v2686
      %v2823 = vmul.f32 %v2359, %v2690
      %v2824 = vmul.f32 %v2361, %v2694
      %v2825 = vmul.f32 %v2359, %v2698
      %v2826 = vmul.f32 %v2361, %v2702
      %v2827 = vmul.f32 %v2359, %v2706
      %v2828 = vmul.f32 %v2361, %v2710
      %v2829 = vmul.f32 %v2359, %v2714
      %v2830 = vmul.f32 %v2361, %v2718
      %v2831 = vmul.f32 %v2365, %v2658
      %v2832 = vmul.f32 %v2367, %v2662
      %v2833 = vmul.f32 %v2365, %v2666
      %v2834 = vmul.f32 %v2367, %v2670
      %v2835 = vmul.f32 %v2365, %v2674
      %v2836 = vmul.f32 %v2367, %v2678
      %v2837 = vmul.f32 %v2365, %v2682
      %v2838 = vmul.f32 %v2367, %v2686
      %v2839 = vmul.f32 %v2365, %v2690
      %v2840 = vmul.f32 %v2367, %v2694
      %v2841 = vmul.f32 %v2365, %v2698
      %v2842 = vmul.f32 %v2367, %v2702
      %v2843 = vmul.f32 %v2365, %v2706
      %v2844 = vmul.f32 %v2367, %v2710
      %v2845 = vmul.f32 %v2365, %v2714
      %v2846 = vmul.f32 %v2367, %v2718
      %v2847 = vmul.f32 %v2371, %v2658
      %v2848 = vmul.f32 %v2373, %v2662
      %v2849 = vmul.f32 %v2371, %v2666
      %v2850 = vmul.f32 %v2373, %v2670
      %v2851 = vmul.f32 %v2371, %v2674
      %v2852 = vmul.f32 %v2373, %v2678
      %v2853 = vmul.f32 %v2371, %v2682
      %v2854 = vmul.f32 %v2373, %v2686
      %v2855 = vmul.f32 %v2371, %v2690
      %v2856 = vmul.f32 %v2373, %v2694
      %v2857 = vmul.f32 %v2371, %v2698
      %v2858 = vmul.f32 %v2373, %v2702
      %v2859 = vmul.f32 %v2371, %v2706
      %v2860 = vmul.f32 %v2373, %v2710
      %v2861 = vmul.f32 %v2371, %v2714
      %v2862 = vmul.f32 %v2373, %v2718
      %v2863 = vmul.f32 %v2555, %v2658
      %v2864 = vmul.f32 %v2557, %v2662
      %v2865 = vmul.f32 %v2555, %v2666
      %v2866 = vmul.f32 %v2557, %v2670
      %v2867 = vmul.f32 %v2555, %v2674
      %v2868 = vmul.f32 %v2557, %v2678
      %v2869 = vmul.f32 %v2555, %v2682
      %v2870 = vmul.f32 %v2557, %v2686
      %v2871 = vmul.f32 %v2555, %v2690
      %v2872 = vmul.f32 %v2557, %v2694
      %v2873 = vmul.f32 %v2555, %v2698
      %v2874 = vmul.f32 %v2557, %v2702
      %v2875 = vmul.f32 %v2555, %v2706
      %v2876 = vmul.f32 %v2557, %v2710
      %v2877 = vmul.f32 %v2555, %v2714
      %v2878 = vmul.f32 %v2557, %v2718
      %v2879 = vmul.f32 %v2561, %v2658
      %v2880 = vmul.f32 %v2563, %v2662
      %v2881 = vmul.f32 %v2561, %v2666
      %v2882 = vmul.f32 %v2563, %v2670
      %v2883 = vmul.f32 %v2561, %v2674
      %v2884 = vmul.f32 %v2563, %v2678
      %v2885 = vmul.f32 %v2561, %v2682
      %v2886 = vmul.f32 %v2563, %v2686
      %v2887 = vmul.f32 %v2561, %v2690
      %v2888 = vmul.f32 %v2563, %v2694
      %v2889 = vmul.f32 %v2561, %v2698
      %v2890 = vmul.f32 %v2563, %v2702
      %v2891 = vmul.f32 %v2561, %v2706
      %v2892 = vmul.f32 %v2563, %v2710
      %v2893 = vmul.f32 %v2561, %v2714
      %v2894 = vmul.f32 %v2563, %v2718
      %v2895 = vmul.f32 %v2567, %v2658
      %v2896 = vmul.f32 %v2569, %v2662
      %v2897 = vmul.f32 %v2567, %v2666
      %v2898 = vmul.f32 %v2569, %v2670
      %v2899 = vmul.f32 %v2567, %v2674
      %v2900 = vmul.f32 %v2569, %v2678
      %v2901 = vmul.f32 %v2567, %v2682
      %v2902 = vmul.f32 %v2569, %v2686
      %v2903 = vmul.f32 %v2567, %v2690
      %v2904 = vmul.f32 %v2569, %v2694
      %v2905 = vmul.f32 %v2567, %v2698
      %v2906 = vmul.f32 %v2569, %v2702
      %v2907 = vmul.f32 %v2567, %v2706
      %v2908 = vmul.f32 %v2569, %v2710
      %v2909 = vmul.f32 %v2567, %v2714
      %v2910 = vmul.f32 %v2569, %v2718
      %v2911 = vmul.f32 %v2573, %v2658
      %v2912 = vmul.f32 %v2575, %v2662
      %v2913 = vmul.f32 %v2573, %v2666
      %v2914 = vmul.f32 %v2575, %v2670
      %v2915 = vmul.f32 %v2573, %v2674
      %v2916 = vmul.f32 %v2575, %v2678
      %v2917 = vmul.f32 %v2573, %v2682
      %v2918 = vmul.f32 %v2575, %v2686
      %v2919 = vmul.f32 %v2573, %v2690
      %v2920 = vmul.f32 %v2575, %v2694
      %v2921 = vmul.f32 %v2573, %v2698
      %v2922 = vmul.f32 %v2575, %v2702
      %v2923 = vmul.f32 %v2573, %v2706
      %v2924 = vmul.f32 %v2575, %v2710
      %v2925 = vmul.f32 %v2573, %v2714
      %v2926 = vmul.f32 %v2575, %v2718
      %v2927 = vmul.f32 %v2579, %v2658
      %v2928 = vmul.f32 %v2581, %v2662
      %v2929 = vmul.f32 %v2579, %v2666
      %v2930 = vmul.f32 %v2581, %v2670
      %v2931 = vmul.f32 %v2579, %v2674
      %v2932 = vmul.f32 %v2581, %v2678
      %v2933 = vmul.f32 %v2579, %v2682
      %v2934 = vmul.f32 %v2581, %v2686
      %v2935 = vmul.f32 %v2579, %v2690
      %v2936 = vmul.f32 %v2581, %v2694
      %v2937 = vmul.f32 %v2579, %v2698
      %v2938 = vmul.f32 %v2581, %v2702
      %v2939 = vmul.f32 %v2579, %v2706
      %v2940 = vmul.f32 %v2581, %v2710
      %v2941 = vmul.f32 %v2579, %v2714
      %v2942 = vmul.f32 %v2581, %v2718
      %v2943 = vmul.f32 %v2585, %v2658
      %v2944 = vmul.f32 %v2587, %v2662
      %v2945 = vmul.f32 %v2585, %v2666
      %v2946 = vmul.f32 %v2587, %v2670
      %v2947 = vmul.f32 %v2585, %v2674
      %v2948 = vmul.f32 %v2587, %v2678
      %v2949 = vmul.f32 %v2585, %v2682
      %v2950 = vmul.f32 %v2587, %v2686
      %v2951 = vmul.f32 %v2585, %v2690
      %v2952 = vmul.f32 %v2587, %v2694
      %v2953 = vmul.f32 %v2585, %v2698
      %v2954 = vmul.f32 %v2587, %v2702
      %v2955 = vmul.f32 %v2585, %v2706
      %v2956 = vmul.f32 %v2587, %v2710
      %v2957 = vmul.f32 %v2585, %v2714
      %v2958 = vmul.f32 %v2587, %v2718
      %v2959 = vmul.f32 %v2591, %v2658
      %v2960 = vmul.f32 %v2593, %v2662
      %v2961 = vmul.f32 %v2591, %v2666
      %v2962 = vmul.f32 %v2593, %v2670
      %v2963 = vmul.f32 %v2591, %v2674
      %v2964 = vmul.f32 %v2593, %v2678
      %v2965 = vmul.f32 %v2591, %v2682
      %v2966 = vmul.f32 %v2593, %v2686
      %v2967 = vmul.f32 %v2591, %v2690
      %v2968 = vmul.f32 %v2593, %v2694
      %v2969 = vmul.f32 %v2591, %v2698
      %v2970 = vmul.f32 %v2593, %v2702
      %v2971 = vmul.f32 %v2591, %v2706
      %v2972 = vmul.f32 %v2593, %v2710
      %v2973 = vmul.f32 %v2591, %v2714
      %v2974 = vmul.f32 %v2593, %v2718
      %v2975 = vmul.f32 %v2597, %v2658
      %v2976 = vmul.f32 %v2599, %v2662
      %v2977 = vmul.f32 %v2597, %v2666
      %v2978 = vmul.f32 %v2599, %v2670
      %v2979 = vmul.f32 %v2597, %v2674
      %v2980 = vmul.f32 %v2599, %v2678
      %v2981 = vmul.f32 %v2597, %v2682
      %v2982 = vmul.f32 %v2599, %v2686
      %v2983 = vmul.f32 %v2597, %v2690
      %v2984 = vmul.f32 %v2599, %v2694
      %v2985 = vmul.f32 %v2597, %v2698
      %v2986 = vmul.f32 %v2599, %v2702
      %v2987 = vmul.f32 %v2597, %v2706
      %v2988 = vmul.f32 %v2599, %v2710
      %v2989 = vmul.f32 %v2597, %v2714
      %v2990 = vmul.f32 %v2599, %v2718
      %v2991 = vld [vmem:[%s29] sm:$0xff]
      %v2992 = vld [vmem:[%s29 + $0x8] sm:$0xff]
      %v2993 = vld [vmem:[%s29 + $0x10] sm:$0xff]
      %v2994 = vld [vmem:[%s29 + $0x18] sm:$0xff]
      %v2995 = vld [vmem:[%s29 + $0x20] sm:$0xff]
      %v2996 = vld [vmem:[%s29 + $0x28] sm:$0xff]
      %v2997 = vld [vmem:[%s29 + $0x30] sm:$0xff]
      %v2998 = vld [vmem:[%s29 + $0x38] sm:$0xff]
      %2999 = vmatprep.subr.mxu0 %v2444
      %3000 = vmatpush1.xpose.msra.mxu0 %v2442
      %3001 = vmatprep.subr.mxu0 %v2444
      %3002 = vmatpush1.xpose.msra.mxu0 %v2442
      %3003 = vmatprep.subr.mxu0 %v2444
      %3004 = vmatpush1.xpose.msra.mxu0 %v2442
      %3005 = vmatprep.subr.mxu0 %v2444
      %3006 = vmatpush1.xpose.msra.mxu0 %v2442
      %3007 = vmatprep.subr.mxu0 %v2444
      %3008 = vmatpush1.xpose.msra.mxu0 %v2442
      %3009 = vmatprep.subr.mxu0 %v2444
      %3010 = vmatpush1.xpose.msra.mxu0 %v2442
      %3011 = vmatprep.subr.mxu0 %v2444
      %3012 = vmatpush1.xpose.msra.mxu0 %v2442
      %3013 = vmatprep.subr.mxu0 %v2444
      %3014 = vmatpush1.xpose.msra.mxu0 %v2442
      %3015 = vmatprep.subr.mxu0 0.0
      %3016 = vmatpush1.xpose.msra.mxu0 0.0
      %3017 = vmatprep.subr.mxu0 0.0
      %3018 = vmatpush1.xpose.msra.mxu0 0.0
      %3019 = vmatprep.subr.mxu0 0.0
      %3020 = vmatpush1.xpose.msra.mxu0 0.0
      %3021 = vmatprep.subr.mxu0 0.0
      %3022 = vmatpush1.xpose.msra.mxu0 0.0
      %3023 = vmatprep.subr.mxu0 0.0
      %3024 = vmatpush1.xpose.msra.mxu0 0.0
      %3025 = vmatprep.subr.mxu0 0.0
      %3026 = vmatpush1.xpose.msra.mxu0 0.0
      %3027 = vmatprep.subr.mxu0 0.0
      %3028 = vmatpush1.xpose.msra.mxu0 0.0
      %3029 = vmatprep.subr.mxu0 0.0
      %3030 = vmatpush1.xpose.msra.mxu0 0.0
      %3031 = vmatprep.subr.mxu0 0.0
      %3032 = vmatpush1.xpose.msra.mxu0 0.0
      %3033 = vmatprep.subr.mxu0 0.0
      %3034 = vmatpush1.xpose.msra.mxu0 0.0
      %3035 = vmatprep.subr.mxu0 0.0
      %3036 = vmatpush1.xpose.msra.mxu0 0.0
      %3037 = vmatprep.subr.mxu0 0.0
      %3038 = vmatpush1.xpose.msra.mxu0 0.0
      %3039 = vmatprep.subr.mxu0 0.0
      %3040 = vmatpush1.xpose.msra.mxu0 0.0
      %3041 = vmatprep.subr.mxu0 0.0
      %3042 = vmatpush1.xpose.msra.mxu0 0.0
      %3043 = vmatprep.subr.mxu0 0.0
      %3044 = vmatpush1.xpose.msra.mxu0 0.0
      %3045 = vmatprep.subr.mxu0 0.0
      %3046 = vmatpush1.xpose.msra.mxu0 0.0
      %3047 = vmatprep.subr.mxu0 0.0
      %3048 = vmatpush1.xpose.msra.mxu0 0.0
      %3049 = vmatprep.subr.mxu0 0.0
      %3050 = vmatpush1.xpose.msra.mxu0 0.0
      %3051 = vmatprep.subr.mxu0 0.0
      %3052 = vmatpush1.xpose.msra.mxu0 0.0
      %3053 = vmatprep.subr.mxu0 0.0
      %3054 = vmatpush1.xpose.msra.mxu0 0.0
      %3055 = vmatprep.subr.mxu0 0.0
      %3056 = vmatpush1.xpose.msra.mxu0 0.0
      %3057 = vmatprep.subr.mxu0 0.0
      %3058 = vmatpush1.xpose.msra.mxu0 0.0
      %3059 = vmatprep.subr.mxu0 0.0
      %3060 = vmatpush1.xpose.msra.mxu0 0.0
      %3061 = vmatprep.subr.mxu0 0.0
      %3062 = vmatpush1.xpose.msra.mxu0 0.0
      %3063 = vmatprep.mubr.f32.mxu0 %v2736
      %3064 = vmatmul.mubr.f32.gmra.mrb[0].mxu0 %v2735
      %v3065 = vpop.f32.mrb[0].mxu0
      %v3066 = vadd.f32 %v2991, %v3065
      %v3067 = vpop.f32.mrb[0].mxu0
      %3068 = vmatprep.mubr.f32.mxu0 %v2738
      %3069 = vmatmul.mubr.f32.gmra.mrb[0].mxu0 %v2737
      %v3070 = vpop.f32.mrb[0].mxu0
      %v3071 = vadd.f32 %v2992, %v3070
      %v3072 = vpop.f32.mrb[0].mxu0
      %3073 = vmatprep.mubr.f32.mxu0 %v2740
      %3074 = vmatmul.mubr.f32.gmra.mrb[0].mxu0 %v2739
      %v3075 = vpop.f32.mrb[0].mxu0
      %v3076 = vadd.f32 %v2993, %v3075
      %v3077 = vpop.f32.mrb[0].mxu0
      %3078 = vmatprep.mubr.f32.mxu0 %v2742
      %3079 = vmatmul.mubr.f32.gmra.mrb[0].mxu0 %v2741
      %v3080 = vpop.f32.mrb[0].mxu0
      %v3081 = vadd.f32 %v2994, %v3080
      %v3082 = vpop.f32.mrb[0].mxu0
      %3083 = vmatprep.mubr.f32.mxu0 %v2744
      %3084 = vmatmul.mubr.f32.gmra.mrb[0].mxu0 %v2743
      %v3085 = vpop.f32.mrb[0].mxu0
      %v3086 = vadd.f32 %v2995, %v3085
      %v3087 = vpop.f32.mrb[0].mxu0
      %3088 = vmatprep.mubr.f32.mxu0 %v2746
      %3089 = vmatmul.mubr.f32.gmra.mrb[0].mxu0 %v2745
      %v3090 = vpop.f32.mrb[0].mxu0
      %v3091 = vadd.f32 %v2996, %v3090
      %v3092 = vpop.f32.mrb[0].mxu0
      %3093 = vmatprep.mubr.f32.mxu0 %v2748
      %3094 = vmatmul.mubr.f32.gmra.mrb[0].mxu0 %v2747
      %v3095 = vpop.f32.mrb[0].mxu0
      %v3096 = vadd.f32 %v2997, %v3095
      %v3097 = vpop.f32.mrb[0].mxu0
      %3098 = vmatprep.mubr.f32.mxu0 %v2750
      %3099 = vmatmul.mubr.f32.gmra.mrb[0].mxu0 %v2749
      %v3100 = vpop.f32.mrb[0].mxu0
      %v3101 = vadd.f32 %v2998, %v3100
      %v3102 = vpop.f32.mrb[0].mxu0
      %3103 = vdwg.mxu0
      %3104 = vmatprep.subr.mxu0 %v2450
      %3105 = vmatpush1.xpose.msra.mxu0 %v2448
      %3106 = vmatprep.subr.mxu0 %v2450
      %3107 = vmatpush1.xpose.msra.mxu0 %v2448
      %3108 = vmatprep.subr.mxu0 %v2450
      %3109 = vmatpush1.xpose.msra.mxu0 %v2448
      %3110 = vmatprep.subr.mxu0 %v2450
      %3111 = vmatpush1.xpose.msra.mxu0 %v2448
      %3112 = vmatprep.subr.mxu0 %v2450
      %3113 = vmatpush1.xpose.msra.mxu0 %v2448
      %3114 = vmatprep.subr.mxu0 %v2450
      %3115 = vmatpush1.xpose.msra.mxu0 %v2448
      %3116 = vmatprep.subr.mxu0 %v2450
      %3117 = vmatpush1.xpose.msra.mxu0 %v2448
      %3118 = vmatprep.subr.mxu0 %v2450
      %3119 = vmatpush1.xpose.msra.mxu0 %v2448
      %3120 = vmatprep.subr.mxu0 0.0
      %3121 = vmatpush1.xpose.msra.mxu0 0.0
      %3122 = vmatprep.subr.mxu0 0.0
      %3123 = vmatpush1.xpose.msra.mxu0 0.0
      %3124 = vmatprep.subr.mxu0 0.0
      %3125 = vmatpush1.xpose.msra.mxu0 0.0
      %3126 = vmatprep.subr.mxu0 0.0
      %3127 = vmatpush1.xpose.msra.mxu0 0.0
      %3128 = vmatprep.subr.mxu0 0.0
      %3129 = vmatpush1.xpose.msra.mxu0 0.0
      %3130 = vmatprep.subr.mxu0 0.0
      %3131 = vmatpush1.xpose.msra.mxu0 0.0
      %3132 = vmatprep.subr.mxu0 0.0
      %3133 = vmatpush1.xpose.msra.mxu0 0.0
      %3134 = vmatprep.subr.mxu0 0.0
      %3135 = vmatpush1.xpose.msra.mxu0 0.0
      %3136 = vmatprep.subr.mxu0 0.0
      %3137 = vmatpush1.xpose.msra.mxu0 0.0
      %3138 = vmatprep.subr.mxu0 0.0
      %3139 = vmatpush1.xpose.msra.mxu0 0.0
      %3140 = vmatprep.subr.mxu0 0.0
      %3141 = vmatpush1.xpose.msra.mxu0 0.0
      %3142 = vmatprep.subr.mxu0 0.0
      %3143 = vmatpush1.xpose.msra.mxu0 0.0
      %3144 = vmatprep.subr.mxu0 0.0
      %3145 = vmatpush1.xpose.msra.mxu0 0.0
      %3146 = vmatprep.subr.mxu0 0.0
      %3147 = vmatpush1.xpose.msra.mxu0 0.0
      %3148 = vmatprep.subr.mxu0 0.0
      %3149 = vmatpush1.xpose.msra.mxu0 0.0
      %3150 = vmatprep.subr.mxu0 0.0
      %3151 = vmatpush1.xpose.msra.mxu0 0.0
      %3152 = vmatprep.subr.mxu0 0.0
      %3153 = vmatpush1.xpose.msra.mxu0 0.0
      %3154 = vmatprep.subr.mxu0 0.0
      %3155 = vmatpush1.xpose.msra.mxu0 0.0
      %3156 = vmatprep.subr.mxu0 0.0
      %3157 = vmatpush1.xpose.msra.mxu0 0.0
      %3158 = vmatprep.subr.mxu0 0.0
      %3159 = vmatpush1.xpose.msra.mxu0 0.0
      %3160 = vmatprep.subr.mxu0 0.0
      %3161 = vmatpush1.xpose.msra.mxu0 0.0
      %3162 = vmatprep.subr.mxu0 0.0
      %3163 = vmatpush1.xpose.msra.mxu0 0.0
      %3164 = vmatprep.subr.mxu0 0.0
      %3165 = vmatpush1.xpose.msra.mxu0 0.0
      %3166 = vmatprep.subr.mxu0 0.0
      %3167 = vmatpush1.xpose.msra.mxu0 0.0
      %3168 = vmatprep.mubr.f32.mxu0 %v2752
      %3169 = vmatmul.mubr.f32.gmra.mrb[0].mxu0 %v2751
      %v3170 = vpop.f32.mrb[0].mxu0
      %v3171 = vadd.f32 %v2991, %v3170
      %v3172 = vpop.f32.mrb[0].mxu0
      %3173 = vmatprep.mubr.f32.mxu0 %v2754
      %3174 = vmatmul.mubr.f32.gmra.mrb[0].mxu0 %v2753
      %v3175 = vpop.f32.mrb[0].mxu0
      %v3176 = vadd.f32 %v2992, %v3175
      %v3177 = vpop.f32.mrb[0].mxu0
      %3178 = vmatprep.mubr.f32.mxu0 %v2756
      %3179 = vmatmul.mubr.f32.gmra.mrb[0].mxu0 %v2755
      %v3180 = vpop.f32.mrb[0].mxu0
      %v3181 = vadd.f32 %v2993, %v3180
      %v3182 = vpop.f32.mrb[0].mxu0
      %3183 = vmatprep.mubr.f32.mxu0 %v2758
      %3184 = vmatmul.mubr.f32.gmra.mrb[0].mxu0 %v2757
      %v3185 = vpop.f32.mrb[0].mxu0
      %v3186 = vadd.f32 %v2994, %v3185
      %v3187 = vpop.f32.mrb[0].mxu0
      %3188 = vmatprep.mubr.f32.mxu0 %v2760
      %3189 = vmatmul.mubr.f32.gmra.mrb[0].mxu0 %v2759
      %v3190 = vpop.f32.mrb[0].mxu0
      %v3191 = vadd.f32 %v2995, %v3190
      %v3192 = vpop.f32.mrb[0].mxu0
      %3193 = vmatprep.mubr.f32.mxu0 %v2762
      %3194 = vmatmul.mubr.f32.gmra.mrb[0].mxu0 %v2761
      %v3195 = vpop.f32.mrb[0].mxu0
      %v3196 = vadd.f32 %v2996, %v3195
      %v3197 = vpop.f32.mrb[0].mxu0
      %3198 = vmatprep.mubr.f32.mxu0 %v2764
      %3199 = vmatmul.mubr.f32.gmra.mrb[0].mxu0 %v2763
      %v3200 = vpop.f32.mrb[0].mxu0
      %v3201 = vadd.f32 %v2997, %v3200
      %v3202 = vpop.f32.mrb[0].mxu0
      %3203 = vmatprep.mubr.f32.mxu0 %v2766
      %3204 = vmatmul.mubr.f32.gmra.mrb[0].mxu0 %v2765
      %v3205 = vpop.f32.mrb[0].mxu0
      %v3206 = vadd.f32 %v2998, %v3205
      %v3207 = vpop.f32.mrb[0].mxu0
      %3208 = vdwg.mxu0
      %3209 = vmatprep.subr.mxu0 %v2456
      %3210 = vmatpush1.xpose.msra.mxu0 %v2454
      %3211 = vmatprep.subr.mxu0 %v2456
      %3212 = vmatpush1.xpose.msra.mxu0 %v2454
      %3213 = vmatprep.subr.mxu0 %v2456
      %3214 = vmatpush1.xpose.msra.mxu0 %v2454
      %3215 = vmatprep.subr.mxu0 %v2456
      %3216 = vmatpush1.xpose.msra.mxu0 %v2454
      %3217 = vmatprep.subr.mxu0 %v2456
      %3218 = vmatpush1.xpose.msra.mxu0 %v2454
      %3219 = vmatprep.subr.mxu0 %v2456
      %3220 = vmatpush1.xpose.msra.mxu0 %v2454
      %3221 = vmatprep.subr.mxu0 %v2456
      %3222 = vmatpush1.xpose.msra.mxu0 %v2454
      %3223 = vmatprep.subr.mxu0 %v2456
      %3224 = vmatpush1.xpose.msra.mxu0 %v2454
      %3225 = vmatprep.subr.mxu0 0.0
      %3226 = vmatpush1.xpose.msra.mxu0 0.0
      %3227 = vmatprep.subr.mxu0 0.0
      %3228 = vmatpush1.xpose.msra.mxu0 0.0
      %3229 = vmatprep.subr.mxu0 0.0
      %3230 = vmatpush1.xpose.msra.mxu0 0.0
      %3231 = vmatprep.subr.mxu0 0.0
      %3232 = vmatpush1.xpose.msra.mxu0 0.0
      %3233 = vmatprep.subr.mxu0 0.0
      %3234 = vmatpush1.xpose.msra.mxu0 0.0
      %3235 = vmatprep.subr.mxu0 0.0
      %3236 = vmatpush1.xpose.msra.mxu0 0.0
      %3237 = vmatprep.subr.mxu0 0.0
      %3238 = vmatpush1.xpose.msra.mxu0 0.0
      %3239 = vmatprep.subr.mxu0 0.0
      %3240 = vmatpush1.xpose.msra.mxu0 0.0
      %3241 = vmatprep.subr.mxu0 0.0
      %3242 = vmatpush1.xpose.msra.mxu0 0.0
      %3243 = vmatprep.subr.mxu0 0.0
      %3244 = vmatpush1.xpose.msra.mxu0 0.0
      %3245 = vmatprep.subr.mxu0 0.0
      %3246 = vmatpush1.xpose.msra.mxu0 0.0
      %3247 = vmatprep.subr.mxu0 0.0
      %3248 = vmatpush1.xpose.msra.mxu0 0.0
      %3249 = vmatprep.subr.mxu0 0.0
      %3250 = vmatpush1.xpose.msra.mxu0 0.0
      %3251 = vmatprep.subr.mxu0 0.0
      %3252 = vmatpush1.xpose.msra.mxu0 0.0
      %3253 = vmatprep.subr.mxu0 0.0
      %3254 = vmatpush1.xpose.msra.mxu0 0.0
      %3255 = vmatprep.subr.mxu0 0.0
      %3256 = vmatpush1.xpose.msra.mxu0 0.0
      %3257 = vmatprep.subr.mxu0 0.0
      %3258 = vmatpush1.xpose.msra.mxu0 0.0
      %3259 = vmatprep.subr.mxu0 0.0
      %3260 = vmatpush1.xpose.msra.mxu0 0.0
      %3261 = vmatprep.subr.mxu0 0.0
      %3262 = vmatpush1.xpose.msra.mxu0 0.0
      %3263 = vmatprep.subr.mxu0 0.0
      %3264 = vmatpush1.xpose.msra.mxu0 0.0
      %3265 = vmatprep.subr.mxu0 0.0
      %3266 = vmatpush1.xpose.msra.mxu0 0.0
      %3267 = vmatprep.subr.mxu0 0.0
      %3268 = vmatpush1.xpose.msra.mxu0 0.0
      %3269 = vmatprep.subr.mxu0 0.0
      %3270 = vmatpush1.xpose.msra.mxu0 0.0
      %3271 = vmatprep.subr.mxu0 0.0
      %3272 = vmatpush1.xpose.msra.mxu0 0.0
      %3273 = vmatprep.mubr.f32.mxu0 %v2768
      %3274 = vmatmul.mubr.f32.gmra.mrb[0].mxu0 %v2767
      %v3275 = vpop.f32.mrb[0].mxu0
      %v3276 = vadd.f32 %v2991, %v3275
      %v3277 = vpop.f32.mrb[0].mxu0
      %3278 = vmatprep.mubr.f32.mxu0 %v2770
      %3279 = vmatmul.mubr.f32.gmra.mrb[0].mxu0 %v2769
      %v3280 = vpop.f32.mrb[0].mxu0
      %v3281 = vadd.f32 %v2992, %v3280
      %v3282 = vpop.f32.mrb[0].mxu0
      %3283 = vmatprep.mubr.f32.mxu0 %v2772
      %3284 = vmatmul.mubr.f32.gmra.mrb[0].mxu0 %v2771
      %v3285 = vpop.f32.mrb[0].mxu0
      %v3286 = vadd.f32 %v2993, %v3285
      %v3287 = vpop.f32.mrb[0].mxu0
      %3288 = vmatprep.mubr.f32.mxu0 %v2774
      %3289 = vmatmul.mubr.f32.gmra.mrb[0].mxu0 %v2773
      %v3290 = vpop.f32.mrb[0].mxu0
      %v3291 = vadd.f32 %v2994, %v3290
      %v3292 = vpop.f32.mrb[0].mxu0
      %3293 = vmatprep.mubr.f32.mxu0 %v2776
      %3294 = vmatmul.mubr.f32.gmra.mrb[0].mxu0 %v2775
      %v3295 = vpop.f32.mrb[0].mxu0
      %v3296 = vadd.f32 %v2995, %v3295
      %v3297 = vpop.f32.mrb[0].mxu0
      %3298 = vmatprep.mubr.f32.mxu0 %v2778
      %3299 = vmatmul.mubr.f32.gmra.mrb[0].mxu0 %v2777
      %v3300 = vpop.f32.mrb[0].mxu0
      %v3301 = vadd.f32 %v2996, %v3300
      %v3302 = vpop.f32.mrb[0].mxu0
      %3303 = vmatprep.mubr.f32.mxu0 %v2780
      %3304 = vmatmul.mubr.f32.gmra.mrb[0].mxu0 %v2779
      %v3305 = vpop.f32.mrb[0].mxu0
      %v3306 = vadd.f32 %v2997, %v3305
      %v3307 = vpop.f32.mrb[0].mxu0
      %3308 = vmatprep.mubr.f32.mxu0 %v2782
      %3309 = vmatmul.mubr.f32.gmra.mrb[0].mxu0 %v2781
      %v3310 = vpop.f32.mrb[0].mxu0
      %v3311 = vadd.f32 %v2998, %v3310
      %v3312 = vpop.f32.mrb[0].mxu0
      %3313 = vdwg.mxu0
      %3314 = vmatprep.subr.mxu0 %v2462
      %3315 = vmatpush1.xpose.msra.mxu0 %v2460
      %3316 = vmatprep.subr.mxu0 %v2462
      %3317 = vmatpush1.xpose.msra.mxu0 %v2460
      %3318 = vmatprep.subr.mxu0 %v2462
      %3319 = vmatpush1.xpose.msra.mxu0 %v2460
      %3320 = vmatprep.subr.mxu0 %v2462
      %3321 = vmatpush1.xpose.msra.mxu0 %v2460
      %3322 = vmatprep.subr.mxu0 %v2462
      %3323 = vmatpush1.xpose.msra.mxu0 %v2460
      %3324 = vmatprep.subr.mxu0 %v2462
      %3325 = vmatpush1.xpose.msra.mxu0 %v2460
      %3326 = vmatprep.subr.mxu0 %v2462
      %3327 = vmatpush1.xpose.msra.mxu0 %v2460
      %3328 = vmatprep.subr.mxu0 %v2462
      %3329 = vmatpush1.xpose.msra.mxu0 %v2460
      %3330 = vmatprep.subr.mxu0 0.0
      %3331 = vmatpush1.xpose.msra.mxu0 0.0
      %3332 = vmatprep.subr.mxu0 0.0
      %3333 = vmatpush1.xpose.msra.mxu0 0.0
      %3334 = vmatprep.subr.mxu0 0.0
      %3335 = vmatpush1.xpose.msra.mxu0 0.0
      %3336 = vmatprep.subr.mxu0 0.0
      %3337 = vmatpush1.xpose.msra.mxu0 0.0
      %3338 = vmatprep.subr.mxu0 0.0
      %3339 = vmatpush1.xpose.msra.mxu0 0.0
      %3340 = vmatprep.subr.mxu0 0.0
      %3341 = vmatpush1.xpose.msra.mxu0 0.0
      %3342 = vmatprep.subr.mxu0 0.0
      %3343 = vmatpush1.xpose.msra.mxu0 0.0
      %3344 = vmatprep.subr.mxu0 0.0
      %3345 = vmatpush1.xpose.msra.mxu0 0.0
      %3346 = vmatprep.subr.mxu0 0.0
      %3347 = vmatpush1.xpose.msra.mxu0 0.0
      %3348 = vmatprep.subr.mxu0 0.0
      %3349 = vmatpush1.xpose.msra.mxu0 0.0
      %3350 = vmatprep.subr.mxu0 0.0
      %3351 = vmatpush1.xpose.msra.mxu0 0.0
      %3352 = vmatprep.subr.mxu0 0.0
      %3353 = vmatpush1.xpose.msra.mxu0 0.0
      %3354 = vmatprep.subr.mxu0 0.0
      %3355 = vmatpush1.xpose.msra.mxu0 0.0
      %3356 = vmatprep.subr.mxu0 0.0
      %3357 = vmatpush1.xpose.msra.mxu0 0.0
      %3358 = vmatprep.subr.mxu0 0.0
      %3359 = vmatpush1.xpose.msra.mxu0 0.0
      %3360 = vmatprep.subr.mxu0 0.0
      %3361 = vmatpush1.xpose.msra.mxu0 0.0
      %3362 = vmatprep.subr.mxu0 0.0
      %3363 = vmatpush1.xpose.msra.mxu0 0.0
      %3364 = vmatprep.subr.mxu0 0.0
      %3365 = vmatpush1.xpose.msra.mxu0 0.0
      %3366 = vmatprep.subr.mxu0 0.0
      %3367 = vmatpush1.xpose.msra.mxu0 0.0
      %3368 = vmatprep.subr.mxu0 0.0
      %3369 = vmatpush1.xpose.msra.mxu0 0.0
      %3370 = vmatprep.subr.mxu0 0.0
      %3371 = vmatpush1.xpose.msra.mxu0 0.0
      %3372 = vmatprep.subr.mxu0 0.0
      %3373 = vmatpush1.xpose.msra.mxu0 0.0
      %3374 = vmatprep.subr.mxu0 0.0
      %3375 = vmatpush1.xpose.msra.mxu0 0.0
      %3376 = vmatprep.subr.mxu0 0.0
      %3377 = vmatpush1.xpose.msra.mxu0 0.0
      %3378 = vmatprep.mubr.f32.mxu0 %v2784
      %3379 = vmatmul.mubr.f32.gmra.mrb[0].mxu0 %v2783
      %v3380 = vpop.f32.mrb[0].mxu0
      %v3381 = vadd.f32 %v2991, %v3380
      %v3382 = vpop.f32.mrb[0].mxu0
      %3383 = vmatprep.mubr.f32.mxu0 %v2786
      %3384 = vmatmul.mubr.f32.gmra.mrb[0].mxu0 %v2785
      %v3385 = vpop.f32.mrb[0].mxu0
      %v3386 = vadd.f32 %v2992, %v3385
      %v3387 = vpop.f32.mrb[0].mxu0
      %3388 = vmatprep.mubr.f32.mxu0 %v2788
      %3389 = vmatmul.mubr.f32.gmra.mrb[0].mxu0 %v2787
      %v3390 = vpop.f32.mrb[0].mxu0
      %v3391 = vadd.f32 %v2993, %v3390
      %v3392 = vpop.f32.mrb[0].mxu0
      %3393 = vmatprep.mubr.f32.mxu0 %v2790
      %3394 = vmatmul.mubr.f32.gmra.mrb[0].mxu0 %v2789
      %v3395 = vpop.f32.mrb[0].mxu0
      %v3396 = vadd.f32 %v2994, %v3395
      %v3397 = vpop.f32.mrb[0].mxu0
      %3398 = vmatprep.mubr.f32.mxu0 %v2792
      %3399 = vmatmul.mubr.f32.gmra.mrb[0].mxu0 %v2791
      %v3400 = vpop.f32.mrb[0].mxu0
      %v3401 = vadd.f32 %v2995, %v3400
      %v3402 = vpop.f32.mrb[0].mxu0
      %3403 = vmatprep.mubr.f32.mxu0 %v2794
      %3404 = vmatmul.mubr.f32.gmra.mrb[0].mxu0 %v2793
      %v3405 = vpop.f32.mrb[0].mxu0
      %v3406 = vadd.f32 %v2996, %v3405
      %v3407 = vpop.f32.mrb[0].mxu0
      %3408 = vmatprep.mubr.f32.mxu0 %v2796
      %3409 = vmatmul.mubr.f32.gmra.mrb[0].mxu0 %v2795
      %v3410 = vpop.f32.mrb[0].mxu0
      %v3411 = vadd.f32 %v2997, %v3410
      %v3412 = vpop.f32.mrb[0].mxu0
      %3413 = vmatprep.mubr.f32.mxu0 %v2798
      %3414 = vmatmul.mubr.f32.gmra.mrb[0].mxu0 %v2797
      %v3415 = vpop.f32.mrb[0].mxu0
      %v3416 = vadd.f32 %v2998, %v3415
      %v3417 = vpop.f32.mrb[0].mxu0
      %3418 = vdwg.mxu0
      %3419 = vmatprep.subr.mxu0 %v2468
      %3420 = vmatpush1.xpose.msra.mxu0 %v2466
      %3421 = vmatprep.subr.mxu0 %v2468
      %3422 = vmatpush1.xpose.msra.mxu0 %v2466
      %3423 = vmatprep.subr.mxu0 %v2468
      %3424 = vmatpush1.xpose.msra.mxu0 %v2466
      %3425 = vmatprep.subr.mxu0 %v2468
      %3426 = vmatpush1.xpose.msra.mxu0 %v2466
      %3427 = vmatprep.subr.mxu0 %v2468
      %3428 = vmatpush1.xpose.msra.mxu0 %v2466
      %3429 = vmatprep.subr.mxu0 %v2468
      %3430 = vmatpush1.xpose.msra.mxu0 %v2466
      %3431 = vmatprep.subr.mxu0 %v2468
      %3432 = vmatpush1.xpose.msra.mxu0 %v2466
      %3433 = vmatprep.subr.mxu0 %v2468
      %3434 = vmatpush1.xpose.msra.mxu0 %v2466
      %3435 = vmatprep.subr.mxu0 0.0
      %3436 = vmatpush1.xpose.msra.mxu0 0.0
      %3437 = vmatprep.subr.mxu0 0.0
      %3438 = vmatpush1.xpose.msra.mxu0 0.0
      %3439 = vmatprep.subr.mxu0 0.0
      %3440 = vmatpush1.xpose.msra.mxu0 0.0
      %3441 = vmatprep.subr.mxu0 0.0
      %3442 = vmatpush1.xpose.msra.mxu0 0.0
      %3443 = vmatprep.subr.mxu0 0.0
      %3444 = vmatpush1.xpose.msra.mxu0 0.0
      %3445 = vmatprep.subr.mxu0 0.0
      %3446 = vmatpush1.xpose.msra.mxu0 0.0
      %3447 = vmatprep.subr.mxu0 0.0
      %3448 = vmatpush1.xpose.msra.mxu0 0.0
      %3449 = vmatprep.subr.mxu0 0.0
      %3450 = vmatpush1.xpose.msra.mxu0 0.0
      %3451 = vmatprep.subr.mxu0 0.0
      %3452 = vmatpush1.xpose.msra.mxu0 0.0
      %3453 = vmatprep.subr.mxu0 0.0
      %3454 = vmatpush1.xpose.msra.mxu0 0.0
      %3455 = vmatprep.subr.mxu0 0.0
      %3456 = vmatpush1.xpose.msra.mxu0 0.0
      %3457 = vmatprep.subr.mxu0 0.0
      %3458 = vmatpush1.xpose.msra.mxu0 0.0
      %3459 = vmatprep.subr.mxu0 0.0
      %3460 = vmatpush1.xpose.msra.mxu0 0.0
      %3461 = vmatprep.subr.mxu0 0.0
      %3462 = vmatpush1.xpose.msra.mxu0 0.0
      %3463 = vmatprep.subr.mxu0 0.0
      %3464 = vmatpush1.xpose.msra.mxu0 0.0
      %3465 = vmatprep.subr.mxu0 0.0
      %3466 = vmatpush1.xpose.msra.mxu0 0.0
      %3467 = vmatprep.subr.mxu0 0.0
      %3468 = vmatpush1.xpose.msra.mxu0 0.0
      %3469 = vmatprep.subr.mxu0 0.0
      %3470 = vmatpush1.xpose.msra.mxu0 0.0
      %3471 = vmatprep.subr.mxu0 0.0
      %3472 = vmatpush1.xpose.msra.mxu0 0.0
      %3473 = vmatprep.subr.mxu0 0.0
      %3474 = vmatpush1.xpose.msra.mxu0 0.0
      %3475 = vmatprep.subr.mxu0 0.0
      %3476 = vmatpush1.xpose.msra.mxu0 0.0
      %3477 = vmatprep.subr.mxu0 0.0
      %3478 = vmatpush1.xpose.msra.mxu0 0.0
      %3479 = vmatprep.subr.mxu0 0.0
      %3480 = vmatpush1.xpose.msra.mxu0 0.0
      %3481 = vmatprep.subr.mxu0 0.0
      %3482 = vmatpush1.xpose.msra.mxu0 0.0
      %3483 = vmatprep.mubr.f32.mxu0 %v2800
      %3484 = vmatmul.mubr.f32.gmra.mrb[0].mxu0 %v2799
      %v3485 = vpop.f32.mrb[0].mxu0
      %v3486 = vadd.f32 %v2991, %v3485
      %v3487 = vpop.f32.mrb[0].mxu0
      %3488 = vmatprep.mubr.f32.mxu0 %v2802
      %3489 = vmatmul.mubr.f32.gmra.mrb[0].mxu0 %v2801
      %v3490 = vpop.f32.mrb[0].mxu0
      %v3491 = vadd.f32 %v2992, %v3490
      %v3492 = vpop.f32.mrb[0].mxu0
      %3493 = vmatprep.mubr.f32.mxu0 %v2804
      %3494 = vmatmul.mubr.f32.gmra.mrb[0].mxu0 %v2803
      %v3495 = vpop.f32.mrb[0].mxu0
      %v3496 = vadd.f32 %v2993, %v3495
      %v3497 = vpop.f32.mrb[0].mxu0
      %3498 = vmatprep.mubr.f32.mxu0 %v2806
      %3499 = vmatmul.mubr.f32.gmra.mrb[0].mxu0 %v2805
      %v3500 = vpop.f32.mrb[0].mxu0
      %v3501 = vadd.f32 %v2994, %v3500
      %v3502 = vpop.f32.mrb[0].mxu0
      %3503 = vmatprep.mubr.f32.mxu0 %v2808
      %3504 = vmatmul.mubr.f32.gmra.mrb[0].mxu0 %v2807
      %v3505 = vpop.f32.mrb[0].mxu0
      %v3506 = vadd.f32 %v2995, %v3505
      %v3507 = vpop.f32.mrb[0].mxu0
      %3508 = vmatprep.mubr.f32.mxu0 %v2810
      %3509 = vmatmul.mubr.f32.gmra.mrb[0].mxu0 %v2809
      %v3510 = vpop.f32.mrb[0].mxu0
      %v3511 = vadd.f32 %v2996, %v3510
      %v3512 = vpop.f32.mrb[0].mxu0
      %3513 = vmatprep.mubr.f32.mxu0 %v2812
      %3514 = vmatmul.mubr.f32.gmra.mrb[0].mxu0 %v2811
      %v3515 = vpop.f32.mrb[0].mxu0
      %v3516 = vadd.f32 %v2997, %v3515
      %v3517 = vpop.f32.mrb[0].mxu0
      %3518 = vmatprep.mubr.f32.mxu0 %v2814
      %3519 = vmatmul.mubr.f32.gmra.mrb[0].mxu0 %v2813
      %v3520 = vpop.f32.mrb[0].mxu0
      %v3521 = vadd.f32 %v2998, %v3520
      %v3522 = vpop.f32.mrb[0].mxu0
      %3523 = vdwg.mxu0
      %3524 = vmatprep.subr.mxu0 %v2474
      %3525 = vmatpush1.xpose.msra.mxu0 %v2472
      %3526 = vmatprep.subr.mxu0 %v2474
      %3527 = vmatpush1.xpose.msra.mxu0 %v2472
      %3528 = vmatprep.subr.mxu0 %v2474
      %3529 = vmatpush1.xpose.msra.mxu0 %v2472
      %3530 = vmatprep.subr.mxu0 %v2474
      %3531 = vmatpush1.xpose.msra.mxu0 %v2472
      %3532 = vmatprep.subr.mxu0 %v2474
      %3533 = vmatpush1.xpose.msra.mxu0 %v2472
      %3534 = vmatprep.subr.mxu0 %v2474
      %3535 = vmatpush1.xpose.msra.mxu0 %v2472
      %3536 = vmatprep.subr.mxu0 %v2474
      %3537 = vmatpush1.xpose.msra.mxu0 %v2472
      %3538 = vmatprep.subr.mxu0 %v2474
      %3539 = vmatpush1.xpose.msra.mxu0 %v2472
      %3540 = vmatprep.subr.mxu0 0.0
      %3541 = vmatpush1.xpose.msra.mxu0 0.0
      %3542 = vmatprep.subr.mxu0 0.0
      %3543 = vmatpush1.xpose.msra.mxu0 0.0
      %3544 = vmatprep.subr.mxu0 0.0
      %3545 = vmatpush1.xpose.msra.mxu0 0.0
      %3546 = vmatprep.subr.mxu0 0.0
      %3547 = vmatpush1.xpose.msra.mxu0 0.0
      %3548 = vmatprep.subr.mxu0 0.0
      %3549 = vmatpush1.xpose.msra.mxu0 0.0
      %3550 = vmatprep.subr.mxu0 0.0
      %3551 = vmatpush1.xpose.msra.mxu0 0.0
      %3552 = vmatprep.subr.mxu0 0.0
      %3553 = vmatpush1.xpose.msra.mxu0 0.0
      %3554 = vmatprep.subr.mxu0 0.0
      %3555 = vmatpush1.xpose.msra.mxu0 0.0
      %3556 = vmatprep.subr.mxu0 0.0
      %3557 = vmatpush1.xpose.msra.mxu0 0.0
      %3558 = vmatprep.subr.mxu0 0.0
      %3559 = vmatpush1.xpose.msra.mxu0 0.0
      %3560 = vmatprep.subr.mxu0 0.0
      %3561 = vmatpush1.xpose.msra.mxu0 0.0
      %3562 = vmatprep.subr.mxu0 0.0
      %3563 = vmatpush1.xpose.msra.mxu0 0.0
      %3564 = vmatprep.subr.mxu0 0.0
      %3565 = vmatpush1.xpose.msra.mxu0 0.0
      %3566 = vmatprep.subr.mxu0 0.0
      %3567 = vmatpush1.xpose.msra.mxu0 0.0
      %3568 = vmatprep.subr.mxu0 0.0
      %3569 = vmatpush1.xpose.msra.mxu0 0.0
      %3570 = vmatprep.subr.mxu0 0.0
      %3571 = vmatpush1.xpose.msra.mxu0 0.0
      %3572 = vmatprep.subr.mxu0 0.0
      %3573 = vmatpush1.xpose.msra.mxu0 0.0
      %3574 = vmatprep.subr.mxu0 0.0
      %3575 = vmatpush1.xpose.msra.mxu0 0.0
      %3576 = vmatprep.subr.mxu0 0.0
      %3577 = vmatpush1.xpose.msra.mxu0 0.0
      %3578 = vmatprep.subr.mxu0 0.0
      %3579 = vmatpush1.xpose.msra.mxu0 0.0
      %3580 = vmatprep.subr.mxu0 0.0
      %3581 = vmatpush1.xpose.msra.mxu0 0.0
      %3582 = vmatprep.subr.mxu0 0.0
      %3583 = vmatpush1.xpose.msra.mxu0 0.0
      %3584 = vmatprep.subr.mxu0 0.0
      %3585 = vmatpush1.xpose.msra.mxu0 0.0
      %3586 = vmatprep.subr.mxu0 0.0
      %3587 = vmatpush1.xpose.msra.mxu0 0.0
      %3588 = vmatprep.mubr.f32.mxu0 %v2816
      %3589 = vmatmul.mubr.f32.gmra.mrb[0].mxu0 %v2815
      %v3590 = vpop.f32.mrb[0].mxu0
      %v3591 = vadd.f32 %v2991, %v3590
      %v3592 = vpop.f32.mrb[0].mxu0
      %3593 = vmatprep.mubr.f32.mxu0 %v2818
      %3594 = vmatmul.mubr.f32.gmra.mrb[0].mxu0 %v2817
      %v3595 = vpop.f32.mrb[0].mxu0
      %v3596 = vadd.f32 %v2992, %v3595
      %v3597 = vpop.f32.mrb[0].mxu0
      %3598 = vmatprep.mubr.f32.mxu0 %v2820
      %3599 = vmatmul.mubr.f32.gmra.mrb[0].mxu0 %v2819
      %v3600 = vpop.f32.mrb[0].mxu0
      %v3601 = vadd.f32 %v2993, %v3600
      %v3602 = vpop.f32.mrb[0].mxu0
      %3603 = vmatprep.mubr.f32.mxu0 %v2822
      %3604 = vmatmul.mubr.f32.gmra.mrb[0].mxu0 %v2821
      %v3605 = vpop.f32.mrb[0].mxu0
      %v3606 = vadd.f32 %v2994, %v3605
      %v3607 = vpop.f32.mrb[0].mxu0
      %3608 = vmatprep.mubr.f32.mxu0 %v2824
      %3609 = vmatmul.mubr.f32.gmra.mrb[0].mxu0 %v2823
      %v3610 = vpop.f32.mrb[0].mxu0
      %v3611 = vadd.f32 %v2995, %v3610
      %v3612 = vpop.f32.mrb[0].mxu0
      %3613 = vmatprep.mubr.f32.mxu0 %v2826
      %3614 = vmatmul.mubr.f32.gmra.mrb[0].mxu0 %v2825
      %v3615 = vpop.f32.mrb[0].mxu0
      %v3616 = vadd.f32 %v2996, %v3615
      %v3617 = vpop.f32.mrb[0].mxu0
      %3618 = vmatprep.mubr.f32.mxu0 %v2828
      %3619 = vmatmul.mubr.f32.gmra.mrb[0].mxu0 %v2827
      %v3620 = vpop.f32.mrb[0].mxu0
      %v3621 = vadd.f32 %v2997, %v3620
      %v3622 = vpop.f32.mrb[0].mxu0
      %3623 = vmatprep.mubr.f32.mxu0 %v2830
      %3624 = vmatmul.mubr.f32.gmra.mrb[0].mxu0 %v2829
      %v3625 = vpop.f32.mrb[0].mxu0
      %v3626 = vadd.f32 %v2998, %v3625
      %v3627 = vpop.f32.mrb[0].mxu0
      %3628 = vdwg.mxu0
      %3629 = vmatprep.subr.mxu0 %v2480
      %3630 = vmatpush1.xpose.msra.mxu0 %v2478
      %3631 = vmatprep.subr.mxu0 %v2480
      %3632 = vmatpush1.xpose.msra.mxu0 %v2478
      %3633 = vmatprep.subr.mxu0 %v2480
      %3634 = vmatpush1.xpose.msra.mxu0 %v2478
      %3635 = vmatprep.subr.mxu0 %v2480
      %3636 = vmatpush1.xpose.msra.mxu0 %v2478
      %3637 = vmatprep.subr.mxu0 %v2480
      %3638 = vmatpush1.xpose.msra.mxu0 %v2478
      %3639 = vmatprep.subr.mxu0 %v2480
      %3640 = vmatpush1.xpose.msra.mxu0 %v2478
      %3641 = vmatprep.subr.mxu0 %v2480
      %3642 = vmatpush1.xpose.msra.mxu0 %v2478
      %3643 = vmatprep.subr.mxu0 %v2480
      %3644 = vmatpush1.xpose.msra.mxu0 %v2478
      %3645 = vmatprep.subr.mxu0 0.0
      %3646 = vmatpush1.xpose.msra.mxu0 0.0
      %3647 = vmatprep.subr.mxu0 0.0
      %3648 = vmatpush1.xpose.msra.mxu0 0.0
      %3649 = vmatprep.subr.mxu0 0.0
      %3650 = vmatpush1.xpose.msra.mxu0 0.0
      %3651 = vmatprep.subr.mxu0 0.0
      %3652 = vmatpush1.xpose.msra.mxu0 0.0
      %3653 = vmatprep.subr.mxu0 0.0
      %3654 = vmatpush1.xpose.msra.mxu0 0.0
      %3655 = vmatprep.subr.mxu0 0.0
      %3656 = vmatpush1.xpose.msra.mxu0 0.0
      %3657 = vmatprep.subr.mxu0 0.0
      %3658 = vmatpush1.xpose.msra.mxu0 0.0
      %3659 = vmatprep.subr.mxu0 0.0
      %3660 = vmatpush1.xpose.msra.mxu0 0.0
      %3661 = vmatprep.subr.mxu0 0.0
      %3662 = vmatpush1.xpose.msra.mxu0 0.0
      %3663 = vmatprep.subr.mxu0 0.0
      %3664 = vmatpush1.xpose.msra.mxu0 0.0
      %3665 = vmatprep.subr.mxu0 0.0
      %3666 = vmatpush1.xpose.msra.mxu0 0.0
      %3667 = vmatprep.subr.mxu0 0.0
      %3668 = vmatpush1.xpose.msra.mxu0 0.0
      %3669 = vmatprep.subr.mxu0 0.0
      %3670 = vmatpush1.xpose.msra.mxu0 0.0
      %3671 = vmatprep.subr.mxu0 0.0
      %3672 = vmatpush1.xpose.msra.mxu0 0.0
      %3673 = vmatprep.subr.mxu0 0.0
      %3674 = vmatpush1.xpose.msra.mxu0 0.0
      %3675 = vmatprep.subr.mxu0 0.0
      %3676 = vmatpush1.xpose.msra.mxu0 0.0
      %3677 = vmatprep.subr.mxu0 0.0
      %3678 = vmatpush1.xpose.msra.mxu0 0.0
      %3679 = vmatprep.subr.mxu0 0.0
      %3680 = vmatpush1.xpose.msra.mxu0 0.0
      %3681 = vmatprep.subr.mxu0 0.0
      %3682 = vmatpush1.xpose.msra.mxu0 0.0
      %3683 = vmatprep.subr.mxu0 0.0
      %3684 = vmatpush1.xpose.msra.mxu0 0.0
      %3685 = vmatprep.subr.mxu0 0.0
      %3686 = vmatpush1.xpose.msra.mxu0 0.0
      %3687 = vmatprep.subr.mxu0 0.0
      %3688 = vmatpush1.xpose.msra.mxu0 0.0
      %3689 = vmatprep.subr.mxu0 0.0
      %3690 = vmatpush1.xpose.msra.mxu0 0.0
      %3691 = vmatprep.subr.mxu0 0.0
      %3692 = vmatpush1.xpose.msra.mxu0 0.0
      %3693 = vmatprep.mubr.f32.mxu0 %v2832
      %3694 = vmatmul.mubr.f32.gmra.mrb[0].mxu0 %v2831
      %v3695 = vpop.f32.mrb[0].mxu0
      %v3696 = vadd.f32 %v2991, %v3695
      %v3697 = vpop.f32.mrb[0].mxu0
      %3698 = vmatprep.mubr.f32.mxu0 %v2834
      %3699 = vmatmul.mubr.f32.gmra.mrb[0].mxu0 %v2833
      %v3700 = vpop.f32.mrb[0].mxu0
      %v3701 = vadd.f32 %v2992, %v3700
      %v3702 = vpop.f32.mrb[0].mxu0
      %3703 = vmatprep.mubr.f32.mxu0 %v2836
      %3704 = vmatmul.mubr.f32.gmra.mrb[0].mxu0 %v2835
      %v3705 = vpop.f32.mrb[0].mxu0
      %v3706 = vadd.f32 %v2993, %v3705
      %v3707 = vpop.f32.mrb[0].mxu0
      %3708 = vmatprep.mubr.f32.mxu0 %v2838
      %3709 = vmatmul.mubr.f32.gmra.mrb[0].mxu0 %v2837
      %v3710 = vpop.f32.mrb[0].mxu0
      %v3711 = vadd.f32 %v2994, %v3710
      %v3712 = vpop.f32.mrb[0].mxu0
      %3713 = vmatprep.mubr.f32.mxu0 %v2840
      %3714 = vmatmul.mubr.f32.gmra.mrb[0].mxu0 %v2839
      %v3715 = vpop.f32.mrb[0].mxu0
      %v3716 = vadd.f32 %v2995, %v3715
      %v3717 = vpop.f32.mrb[0].mxu0
      %3718 = vmatprep.mubr.f32.mxu0 %v2842
      %3719 = vmatmul.mubr.f32.gmra.mrb[0].mxu0 %v2841
      %v3720 = vpop.f32.mrb[0].mxu0
      %v3721 = vadd.f32 %v2996, %v3720
      %v3722 = vpop.f32.mrb[0].mxu0
      %3723 = vmatprep.mubr.f32.mxu0 %v2844
      %3724 = vmatmul.mubr.f32.gmra.mrb[0].mxu0 %v2843
      %v3725 = vpop.f32.mrb[0].mxu0
      %v3726 = vadd.f32 %v2997, %v3725
      %v3727 = vpop.f32.mrb[0].mxu0
      %3728 = vmatprep.mubr.f32.mxu0 %v2846
      %3729 = vmatmul.mubr.f32.gmra.mrb[0].mxu0 %v2845
      %v3730 = vpop.f32.mrb[0].mxu0
      %v3731 = vadd.f32 %v2998, %v3730
      %v3732 = vpop.f32.mrb[0].mxu0
      %3733 = vdwg.mxu0
      %3734 = vmatprep.subr.mxu0 %v2486
      %3735 = vmatpush1.xpose.msra.mxu0 %v2484
      %3736 = vmatprep.subr.mxu0 %v2486
      %3737 = vmatpush1.xpose.msra.mxu0 %v2484
      %3738 = vmatprep.subr.mxu0 %v2486
      %3739 = vmatpush1.xpose.msra.mxu0 %v2484
      %3740 = vmatprep.subr.mxu0 %v2486
      %3741 = vmatpush1.xpose.msra.mxu0 %v2484
      %3742 = vmatprep.subr.mxu0 %v2486
      %3743 = vmatpush1.xpose.msra.mxu0 %v2484
      %3744 = vmatprep.subr.mxu0 %v2486
      %3745 = vmatpush1.xpose.msra.mxu0 %v2484
      %3746 = vmatprep.subr.mxu0 %v2486
      %3747 = vmatpush1.xpose.msra.mxu0 %v2484
      %3748 = vmatprep.subr.mxu0 %v2486
      %3749 = vmatpush1.xpose.msra.mxu0 %v2484
      %3750 = vmatprep.subr.mxu0 0.0
      %3751 = vmatpush1.xpose.msra.mxu0 0.0
      %3752 = vmatprep.subr.mxu0 0.0
      %3753 = vmatpush1.xpose.msra.mxu0 0.0
      %3754 = vmatprep.subr.mxu0 0.0
      %3755 = vmatpush1.xpose.msra.mxu0 0.0
      %3756 = vmatprep.subr.mxu0 0.0
      %3757 = vmatpush1.xpose.msra.mxu0 0.0
      %3758 = vmatprep.subr.mxu0 0.0
      %3759 = vmatpush1.xpose.msra.mxu0 0.0
      %3760 = vmatprep.subr.mxu0 0.0
      %3761 = vmatpush1.xpose.msra.mxu0 0.0
      %3762 = vmatprep.subr.mxu0 0.0
      %3763 = vmatpush1.xpose.msra.mxu0 0.0
      %3764 = vmatprep.subr.mxu0 0.0
      %3765 = vmatpush1.xpose.msra.mxu0 0.0
      %3766 = vmatprep.subr.mxu0 0.0
      %3767 = vmatpush1.xpose.msra.mxu0 0.0
      %3768 = vmatprep.subr.mxu0 0.0
      %3769 = vmatpush1.xpose.msra.mxu0 0.0
      %3770 = vmatprep.subr.mxu0 0.0
      %3771 = vmatpush1.xpose.msra.mxu0 0.0
      %3772 = vmatprep.subr.mxu0 0.0
      %3773 = vmatpush1.xpose.msra.mxu0 0.0
      %3774 = vmatprep.subr.mxu0 0.0
      %3775 = vmatpush1.xpose.msra.mxu0 0.0
      %3776 = vmatprep.subr.mxu0 0.0
      %3777 = vmatpush1.xpose.msra.mxu0 0.0
      %3778 = vmatprep.subr.mxu0 0.0
      %3779 = vmatpush1.xpose.msra.mxu0 0.0
      %3780 = vmatprep.subr.mxu0 0.0
      %3781 = vmatpush1.xpose.msra.mxu0 0.0
      %3782 = vmatprep.subr.mxu0 0.0
      %3783 = vmatpush1.xpose.msra.mxu0 0.0
      %3784 = vmatprep.subr.mxu0 0.0
      %3785 = vmatpush1.xpose.msra.mxu0 0.0
      %3786 = vmatprep.subr.mxu0 0.0
      %3787 = vmatpush1.xpose.msra.mxu0 0.0
      %3788 = vmatprep.subr.mxu0 0.0
      %3789 = vmatpush1.xpose.msra.mxu0 0.0
      %3790 = vmatprep.subr.mxu0 0.0
      %3791 = vmatpush1.xpose.msra.mxu0 0.0
      %3792 = vmatprep.subr.mxu0 0.0
      %3793 = vmatpush1.xpose.msra.mxu0 0.0
      %3794 = vmatprep.subr.mxu0 0.0
      %3795 = vmatpush1.xpose.msra.mxu0 0.0
      %3796 = vmatprep.subr.mxu0 0.0
      %3797 = vmatpush1.xpose.msra.mxu0 0.0
      %3798 = vmatprep.mubr.f32.mxu0 %v2848
      %3799 = vmatmul.mubr.f32.gmra.mrb[0].mxu0 %v2847
      %v3800 = vpop.f32.mrb[0].mxu0
      %v3801 = vadd.f32 %v2991, %v3800
      %v3802 = vpop.f32.mrb[0].mxu0
      %3803 = vmatprep.mubr.f32.mxu0 %v2850
      %3804 = vmatmul.mubr.f32.gmra.mrb[0].mxu0 %v2849
      %v3805 = vpop.f32.mrb[0].mxu0
      %v3806 = vadd.f32 %v2992, %v3805
      %v3807 = vpop.f32.mrb[0].mxu0
      %3808 = vmatprep.mubr.f32.mxu0 %v2852
      %3809 = vmatmul.mubr.f32.gmra.mrb[0].mxu0 %v2851
      %v3810 = vpop.f32.mrb[0].mxu0
      %v3811 = vadd.f32 %v2993, %v3810
      %v3812 = vpop.f32.mrb[0].mxu0
      %3813 = vmatprep.mubr.f32.mxu0 %v2854
      %3814 = vmatmul.mubr.f32.gmra.mrb[0].mxu0 %v2853
      %v3815 = vpop.f32.mrb[0].mxu0
      %v3816 = vadd.f32 %v2994, %v3815
      %v3817 = vpop.f32.mrb[0].mxu0
      %3818 = vmatprep.mubr.f32.mxu0 %v2856
      %3819 = vmatmul.mubr.f32.gmra.mrb[0].mxu0 %v2855
      %v3820 = vpop.f32.mrb[0].mxu0
      %v3821 = vadd.f32 %v2995, %v3820
      %v3822 = vpop.f32.mrb[0].mxu0
      %3823 = vmatprep.mubr.f32.mxu0 %v2858
      %3824 = vmatmul.mubr.f32.gmra.mrb[0].mxu0 %v2857
      %v3825 = vpop.f32.mrb[0].mxu0
      %v3826 = vadd.f32 %v2996, %v3825
      %v3827 = vpop.f32.mrb[0].mxu0
      %3828 = vmatprep.mubr.f32.mxu0 %v2860
      %3829 = vmatmul.mubr.f32.gmra.mrb[0].mxu0 %v2859
      %v3830 = vpop.f32.mrb[0].mxu0
      %v3831 = vadd.f32 %v2997, %v3830
      %v3832 = vpop.f32.mrb[0].mxu0
      %3833 = vmatprep.mubr.f32.mxu0 %v2862
      %3834 = vmatmul.mubr.f32.gmra.mrb[0].mxu0 %v2861
      %v3835 = vpop.f32.mrb[0].mxu0
      %v3836 = vadd.f32 %v2998, %v3835
      %v3837 = vpop.f32.mrb[0].mxu0
      %3838 = vdwg.mxu0
      %vm3839 = vcmask 523264
      %v3840 = vsel %vm3839, %v3066, -inf
      %3841 = vmax.xlane.f32.xlu0 %v3840
      %v3842 = vpop.xlane.xlu0 %3841
      %v3843 = vsel %vm3839, %v3071, -inf
      %3844 = vmax.xlane.f32.xlu0 %v3843
      %v3845 = vpop.xlane.xlu0 %3844
      %v3846 = vsel %vm3839, %v3076, -inf
      %3847 = vmax.xlane.f32.xlu0 %v3846
      %v3848 = vpop.xlane.xlu0 %3847
      %v3849 = vsel %vm3839, %v3081, -inf
      %3850 = vmax.xlane.f32.xlu0 %v3849
      %v3851 = vpop.xlane.xlu0 %3850
      %v3852 = vsel %vm3839, %v3086, -inf
      %3853 = vmax.xlane.f32.xlu0 %v3852
      %v3854 = vpop.xlane.xlu0 %3853
      %v3855 = vsel %vm3839, %v3091, -inf
      %3856 = vmax.xlane.f32.xlu0 %v3855
      %v3857 = vpop.xlane.xlu0 %3856
      %v3858 = vsel %vm3839, %v3096, -inf
      %3859 = vmax.xlane.f32.xlu0 %v3858
      %v3860 = vpop.xlane.xlu0 %3859
      %v3861 = vsel %vm3839, %v3101, -inf
      %3862 = vmax.xlane.f32.xlu0 %v3861
      %v3863 = vpop.xlane.xlu0 %3862
      %v3864 = vsel %vm3839, %v3171, -inf
      %3865 = vmax.xlane.f32.xlu0 %v3864
      %v3866 = vpop.xlane.xlu0 %3865
      %v3867 = vsel %vm3839, %v3176, -inf
      %3868 = vmax.xlane.f32.xlu0 %v3867
      %v3869 = vpop.xlane.xlu0 %3868
      %v3870 = vsel %vm3839, %v3181, -inf
      %3871 = vmax.xlane.f32.xlu0 %v3870
      %v3872 = vpop.xlane.xlu0 %3871
      %v3873 = vsel %vm3839, %v3186, -inf
      %3874 = vmax.xlane.f32.xlu0 %v3873
      %v3875 = vpop.xlane.xlu0 %3874
      %v3876 = vsel %vm3839, %v3191, -inf
      %3877 = vmax.xlane.f32.xlu0 %v3876
      %v3878 = vpop.xlane.xlu0 %3877
      %v3879 = vsel %vm3839, %v3196, -inf
      %3880 = vmax.xlane.f32.xlu0 %v3879
      %v3881 = vpop.xlane.xlu0 %3880
      %v3882 = vsel %vm3839, %v3201, -inf
      %3883 = vmax.xlane.f32.xlu0 %v3882
      %v3884 = vpop.xlane.xlu0 %3883
      %v3885 = vsel %vm3839, %v3206, -inf
      %3886 = vmax.xlane.f32.xlu0 %v3885
      %v3887 = vpop.xlane.xlu0 %3886
      %v3888 = vsel %vm3839, %v3276, -inf
      %3889 = vmax.xlane.f32.xlu0 %v3888
      %v3890 = vpop.xlane.xlu0 %3889
      %v3891 = vsel %vm3839, %v3281, -inf
      %3892 = vmax.xlane.f32.xlu0 %v3891
      %v3893 = vpop.xlane.xlu0 %3892
      %v3894 = vsel %vm3839, %v3286, -inf
      %3895 = vmax.xlane.f32.xlu0 %v3894
      %v3896 = vpop.xlane.xlu0 %3895
      %v3897 = vsel %vm3839, %v3291, -inf
      %3898 = vmax.xlane.f32.xlu0 %v3897
      %v3899 = vpop.xlane.xlu0 %3898
      %v3900 = vsel %vm3839, %v3296, -inf
      %3901 = vmax.xlane.f32.xlu0 %v3900
      %v3902 = vpop.xlane.xlu0 %3901
      %v3903 = vsel %vm3839, %v3301, -inf
      %3904 = vmax.xlane.f32.xlu0 %v3903
      %v3905 = vpop.xlane.xlu0 %3904
      %v3906 = vsel %vm3839, %v3306, -inf
      %3907 = vmax.xlane.f32.xlu0 %v3906
      %v3908 = vpop.xlane.xlu0 %3907
      %v3909 = vsel %vm3839, %v3311, -inf
      %3910 = vmax.xlane.f32.xlu0 %v3909
      %v3911 = vpop.xlane.xlu0 %3910
      %v3912 = vsel %vm3839, %v3381, -inf
      %3913 = vmax.xlane.f32.xlu0 %v3912
      %v3914 = vpop.xlane.xlu0 %3913
      %v3915 = vsel %vm3839, %v3386, -inf
      %3916 = vmax.xlane.f32.xlu0 %v3915
      %v3917 = vpop.xlane.xlu0 %3916
      %v3918 = vsel %vm3839, %v3391, -inf
      %3919 = vmax.xlane.f32.xlu0 %v3918
      %v3920 = vpop.xlane.xlu0 %3919
      %v3921 = vsel %vm3839, %v3396, -inf
      %3922 = vmax.xlane.f32.xlu0 %v3921
      %v3923 = vpop.xlane.xlu0 %3922
      %v3924 = vsel %vm3839, %v3401, -inf
      %3925 = vmax.xlane.f32.xlu0 %v3924
      %v3926 = vpop.xlane.xlu0 %3925
      %v3927 = vsel %vm3839, %v3406, -inf
      %3928 = vmax.xlane.f32.xlu0 %v3927
      %v3929 = vpop.xlane.xlu0 %3928
      %v3930 = vsel %vm3839, %v3411, -inf
      %3931 = vmax.xlane.f32.xlu0 %v3930
      %v3932 = vpop.xlane.xlu0 %3931
      %v3933 = vsel %vm3839, %v3416, -inf
      %3934 = vmax.xlane.f32.xlu0 %v3933
      %v3935 = vpop.xlane.xlu0 %3934
      %v3936 = vsel %vm3839, %v3486, -inf
      %3937 = vmax.xlane.f32.xlu0 %v3936
      %v3938 = vpop.xlane.xlu0 %3937
      %v3939 = vsel %vm3839, %v3491, -inf
      %3940 = vmax.xlane.f32.xlu0 %v3939
      %v3941 = vpop.xlane.xlu0 %3940
      %v3942 = vsel %vm3839, %v3496, -inf
      %3943 = vmax.xlane.f32.xlu0 %v3942
      %v3944 = vpop.xlane.xlu0 %3943
      %v3945 = vsel %vm3839, %v3501, -inf
      %3946 = vmax.xlane.f32.xlu0 %v3945
      %v3947 = vpop.xlane.xlu0 %3946
      %v3948 = vsel %vm3839, %v3506, -inf
      %3949 = vmax.xlane.f32.xlu0 %v3948
      %v3950 = vpop.xlane.xlu0 %3949
      %v3951 = vsel %vm3839, %v3511, -inf
      %3952 = vmax.xlane.f32.xlu0 %v3951
      %v3953 = vpop.xlane.xlu0 %3952
      %v3954 = vsel %vm3839, %v3516, -inf
      %3955 = vmax.xlane.f32.xlu0 %v3954
      %v3956 = vpop.xlane.xlu0 %3955
      %v3957 = vsel %vm3839, %v3521, -inf
      %3958 = vmax.xlane.f32.xlu0 %v3957
      %v3959 = vpop.xlane.xlu0 %3958
      %v3960 = vsel %vm3839, %v3591, -inf
      %3961 = vmax.xlane.f32.xlu0 %v3960
      %v3962 = vpop.xlane.xlu0 %3961
      %v3963 = vsel %vm3839, %v3596, -inf
      %3964 = vmax.xlane.f32.xlu0 %v3963
      %v3965 = vpop.xlane.xlu0 %3964
      %v3966 = vsel %vm3839, %v3601, -inf
      %3967 = vmax.xlane.f32.xlu0 %v3966
      %v3968 = vpop.xlane.xlu0 %3967
      %v3969 = vsel %vm3839, %v3606, -inf
      %3970 = vmax.xlane.f32.xlu0 %v3969
      %v3971 = vpop.xlane.xlu0 %3970
      %v3972 = vsel %vm3839, %v3611, -inf
      %3973 = vmax.xlane.f32.xlu0 %v3972
      %v3974 = vpop.xlane.xlu0 %3973
      %v3975 = vsel %vm3839, %v3616, -inf
      %3976 = vmax.xlane.f32.xlu0 %v3975
      %v3977 = vpop.xlane.xlu0 %3976
      %v3978 = vsel %vm3839, %v3621, -inf
      %3979 = vmax.xlane.f32.xlu0 %v3978
      %v3980 = vpop.xlane.xlu0 %3979
      %v3981 = vsel %vm3839, %v3626, -inf
      %3982 = vmax.xlane.f32.xlu0 %v3981
      %v3983 = vpop.xlane.xlu0 %3982
      %v3984 = vsel %vm3839, %v3696, -inf
      %3985 = vmax.xlane.f32.xlu0 %v3984
      %v3986 = vpop.xlane.xlu0 %3985
      %v3987 = vsel %vm3839, %v3701, -inf
      %3988 = vmax.xlane.f32.xlu0 %v3987
      %v3989 = vpop.xlane.xlu0 %3988
      %v3990 = vsel %vm3839, %v3706, -inf
      %3991 = vmax.xlane.f32.xlu0 %v3990
      %v3992 = vpop.xlane.xlu0 %3991
      %v3993 = vsel %vm3839, %v3711, -inf
      %3994 = vmax.xlane.f32.xlu0 %v3993
      %v3995 = vpop.xlane.xlu0 %3994
      %v3996 = vsel %vm3839, %v3716, -inf
      %3997 = vmax.xlane.f32.xlu0 %v3996
      %v3998 = vpop.xlane.xlu0 %3997
      %v3999 = vsel %vm3839, %v3721, -inf
      %4000 = vmax.xlane.f32.xlu0 %v3999
      %v4001 = vpop.xlane.xlu0 %4000
      %v4002 = vsel %vm3839, %v3726, -inf
      %4003 = vmax.xlane.f32.xlu0 %v4002
      %v4004 = vpop.xlane.xlu0 %4003
      %v4005 = vsel %vm3839, %v3731, -inf
      %4006 = vmax.xlane.f32.xlu0 %v4005
      %v4007 = vpop.xlane.xlu0 %4006
      %v4008 = vsel %vm3839, %v3801, -inf
      %4009 = vmax.xlane.f32.xlu0 %v4008
      %v4010 = vpop.xlane.xlu0 %4009
      %v4011 = vsel %vm3839, %v3806, -inf
      %4012 = vmax.xlane.f32.xlu0 %v4011
      %v4013 = vpop.xlane.xlu0 %4012
      %v4014 = vsel %vm3839, %v3811, -inf
      %4015 = vmax.xlane.f32.xlu0 %v4014
      %v4016 = vpop.xlane.xlu0 %4015
      %v4017 = vsel %vm3839, %v3816, -inf
      %4018 = vmax.xlane.f32.xlu0 %v4017
      %v4019 = vpop.xlane.xlu0 %4018
      %v4020 = vsel %vm3839, %v3821, -inf
      %4021 = vmax.xlane.f32.xlu0 %v4020
      %v4022 = vpop.xlane.xlu0 %4021
      %v4023 = vsel %vm3839, %v3826, -inf
      %4024 = vmax.xlane.f32.xlu0 %v4023
      %v4025 = vpop.xlane.xlu0 %4024
      %v4026 = vsel %vm3839, %v3831, -inf
      %4027 = vmax.xlane.f32.xlu0 %v4026
      %v4028 = vpop.xlane.xlu0 %4027
      %v4029 = vsel %vm3839, %v3836, -inf
      %4030 = vmax.xlane.f32.xlu0 %v4029
      %v4031 = vpop.xlane.xlu0 %4030
      %v4032 = vsub.f32 %v3066, %v3842
      %v4033 = vsub.f32 %v3071, %v3845
      %v4034 = vsub.f32 %v3076, %v3848
      %v4035 = vsub.f32 %v3081, %v3851
      %v4036 = vsub.f32 %v3086, %v3854
      %v4037 = vsub.f32 %v3091, %v3857
      %v4038 = vsub.f32 %v3096, %v3860
      %v4039 = vsub.f32 %v3101, %v3863
      %v4040 = vsub.f32 %v3171, %v3866
      %v4041 = vsub.f32 %v3176, %v3869
      %v4042 = vsub.f32 %v3181, %v3872
      %v4043 = vsub.f32 %v3186, %v3875
      %v4044 = vsub.f32 %v3191, %v3878
      %v4045 = vsub.f32 %v3196, %v3881
      %v4046 = vsub.f32 %v3201, %v3884
      %v4047 = vsub.f32 %v3206, %v3887
      %v4048 = vsub.f32 %v3276, %v3890
      %v4049 = vsub.f32 %v3281, %v3893
      %v4050 = vsub.f32 %v3286, %v3896
      %v4051 = vsub.f32 %v3291, %v3899
      %v4052 = vsub.f32 %v3296, %v3902
      %v4053 = vsub.f32 %v3301, %v3905
      %v4054 = vsub.f32 %v3306, %v3908
      %v4055 = vsub.f32 %v3311, %v3911
      %v4056 = vsub.f32 %v3381, %v3914
      %v4057 = vsub.f32 %v3386, %v3917
      %v4058 = vsub.f32 %v3391, %v3920
      %v4059 = vsub.f32 %v3396, %v3923
      %v4060 = vsub.f32 %v3401, %v3926
      %v4061 = vsub.f32 %v3406, %v3929
      %v4062 = vsub.f32 %v3411, %v3932
      %v4063 = vsub.f32 %v3416, %v3935
      %v4064 = vsub.f32 %v3486, %v3938
      %v4065 = vsub.f32 %v3491, %v3941
      %v4066 = vsub.f32 %v3496, %v3944
      %v4067 = vsub.f32 %v3501, %v3947
      %v4068 = vsub.f32 %v3506, %v3950
      %v4069 = vsub.f32 %v3511, %v3953
      %v4070 = vsub.f32 %v3516, %v3956
      %v4071 = vsub.f32 %v3521, %v3959
      %v4072 = vsub.f32 %v3591, %v3962
      %v4073 = vsub.f32 %v3596, %v3965
      %v4074 = vsub.f32 %v3601, %v3968
      %v4075 = vsub.f32 %v3606, %v3971
      %v4076 = vsub.f32 %v3611, %v3974
      %v4077 = vsub.f32 %v3616, %v3977
      %v4078 = vsub.f32 %v3621, %v3980
      %v4079 = vsub.f32 %v3626, %v3983
      %v4080 = vsub.f32 %v3696, %v3986
      %v4081 = vsub.f32 %v3701, %v3989
      %v4082 = vsub.f32 %v3706, %v3992
      %v4083 = vsub.f32 %v3711, %v3995
      %v4084 = vsub.f32 %v3716, %v3998
      %v4085 = vsub.f32 %v3721, %v4001
      %v4086 = vsub.f32 %v3726, %v4004
      %v4087 = vsub.f32 %v3731, %v4007
      %v4088 = vsub.f32 %v3801, %v4010
      %v4089 = vsub.f32 %v3806, %v4013
      %v4090 = vsub.f32 %v3811, %v4016
      %v4091 = vsub.f32 %v3816, %v4019
      %v4092 = vsub.f32 %v3821, %v4022
      %v4093 = vsub.f32 %v3826, %v4025
      %v4094 = vsub.f32 %v3831, %v4028
      %v4095 = vsub.f32 %v3836, %v4031
      %v4096 = vmul.f32 %v4032, 1.442695
      %v4097 = vpow.pop %v4096
      %v4098 = vmul.f32 %v4033, 1.442695
      %v4099 = vpow.pop %v4098
      %v4100 = vmul.f32 %v4034, 1.442695
      %v4101 = vpow.pop %v4100
      %v4102 = vmul.f32 %v4035, 1.442695
      %v4103 = vpow.pop %v4102
      %v4104 = vmul.f32 %v4036, 1.442695
      %v4105 = vpow.pop %v4104
      %v4106 = vmul.f32 %v4037, 1.442695
      %v4107 = vpow.pop %v4106
      %v4108 = vmul.f32 %v4038, 1.442695
      %v4109 = vpow.pop %v4108
      %v4110 = vmul.f32 %v4039, 1.442695
      %v4111 = vpow.pop %v4110
      %v4112 = vmul.f32 %v4040, 1.442695
      %v4113 = vpow.pop %v4112
      %v4114 = vmul.f32 %v4041, 1.442695
      %v4115 = vpow.pop %v4114
      %v4116 = vmul.f32 %v4042, 1.442695
      %v4117 = vpow.pop %v4116
      %v4118 = vmul.f32 %v4043, 1.442695
      %v4119 = vpow.pop %v4118
      %v4120 = vmul.f32 %v4044, 1.442695
      %v4121 = vpow.pop %v4120
      %v4122 = vmul.f32 %v4045, 1.442695
      %v4123 = vpow.pop %v4122
      %v4124 = vmul.f32 %v4046, 1.442695
      %v4125 = vpow.pop %v4124
      %v4126 = vmul.f32 %v4047, 1.442695
      %v4127 = vpow.pop %v4126
      %v4128 = vmul.f32 %v4048, 1.442695
      %v4129 = vpow.pop %v4128
      %v4130 = vmul.f32 %v4049, 1.442695
      %v4131 = vpow.pop %v4130
      %v4132 = vmul.f32 %v4050, 1.442695
      %v4133 = vpow.pop %v4132
      %v4134 = vmul.f32 %v4051, 1.442695
      %v4135 = vpow.pop %v4134
      %v4136 = vmul.f32 %v4052, 1.442695
      %v4137 = vpow.pop %v4136
      %v4138 = vmul.f32 %v4053, 1.442695
      %v4139 = vpow.pop %v4138
      %v4140 = vmul.f32 %v4054, 1.442695
      %v4141 = vpow.pop %v4140
      %v4142 = vmul.f32 %v4055, 1.442695
      %v4143 = vpow.pop %v4142
      %v4144 = vmul.f32 %v4056, 1.442695
      %v4145 = vpow.pop %v4144
      %v4146 = vmul.f32 %v4057, 1.442695
      %v4147 = vpow.pop %v4146
      %v4148 = vmul.f32 %v4058, 1.442695
      %v4149 = vpow.pop %v4148
      %v4150 = vmul.f32 %v4059, 1.442695
      %v4151 = vpow.pop %v4150
      %v4152 = vmul.f32 %v4060, 1.442695
      %v4153 = vpow.pop %v4152
      %v4154 = vmul.f32 %v4061, 1.442695
      %v4155 = vpow.pop %v4154
      %v4156 = vmul.f32 %v4062, 1.442695
      %v4157 = vpow.pop %v4156
      %v4158 = vmul.f32 %v4063, 1.442695
      %v4159 = vpow.pop %v4158
      %v4160 = vmul.f32 %v4064, 1.442695
      %v4161 = vpow.pop %v4160
      %v4162 = vmul.f32 %v4065, 1.442695
      %v4163 = vpow.pop %v4162
      %v4164 = vmul.f32 %v4066, 1.442695
      %v4165 = vpow.pop %v4164
      %v4166 = vmul.f32 %v4067, 1.442695
      %v4167 = vpow.pop %v4166
      %v4168 = vmul.f32 %v4068, 1.442695
      %v4169 = vpow.pop %v4168
      %v4170 = vmul.f32 %v4069, 1.442695
      %v4171 = vpow.pop %v4170
      %v4172 = vmul.f32 %v4070, 1.442695
      %v4173 = vpow.pop %v4172
      %v4174 = vmul.f32 %v4071, 1.442695
      %v4175 = vpow.pop %v4174
      %v4176 = vmul.f32 %v4072, 1.442695
      %v4177 = vpow.pop %v4176
      %v4178 = vmul.f32 %v4073, 1.442695
      %v4179 = vpow.pop %v4178
      %v4180 = vmul.f32 %v4074, 1.442695
      %v4181 = vpow.pop %v4180
      %v4182 = vmul.f32 %v4075, 1.442695
      %v4183 = vpow.pop %v4182
      %v4184 = vmul.f32 %v4076, 1.442695
      %v4185 = vpow.pop %v4184
      %v4186 = vmul.f32 %v4077, 1.442695
      %v4187 = vpow.pop %v4186
      %v4188 = vmul.f32 %v4078, 1.442695
      %v4189 = vpow.pop %v4188
      %v4190 = vmul.f32 %v4079, 1.442695
      %v4191 = vpow.pop %v4190
      %v4192 = vmul.f32 %v4080, 1.442695
      %v4193 = vpow.pop %v4192
      %v4194 = vmul.f32 %v4081, 1.442695
      %v4195 = vpow.pop %v4194
      %v4196 = vmul.f32 %v4082, 1.442695
      %v4197 = vpow.pop %v4196
      %v4198 = vmul.f32 %v4083, 1.442695
      %v4199 = vpow.pop %v4198
      %v4200 = vmul.f32 %v4084, 1.442695
      %v4201 = vpow.pop %v4200
      %v4202 = vmul.f32 %v4085, 1.442695
      %v4203 = vpow.pop %v4202
      %v4204 = vmul.f32 %v4086, 1.442695
      %v4205 = vpow.pop %v4204
      %v4206 = vmul.f32 %v4087, 1.442695
      %v4207 = vpow.pop %v4206
      %v4208 = vmul.f32 %v4088, 1.442695
      %v4209 = vpow.pop %v4208
      %v4210 = vmul.f32 %v4089, 1.442695
      %v4211 = vpow.pop %v4210
      %v4212 = vmul.f32 %v4090, 1.442695
      %v4213 = vpow.pop %v4212
      %v4214 = vmul.f32 %v4091, 1.442695
      %v4215 = vpow.pop %v4214
      %v4216 = vmul.f32 %v4092, 1.442695
      %v4217 = vpow.pop %v4216
      %v4218 = vmul.f32 %v4093, 1.442695
      %v4219 = vpow.pop %v4218
      %v4220 = vmul.f32 %v4094, 1.442695
      %v4221 = vpow.pop %v4220
      %v4222 = vmul.f32 %v4095, 1.442695
      %v4223 = vpow.pop %v4222
      %v4224 = vsel %vm3839, %v4097, 0.0
      %4225 = vadd.xlane.f32.xlu0 %v4224
      %v4226 = vpop.xlane.xlu0 %4225
      %v4227 = vsel %vm3839, %v4099, 0.0
      %4228 = vadd.xlane.f32.xlu0 %v4227
      %v4229 = vpop.xlane.xlu0 %4228
      %v4230 = vsel %vm3839, %v4101, 0.0
      %4231 = vadd.xlane.f32.xlu0 %v4230
      %v4232 = vpop.xlane.xlu0 %4231
      %v4233 = vsel %vm3839, %v4103, 0.0
      %4234 = vadd.xlane.f32.xlu0 %v4233
      %v4235 = vpop.xlane.xlu0 %4234
      %v4236 = vsel %vm3839, %v4105, 0.0
      %4237 = vadd.xlane.f32.xlu0 %v4236
      %v4238 = vpop.xlane.xlu0 %4237
      %v4239 = vsel %vm3839, %v4107, 0.0
      %4240 = vadd.xlane.f32.xlu0 %v4239
      %v4241 = vpop.xlane.xlu0 %4240
      %v4242 = vsel %vm3839, %v4109, 0.0
      %4243 = vadd.xlane.f32.xlu0 %v4242
      %v4244 = vpop.xlane.xlu0 %4243
      %v4245 = vsel %vm3839, %v4111, 0.0
      %4246 = vadd.xlane.f32.xlu0 %v4245
      %v4247 = vpop.xlane.xlu0 %4246
      %v4248 = vsel %vm3839, %v4113, 0.0
      %4249 = vadd.xlane.f32.xlu0 %v4248
      %v4250 = vpop.xlane.xlu0 %4249
      %v4251 = vsel %vm3839, %v4115, 0.0
      %4252 = vadd.xlane.f32.xlu0 %v4251
      %v4253 = vpop.xlane.xlu0 %4252
      %v4254 = vsel %vm3839, %v4117, 0.0
      %4255 = vadd.xlane.f32.xlu0 %v4254
      %v4256 = vpop.xlane.xlu0 %4255
      %v4257 = vsel %vm3839, %v4119, 0.0
      %4258 = vadd.xlane.f32.xlu0 %v4257
      %v4259 = vpop.xlane.xlu0 %4258
      %v4260 = vsel %vm3839, %v4121, 0.0
      %4261 = vadd.xlane.f32.xlu0 %v4260
      %v4262 = vpop.xlane.xlu0 %4261
      %v4263 = vsel %vm3839, %v4123, 0.0
      %4264 = vadd.xlane.f32.xlu0 %v4263
      %v4265 = vpop.xlane.xlu0 %4264
      %v4266 = vsel %vm3839, %v4125, 0.0
      %4267 = vadd.xlane.f32.xlu0 %v4266
      %v4268 = vpop.xlane.xlu0 %4267
      %v4269 = vsel %vm3839, %v4127, 0.0
      %4270 = vadd.xlane.f32.xlu0 %v4269
      %v4271 = vpop.xlane.xlu0 %4270
      %v4272 = vsel %vm3839, %v4129, 0.0
      %4273 = vadd.xlane.f32.xlu0 %v4272
      %v4274 = vpop.xlane.xlu0 %4273
      %v4275 = vsel %vm3839, %v4131, 0.0
      %4276 = vadd.xlane.f32.xlu0 %v4275
      %v4277 = vpop.xlane.xlu0 %4276
      %v4278 = vsel %vm3839, %v4133, 0.0
      %4279 = vadd.xlane.f32.xlu0 %v4278
      %v4280 = vpop.xlane.xlu0 %4279
      %v4281 = vsel %vm3839, %v4135, 0.0
      %4282 = vadd.xlane.f32.xlu0 %v4281
      %v4283 = vpop.xlane.xlu0 %4282
      %v4284 = vsel %vm3839, %v4137, 0.0
      %4285 = vadd.xlane.f32.xlu0 %v4284
      %v4286 = vpop.xlane.xlu0 %4285
      %v4287 = vsel %vm3839, %v4139, 0.0
      %4288 = vadd.xlane.f32.xlu0 %v4287
      %v4289 = vpop.xlane.xlu0 %4288
      %v4290 = vsel %vm3839, %v4141, 0.0
      %4291 = vadd.xlane.f32.xlu0 %v4290
      %v4292 = vpop.xlane.xlu0 %4291
      %v4293 = vsel %vm3839, %v4143, 0.0
      %4294 = vadd.xlane.f32.xlu0 %v4293
      %v4295 = vpop.xlane.xlu0 %4294
      %v4296 = vsel %vm3839, %v4145, 0.0
      %4297 = vadd.xlane.f32.xlu0 %v4296
      %v4298 = vpop.xlane.xlu0 %4297
      %v4299 = vsel %vm3839, %v4147, 0.0
      %4300 = vadd.xlane.f32.xlu0 %v4299
      %v4301 = vpop.xlane.xlu0 %4300
      %v4302 = vsel %vm3839, %v4149, 0.0
      %4303 = vadd.xlane.f32.xlu0 %v4302
      %v4304 = vpop.xlane.xlu0 %4303
      %v4305 = vsel %vm3839, %v4151, 0.0
      %4306 = vadd.xlane.f32.xlu0 %v4305
      %v4307 = vpop.xlane.xlu0 %4306
      %v4308 = vsel %vm3839, %v4153, 0.0
      %4309 = vadd.xlane.f32.xlu0 %v4308
      %v4310 = vpop.xlane.xlu0 %4309
      %v4311 = vsel %vm3839, %v4155, 0.0
      %4312 = vadd.xlane.f32.xlu0 %v4311
      %v4313 = vpop.xlane.xlu0 %4312
      %v4314 = vsel %vm3839, %v4157, 0.0
      %4315 = vadd.xlane.f32.xlu0 %v4314
      %v4316 = vpop.xlane.xlu0 %4315
      %v4317 = vsel %vm3839, %v4159, 0.0
      %4318 = vadd.xlane.f32.xlu0 %v4317
      %v4319 = vpop.xlane.xlu0 %4318
      %v4320 = vsel %vm3839, %v4161, 0.0
      %4321 = vadd.xlane.f32.xlu0 %v4320
      %v4322 = vpop.xlane.xlu0 %4321
      %v4323 = vsel %vm3839, %v4163, 0.0
      %4324 = vadd.xlane.f32.xlu0 %v4323
      %v4325 = vpop.xlane.xlu0 %4324
      %v4326 = vsel %vm3839, %v4165, 0.0
      %4327 = vadd.xlane.f32.xlu0 %v4326
      %v4328 = vpop.xlane.xlu0 %4327
      %v4329 = vsel %vm3839, %v4167, 0.0
      %4330 = vadd.xlane.f32.xlu0 %v4329
      %v4331 = vpop.xlane.xlu0 %4330
      %v4332 = vsel %vm3839, %v4169, 0.0
      %4333 = vadd.xlane.f32.xlu0 %v4332
      %v4334 = vpop.xlane.xlu0 %4333
      %v4335 = vsel %vm3839, %v4171, 0.0
      %4336 = vadd.xlane.f32.xlu0 %v4335
      %v4337 = vpop.xlane.xlu0 %4336
      %v4338 = vsel %vm3839, %v4173, 0.0
      %4339 = vadd.xlane.f32.xlu0 %v4338
      %v4340 = vpop.xlane.xlu0 %4339
      %v4341 = vsel %vm3839, %v4175, 0.0
      %4342 = vadd.xlane.f32.xlu0 %v4341
      %v4343 = vpop.xlane.xlu0 %4342
      %v4344 = vsel %vm3839, %v4177, 0.0
      %4345 = vadd.xlane.f32.xlu0 %v4344
      %v4346 = vpop.xlane.xlu0 %4345
      %v4347 = vsel %vm3839, %v4179, 0.0
      %4348 = vadd.xlane.f32.xlu0 %v4347
      %v4349 = vpop.xlane.xlu0 %4348
      %v4350 = vsel %vm3839, %v4181, 0.0
      %4351 = vadd.xlane.f32.xlu0 %v4350
      %v4352 = vpop.xlane.xlu0 %4351
      %v4353 = vsel %vm3839, %v4183, 0.0
      %4354 = vadd.xlane.f32.xlu0 %v4353
      %v4355 = vpop.xlane.xlu0 %4354
      %v4356 = vsel %vm3839, %v4185, 0.0
      %4357 = vadd.xlane.f32.xlu0 %v4356
      %v4358 = vpop.xlane.xlu0 %4357
      %v4359 = vsel %vm3839, %v4187, 0.0
      %4360 = vadd.xlane.f32.xlu0 %v4359
      %v4361 = vpop.xlane.xlu0 %4360
      %v4362 = vsel %vm3839, %v4189, 0.0
      %4363 = vadd.xlane.f32.xlu0 %v4362
      %v4364 = vpop.xlane.xlu0 %4363
      %v4365 = vsel %vm3839, %v4191, 0.0
      %4366 = vadd.xlane.f32.xlu0 %v4365
      %v4367 = vpop.xlane.xlu0 %4366
      %v4368 = vsel %vm3839, %v4193, 0.0
      %4369 = vadd.xlane.f32.xlu0 %v4368
      %v4370 = vpop.xlane.xlu0 %4369
      %v4371 = vsel %vm3839, %v4195, 0.0
      %4372 = vadd.xlane.f32.xlu0 %v4371
      %v4373 = vpop.xlane.xlu0 %4372
      %v4374 = vsel %vm3839, %v4197, 0.0
      %4375 = vadd.xlane.f32.xlu0 %v4374
      %v4376 = vpop.xlane.xlu0 %4375
      %v4377 = vsel %vm3839, %v4199, 0.0
      %4378 = vadd.xlane.f32.xlu0 %v4377
      %v4379 = vpop.xlane.xlu0 %4378
      %v4380 = vsel %vm3839, %v4201, 0.0
      %4381 = vadd.xlane.f32.xlu0 %v4380
      %v4382 = vpop.xlane.xlu0 %4381
      %v4383 = vsel %vm3839, %v4203, 0.0
      %4384 = vadd.xlane.f32.xlu0 %v4383
      %v4385 = vpop.xlane.xlu0 %4384
      %v4386 = vsel %vm3839, %v4205, 0.0
      %4387 = vadd.xlane.f32.xlu0 %v4386
      %v4388 = vpop.xlane.xlu0 %4387
      %v4389 = vsel %vm3839, %v4207, 0.0
      %4390 = vadd.xlane.f32.xlu0 %v4389
      %v4391 = vpop.xlane.xlu0 %4390
      %v4392 = vsel %vm3839, %v4209, 0.0
      %4393 = vadd.xlane.f32.xlu0 %v4392
      %v4394 = vpop.xlane.xlu0 %4393
      %v4395 = vsel %vm3839, %v4211, 0.0
      %4396 = vadd.xlane.f32.xlu0 %v4395
      %v4397 = vpop.xlane.xlu0 %4396
      %v4398 = vsel %vm3839, %v4213, 0.0
      %4399 = vadd.xlane.f32.xlu0 %v4398
      %v4400 = vpop.xlane.xlu0 %4399
      %v4401 = vsel %vm3839, %v4215, 0.0
      %4402 = vadd.xlane.f32.xlu0 %v4401
      %v4403 = vpop.xlane.xlu0 %4402
      %v4404 = vsel %vm3839, %v4217, 0.0
      %4405 = vadd.xlane.f32.xlu0 %v4404
      %v4406 = vpop.xlane.xlu0 %4405
      %v4407 = vsel %vm3839, %v4219, 0.0
      %4408 = vadd.xlane.f32.xlu0 %v4407
      %v4409 = vpop.xlane.xlu0 %4408
      %v4410 = vsel %vm3839, %v4221, 0.0
      %4411 = vadd.xlane.f32.xlu0 %v4410
      %v4412 = vpop.xlane.xlu0 %4411
      %v4413 = vsel %vm3839, %v4223, 0.0
      %4414 = vadd.xlane.f32.xlu0 %v4413
      %v4415 = vpop.xlane.xlu0 %4414
      %v4416 = vrcp.pop %v4226
      %v4417 = vmul.f32 %v4097, %v4416
      %v4418 = vrcp.pop %v4229
      %v4419 = vmul.f32 %v4099, %v4418
      %v4420 = vrcp.pop %v4232
      %v4421 = vmul.f32 %v4101, %v4420
      %v4422 = vrcp.pop %v4235
      %v4423 = vmul.f32 %v4103, %v4422
      %v4424 = vrcp.pop %v4238
      %v4425 = vmul.f32 %v4105, %v4424
      %v4426 = vrcp.pop %v4241
      %v4427 = vmul.f32 %v4107, %v4426
      %v4428 = vrcp.pop %v4244
      %v4429 = vmul.f32 %v4109, %v4428
      %v4430 = vrcp.pop %v4247
      %v4431 = vmul.f32 %v4111, %v4430
      %v4432 = vrcp.pop %v4250
      %v4433 = vmul.f32 %v4113, %v4432
      %v4434 = vrcp.pop %v4253
      %v4435 = vmul.f32 %v4115, %v4434
      %v4436 = vrcp.pop %v4256
      %v4437 = vmul.f32 %v4117, %v4436
      %v4438 = vrcp.pop %v4259
      %v4439 = vmul.f32 %v4119, %v4438
      %v4440 = vrcp.pop %v4262
      %v4441 = vmul.f32 %v4121, %v4440
      %v4442 = vrcp.pop %v4265
      %v4443 = vmul.f32 %v4123, %v4442
      %v4444 = vrcp.pop %v4268
      %v4445 = vmul.f32 %v4125, %v4444
      %v4446 = vrcp.pop %v4271
      %v4447 = vmul.f32 %v4127, %v4446
      %v4448 = vrcp.pop %v4274
      %v4449 = vmul.f32 %v4129, %v4448
      %v4450 = vrcp.pop %v4277
      %v4451 = vmul.f32 %v4131, %v4450
      %v4452 = vrcp.pop %v4280
      %v4453 = vmul.f32 %v4133, %v4452
      %v4454 = vrcp.pop %v4283
      %v4455 = vmul.f32 %v4135, %v4454
      %v4456 = vrcp.pop %v4286
      %v4457 = vmul.f32 %v4137, %v4456
      %v4458 = vrcp.pop %v4289
      %v4459 = vmul.f32 %v4139, %v4458
      %v4460 = vrcp.pop %v4292
      %v4461 = vmul.f32 %v4141, %v4460
      %v4462 = vrcp.pop %v4295
      %v4463 = vmul.f32 %v4143, %v4462
      %v4464 = vrcp.pop %v4298
      %v4465 = vmul.f32 %v4145, %v4464
      %v4466 = vrcp.pop %v4301
      %v4467 = vmul.f32 %v4147, %v4466
      %v4468 = vrcp.pop %v4304
      %v4469 = vmul.f32 %v4149, %v4468
      %v4470 = vrcp.pop %v4307
      %v4471 = vmul.f32 %v4151, %v4470
      %v4472 = vrcp.pop %v4310
      %v4473 = vmul.f32 %v4153, %v4472
      %v4474 = vrcp.pop %v4313
      %v4475 = vmul.f32 %v4155, %v4474
      %v4476 = vrcp.pop %v4316
      %v4477 = vmul.f32 %v4157, %v4476
      %v4478 = vrcp.pop %v4319
      %v4479 = vmul.f32 %v4159, %v4478
      %v4480 = vrcp.pop %v4322
      %v4481 = vmul.f32 %v4161, %v4480
      %v4482 = vrcp.pop %v4325
      %v4483 = vmul.f32 %v4163, %v4482
      %v4484 = vrcp.pop %v4328
      %v4485 = vmul.f32 %v4165, %v4484
      %v4486 = vrcp.pop %v4331
      %v4487 = vmul.f32 %v4167, %v4486
      %v4488 = vrcp.pop %v4334
      %v4489 = vmul.f32 %v4169, %v4488
      %v4490 = vrcp.pop %v4337
      %v4491 = vmul.f32 %v4171, %v4490
      %v4492 = vrcp.pop %v4340
      %v4493 = vmul.f32 %v4173, %v4492
      %v4494 = vrcp.pop %v4343
      %v4495 = vmul.f32 %v4175, %v4494
      %v4496 = vrcp.pop %v4346
      %v4497 = vmul.f32 %v4177, %v4496
      %v4498 = vrcp.pop %v4349
      %v4499 = vmul.f32 %v4179, %v4498
      %v4500 = vrcp.pop %v4352
      %v4501 = vmul.f32 %v4181, %v4500
      %v4502 = vrcp.pop %v4355
      %v4503 = vmul.f32 %v4183, %v4502
      %v4504 = vrcp.pop %v4358
      %v4505 = vmul.f32 %v4185, %v4504
      %v4506 = vrcp.pop %v4361
      %v4507 = vmul.f32 %v4187, %v4506
      %v4508 = vrcp.pop %v4364
      %v4509 = vmul.f32 %v4189, %v4508
      %v4510 = vrcp.pop %v4367
      %v4511 = vmul.f32 %v4191, %v4510
      %v4512 = vrcp.pop %v4370
      %v4513 = vmul.f32 %v4193, %v4512
      %v4514 = vrcp.pop %v4373
      %v4515 = vmul.f32 %v4195, %v4514
      %v4516 = vrcp.pop %v4376
      %v4517 = vmul.f32 %v4197, %v4516
      %v4518 = vrcp.pop %v4379
      %v4519 = vmul.f32 %v4199, %v4518
      %v4520 = vrcp.pop %v4382
      %v4521 = vmul.f32 %v4201, %v4520
      %v4522 = vrcp.pop %v4385
      %v4523 = vmul.f32 %v4203, %v4522
      %v4524 = vrcp.pop %v4388
      %v4525 = vmul.f32 %v4205, %v4524
      %v4526 = vrcp.pop %v4391
      %v4527 = vmul.f32 %v4207, %v4526
      %v4528 = vrcp.pop %v4394
      %v4529 = vmul.f32 %v4209, %v4528
      %v4530 = vrcp.pop %v4397
      %v4531 = vmul.f32 %v4211, %v4530
      %v4532 = vrcp.pop %v4400
      %v4533 = vmul.f32 %v4213, %v4532
      %v4534 = vrcp.pop %v4403
      %v4535 = vmul.f32 %v4215, %v4534
      %v4536 = vrcp.pop %v4406
      %v4537 = vmul.f32 %v4217, %v4536
      %v4538 = vrcp.pop %v4409
      %v4539 = vmul.f32 %v4219, %v4538
      %v4540 = vrcp.pop %v4412
      %v4541 = vmul.f32 %v4221, %v4540
      %v4542 = vrcp.pop %v4415
      %v4543 = vmul.f32 %v4223, %v4542
      %v4545 = vsel %vm3839, %v4417, 0
      %v4548 = vsel %vm3839, %v4419, 0
      %v4551 = vsel %vm3839, %v4421, 0
      %v4554 = vsel %vm3839, %v4423, 0
      %v4557 = vsel %vm3839, %v4425, 0
      %v4560 = vsel %vm3839, %v4427, 0
      %v4563 = vsel %vm3839, %v4429, 0
      %v4566 = vsel %vm3839, %v4431, 0
      %4568 = vmatprep.subr.mxu0 %v2864
      %4569 = vmatpush1.msra.mxu0 %v2863
      %4570 = vmatprep.subr.mxu0 %v2866
      %4571 = vmatpush1.msra.mxu0 %v2865
      %4572 = vmatprep.subr.mxu0 %v2868
      %4573 = vmatpush1.msra.mxu0 %v2867
      %4574 = vmatprep.subr.mxu0 %v2870
      %4575 = vmatpush1.msra.mxu0 %v2869
      %4576 = vmatprep.subr.mxu0 %v2872
      %4577 = vmatpush1.msra.mxu0 %v2871
      %4578 = vmatprep.subr.mxu0 %v2874
      %4579 = vmatpush1.msra.mxu0 %v2873
      %4580 = vmatprep.subr.mxu0 %v2876
      %4581 = vmatpush1.msra.mxu0 %v2875
      %4582 = vmatprep.subr.mxu0 %v2878
      %4583 = vmatpush1.msra.mxu0 %v2877
      %4584 = vmatprep.subr.mxu0 0.0
      %4585 = vmatpush1.msra.mxu0 0.0
      %4586 = vmatprep.subr.mxu0 0.0
      %4587 = vmatpush1.msra.mxu0 0.0
      %4588 = vmatprep.subr.mxu0 0.0
      %4589 = vmatpush1.msra.mxu0 0.0
      %4590 = vmatprep.subr.mxu0 0.0
      %4591 = vmatpush1.msra.mxu0 0.0
      %4592 = vmatprep.subr.mxu0 0.0
      %4593 = vmatpush1.msra.mxu0 0.0
      %4594 = vmatprep.subr.mxu0 0.0
      %4595 = vmatpush1.msra.mxu0 0.0
      %4596 = vmatprep.subr.mxu0 0.0
      %4597 = vmatpush1.msra.mxu0 0.0
      %4598 = vmatprep.subr.mxu0 0.0
      %4599 = vmatpush1.msra.mxu0 0.0
      %4600 = vmatprep.subr.mxu0 0.0
      %4601 = vmatpush1.msra.mxu0 0.0
      %4602 = vmatprep.subr.mxu0 0.0
      %4603 = vmatpush1.msra.mxu0 0.0
      %4604 = vmatprep.subr.mxu0 0.0
      %4605 = vmatpush1.msra.mxu0 0.0
      %4606 = vmatprep.subr.mxu0 0.0
      %4607 = vmatpush1.msra.mxu0 0.0
      %4608 = vmatprep.subr.mxu0 0.0
      %4609 = vmatpush1.msra.mxu0 0.0
      %4610 = vmatprep.subr.mxu0 0.0
      %4611 = vmatpush1.msra.mxu0 0.0
      %4612 = vmatprep.subr.mxu0 0.0
      %4613 = vmatpush1.msra.mxu0 0.0
      %4614 = vmatprep.subr.mxu0 0.0
      %4615 = vmatpush1.msra.mxu0 0.0
      %4616 = vmatprep.subr.mxu0 0.0
      %4617 = vmatpush1.msra.mxu0 0.0
      %4618 = vmatprep.subr.mxu0 0.0
      %4619 = vmatpush1.msra.mxu0 0.0
      %4620 = vmatprep.subr.mxu0 0.0
      %4621 = vmatpush1.msra.mxu0 0.0
      %4622 = vmatprep.subr.mxu0 0.0
      %4623 = vmatpush1.msra.mxu0 0.0
      %4624 = vmatprep.subr.mxu0 0.0
      %4625 = vmatpush1.msra.mxu0 0.0
      %4626 = vmatprep.subr.mxu0 0.0
      %4627 = vmatpush1.msra.mxu0 0.0
      %4628 = vmatprep.subr.mxu0 0.0
      %4629 = vmatpush1.msra.mxu0 0.0
      %4630 = vmatprep.subr.mxu0 0.0
      %4631 = vmatpush1.msra.mxu0 0.0
      %4632 = vmatprep.mubr.f32.mxu0 0.0
      %4633 = vmatmul.mubr.f32.gmra.mrb[0].mxu0 %v4545
      %v4634 = vpop.f32.mrb[0].mxu0
      %v4635 = vadd.f32 0.0, %v4634
      %v4636 = vpop.f32.mrb[0].mxu0
      %v4637 = vadd.f32 0.0, %v4636
      %4638 = vmatprep.mubr.f32.mxu0 0.0
      %4639 = vmatmul.mubr.f32.gmra.mrb[0].mxu0 %v4548
      %v4640 = vpop.f32.mrb[0].mxu0
      %v4641 = vadd.f32 0.0, %v4640
      %v4642 = vpop.f32.mrb[0].mxu0
      %v4643 = vadd.f32 0.0, %v4642
      %4644 = vmatprep.mubr.f32.mxu0 0.0
      %4645 = vmatmul.mubr.f32.gmra.mrb[0].mxu0 %v4551
      %v4646 = vpop.f32.mrb[0].mxu0
      %v4647 = vadd.f32 0.0, %v4646
      %v4648 = vpop.f32.mrb[0].mxu0
      %v4649 = vadd.f32 0.0, %v4648
      %4650 = vmatprep.mubr.f32.mxu0 0.0
      %4651 = vmatmul.mubr.f32.gmra.mrb[0].mxu0 %v4554
      %v4652 = vpop.f32.mrb[0].mxu0
      %v4653 = vadd.f32 0.0, %v4652
      %v4654 = vpop.f32.mrb[0].mxu0
      %v4655 = vadd.f32 0.0, %v4654
      %4656 = vmatprep.mubr.f32.mxu0 0.0
      %4657 = vmatmul.mubr.f32.gmra.mrb[0].mxu0 %v4557
      %v4658 = vpop.f32.mrb[0].mxu0
      %v4659 = vadd.f32 0.0, %v4658
      %v4660 = vpop.f32.mrb[0].mxu0
      %v4661 = vadd.f32 0.0, %v4660
      %4662 = vmatprep.mubr.f32.mxu0 0.0
      %4663 = vmatmul.mubr.f32.gmra.mrb[0].mxu0 %v4560
      %v4664 = vpop.f32.mrb[0].mxu0
      %v4665 = vadd.f32 0.0, %v4664
      %v4666 = vpop.f32.mrb[0].mxu0
      %v4667 = vadd.f32 0.0, %v4666
      %4668 = vmatprep.mubr.f32.mxu0 0.0
      %4669 = vmatmul.mubr.f32.gmra.mrb[0].mxu0 %v4563
      %v4670 = vpop.f32.mrb[0].mxu0
      %v4671 = vadd.f32 0.0, %v4670
      %v4672 = vpop.f32.mrb[0].mxu0
      %v4673 = vadd.f32 0.0, %v4672
      %4674 = vmatprep.mubr.f32.mxu0 0.0
      %4675 = vmatmul.mubr.f32.gmra.mrb[0].mxu0 %v4566
      %v4676 = vpop.f32.mrb[0].mxu0
      %v4677 = vadd.f32 0.0, %v4676
      %v4678 = vpop.f32.mrb[0].mxu0
      %v4679 = vadd.f32 0.0, %v4678
      %4680 = vdwg.mxu0
      %v4682 = vsel %vm3839, %v4433, 0
      %v4685 = vsel %vm3839, %v4435, 0
      %v4688 = vsel %vm3839, %v4437, 0
      %v4691 = vsel %vm3839, %v4439, 0
      %v4694 = vsel %vm3839, %v4441, 0
      %v4697 = vsel %vm3839, %v4443, 0
      %v4700 = vsel %vm3839, %v4445, 0
      %v4703 = vsel %vm3839, %v4447, 0
      %4705 = vmatprep.subr.mxu0 %v2880
      %4706 = vmatpush1.msra.mxu0 %v2879
      %4707 = vmatprep.subr.mxu0 %v2882
      %4708 = vmatpush1.msra.mxu0 %v2881
      %4709 = vmatprep.subr.mxu0 %v2884
      %4710 = vmatpush1.msra.mxu0 %v2883
      %4711 = vmatprep.subr.mxu0 %v2886
      %4712 = vmatpush1.msra.mxu0 %v2885
      %4713 = vmatprep.subr.mxu0 %v2888
      %4714 = vmatpush1.msra.mxu0 %v2887
      %4715 = vmatprep.subr.mxu0 %v2890
      %4716 = vmatpush1.msra.mxu0 %v2889
      %4717 = vmatprep.subr.mxu0 %v2892
      %4718 = vmatpush1.msra.mxu0 %v2891
      %4719 = vmatprep.subr.mxu0 %v2894
      %4720 = vmatpush1.msra.mxu0 %v2893
      %4721 = vmatprep.subr.mxu0 0.0
      %4722 = vmatpush1.msra.mxu0 0.0
      %4723 = vmatprep.subr.mxu0 0.0
      %4724 = vmatpush1.msra.mxu0 0.0
      %4725 = vmatprep.subr.mxu0 0.0
      %4726 = vmatpush1.msra.mxu0 0.0
      %4727 = vmatprep.subr.mxu0 0.0
      %4728 = vmatpush1.msra.mxu0 0.0
      %4729 = vmatprep.subr.mxu0 0.0
      %4730 = vmatpush1.msra.mxu0 0.0
      %4731 = vmatprep.subr.mxu0 0.0
      %4732 = vmatpush1.msra.mxu0 0.0
      %4733 = vmatprep.subr.mxu0 0.0
      %4734 = vmatpush1.msra.mxu0 0.0
      %4735 = vmatprep.subr.mxu0 0.0
      %4736 = vmatpush1.msra.mxu0 0.0
      %4737 = vmatprep.subr.mxu0 0.0
      %4738 = vmatpush1.msra.mxu0 0.0
      %4739 = vmatprep.subr.mxu0 0.0
      %4740 = vmatpush1.msra.mxu0 0.0
      %4741 = vmatprep.subr.mxu0 0.0
      %4742 = vmatpush1.msra.mxu0 0.0
      %4743 = vmatprep.subr.mxu0 0.0
      %4744 = vmatpush1.msra.mxu0 0.0
      %4745 = vmatprep.subr.mxu0 0.0
      %4746 = vmatpush1.msra.mxu0 0.0
      %4747 = vmatprep.subr.mxu0 0.0
      %4748 = vmatpush1.msra.mxu0 0.0
      %4749 = vmatprep.subr.mxu0 0.0
      %4750 = vmatpush1.msra.mxu0 0.0
      %4751 = vmatprep.subr.mxu0 0.0
      %4752 = vmatpush1.msra.mxu0 0.0
      %4753 = vmatprep.subr.mxu0 0.0
      %4754 = vmatpush1.msra.mxu0 0.0
      %4755 = vmatprep.subr.mxu0 0.0
      %4756 = vmatpush1.msra.mxu0 0.0
      %4757 = vmatprep.subr.mxu0 0.0
      %4758 = vmatpush1.msra.mxu0 0.0
      %4759 = vmatprep.subr.mxu0 0.0
      %4760 = vmatpush1.msra.mxu0 0.0
      %4761 = vmatprep.subr.mxu0 0.0
      %4762 = vmatpush1.msra.mxu0 0.0
      %4763 = vmatprep.subr.mxu0 0.0
      %4764 = vmatpush1.msra.mxu0 0.0
      %4765 = vmatprep.subr.mxu0 0.0
      %4766 = vmatpush1.msra.mxu0 0.0
      %4767 = vmatprep.subr.mxu0 0.0
      %4768 = vmatpush1.msra.mxu0 0.0
      %4769 = vmatprep.mubr.f32.mxu0 0.0
      %4770 = vmatmul.mubr.f32.gmra.mrb[0].mxu0 %v4682
      %v4771 = vpop.f32.mrb[0].mxu0
      %v4772 = vadd.f32 0.0, %v4771
      %v4773 = vpop.f32.mrb[0].mxu0
      %v4774 = vadd.f32 0.0, %v4773
      %4775 = vmatprep.mubr.f32.mxu0 0.0
      %4776 = vmatmul.mubr.f32.gmra.mrb[0].mxu0 %v4685
      %v4777 = vpop.f32.mrb[0].mxu0
      %v4778 = vadd.f32 0.0, %v4777
      %v4779 = vpop.f32.mrb[0].mxu0
      %v4780 = vadd.f32 0.0, %v4779
      %4781 = vmatprep.mubr.f32.mxu0 0.0
      %4782 = vmatmul.mubr.f32.gmra.mrb[0].mxu0 %v4688
      %v4783 = vpop.f32.mrb[0].mxu0
      %v4784 = vadd.f32 0.0, %v4783
      %v4785 = vpop.f32.mrb[0].mxu0
      %v4786 = vadd.f32 0.0, %v4785
      %4787 = vmatprep.mubr.f32.mxu0 0.0
      %4788 = vmatmul.mubr.f32.gmra.mrb[0].mxu0 %v4691
      %v4789 = vpop.f32.mrb[0].mxu0
      %v4790 = vadd.f32 0.0, %v4789
      %v4791 = vpop.f32.mrb[0].mxu0
      %v4792 = vadd.f32 0.0, %v4791
      %4793 = vmatprep.mubr.f32.mxu0 0.0
      %4794 = vmatmul.mubr.f32.gmra.mrb[0].mxu0 %v4694
      %v4795 = vpop.f32.mrb[0].mxu0
      %v4796 = vadd.f32 0.0, %v4795
      %v4797 = vpop.f32.mrb[0].mxu0
      %v4798 = vadd.f32 0.0, %v4797
      %4799 = vmatprep.mubr.f32.mxu0 0.0
      %4800 = vmatmul.mubr.f32.gmra.mrb[0].mxu0 %v4697
      %v4801 = vpop.f32.mrb[0].mxu0
      %v4802 = vadd.f32 0.0, %v4801
      %v4803 = vpop.f32.mrb[0].mxu0
      %v4804 = vadd.f32 0.0, %v4803
      %4805 = vmatprep.mubr.f32.mxu0 0.0
      %4806 = vmatmul.mubr.f32.gmra.mrb[0].mxu0 %v4700
      %v4807 = vpop.f32.mrb[0].mxu0
      %v4808 = vadd.f32 0.0, %v4807
      %v4809 = vpop.f32.mrb[0].mxu0
      %v4810 = vadd.f32 0.0, %v4809
      %4811 = vmatprep.mubr.f32.mxu0 0.0
      %4812 = vmatmul.mubr.f32.gmra.mrb[0].mxu0 %v4703
      %v4813 = vpop.f32.mrb[0].mxu0
      %v4814 = vadd.f32 0.0, %v4813
      %v4815 = vpop.f32.mrb[0].mxu0
      %v4816 = vadd.f32 0.0, %v4815
      %4817 = vdwg.mxu0
      %v4819 = vsel %vm3839, %v4449, 0
      %v4822 = vsel %vm3839, %v4451, 0
      %v4825 = vsel %vm3839, %v4453, 0
      %v4828 = vsel %vm3839, %v4455, 0
      %v4831 = vsel %vm3839, %v4457, 0
      %v4834 = vsel %vm3839, %v4459, 0
      %v4837 = vsel %vm3839, %v4461, 0
      %v4840 = vsel %vm3839, %v4463, 0
      %4842 = vmatprep.subr.mxu0 %v2896
      %4843 = vmatpush1.msra.mxu0 %v2895
      %4844 = vmatprep.subr.mxu0 %v2898
      %4845 = vmatpush1.msra.mxu0 %v2897
      %4846 = vmatprep.subr.mxu0 %v2900
      %4847 = vmatpush1.msra.mxu0 %v2899
      %4848 = vmatprep.subr.mxu0 %v2902
      %4849 = vmatpush1.msra.mxu0 %v2901
      %4850 = vmatprep.subr.mxu0 %v2904
      %4851 = vmatpush1.msra.mxu0 %v2903
      %4852 = vmatprep.subr.mxu0 %v2906
      %4853 = vmatpush1.msra.mxu0 %v2905
      %4854 = vmatprep.subr.mxu0 %v2908
      %4855 = vmatpush1.msra.mxu0 %v2907
      %4856 = vmatprep.subr.mxu0 %v2910
      %4857 = vmatpush1.msra.mxu0 %v2909
      %4858 = vmatprep.subr.mxu0 0.0
      %4859 = vmatpush1.msra.mxu0 0.0
      %4860 = vmatprep.subr.mxu0 0.0
      %4861 = vmatpush1.msra.mxu0 0.0
      %4862 = vmatprep.subr.mxu0 0.0
      %4863 = vmatpush1.msra.mxu0 0.0
      %4864 = vmatprep.subr.mxu0 0.0
      %4865 = vmatpush1.msra.mxu0 0.0
      %4866 = vmatprep.subr.mxu0 0.0
      %4867 = vmatpush1.msra.mxu0 0.0
      %4868 = vmatprep.subr.mxu0 0.0
      %4869 = vmatpush1.msra.mxu0 0.0
      %4870 = vmatprep.subr.mxu0 0.0
      %4871 = vmatpush1.msra.mxu0 0.0
      %4872 = vmatprep.subr.mxu0 0.0
      %4873 = vmatpush1.msra.mxu0 0.0
      %4874 = vmatprep.subr.mxu0 0.0
      %4875 = vmatpush1.msra.mxu0 0.0
      %4876 = vmatprep.subr.mxu0 0.0
      %4877 = vmatpush1.msra.mxu0 0.0
      %4878 = vmatprep.subr.mxu0 0.0
      %4879 = vmatpush1.msra.mxu0 0.0
      %4880 = vmatprep.subr.mxu0 0.0
      %4881 = vmatpush1.msra.mxu0 0.0
      %4882 = vmatprep.subr.mxu0 0.0
      %4883 = vmatpush1.msra.mxu0 0.0
      %4884 = vmatprep.subr.mxu0 0.0
      %4885 = vmatpush1.msra.mxu0 0.0
      %4886 = vmatprep.subr.mxu0 0.0
      %4887 = vmatpush1.msra.mxu0 0.0
      %4888 = vmatprep.subr.mxu0 0.0
      %4889 = vmatpush1.msra.mxu0 0.0
      %4890 = vmatprep.subr.mxu0 0.0
      %4891 = vmatpush1.msra.mxu0 0.0
      %4892 = vmatprep.subr.mxu0 0.0
      %4893 = vmatpush1.msra.mxu0 0.0
      %4894 = vmatprep.subr.mxu0 0.0
      %4895 = vmatpush1.msra.mxu0 0.0
      %4896 = vmatprep.subr.mxu0 0.0
      %4897 = vmatpush1.msra.mxu0 0.0
      %4898 = vmatprep.subr.mxu0 0.0
      %4899 = vmatpush1.msra.mxu0 0.0
      %4900 = vmatprep.subr.mxu0 0.0
      %4901 = vmatpush1.msra.mxu0 0.0
      %4902 = vmatprep.subr.mxu0 0.0
      %4903 = vmatpush1.msra.mxu0 0.0
      %4904 = vmatprep.subr.mxu0 0.0
      %4905 = vmatpush1.msra.mxu0 0.0
      %4906 = vmatprep.mubr.f32.mxu0 0.0
      %4907 = vmatmul.mubr.f32.gmra.mrb[0].mxu0 %v4819
      %v4908 = vpop.f32.mrb[0].mxu0
      %v4909 = vadd.f32 0.0, %v4908
      %v4910 = vpop.f32.mrb[0].mxu0
      %v4911 = vadd.f32 0.0, %v4910
      %4912 = vmatprep.mubr.f32.mxu0 0.0
      %4913 = vmatmul.mubr.f32.gmra.mrb[0].mxu0 %v4822
      %v4914 = vpop.f32.mrb[0].mxu0
      %v4915 = vadd.f32 0.0, %v4914
      %v4916 = vpop.f32.mrb[0].mxu0
      %v4917 = vadd.f32 0.0, %v4916
      %4918 = vmatprep.mubr.f32.mxu0 0.0
      %4919 = vmatmul.mubr.f32.gmra.mrb[0].mxu0 %v4825
      %v4920 = vpop.f32.mrb[0].mxu0
      %v4921 = vadd.f32 0.0, %v4920
      %v4922 = vpop.f32.mrb[0].mxu0
      %v4923 = vadd.f32 0.0, %v4922
      %4924 = vmatprep.mubr.f32.mxu0 0.0
      %4925 = vmatmul.mubr.f32.gmra.mrb[0].mxu0 %v4828
      %v4926 = vpop.f32.mrb[0].mxu0
      %v4927 = vadd.f32 0.0, %v4926
      %v4928 = vpop.f32.mrb[0].mxu0
      %v4929 = vadd.f32 0.0, %v4928
      %4930 = vmatprep.mubr.f32.mxu0 0.0
      %4931 = vmatmul.mubr.f32.gmra.mrb[0].mxu0 %v4831
      %v4932 = vpop.f32.mrb[0].mxu0
      %v4933 = vadd.f32 0.0, %v4932
      %v4934 = vpop.f32.mrb[0].mxu0
      %v4935 = vadd.f32 0.0, %v4934
      %4936 = vmatprep.mubr.f32.mxu0 0.0
      %4937 = vmatmul.mubr.f32.gmra.mrb[0].mxu0 %v4834
      %v4938 = vpop.f32.mrb[0].mxu0
      %v4939 = vadd.f32 0.0, %v4938
      %v4940 = vpop.f32.mrb[0].mxu0
      %v4941 = vadd.f32 0.0, %v4940
      %4942 = vmatprep.mubr.f32.mxu0 0.0
      %4943 = vmatmul.mubr.f32.gmra.mrb[0].mxu0 %v4837
      %v4944 = vpop.f32.mrb[0].mxu0
      %v4945 = vadd.f32 0.0, %v4944
      %v4946 = vpop.f32.mrb[0].mxu0
      %v4947 = vadd.f32 0.0, %v4946
      %4948 = vmatprep.mubr.f32.mxu0 0.0
      %4949 = vmatmul.mubr.f32.gmra.mrb[0].mxu0 %v4840
      %v4950 = vpop.f32.mrb[0].mxu0
      %v4951 = vadd.f32 0.0, %v4950
      %v4952 = vpop.f32.mrb[0].mxu0
      %v4953 = vadd.f32 0.0, %v4952
      %4954 = vdwg.mxu0
      %v4956 = vsel %vm3839, %v4465, 0
      %v4959 = vsel %vm3839, %v4467, 0
      %v4962 = vsel %vm3839, %v4469, 0
      %v4965 = vsel %vm3839, %v4471, 0
      %v4968 = vsel %vm3839, %v4473, 0
      %v4971 = vsel %vm3839, %v4475, 0
      %v4974 = vsel %vm3839, %v4477, 0
      %v4977 = vsel %vm3839, %v4479, 0
      %4979 = vmatprep.subr.mxu0 %v2912
      %4980 = vmatpush1.msra.mxu0 %v2911
      %4981 = vmatprep.subr.mxu0 %v2914
      %4982 = vmatpush1.msra.mxu0 %v2913
      %4983 = vmatprep.subr.mxu0 %v2916
      %4984 = vmatpush1.msra.mxu0 %v2915
      %4985 = vmatprep.subr.mxu0 %v2918
      %4986 = vmatpush1.msra.mxu0 %v2917
      %4987 = vmatprep.subr.mxu0 %v2920
      %4988 = vmatpush1.msra.mxu0 %v2919
      %4989 = vmatprep.subr.mxu0 %v2922
      %4990 = vmatpush1.msra.mxu0 %v2921
      %4991 = vmatprep.subr.mxu0 %v2924
      %4992 = vmatpush1.msra.mxu0 %v2923
      %4993 = vmatprep.subr.mxu0 %v2926
      %4994 = vmatpush1.msra.mxu0 %v2925
      %4995 = vmatprep.subr.mxu0 0.0
      %4996 = vmatpush1.msra.mxu0 0.0
      %4997 = vmatprep.subr.mxu0 0.0
      %4998 = vmatpush1.msra.mxu0 0.0
      %4999 = vmatprep.subr.mxu0 0.0
      %5000 = vmatpush1.msra.mxu0 0.0
      %5001 = vmatprep.subr.mxu0 0.0
      %5002 = vmatpush1.msra.mxu0 0.0
      %5003 = vmatprep.subr.mxu0 0.0
      %5004 = vmatpush1.msra.mxu0 0.0
      %5005 = vmatprep.subr.mxu0 0.0
      %5006 = vmatpush1.msra.mxu0 0.0
      %5007 = vmatprep.subr.mxu0 0.0
      %5008 = vmatpush1.msra.mxu0 0.0
      %5009 = vmatprep.subr.mxu0 0.0
      %5010 = vmatpush1.msra.mxu0 0.0
      %5011 = vmatprep.subr.mxu0 0.0
      %5012 = vmatpush1.msra.mxu0 0.0
      %5013 = vmatprep.subr.mxu0 0.0
      %5014 = vmatpush1.msra.mxu0 0.0
      %5015 = vmatprep.subr.mxu0 0.0
      %5016 = vmatpush1.msra.mxu0 0.0
      %5017 = vmatprep.subr.mxu0 0.0
      %5018 = vmatpush1.msra.mxu0 0.0
      %5019 = vmatprep.subr.mxu0 0.0
      %5020 = vmatpush1.msra.mxu0 0.0
      %5021 = vmatprep.subr.mxu0 0.0
      %5022 = vmatpush1.msra.mxu0 0.0
      %5023 = vmatprep.subr.mxu0 0.0
      %5024 = vmatpush1.msra.mxu0 0.0
      %5025 = vmatprep.subr.mxu0 0.0
      %5026 = vmatpush1.msra.mxu0 0.0
      %5027 = vmatprep.subr.mxu0 0.0
      %5028 = vmatpush1.msra.mxu0 0.0
      %5029 = vmatprep.subr.mxu0 0.0
      %5030 = vmatpush1.msra.mxu0 0.0
      %5031 = vmatprep.subr.mxu0 0.0
      %5032 = vmatpush1.msra.mxu0 0.0
      %5033 = vmatprep.subr.mxu0 0.0
      %5034 = vmatpush1.msra.mxu0 0.0
      %5035 = vmatprep.subr.mxu0 0.0
      %5036 = vmatpush1.msra.mxu0 0.0
      %5037 = vmatprep.subr.mxu0 0.0
      %5038 = vmatpush1.msra.mxu0 0.0
      %5039 = vmatprep.subr.mxu0 0.0
      %5040 = vmatpush1.msra.mxu0 0.0
      %5041 = vmatprep.subr.mxu0 0.0
      %5042 = vmatpush1.msra.mxu0 0.0
      %5043 = vmatprep.mubr.f32.mxu0 0.0
      %5044 = vmatmul.mubr.f32.gmra.mrb[0].mxu0 %v4956
      %v5045 = vpop.f32.mrb[0].mxu0
      %v5046 = vadd.f32 0.0, %v5045
      %v5047 = vpop.f32.mrb[0].mxu0
      %v5048 = vadd.f32 0.0, %v5047
      %5049 = vmatprep.mubr.f32.mxu0 0.0
      %5050 = vmatmul.mubr.f32.gmra.mrb[0].mxu0 %v4959
      %v5051 = vpop.f32.mrb[0].mxu0
      %v5052 = vadd.f32 0.0, %v5051
      %v5053 = vpop.f32.mrb[0].mxu0
      %v5054 = vadd.f32 0.0, %v5053
      %5055 = vmatprep.mubr.f32.mxu0 0.0
      %5056 = vmatmul.mubr.f32.gmra.mrb[0].mxu0 %v4962
      %v5057 = vpop.f32.mrb[0].mxu0
      %v5058 = vadd.f32 0.0, %v5057
      %v5059 = vpop.f32.mrb[0].mxu0
      %v5060 = vadd.f32 0.0, %v5059
      %5061 = vmatprep.mubr.f32.mxu0 0.0
      %5062 = vmatmul.mubr.f32.gmra.mrb[0].mxu0 %v4965
      %v5063 = vpop.f32.mrb[0].mxu0
      %v5064 = vadd.f32 0.0, %v5063
      %v5065 = vpop.f32.mrb[0].mxu0
      %v5066 = vadd.f32 0.0, %v5065
      %5067 = vmatprep.mubr.f32.mxu0 0.0
      %5068 = vmatmul.mubr.f32.gmra.mrb[0].mxu0 %v4968
      %v5069 = vpop.f32.mrb[0].mxu0
      %v5070 = vadd.f32 0.0, %v5069
      %v5071 = vpop.f32.mrb[0].mxu0
      %v5072 = vadd.f32 0.0, %v5071
      %5073 = vmatprep.mubr.f32.mxu0 0.0
      %5074 = vmatmul.mubr.f32.gmra.mrb[0].mxu0 %v4971
      %v5075 = vpop.f32.mrb[0].mxu0
      %v5076 = vadd.f32 0.0, %v5075
      %v5077 = vpop.f32.mrb[0].mxu0
      %v5078 = vadd.f32 0.0, %v5077
      %5079 = vmatprep.mubr.f32.mxu0 0.0
      %5080 = vmatmul.mubr.f32.gmra.mrb[0].mxu0 %v4974
      %v5081 = vpop.f32.mrb[0].mxu0
      %v5082 = vadd.f32 0.0, %v5081
      %v5083 = vpop.f32.mrb[0].mxu0
      %v5084 = vadd.f32 0.0, %v5083
      %5085 = vmatprep.mubr.f32.mxu0 0.0
      %5086 = vmatmul.mubr.f32.gmra.mrb[0].mxu0 %v4977
      %v5087 = vpop.f32.mrb[0].mxu0
      %v5088 = vadd.f32 0.0, %v5087
      %v5089 = vpop.f32.mrb[0].mxu0
      %v5090 = vadd.f32 0.0, %v5089
      %5091 = vdwg.mxu0
      %v5093 = vsel %vm3839, %v4481, 0
      %v5096 = vsel %vm3839, %v4483, 0
      %v5099 = vsel %vm3839, %v4485, 0
      %v5102 = vsel %vm3839, %v4487, 0
      %v5105 = vsel %vm3839, %v4489, 0
      %v5108 = vsel %vm3839, %v4491, 0
      %v5111 = vsel %vm3839, %v4493, 0
      %v5114 = vsel %vm3839, %v4495, 0
      %5116 = vmatprep.subr.mxu0 %v2928
      %5117 = vmatpush1.msra.mxu0 %v2927
      %5118 = vmatprep.subr.mxu0 %v2930
      %5119 = vmatpush1.msra.mxu0 %v2929
      %5120 = vmatprep.subr.mxu0 %v2932
      %5121 = vmatpush1.msra.mxu0 %v2931
      %5122 = vmatprep.subr.mxu0 %v2934
      %5123 = vmatpush1.msra.mxu0 %v2933
      %5124 = vmatprep.subr.mxu0 %v2936
      %5125 = vmatpush1.msra.mxu0 %v2935
      %5126 = vmatprep.subr.mxu0 %v2938
      %5127 = vmatpush1.msra.mxu0 %v2937
      %5128 = vmatprep.subr.mxu0 %v2940
      %5129 = vmatpush1.msra.mxu0 %v2939
      %5130 = vmatprep.subr.mxu0 %v2942
      %5131 = vmatpush1.msra.mxu0 %v2941
      %5132 = vmatprep.subr.mxu0 0.0
      %5133 = vmatpush1.msra.mxu0 0.0
      %5134 = vmatprep.subr.mxu0 0.0
      %5135 = vmatpush1.msra.mxu0 0.0
      %5136 = vmatprep.subr.mxu0 0.0
      %5137 = vmatpush1.msra.mxu0 0.0
      %5138 = vmatprep.subr.mxu0 0.0
      %5139 = vmatpush1.msra.mxu0 0.0
      %5140 = vmatprep.subr.mxu0 0.0
      %5141 = vmatpush1.msra.mxu0 0.0
      %5142 = vmatprep.subr.mxu0 0.0
      %5143 = vmatpush1.msra.mxu0 0.0
      %5144 = vmatprep.subr.mxu0 0.0
      %5145 = vmatpush1.msra.mxu0 0.0
      %5146 = vmatprep.subr.mxu0 0.0
      %5147 = vmatpush1.msra.mxu0 0.0
      %5148 = vmatprep.subr.mxu0 0.0
      %5149 = vmatpush1.msra.mxu0 0.0
      %5150 = vmatprep.subr.mxu0 0.0
      %5151 = vmatpush1.msra.mxu0 0.0
      %5152 = vmatprep.subr.mxu0 0.0
      %5153 = vmatpush1.msra.mxu0 0.0
      %5154 = vmatprep.subr.mxu0 0.0
      %5155 = vmatpush1.msra.mxu0 0.0
      %5156 = vmatprep.subr.mxu0 0.0
      %5157 = vmatpush1.msra.mxu0 0.0
      %5158 = vmatprep.subr.mxu0 0.0
      %5159 = vmatpush1.msra.mxu0 0.0
      %5160 = vmatprep.subr.mxu0 0.0
      %5161 = vmatpush1.msra.mxu0 0.0
      %5162 = vmatprep.subr.mxu0 0.0
      %5163 = vmatpush1.msra.mxu0 0.0
      %5164 = vmatprep.subr.mxu0 0.0
      %5165 = vmatpush1.msra.mxu0 0.0
      %5166 = vmatprep.subr.mxu0 0.0
      %5167 = vmatpush1.msra.mxu0 0.0
      %5168 = vmatprep.subr.mxu0 0.0
      %5169 = vmatpush1.msra.mxu0 0.0
      %5170 = vmatprep.subr.mxu0 0.0
      %5171 = vmatpush1.msra.mxu0 0.0
      %5172 = vmatprep.subr.mxu0 0.0
      %5173 = vmatpush1.msra.mxu0 0.0
      %5174 = vmatprep.subr.mxu0 0.0
      %5175 = vmatpush1.msra.mxu0 0.0
      %5176 = vmatprep.subr.mxu0 0.0
      %5177 = vmatpush1.msra.mxu0 0.0
      %5178 = vmatprep.subr.mxu0 0.0
      %5179 = vmatpush1.msra.mxu0 0.0
      %5180 = vmatprep.mubr.f32.mxu0 0.0
      %5181 = vmatmul.mubr.f32.gmra.mrb[0].mxu0 %v5093
      %v5182 = vpop.f32.mrb[0].mxu0
      %v5183 = vadd.f32 0.0, %v5182
      %v5184 = vpop.f32.mrb[0].mxu0
      %v5185 = vadd.f32 0.0, %v5184
      %5186 = vmatprep.mubr.f32.mxu0 0.0
      %5187 = vmatmul.mubr.f32.gmra.mrb[0].mxu0 %v5096
      %v5188 = vpop.f32.mrb[0].mxu0
      %v5189 = vadd.f32 0.0, %v5188
      %v5190 = vpop.f32.mrb[0].mxu0
      %v5191 = vadd.f32 0.0, %v5190
      %5192 = vmatprep.mubr.f32.mxu0 0.0
      %5193 = vmatmul.mubr.f32.gmra.mrb[0].mxu0 %v5099
      %v5194 = vpop.f32.mrb[0].mxu0
      %v5195 = vadd.f32 0.0, %v5194
      %v5196 = vpop.f32.mrb[0].mxu0
      %v5197 = vadd.f32 0.0, %v5196
      %5198 = vmatprep.mubr.f32.mxu0 0.0
      %5199 = vmatmul.mubr.f32.gmra.mrb[0].mxu0 %v5102
      %v5200 = vpop.f32.mrb[0].mxu0
      %v5201 = vadd.f32 0.0, %v5200
      %v5202 = vpop.f32.mrb[0].mxu0
      %v5203 = vadd.f32 0.0, %v5202
      %5204 = vmatprep.mubr.f32.mxu0 0.0
      %5205 = vmatmul.mubr.f32.gmra.mrb[0].mxu0 %v5105
      %v5206 = vpop.f32.mrb[0].mxu0
      %v5207 = vadd.f32 0.0, %v5206
      %v5208 = vpop.f32.mrb[0].mxu0
      %v5209 = vadd.f32 0.0, %v5208
      %5210 = vmatprep.mubr.f32.mxu0 0.0
      %5211 = vmatmul.mubr.f32.gmra.mrb[0].mxu0 %v5108
      %v5212 = vpop.f32.mrb[0].mxu0
      %v5213 = vadd.f32 0.0, %v5212
      %v5214 = vpop.f32.mrb[0].mxu0
      %v5215 = vadd.f32 0.0, %v5214
      %5216 = vmatprep.mubr.f32.mxu0 0.0
      %5217 = vmatmul.mubr.f32.gmra.mrb[0].mxu0 %v5111
      %v5218 = vpop.f32.mrb[0].mxu0
      %v5219 = vadd.f32 0.0, %v5218
      %v5220 = vpop.f32.mrb[0].mxu0
      %v5221 = vadd.f32 0.0, %v5220
      %5222 = vmatprep.mubr.f32.mxu0 0.0
      %5223 = vmatmul.mubr.f32.gmra.mrb[0].mxu0 %v5114
      %v5224 = vpop.f32.mrb[0].mxu0
      %v5225 = vadd.f32 0.0, %v5224
      %v5226 = vpop.f32.mrb[0].mxu0
      %v5227 = vadd.f32 0.0, %v5226
      %5228 = vdwg.mxu0
      %v5230 = vsel %vm3839, %v4497, 0
      %v5233 = vsel %vm3839, %v4499, 0
      %v5236 = vsel %vm3839, %v4501, 0
      %v5239 = vsel %vm3839, %v4503, 0
      %v5242 = vsel %vm3839, %v4505, 0
      %v5245 = vsel %vm3839, %v4507, 0
      %v5248 = vsel %vm3839, %v4509, 0
      %v5251 = vsel %vm3839, %v4511, 0
      %5253 = vmatprep.subr.mxu0 %v2944
      %5254 = vmatpush1.msra.mxu0 %v2943
      %5255 = vmatprep.subr.mxu0 %v2946
      %5256 = vmatpush1.msra.mxu0 %v2945
      %5257 = vmatprep.subr.mxu0 %v2948
      %5258 = vmatpush1.msra.mxu0 %v2947
      %5259 = vmatprep.subr.mxu0 %v2950
      %5260 = vmatpush1.msra.mxu0 %v2949
      %5261 = vmatprep.subr.mxu0 %v2952
      %5262 = vmatpush1.msra.mxu0 %v2951
      %5263 = vmatprep.subr.mxu0 %v2954
      %5264 = vmatpush1.msra.mxu0 %v2953
      %5265 = vmatprep.subr.mxu0 %v2956
      %5266 = vmatpush1.msra.mxu0 %v2955
      %5267 = vmatprep.subr.mxu0 %v2958
      %5268 = vmatpush1.msra.mxu0 %v2957
      %5269 = vmatprep.subr.mxu0 0.0
      %5270 = vmatpush1.msra.mxu0 0.0
      %5271 = vmatprep.subr.mxu0 0.0
      %5272 = vmatpush1.msra.mxu0 0.0
      %5273 = vmatprep.subr.mxu0 0.0
      %5274 = vmatpush1.msra.mxu0 0.0
      %5275 = vmatprep.subr.mxu0 0.0
      %5276 = vmatpush1.msra.mxu0 0.0
      %5277 = vmatprep.subr.mxu0 0.0
      %5278 = vmatpush1.msra.mxu0 0.0
      %5279 = vmatprep.subr.mxu0 0.0
      %5280 = vmatpush1.msra.mxu0 0.0
      %5281 = vmatprep.subr.mxu0 0.0
      %5282 = vmatpush1.msra.mxu0 0.0
      %5283 = vmatprep.subr.mxu0 0.0
      %5284 = vmatpush1.msra.mxu0 0.0
      %5285 = vmatprep.subr.mxu0 0.0
      %5286 = vmatpush1.msra.mxu0 0.0
      %5287 = vmatprep.subr.mxu0 0.0
      %5288 = vmatpush1.msra.mxu0 0.0
      %5289 = vmatprep.subr.mxu0 0.0
      %5290 = vmatpush1.msra.mxu0 0.0
      %5291 = vmatprep.subr.mxu0 0.0
      %5292 = vmatpush1.msra.mxu0 0.0
      %5293 = vmatprep.subr.mxu0 0.0
      %5294 = vmatpush1.msra.mxu0 0.0
      %5295 = vmatprep.subr.mxu0 0.0
      %5296 = vmatpush1.msra.mxu0 0.0
      %5297 = vmatprep.subr.mxu0 0.0
      %5298 = vmatpush1.msra.mxu0 0.0
      %5299 = vmatprep.subr.mxu0 0.0
      %5300 = vmatpush1.msra.mxu0 0.0
      %5301 = vmatprep.subr.mxu0 0.0
      %5302 = vmatpush1.msra.mxu0 0.0
      %5303 = vmatprep.subr.mxu0 0.0
      %5304 = vmatpush1.msra.mxu0 0.0
      %5305 = vmatprep.subr.mxu0 0.0
      %5306 = vmatpush1.msra.mxu0 0.0
      %5307 = vmatprep.subr.mxu0 0.0
      %5308 = vmatpush1.msra.mxu0 0.0
      %5309 = vmatprep.subr.mxu0 0.0
      %5310 = vmatpush1.msra.mxu0 0.0
      %5311 = vmatprep.subr.mxu0 0.0
      %5312 = vmatpush1.msra.mxu0 0.0
      %5313 = vmatprep.subr.mxu0 0.0
      %5314 = vmatpush1.msra.mxu0 0.0
      %5315 = vmatprep.subr.mxu0 0.0
      %5316 = vmatpush1.msra.mxu0 0.0
      %5317 = vmatprep.mubr.f32.mxu0 0.0
      %5318 = vmatmul.mubr.f32.gmra.mrb[0].mxu0 %v5230
      %v5319 = vpop.f32.mrb[0].mxu0
      %v5320 = vadd.f32 0.0, %v5319
      %v5321 = vpop.f32.mrb[0].mxu0
      %v5322 = vadd.f32 0.0, %v5321
      %5323 = vmatprep.mubr.f32.mxu0 0.0
      %5324 = vmatmul.mubr.f32.gmra.mrb[0].mxu0 %v5233
      %v5325 = vpop.f32.mrb[0].mxu0
      %v5326 = vadd.f32 0.0, %v5325
      %v5327 = vpop.f32.mrb[0].mxu0
      %v5328 = vadd.f32 0.0, %v5327
      %5329 = vmatprep.mubr.f32.mxu0 0.0
      %5330 = vmatmul.mubr.f32.gmra.mrb[0].mxu0 %v5236
      %v5331 = vpop.f32.mrb[0].mxu0
      %v5332 = vadd.f32 0.0, %v5331
      %v5333 = vpop.f32.mrb[0].mxu0
      %v5334 = vadd.f32 0.0, %v5333
      %5335 = vmatprep.mubr.f32.mxu0 0.0
      %5336 = vmatmul.mubr.f32.gmra.mrb[0].mxu0 %v5239
      %v5337 = vpop.f32.mrb[0].mxu0
      %v5338 = vadd.f32 0.0, %v5337
      %v5339 = vpop.f32.mrb[0].mxu0
      %v5340 = vadd.f32 0.0, %v5339
      %5341 = vmatprep.mubr.f32.mxu0 0.0
      %5342 = vmatmul.mubr.f32.gmra.mrb[0].mxu0 %v5242
      %v5343 = vpop.f32.mrb[0].mxu0
      %v5344 = vadd.f32 0.0, %v5343
      %v5345 = vpop.f32.mrb[0].mxu0
      %v5346 = vadd.f32 0.0, %v5345
      %5347 = vmatprep.mubr.f32.mxu0 0.0
      %5348 = vmatmul.mubr.f32.gmra.mrb[0].mxu0 %v5245
      %v5349 = vpop.f32.mrb[0].mxu0
      %v5350 = vadd.f32 0.0, %v5349
      %v5351 = vpop.f32.mrb[0].mxu0
      %v5352 = vadd.f32 0.0, %v5351
      %5353 = vmatprep.mubr.f32.mxu0 0.0
      %5354 = vmatmul.mubr.f32.gmra.mrb[0].mxu0 %v5248
      %v5355 = vpop.f32.mrb[0].mxu0
      %v5356 = vadd.f32 0.0, %v5355
      %v5357 = vpop.f32.mrb[0].mxu0
      %v5358 = vadd.f32 0.0, %v5357
      %5359 = vmatprep.mubr.f32.mxu0 0.0
      %5360 = vmatmul.mubr.f32.gmra.mrb[0].mxu0 %v5251
      %v5361 = vpop.f32.mrb[0].mxu0
      %v5362 = vadd.f32 0.0, %v5361
      %v5363 = vpop.f32.mrb[0].mxu0
      %v5364 = vadd.f32 0.0, %v5363
      %5365 = vdwg.mxu0
      %v5367 = vsel %vm3839, %v4513, 0
      %v5370 = vsel %vm3839, %v4515, 0
      %v5373 = vsel %vm3839, %v4517, 0
      %v5376 = vsel %vm3839, %v4519, 0
      %v5379 = vsel %vm3839, %v4521, 0
      %v5382 = vsel %vm3839, %v4523, 0
      %v5385 = vsel %vm3839, %v4525, 0
      %v5388 = vsel %vm3839, %v4527, 0
      %5390 = vmatprep.subr.mxu0 %v2960
      %5391 = vmatpush1.msra.mxu0 %v2959
      %5392 = vmatprep.subr.mxu0 %v2962
      %5393 = vmatpush1.msra.mxu0 %v2961
      %5394 = vmatprep.subr.mxu0 %v2964
      %5395 = vmatpush1.msra.mxu0 %v2963
      %5396 = vmatprep.subr.mxu0 %v2966
      %5397 = vmatpush1.msra.mxu0 %v2965
      %5398 = vmatprep.subr.mxu0 %v2968
      %5399 = vmatpush1.msra.mxu0 %v2967
      %5400 = vmatprep.subr.mxu0 %v2970
      %5401 = vmatpush1.msra.mxu0 %v2969
      %5402 = vmatprep.subr.mxu0 %v2972
      %5403 = vmatpush1.msra.mxu0 %v2971
      %5404 = vmatprep.subr.mxu0 %v2974
      %5405 = vmatpush1.msra.mxu0 %v2973
      %5406 = vmatprep.subr.mxu0 0.0
      %5407 = vmatpush1.msra.mxu0 0.0
      %5408 = vmatprep.subr.mxu0 0.0
      %5409 = vmatpush1.msra.mxu0 0.0
      %5410 = vmatprep.subr.mxu0 0.0
      %5411 = vmatpush1.msra.mxu0 0.0
      %5412 = vmatprep.subr.mxu0 0.0
      %5413 = vmatpush1.msra.mxu0 0.0
      %5414 = vmatprep.subr.mxu0 0.0
      %5415 = vmatpush1.msra.mxu0 0.0
      %5416 = vmatprep.subr.mxu0 0.0
      %5417 = vmatpush1.msra.mxu0 0.0
      %5418 = vmatprep.subr.mxu0 0.0
      %5419 = vmatpush1.msra.mxu0 0.0
      %5420 = vmatprep.subr.mxu0 0.0
      %5421 = vmatpush1.msra.mxu0 0.0
      %5422 = vmatprep.subr.mxu0 0.0
      %5423 = vmatpush1.msra.mxu0 0.0
      %5424 = vmatprep.subr.mxu0 0.0
      %5425 = vmatpush1.msra.mxu0 0.0
      %5426 = vmatprep.subr.mxu0 0.0
      %5427 = vmatpush1.msra.mxu0 0.0
      %5428 = vmatprep.subr.mxu0 0.0
      %5429 = vmatpush1.msra.mxu0 0.0
      %5430 = vmatprep.subr.mxu0 0.0
      %5431 = vmatpush1.msra.mxu0 0.0
      %5432 = vmatprep.subr.mxu0 0.0
      %5433 = vmatpush1.msra.mxu0 0.0
      %5434 = vmatprep.subr.mxu0 0.0
      %5435 = vmatpush1.msra.mxu0 0.0
      %5436 = vmatprep.subr.mxu0 0.0
      %5437 = vmatpush1.msra.mxu0 0.0
      %5438 = vmatprep.subr.mxu0 0.0
      %5439 = vmatpush1.msra.mxu0 0.0
      %5440 = vmatprep.subr.mxu0 0.0
      %5441 = vmatpush1.msra.mxu0 0.0
      %5442 = vmatprep.subr.mxu0 0.0
      %5443 = vmatpush1.msra.mxu0 0.0
      %5444 = vmatprep.subr.mxu0 0.0
      %5445 = vmatpush1.msra.mxu0 0.0
      %5446 = vmatprep.subr.mxu0 0.0
      %5447 = vmatpush1.msra.mxu0 0.0
      %5448 = vmatprep.subr.mxu0 0.0
      %5449 = vmatpush1.msra.mxu0 0.0
      %5450 = vmatprep.subr.mxu0 0.0
      %5451 = vmatpush1.msra.mxu0 0.0
      %5452 = vmatprep.subr.mxu0 0.0
      %5453 = vmatpush1.msra.mxu0 0.0
      %5454 = vmatprep.mubr.f32.mxu0 0.0
      %5455 = vmatmul.mubr.f32.gmra.mrb[0].mxu0 %v5367
      %v5456 = vpop.f32.mrb[0].mxu0
      %v5457 = vadd.f32 0.0, %v5456
      %v5458 = vpop.f32.mrb[0].mxu0
      %v5459 = vadd.f32 0.0, %v5458
      %5460 = vmatprep.mubr.f32.mxu0 0.0
      %5461 = vmatmul.mubr.f32.gmra.mrb[0].mxu0 %v5370
      %v5462 = vpop.f32.mrb[0].mxu0
      %v5463 = vadd.f32 0.0, %v5462
      %v5464 = vpop.f32.mrb[0].mxu0
      %v5465 = vadd.f32 0.0, %v5464
      %5466 = vmatprep.mubr.f32.mxu0 0.0
      %5467 = vmatmul.mubr.f32.gmra.mrb[0].mxu0 %v5373
      %v5468 = vpop.f32.mrb[0].mxu0
      %v5469 = vadd.f32 0.0, %v5468
      %v5470 = vpop.f32.mrb[0].mxu0
      %v5471 = vadd.f32 0.0, %v5470
      %5472 = vmatprep.mubr.f32.mxu0 0.0
      %5473 = vmatmul.mubr.f32.gmra.mrb[0].mxu0 %v5376
      %v5474 = vpop.f32.mrb[0].mxu0
      %v5475 = vadd.f32 0.0, %v5474
      %v5476 = vpop.f32.mrb[0].mxu0
      %v5477 = vadd.f32 0.0, %v5476
      %5478 = vmatprep.mubr.f32.mxu0 0.0
      %5479 = vmatmul.mubr.f32.gmra.mrb[0].mxu0 %v5379
      %v5480 = vpop.f32.mrb[0].mxu0
      %v5481 = vadd.f32 0.0, %v5480
      %v5482 = vpop.f32.mrb[0].mxu0
      %v5483 = vadd.f32 0.0, %v5482
      %5484 = vmatprep.mubr.f32.mxu0 0.0
      %5485 = vmatmul.mubr.f32.gmra.mrb[0].mxu0 %v5382
      %v5486 = vpop.f32.mrb[0].mxu0
      %v5487 = vadd.f32 0.0, %v5486
      %v5488 = vpop.f32.mrb[0].mxu0
      %v5489 = vadd.f32 0.0, %v5488
      %5490 = vmatprep.mubr.f32.mxu0 0.0
      %5491 = vmatmul.mubr.f32.gmra.mrb[0].mxu0 %v5385
      %v5492 = vpop.f32.mrb[0].mxu0
      %v5493 = vadd.f32 0.0, %v5492
      %v5494 = vpop.f32.mrb[0].mxu0
      %v5495 = vadd.f32 0.0, %v5494
      %5496 = vmatprep.mubr.f32.mxu0 0.0
      %5497 = vmatmul.mubr.f32.gmra.mrb[0].mxu0 %v5388
      %v5498 = vpop.f32.mrb[0].mxu0
      %v5499 = vadd.f32 0.0, %v5498
      %v5500 = vpop.f32.mrb[0].mxu0
      %v5501 = vadd.f32 0.0, %v5500
      %5502 = vdwg.mxu0
      %v5504 = vsel %vm3839, %v4529, 0
      %v5507 = vsel %vm3839, %v4531, 0
      %v5510 = vsel %vm3839, %v4533, 0
      %v5513 = vsel %vm3839, %v4535, 0
      %v5516 = vsel %vm3839, %v4537, 0
      %v5519 = vsel %vm3839, %v4539, 0
      %v5522 = vsel %vm3839, %v4541, 0
      %v5525 = vsel %vm3839, %v4543, 0
      %5527 = vmatprep.subr.mxu0 %v2976
      %5528 = vmatpush1.msra.mxu0 %v2975
      %5529 = vmatprep.subr.mxu0 %v2978
      %5530 = vmatpush1.msra.mxu0 %v2977
      %5531 = vmatprep.subr.mxu0 %v2980
      %5532 = vmatpush1.msra.mxu0 %v2979
      %5533 = vmatprep.subr.mxu0 %v2982
      %5534 = vmatpush1.msra.mxu0 %v2981
      %5535 = vmatprep.subr.mxu0 %v2984
      %5536 = vmatpush1.msra.mxu0 %v2983
      %5537 = vmatprep.subr.mxu0 %v2986
      %5538 = vmatpush1.msra.mxu0 %v2985
      %5539 = vmatprep.subr.mxu0 %v2988
      %5540 = vmatpush1.msra.mxu0 %v2987
      %5541 = vmatprep.subr.mxu0 %v2990
      %5542 = vmatpush1.msra.mxu0 %v2989
      %5543 = vmatprep.subr.mxu0 0.0
      %5544 = vmatpush1.msra.mxu0 0.0
      %5545 = vmatprep.subr.mxu0 0.0
      %5546 = vmatpush1.msra.mxu0 0.0
      %5547 = vmatprep.subr.mxu0 0.0
      %5548 = vmatpush1.msra.mxu0 0.0
      %5549 = vmatprep.subr.mxu0 0.0
      %5550 = vmatpush1.msra.mxu0 0.0
      %5551 = vmatprep.subr.mxu0 0.0
      %5552 = vmatpush1.msra.mxu0 0.0
      %5553 = vmatprep.subr.mxu0 0.0
      %5554 = vmatpush1.msra.mxu0 0.0
      %5555 = vmatprep.subr.mxu0 0.0
      %5556 = vmatpush1.msra.mxu0 0.0
      %5557 = vmatprep.subr.mxu0 0.0
      %5558 = vmatpush1.msra.mxu0 0.0
      %5559 = vmatprep.subr.mxu0 0.0
      %5560 = vmatpush1.msra.mxu0 0.0
      %5561 = vmatprep.subr.mxu0 0.0
      %5562 = vmatpush1.msra.mxu0 0.0
      %5563 = vmatprep.subr.mxu0 0.0
      %5564 = vmatpush1.msra.mxu0 0.0
      %5565 = vmatprep.subr.mxu0 0.0
      %5566 = vmatpush1.msra.mxu0 0.0
      %5567 = vmatprep.subr.mxu0 0.0
      %5568 = vmatpush1.msra.mxu0 0.0
      %5569 = vmatprep.subr.mxu0 0.0
      %5570 = vmatpush1.msra.mxu0 0.0
      %5571 = vmatprep.subr.mxu0 0.0
      %5572 = vmatpush1.msra.mxu0 0.0
      %5573 = vmatprep.subr.mxu0 0.0
      %5574 = vmatpush1.msra.mxu0 0.0
      %5575 = vmatprep.subr.mxu0 0.0
      %5576 = vmatpush1.msra.mxu0 0.0
      %5577 = vmatprep.subr.mxu0 0.0
      %5578 = vmatpush1.msra.mxu0 0.0
      %5579 = vmatprep.subr.mxu0 0.0
      %5580 = vmatpush1.msra.mxu0 0.0
      %5581 = vmatprep.subr.mxu0 0.0
      %5582 = vmatpush1.msra.mxu0 0.0
      %5583 = vmatprep.subr.mxu0 0.0
      %5584 = vmatpush1.msra.mxu0 0.0
      %5585 = vmatprep.subr.mxu0 0.0
      %5586 = vmatpush1.msra.mxu0 0.0
      %5587 = vmatprep.subr.mxu0 0.0
      %5588 = vmatpush1.msra.mxu0 0.0
      %5589 = vmatprep.subr.mxu0 0.0
      %5590 = vmatpush1.msra.mxu0 0.0
      %5591 = vmatprep.mubr.f32.mxu0 0.0
      %5592 = vmatmul.mubr.f32.gmra.mrb[0].mxu0 %v5504
      %v5593 = vpop.f32.mrb[0].mxu0
      %v5594 = vadd.f32 0.0, %v5593
      %v5595 = vpop.f32.mrb[0].mxu0
      %v5596 = vadd.f32 0.0, %v5595
      %5597 = vmatprep.mubr.f32.mxu0 0.0
      %5598 = vmatmul.mubr.f32.gmra.mrb[0].mxu0 %v5507
      %v5599 = vpop.f32.mrb[0].mxu0
      %v5600 = vadd.f32 0.0, %v5599
      %v5601 = vpop.f32.mrb[0].mxu0
      %v5602 = vadd.f32 0.0, %v5601
      %5603 = vmatprep.mubr.f32.mxu0 0.0
      %5604 = vmatmul.mubr.f32.gmra.mrb[0].mxu0 %v5510
      %v5605 = vpop.f32.mrb[0].mxu0
      %v5606 = vadd.f32 0.0, %v5605
      %v5607 = vpop.f32.mrb[0].mxu0
      %v5608 = vadd.f32 0.0, %v5607
      %5609 = vmatprep.mubr.f32.mxu0 0.0
      %5610 = vmatmul.mubr.f32.gmra.mrb[0].mxu0 %v5513
      %v5611 = vpop.f32.mrb[0].mxu0
      %v5612 = vadd.f32 0.0, %v5611
      %v5613 = vpop.f32.mrb[0].mxu0
      %v5614 = vadd.f32 0.0, %v5613
      %5615 = vmatprep.mubr.f32.mxu0 0.0
      %5616 = vmatmul.mubr.f32.gmra.mrb[0].mxu0 %v5516
      %v5617 = vpop.f32.mrb[0].mxu0
      %v5618 = vadd.f32 0.0, %v5617
      %v5619 = vpop.f32.mrb[0].mxu0
      %v5620 = vadd.f32 0.0, %v5619
      %5621 = vmatprep.mubr.f32.mxu0 0.0
      %5622 = vmatmul.mubr.f32.gmra.mrb[0].mxu0 %v5519
      %v5623 = vpop.f32.mrb[0].mxu0
      %v5624 = vadd.f32 0.0, %v5623
      %v5625 = vpop.f32.mrb[0].mxu0
      %v5626 = vadd.f32 0.0, %v5625
      %5627 = vmatprep.mubr.f32.mxu0 0.0
      %5628 = vmatmul.mubr.f32.gmra.mrb[0].mxu0 %v5522
      %v5629 = vpop.f32.mrb[0].mxu0
      %v5630 = vadd.f32 0.0, %v5629
      %v5631 = vpop.f32.mrb[0].mxu0
      %v5632 = vadd.f32 0.0, %v5631
      %5633 = vmatprep.mubr.f32.mxu0 0.0
      %5634 = vmatmul.mubr.f32.gmra.mrb[0].mxu0 %v5525
      %v5635 = vpop.f32.mrb[0].mxu0
      %v5636 = vadd.f32 0.0, %v5635
      %v5637 = vpop.f32.mrb[0].mxu0
      %v5638 = vadd.f32 0.0, %v5637
      %5639 = vdwg.mxu0
      %v5640 = vadd.f32 %v4635, %v4641
      %v5641 = vadd.f32 %v5640, %v4647
      %v5642 = vadd.f32 %v5641, %v4653
      %v5643 = vadd.f32 %v5642, %v4659
      %v5644 = vadd.f32 %v5643, %v4665
      %v5645 = vadd.f32 %v5644, %v4671
      %v5646 = vadd.f32 %v5645, %v4677
      %v5647 = vadd.f32 %v4637, %v4643
      %v5648 = vadd.f32 %v5647, %v4649
      %v5649 = vadd.f32 %v5648, %v4655
      %v5650 = vadd.f32 %v5649, %v4661
      %v5651 = vadd.f32 %v5650, %v4667
      %v5652 = vadd.f32 %v5651, %v4673
      %v5653 = vadd.f32 %v5652, %v4679
      %v5654 = vadd.f32 %v4772, %v4778
      %v5655 = vadd.f32 %v5654, %v4784
      %v5656 = vadd.f32 %v5655, %v4790
      %v5657 = vadd.f32 %v5656, %v4796
      %v5658 = vadd.f32 %v5657, %v4802
      %v5659 = vadd.f32 %v5658, %v4808
      %v5660 = vadd.f32 %v5659, %v4814
      %v5661 = vadd.f32 %v4774, %v4780
      %v5662 = vadd.f32 %v5661, %v4786
      %v5663 = vadd.f32 %v5662, %v4792
      %v5664 = vadd.f32 %v5663, %v4798
      %v5665 = vadd.f32 %v5664, %v4804
      %v5666 = vadd.f32 %v5665, %v4810
      %v5667 = vadd.f32 %v5666, %v4816
      %v5668 = vadd.f32 %v4909, %v4915
      %v5669 = vadd.f32 %v5668, %v4921
      %v5670 = vadd.f32 %v5669, %v4927
      %v5671 = vadd.f32 %v5670, %v4933
      %v5672 = vadd.f32 %v5671, %v4939
      %v5673 = vadd.f32 %v5672, %v4945
      %v5674 = vadd.f32 %v5673, %v4951
      %v5675 = vadd.f32 %v4911, %v4917
      %v5676 = vadd.f32 %v5675, %v4923
      %v5677 = vadd.f32 %v5676, %v4929
      %v5678 = vadd.f32 %v5677, %v4935
      %v5679 = vadd.f32 %v5678, %v4941
      %v5680 = vadd.f32 %v5679, %v4947
      %v5681 = vadd.f32 %v5680, %v4953
      %v5682 = vadd.f32 %v5046, %v5052
      %v5683 = vadd.f32 %v5682, %v5058
      %v5684 = vadd.f32 %v5683, %v5064
      %v5685 = vadd.f32 %v5684, %v5070
      %v5686 = vadd.f32 %v5685, %v5076
      %v5687 = vadd.f32 %v5686, %v5082
      %v5688 = vadd.f32 %v5687, %v5088
      %v5689 = vadd.f32 %v5048, %v5054
      %v5690 = vadd.f32 %v5689, %v5060
      %v5691 = vadd.f32 %v5690, %v5066
      %v5692 = vadd.f32 %v5691, %v5072
      %v5693 = vadd.f32 %v5692, %v5078
      %v5694 = vadd.f32 %v5693, %v5084
      %v5695 = vadd.f32 %v5694, %v5090
      %v5696 = vadd.f32 %v5183, %v5189
      %v5697 = vadd.f32 %v5696, %v5195
      %v5698 = vadd.f32 %v5697, %v5201
      %v5699 = vadd.f32 %v5698, %v5207
      %v5700 = vadd.f32 %v5699, %v5213
      %v5701 = vadd.f32 %v5700, %v5219
      %v5702 = vadd.f32 %v5701, %v5225
      %v5703 = vadd.f32 %v5185, %v5191
      %v5704 = vadd.f32 %v5703, %v5197
      %v5705 = vadd.f32 %v5704, %v5203
      %v5706 = vadd.f32 %v5705, %v5209
      %v5707 = vadd.f32 %v5706, %v5215
      %v5708 = vadd.f32 %v5707, %v5221
      %v5709 = vadd.f32 %v5708, %v5227
      %v5710 = vadd.f32 %v5320, %v5326
      %v5711 = vadd.f32 %v5710, %v5332
      %v5712 = vadd.f32 %v5711, %v5338
      %v5713 = vadd.f32 %v5712, %v5344
      %v5714 = vadd.f32 %v5713, %v5350
      %v5715 = vadd.f32 %v5714, %v5356
      %v5716 = vadd.f32 %v5715, %v5362
      %v5717 = vadd.f32 %v5322, %v5328
      %v5718 = vadd.f32 %v5717, %v5334
      %v5719 = vadd.f32 %v5718, %v5340
      %v5720 = vadd.f32 %v5719, %v5346
      %v5721 = vadd.f32 %v5720, %v5352
      %v5722 = vadd.f32 %v5721, %v5358
      %v5723 = vadd.f32 %v5722, %v5364
      %v5724 = vadd.f32 %v5457, %v5463
      %v5725 = vadd.f32 %v5724, %v5469
      %v5726 = vadd.f32 %v5725, %v5475
      %v5727 = vadd.f32 %v5726, %v5481
      %v5728 = vadd.f32 %v5727, %v5487
      %v5729 = vadd.f32 %v5728, %v5493
      %v5730 = vadd.f32 %v5729, %v5499
      %v5731 = vadd.f32 %v5459, %v5465
      %v5732 = vadd.f32 %v5731, %v5471
      %v5733 = vadd.f32 %v5732, %v5477
      %v5734 = vadd.f32 %v5733, %v5483
      %v5735 = vadd.f32 %v5734, %v5489
      %v5736 = vadd.f32 %v5735, %v5495
      %v5737 = vadd.f32 %v5736, %v5501
      %v5738 = vadd.f32 %v5594, %v5600
      %v5739 = vadd.f32 %v5738, %v5606
      %v5740 = vadd.f32 %v5739, %v5612
      %v5741 = vadd.f32 %v5740, %v5618
      %v5742 = vadd.f32 %v5741, %v5624
      %v5743 = vadd.f32 %v5742, %v5630
      %v5744 = vadd.f32 %v5743, %v5636
      %v5745 = vadd.f32 %v5596, %v5602
      %v5746 = vadd.f32 %v5745, %v5608
      %v5747 = vadd.f32 %v5746, %v5614
      %v5748 = vadd.f32 %v5747, %v5620
      %v5749 = vadd.f32 %v5748, %v5626
      %v5750 = vadd.f32 %v5749, %v5632
      %v5751 = vadd.f32 %v5750, %v5638
      %v5752 = vld [vmem:[%s23] sm:$0xff]
      %v5753 = vld [vmem:[%s23 + $0x8] sm:$0xff]
      %v5754 = vld [vmem:[%s23 + $0x10] sm:$0xff]
      %v5755 = vld [vmem:[%s23 + $0x18] sm:$0xff]
      %v5756 = vld [vmem:[%s23 + $0x20] sm:$0xff]
      %v5757 = vld [vmem:[%s23 + $0x28] sm:$0xff]
      %v5758 = vld [vmem:[%s23 + $0x30] sm:$0xff]
      %v5759 = vld [vmem:[%s23 + $0x38] sm:$0xff]
      %v5760 = vld [vmem:[%s23 + $0x40] sm:$0xff]
      %v5761 = vld [vmem:[%s23 + $0x48] sm:$0xff]
      %v5762 = vld [vmem:[%s23 + $0x50] sm:$0xff]
      %v5763 = vld [vmem:[%s23 + $0x58] sm:$0xff]
      %v5764 = vld [vmem:[%s23 + $0x60] sm:$0xff]
      %v5765 = vld [vmem:[%s23 + $0x68] sm:$0xff]
      %v5766 = vld [vmem:[%s23 + $0x70] sm:$0xff]
      %v5767 = vld [vmem:[%s23 + $0x78] sm:$0xff]
      %v5768 = vld [vmem:[%s23 + $0x80] sm:$0xff]
      %v5769 = vld [vmem:[%s23 + $0x88] sm:$0xff]
      %v5770 = vld [vmem:[%s23 + $0x90] sm:$0xff]
      %v5771 = vld [vmem:[%s23 + $0x98] sm:$0xff]
      %v5772 = vld [vmem:[%s23 + $0xa0] sm:$0xff]
      %v5773 = vld [vmem:[%s23 + $0xa8] sm:$0xff]
      %v5774 = vld [vmem:[%s23 + $0xb0] sm:$0xff]
      %v5775 = vld [vmem:[%s23 + $0xb8] sm:$0xff]
      %v5776 = vld [vmem:[%s23 + $0xc0] sm:$0xff]
      %v5777 = vld [vmem:[%s23 + $0xc8] sm:$0xff]
      %v5778 = vld [vmem:[%s23 + $0xd0] sm:$0xff]
      %v5779 = vld [vmem:[%s23 + $0xd8] sm:$0xff]
      %v5780 = vld [vmem:[%s23 + $0xe0] sm:$0xff]
      %v5781 = vld [vmem:[%s23 + $0xe8] sm:$0xff]
      %v5782 = vld [vmem:[%s23 + $0xf0] sm:$0xff]
      %v5783 = vld [vmem:[%s23 + $0xf8] sm:$0xff]
      %v5784 = vld [vmem:[%s23 + $0x100] sm:$0xff]
      %v5785 = vld [vmem:[%s23 + $0x108] sm:$0xff]
      %v5786 = vld [vmem:[%s23 + $0x110] sm:$0xff]
      %v5787 = vld [vmem:[%s23 + $0x118] sm:$0xff]
      %v5788 = vld [vmem:[%s23 + $0x120] sm:$0xff]
      %v5789 = vld [vmem:[%s23 + $0x128] sm:$0xff]
      %v5790 = vld [vmem:[%s23 + $0x130] sm:$0xff]
      %v5791 = vld [vmem:[%s23 + $0x138] sm:$0xff]
      %v5792 = vld [vmem:[%s23 + $0x140] sm:$0xff]
      %v5793 = vld [vmem:[%s23 + $0x148] sm:$0xff]
      %v5794 = vld [vmem:[%s23 + $0x150] sm:$0xff]
      %v5795 = vld [vmem:[%s23 + $0x158] sm:$0xff]
      %v5796 = vld [vmem:[%s23 + $0x160] sm:$0xff]
      %v5797 = vld [vmem:[%s23 + $0x168] sm:$0xff]
      %v5798 = vld [vmem:[%s23 + $0x170] sm:$0xff]
      %v5799 = vld [vmem:[%s23 + $0x178] sm:$0xff]
      %v5800 = vld [vmem:[%s23 + $0x180] sm:$0xff]
      %v5801 = vld [vmem:[%s23 + $0x188] sm:$0xff]
      %v5802 = vld [vmem:[%s23 + $0x190] sm:$0xff]
      %v5803 = vld [vmem:[%s23 + $0x198] sm:$0xff]
      %v5804 = vld [vmem:[%s23 + $0x1a0] sm:$0xff]
      %v5805 = vld [vmem:[%s23 + $0x1a8] sm:$0xff]
      %v5806 = vld [vmem:[%s23 + $0x1b0] sm:$0xff]
      %v5807 = vld [vmem:[%s23 + $0x1b8] sm:$0xff]
      %v5808 = vld [vmem:[%s23 + $0x1c0] sm:$0xff]
      %v5809 = vld [vmem:[%s23 + $0x1c8] sm:$0xff]
      %v5810 = vld [vmem:[%s23 + $0x1d0] sm:$0xff]
      %v5811 = vld [vmem:[%s23 + $0x1d8] sm:$0xff]
      %v5812 = vld [vmem:[%s23 + $0x1e0] sm:$0xff]
      %v5813 = vld [vmem:[%s23 + $0x1e8] sm:$0xff]
      %v5814 = vld [vmem:[%s23 + $0x1f0] sm:$0xff]
      %v5815 = vld [vmem:[%s23 + $0x1f8] sm:$0xff]
      %v5816 = vld [vmem:[%s25] sm:$0x3]
      %v5818 = vlaneseq
      %v5819 = vshrl.u32 %v5818, 7
      %v5820 = vsub.s32 0, %v5819
      %v5821 = vrot.slane %v5816, %v5820
      %v5822 = vlaneseq
      %v5823 = vshrl.u32 %v5822, 7
      %v5824 = vsub.s32 1, %v5823
      %v5825 = vrot.slane %v5816, %v5824
      %5828 = vmatprep.subr.mxu0 %v5753
      %5829 = vmatpush1.msra.mxu0 %v5752
      %5830 = vmatprep.subr.mxu0 %v5755
      %5831 = vmatpush1.msra.mxu0 %v5754
      %5832 = vmatprep.subr.mxu0 %v5757
      %5833 = vmatpush1.msra.mxu0 %v5756
      %5834 = vmatprep.subr.mxu0 %v5759
      %5835 = vmatpush1.msra.mxu0 %v5758
      %5836 = vmatprep.subr.mxu0 %v5761
      %5837 = vmatpush1.msra.mxu0 %v5760
      %5838 = vmatprep.subr.mxu0 %v5763
      %5839 = vmatpush1.msra.mxu0 %v5762
      %5840 = vmatprep.subr.mxu0 %v5765
      %5841 = vmatpush1.msra.mxu0 %v5764
      %5842 = vmatprep.subr.mxu0 %v5767
      %5843 = vmatpush1.msra.mxu0 %v5766
      %5844 = vmatprep.subr.mxu0 %v5769
      %5845 = vmatpush1.msra.mxu0 %v5768
      %5846 = vmatprep.subr.mxu0 %v5771
      %5847 = vmatpush1.msra.mxu0 %v5770
      %5848 = vmatprep.subr.mxu0 %v5773
      %5849 = vmatpush1.msra.mxu0 %v5772
      %5850 = vmatprep.subr.mxu0 %v5775
      %5851 = vmatpush1.msra.mxu0 %v5774
      %5852 = vmatprep.subr.mxu0 %v5777
      %5853 = vmatpush1.msra.mxu0 %v5776
      %5854 = vmatprep.subr.mxu0 %v5779
      %5855 = vmatpush1.msra.mxu0 %v5778
      %5856 = vmatprep.subr.mxu0 %v5781
      %5857 = vmatpush1.msra.mxu0 %v5780
      %5858 = vmatprep.subr.mxu0 %v5783
      %5859 = vmatpush1.msra.mxu0 %v5782
      %5860 = vmatprep.subr.mxu0 %v5785
      %5861 = vmatpush1.msra.mxu0 %v5784
      %5862 = vmatprep.subr.mxu0 %v5787
      %5863 = vmatpush1.msra.mxu0 %v5786
      %5864 = vmatprep.subr.mxu0 %v5789
      %5865 = vmatpush1.msra.mxu0 %v5788
      %5866 = vmatprep.subr.mxu0 %v5791
      %5867 = vmatpush1.msra.mxu0 %v5790
      %5868 = vmatprep.subr.mxu0 %v5793
      %5869 = vmatpush1.msra.mxu0 %v5792
      %5870 = vmatprep.subr.mxu0 %v5795
      %5871 = vmatpush1.msra.mxu0 %v5794
      %5872 = vmatprep.subr.mxu0 %v5797
      %5873 = vmatpush1.msra.mxu0 %v5796
      %5874 = vmatprep.subr.mxu0 %v5799
      %5875 = vmatpush1.msra.mxu0 %v5798
      %5876 = vmatprep.subr.mxu0 %v5801
      %5877 = vmatpush1.msra.mxu0 %v5800
      %5878 = vmatprep.subr.mxu0 %v5803
      %5879 = vmatpush1.msra.mxu0 %v5802
      %5880 = vmatprep.subr.mxu0 %v5805
      %5881 = vmatpush1.msra.mxu0 %v5804
      %5882 = vmatprep.subr.mxu0 %v5807
      %5883 = vmatpush1.msra.mxu0 %v5806
      %5884 = vmatprep.subr.mxu0 %v5809
      %5885 = vmatpush1.msra.mxu0 %v5808
      %5886 = vmatprep.subr.mxu0 %v5811
      %5887 = vmatpush1.msra.mxu0 %v5810
      %5888 = vmatprep.subr.mxu0 %v5813
      %5889 = vmatpush1.msra.mxu0 %v5812
      %5890 = vmatprep.subr.mxu0 %v5815
      %5891 = vmatpush1.msra.mxu0 %v5814
      %5892 = vmatprep.mubr.f32.mxu0 %v5653
      %5893 = vmatmul.mubr.f32.gmra.mrb[0].mxu0 %v5646
      %v5894 = vpop.f32.mrb[0].mxu0
      %v5895 = vadd.f32 %v5821, %v5894
      %v5896 = vpop.f32.mrb[0].mxu0
      %v5897 = vadd.f32 %v5825, %v5896
      %5898 = vmatprep.mubr.f32.mxu0 %v5667
      %5899 = vmatmul.mubr.f32.gmra.mrb[0].mxu0 %v5660
      %v5900 = vpop.f32.mrb[0].mxu0
      %v5901 = vadd.f32 %v5821, %v5900
      %v5902 = vpop.f32.mrb[0].mxu0
      %v5903 = vadd.f32 %v5825, %v5902
      %5904 = vmatprep.mubr.f32.mxu0 %v5681
      %5905 = vmatmul.mubr.f32.gmra.mrb[0].mxu0 %v5674
      %v5906 = vpop.f32.mrb[0].mxu0
      %v5907 = vadd.f32 %v5821, %v5906
      %v5908 = vpop.f32.mrb[0].mxu0
      %v5909 = vadd.f32 %v5825, %v5908
      %5910 = vmatprep.mubr.f32.mxu0 %v5695
      %5911 = vmatmul.mubr.f32.gmra.mrb[0].mxu0 %v5688
      %v5912 = vpop.f32.mrb[0].mxu0
      %v5913 = vadd.f32 %v5821, %v5912
      %v5914 = vpop.f32.mrb[0].mxu0
      %v5915 = vadd.f32 %v5825, %v5914
      %5916 = vmatprep.mubr.f32.mxu0 %v5709
      %5917 = vmatmul.mubr.f32.gmra.mrb[0].mxu0 %v5702
      %v5918 = vpop.f32.mrb[0].mxu0
      %v5919 = vadd.f32 %v5821, %v5918
      %v5920 = vpop.f32.mrb[0].mxu0
      %v5921 = vadd.f32 %v5825, %v5920
      %5922 = vmatprep.mubr.f32.mxu0 %v5723
      %5923 = vmatmul.mubr.f32.gmra.mrb[0].mxu0 %v5716
      %v5924 = vpop.f32.mrb[0].mxu0
      %v5925 = vadd.f32 %v5821, %v5924
      %v5926 = vpop.f32.mrb[0].mxu0
      %v5927 = vadd.f32 %v5825, %v5926
      %5928 = vmatprep.mubr.f32.mxu0 %v5737
      %5929 = vmatmul.mubr.f32.gmra.mrb[0].mxu0 %v5730
      %v5930 = vpop.f32.mrb[0].mxu0
      %v5931 = vadd.f32 %v5821, %v5930
      %v5932 = vpop.f32.mrb[0].mxu0
      %v5933 = vadd.f32 %v5825, %v5932
      %5934 = vmatprep.mubr.f32.mxu0 %v5751
      %5935 = vmatmul.mubr.f32.gmra.mrb[0].mxu0 %v5744
      %v5936 = vpop.f32.mrb[0].mxu0
      %v5937 = vadd.f32 %v5821, %v5936
      %v5938 = vpop.f32.mrb[0].mxu0
      %v5939 = vadd.f32 %v5825, %v5938
      %5940 = vdwg.mxu0
      %v5941 = vld [vmem:[%s31] sm:$0xff]
      %v5942 = vld [vmem:[%s31 + $0x8] sm:$0xff]
      %v5943 = vld [vmem:[%s31 + $0x10] sm:$0xff]
      %v5944 = vld [vmem:[%s31 + $0x18] sm:$0xff]
      %v5945 = vld [vmem:[%s31 + $0x20] sm:$0xff]
      %v5946 = vld [vmem:[%s31 + $0x28] sm:$0xff]
      %v5947 = vld [vmem:[%s31 + $0x30] sm:$0xff]
      %v5948 = vld [vmem:[%s31 + $0x38] sm:$0xff]
      %5949 = vmatprep.subr.mxu0 0.0
      %5950 = vmatpush1.msra.mxu0 %v5941
      %5951 = vmatprep.subr.mxu0 0.0
      %5952 = vmatpush1.msra.mxu0 %v5942
      %5953 = vmatprep.subr.mxu0 0.0
      %5954 = vmatpush1.msra.mxu0 %v5943
      %5955 = vmatprep.subr.mxu0 0.0
      %5956 = vmatpush1.msra.mxu0 %v5944
      %5957 = vmatprep.subr.mxu0 0.0
      %5958 = vmatpush1.msra.mxu0 %v5945
      %5959 = vmatprep.subr.mxu0 0.0
      %5960 = vmatpush1.msra.mxu0 %v5946
      %5961 = vmatprep.subr.mxu0 0.0
      %5962 = vmatpush1.msra.mxu0 %v5947
      %5963 = vmatprep.subr.mxu0 0.0
      %5964 = vmatpush1.msra.mxu0 %v5948
      %5965 = vmatprep.subr.mxu0 0.0
      %5966 = vmatpush1.msra.mxu0 0.0
      %5967 = vmatprep.subr.mxu0 0.0
      %5968 = vmatpush1.msra.mxu0 0.0
      %5969 = vmatprep.subr.mxu0 0.0
      %5970 = vmatpush1.msra.mxu0 0.0
      %5971 = vmatprep.subr.mxu0 0.0
      %5972 = vmatpush1.msra.mxu0 0.0
      %5973 = vmatprep.subr.mxu0 0.0
      %5974 = vmatpush1.msra.mxu0 0.0
      %5975 = vmatprep.subr.mxu0 0.0
      %5976 = vmatpush1.msra.mxu0 0.0
      %5977 = vmatprep.subr.mxu0 0.0
      %5978 = vmatpush1.msra.mxu0 0.0
      %5979 = vmatprep.subr.mxu0 0.0
      %5980 = vmatpush1.msra.mxu0 0.0
      %5981 = vmatprep.subr.mxu0 0.0
      %5982 = vmatpush1.msra.mxu0 0.0
      %5983 = vmatprep.subr.mxu0 0.0
      %5984 = vmatpush1.msra.mxu0 0.0
      %5985 = vmatprep.subr.mxu0 0.0
      %5986 = vmatpush1.msra.mxu0 0.0
      %5987 = vmatprep.subr.mxu0 0.0
      %5988 = vmatpush1.msra.mxu0 0.0
      %5989 = vmatprep.subr.mxu0 0.0
      %5990 = vmatpush1.msra.mxu0 0.0
      %5991 = vmatprep.subr.mxu0 0.0
      %5992 = vmatpush1.msra.mxu0 0.0
      %5993 = vmatprep.subr.mxu0 0.0
      %5994 = vmatpush1.msra.mxu0 0.0
      %5995 = vmatprep.subr.mxu0 0.0
      %5996 = vmatpush1.msra.mxu0 0.0
      %5997 = vmatprep.subr.mxu0 0.0
      %5998 = vmatpush1.msra.mxu0 0.0
      %5999 = vmatprep.subr.mxu0 0.0
      %6000 = vmatpush1.msra.mxu0 0.0
      %6001 = vmatprep.subr.mxu0 0.0
      %6002 = vmatpush1.msra.mxu0 0.0
      %6003 = vmatprep.subr.mxu0 0.0
      %6004 = vmatpush1.msra.mxu0 0.0
      %6005 = vmatprep.subr.mxu0 0.0
      %6006 = vmatpush1.msra.mxu0 0.0
      %6007 = vmatprep.subr.mxu0 0.0
      %6008 = vmatpush1.msra.mxu0 0.0
      %6009 = vmatprep.subr.mxu0 0.0
      %6010 = vmatpush1.msra.mxu0 0.0
      %6011 = vmatprep.subr.mxu0 0.0
      %6012 = vmatpush1.msra.mxu0 0.0
      %6013 = vmatprep.mubr.f32.mxu0 0.0
      %6014 = vmatmul.mubr.f32.gmra.mrb[0].mxu0 %v4545
      %v6015 = vpop.f32.mrb[0].mxu0
      %v6016 = vadd.f32 0.0, %v6015
      %v6017 = vpop.f32.mrb[0].mxu0
      %6018 = vmatprep.mubr.f32.mxu0 0.0
      %6019 = vmatmul.mubr.f32.gmra.mrb[0].mxu0 %v4548
      %v6020 = vpop.f32.mrb[0].mxu0
      %v6021 = vadd.f32 0.0, %v6020
      %v6022 = vpop.f32.mrb[0].mxu0
      %6023 = vmatprep.mubr.f32.mxu0 0.0
      %6024 = vmatmul.mubr.f32.gmra.mrb[0].mxu0 %v4551
      %v6025 = vpop.f32.mrb[0].mxu0
      %v6026 = vadd.f32 0.0, %v6025
      %v6027 = vpop.f32.mrb[0].mxu0
      %6028 = vmatprep.mubr.f32.mxu0 0.0
      %6029 = vmatmul.mubr.f32.gmra.mrb[0].mxu0 %v4554
      %v6030 = vpop.f32.mrb[0].mxu0
      %v6031 = vadd.f32 0.0, %v6030
      %v6032 = vpop.f32.mrb[0].mxu0
      %6033 = vmatprep.mubr.f32.mxu0 0.0
      %6034 = vmatmul.mubr.f32.gmra.mrb[0].mxu0 %v4557
      %v6035 = vpop.f32.mrb[0].mxu0
      %v6036 = vadd.f32 0.0, %v6035
      %v6037 = vpop.f32.mrb[0].mxu0
      %6038 = vmatprep.mubr.f32.mxu0 0.0
      %6039 = vmatmul.mubr.f32.gmra.mrb[0].mxu0 %v4560
      %v6040 = vpop.f32.mrb[0].mxu0
      %v6041 = vadd.f32 0.0, %v6040
      %v6042 = vpop.f32.mrb[0].mxu0
      %6043 = vmatprep.mubr.f32.mxu0 0.0
      %6044 = vmatmul.mubr.f32.gmra.mrb[0].mxu0 %v4563
      %v6045 = vpop.f32.mrb[0].mxu0
      %v6046 = vadd.f32 0.0, %v6045
      %v6047 = vpop.f32.mrb[0].mxu0
      %6048 = vmatprep.mubr.f32.mxu0 0.0
      %6049 = vmatmul.mubr.f32.gmra.mrb[0].mxu0 %v4566
      %v6050 = vpop.f32.mrb[0].mxu0
      %v6051 = vadd.f32 0.0, %v6050
      %v6052 = vpop.f32.mrb[0].mxu0
      %6053 = vmatprep.mubr.f32.mxu0 0.0
      %6054 = vmatmul.mubr.f32.gmra.mrb[0].mxu0 %v4682
      %v6055 = vpop.f32.mrb[0].mxu0
      %v6056 = vadd.f32 0.0, %v6055
      %v6057 = vpop.f32.mrb[0].mxu0
      %6058 = vmatprep.mubr.f32.mxu0 0.0
      %6059 = vmatmul.mubr.f32.gmra.mrb[0].mxu0 %v4685
      %v6060 = vpop.f32.mrb[0].mxu0
      %v6061 = vadd.f32 0.0, %v6060
      %v6062 = vpop.f32.mrb[0].mxu0
      %6063 = vmatprep.mubr.f32.mxu0 0.0
      %6064 = vmatmul.mubr.f32.gmra.mrb[0].mxu0 %v4688
      %v6065 = vpop.f32.mrb[0].mxu0
      %v6066 = vadd.f32 0.0, %v6065
      %v6067 = vpop.f32.mrb[0].mxu0
      %6068 = vmatprep.mubr.f32.mxu0 0.0
      %6069 = vmatmul.mubr.f32.gmra.mrb[0].mxu0 %v4691
      %v6070 = vpop.f32.mrb[0].mxu0
      %v6071 = vadd.f32 0.0, %v6070
      %v6072 = vpop.f32.mrb[0].mxu0
      %6073 = vmatprep.mubr.f32.mxu0 0.0
      %6074 = vmatmul.mubr.f32.gmra.mrb[0].mxu0 %v4694
      %v6075 = vpop.f32.mrb[0].mxu0
      %v6076 = vadd.f32 0.0, %v6075
      %v6077 = vpop.f32.mrb[0].mxu0
      %6078 = vmatprep.mubr.f32.mxu0 0.0
      %6079 = vmatmul.mubr.f32.gmra.mrb[0].mxu0 %v4697
      %v6080 = vpop.f32.mrb[0].mxu0
      %v6081 = vadd.f32 0.0, %v6080
      %v6082 = vpop.f32.mrb[0].mxu0
      %6083 = vmatprep.mubr.f32.mxu0 0.0
      %6084 = vmatmul.mubr.f32.gmra.mrb[0].mxu0 %v4700
      %v6085 = vpop.f32.mrb[0].mxu0
      %v6086 = vadd.f32 0.0, %v6085
      %v6087 = vpop.f32.mrb[0].mxu0
      %6088 = vmatprep.mubr.f32.mxu0 0.0
      %6089 = vmatmul.mubr.f32.gmra.mrb[0].mxu0 %v4703
      %v6090 = vpop.f32.mrb[0].mxu0
      %v6091 = vadd.f32 0.0, %v6090
      %v6092 = vpop.f32.mrb[0].mxu0
      %6093 = vmatprep.mubr.f32.mxu0 0.0
      %6094 = vmatmul.mubr.f32.gmra.mrb[0].mxu0 %v4819
      %v6095 = vpop.f32.mrb[0].mxu0
      %v6096 = vadd.f32 0.0, %v6095
      %v6097 = vpop.f32.mrb[0].mxu0
      %6098 = vmatprep.mubr.f32.mxu0 0.0
      %6099 = vmatmul.mubr.f32.gmra.mrb[0].mxu0 %v4822
      %v6100 = vpop.f32.mrb[0].mxu0
      %v6101 = vadd.f32 0.0, %v6100
      %v6102 = vpop.f32.mrb[0].mxu0
      %6103 = vmatprep.mubr.f32.mxu0 0.0
      %6104 = vmatmul.mubr.f32.gmra.mrb[0].mxu0 %v4825
      %v6105 = vpop.f32.mrb[0].mxu0
      %v6106 = vadd.f32 0.0, %v6105
      %v6107 = vpop.f32.mrb[0].mxu0
      %6108 = vmatprep.mubr.f32.mxu0 0.0
      %6109 = vmatmul.mubr.f32.gmra.mrb[0].mxu0 %v4828
      %v6110 = vpop.f32.mrb[0].mxu0
      %v6111 = vadd.f32 0.0, %v6110
      %v6112 = vpop.f32.mrb[0].mxu0
      %6113 = vmatprep.mubr.f32.mxu0 0.0
      %6114 = vmatmul.mubr.f32.gmra.mrb[0].mxu0 %v4831
      %v6115 = vpop.f32.mrb[0].mxu0
      %v6116 = vadd.f32 0.0, %v6115
      %v6117 = vpop.f32.mrb[0].mxu0
      %6118 = vmatprep.mubr.f32.mxu0 0.0
      %6119 = vmatmul.mubr.f32.gmra.mrb[0].mxu0 %v4834
      %v6120 = vpop.f32.mrb[0].mxu0
      %v6121 = vadd.f32 0.0, %v6120
      %v6122 = vpop.f32.mrb[0].mxu0
      %6123 = vmatprep.mubr.f32.mxu0 0.0
      %6124 = vmatmul.mubr.f32.gmra.mrb[0].mxu0 %v4837
      %v6125 = vpop.f32.mrb[0].mxu0
      %v6126 = vadd.f32 0.0, %v6125
      %v6127 = vpop.f32.mrb[0].mxu0
      %6128 = vmatprep.mubr.f32.mxu0 0.0
      %6129 = vmatmul.mubr.f32.gmra.mrb[0].mxu0 %v4840
      %v6130 = vpop.f32.mrb[0].mxu0
      %v6131 = vadd.f32 0.0, %v6130
      %v6132 = vpop.f32.mrb[0].mxu0
      %6133 = vmatprep.mubr.f32.mxu0 0.0
      %6134 = vmatmul.mubr.f32.gmra.mrb[0].mxu0 %v4956
      %v6135 = vpop.f32.mrb[0].mxu0
      %v6136 = vadd.f32 0.0, %v6135
      %v6137 = vpop.f32.mrb[0].mxu0
      %6138 = vmatprep.mubr.f32.mxu0 0.0
      %6139 = vmatmul.mubr.f32.gmra.mrb[0].mxu0 %v4959
      %v6140 = vpop.f32.mrb[0].mxu0
      %v6141 = vadd.f32 0.0, %v6140
      %v6142 = vpop.f32.mrb[0].mxu0
      %6143 = vmatprep.mubr.f32.mxu0 0.0
      %6144 = vmatmul.mubr.f32.gmra.mrb[0].mxu0 %v4962
      %v6145 = vpop.f32.mrb[0].mxu0
      %v6146 = vadd.f32 0.0, %v6145
      %v6147 = vpop.f32.mrb[0].mxu0
      %6148 = vmatprep.mubr.f32.mxu0 0.0
      %6149 = vmatmul.mubr.f32.gmra.mrb[0].mxu0 %v4965
      %v6150 = vpop.f32.mrb[0].mxu0
      %v6151 = vadd.f32 0.0, %v6150
      %v6152 = vpop.f32.mrb[0].mxu0
      %6153 = vmatprep.mubr.f32.mxu0 0.0
      %6154 = vmatmul.mubr.f32.gmra.mrb[0].mxu0 %v4968
      %v6155 = vpop.f32.mrb[0].mxu0
      %v6156 = vadd.f32 0.0, %v6155
      %v6157 = vpop.f32.mrb[0].mxu0
      %6158 = vmatprep.mubr.f32.mxu0 0.0
      %6159 = vmatmul.mubr.f32.gmra.mrb[0].mxu0 %v4971
      %v6160 = vpop.f32.mrb[0].mxu0
      %v6161 = vadd.f32 0.0, %v6160
      %v6162 = vpop.f32.mrb[0].mxu0
      %6163 = vmatprep.mubr.f32.mxu0 0.0
      %6164 = vmatmul.mubr.f32.gmra.mrb[0].mxu0 %v4974
      %v6165 = vpop.f32.mrb[0].mxu0
      %v6166 = vadd.f32 0.0, %v6165
      %v6167 = vpop.f32.mrb[0].mxu0
      %6168 = vmatprep.mubr.f32.mxu0 0.0
      %6169 = vmatmul.mubr.f32.gmra.mrb[0].mxu0 %v4977
      %v6170 = vpop.f32.mrb[0].mxu0
      %v6171 = vadd.f32 0.0, %v6170
      %v6172 = vpop.f32.mrb[0].mxu0
      %6173 = vmatprep.mubr.f32.mxu0 0.0
      %6174 = vmatmul.mubr.f32.gmra.mrb[0].mxu0 %v5093
      %v6175 = vpop.f32.mrb[0].mxu0
      %v6176 = vadd.f32 0.0, %v6175
      %v6177 = vpop.f32.mrb[0].mxu0
      %6178 = vmatprep.mubr.f32.mxu0 0.0
      %6179 = vmatmul.mubr.f32.gmra.mrb[0].mxu0 %v5096
      %v6180 = vpop.f32.mrb[0].mxu0
      %v6181 = vadd.f32 0.0, %v6180
      %v6182 = vpop.f32.mrb[0].mxu0
      %6183 = vmatprep.mubr.f32.mxu0 0.0
      %6184 = vmatmul.mubr.f32.gmra.mrb[0].mxu0 %v5099
      %v6185 = vpop.f32.mrb[0].mxu0
      %v6186 = vadd.f32 0.0, %v6185
      %v6187 = vpop.f32.mrb[0].mxu0
      %6188 = vmatprep.mubr.f32.mxu0 0.0
      %6189 = vmatmul.mubr.f32.gmra.mrb[0].mxu0 %v5102
      %v6190 = vpop.f32.mrb[0].mxu0
      %v6191 = vadd.f32 0.0, %v6190
      %v6192 = vpop.f32.mrb[0].mxu0
      %6193 = vmatprep.mubr.f32.mxu0 0.0
      %6194 = vmatmul.mubr.f32.gmra.mrb[0].mxu0 %v5105
      %v6195 = vpop.f32.mrb[0].mxu0
      %v6196 = vadd.f32 0.0, %v6195
      %v6197 = vpop.f32.mrb[0].mxu0
      %6198 = vmatprep.mubr.f32.mxu0 0.0
      %6199 = vmatmul.mubr.f32.gmra.mrb[0].mxu0 %v5108
      %v6200 = vpop.f32.mrb[0].mxu0
      %v6201 = vadd.f32 0.0, %v6200
      %v6202 = vpop.f32.mrb[0].mxu0
      %6203 = vmatprep.mubr.f32.mxu0 0.0
      %6204 = vmatmul.mubr.f32.gmra.mrb[0].mxu0 %v5111
      %v6205 = vpop.f32.mrb[0].mxu0
      %v6206 = vadd.f32 0.0, %v6205
      %v6207 = vpop.f32.mrb[0].mxu0
      %6208 = vmatprep.mubr.f32.mxu0 0.0
      %6209 = vmatmul.mubr.f32.gmra.mrb[0].mxu0 %v5114
      %v6210 = vpop.f32.mrb[0].mxu0
      %v6211 = vadd.f32 0.0, %v6210
      %v6212 = vpop.f32.mrb[0].mxu0
      %6213 = vmatprep.mubr.f32.mxu0 0.0
      %6214 = vmatmul.mubr.f32.gmra.mrb[0].mxu0 %v5230
      %v6215 = vpop.f32.mrb[0].mxu0
      %v6216 = vadd.f32 0.0, %v6215
      %v6217 = vpop.f32.mrb[0].mxu0
      %6218 = vmatprep.mubr.f32.mxu0 0.0
      %6219 = vmatmul.mubr.f32.gmra.mrb[0].mxu0 %v5233
      %v6220 = vpop.f32.mrb[0].mxu0
      %v6221 = vadd.f32 0.0, %v6220
      %v6222 = vpop.f32.mrb[0].mxu0
      %6223 = vmatprep.mubr.f32.mxu0 0.0
      %6224 = vmatmul.mubr.f32.gmra.mrb[0].mxu0 %v5236
      %v6225 = vpop.f32.mrb[0].mxu0
      %v6226 = vadd.f32 0.0, %v6225
      %v6227 = vpop.f32.mrb[0].mxu0
      %6228 = vmatprep.mubr.f32.mxu0 0.0
      %6229 = vmatmul.mubr.f32.gmra.mrb[0].mxu0 %v5239
      %v6230 = vpop.f32.mrb[0].mxu0
      %v6231 = vadd.f32 0.0, %v6230
      %v6232 = vpop.f32.mrb[0].mxu0
      %6233 = vmatprep.mubr.f32.mxu0 0.0
      %6234 = vmatmul.mubr.f32.gmra.mrb[0].mxu0 %v5242
      %v6235 = vpop.f32.mrb[0].mxu0
      %v6236 = vadd.f32 0.0, %v6235
      %v6237 = vpop.f32.mrb[0].mxu0
      %6238 = vmatprep.mubr.f32.mxu0 0.0
      %6239 = vmatmul.mubr.f32.gmra.mrb[0].mxu0 %v5245
      %v6240 = vpop.f32.mrb[0].mxu0
      %v6241 = vadd.f32 0.0, %v6240
      %v6242 = vpop.f32.mrb[0].mxu0
      %6243 = vmatprep.mubr.f32.mxu0 0.0
      %6244 = vmatmul.mubr.f32.gmra.mrb[0].mxu0 %v5248
      %v6245 = vpop.f32.mrb[0].mxu0
      %v6246 = vadd.f32 0.0, %v6245
      %v6247 = vpop.f32.mrb[0].mxu0
      %6248 = vmatprep.mubr.f32.mxu0 0.0
      %6249 = vmatmul.mubr.f32.gmra.mrb[0].mxu0 %v5251
      %v6250 = vpop.f32.mrb[0].mxu0
      %v6251 = vadd.f32 0.0, %v6250
      %v6252 = vpop.f32.mrb[0].mxu0
      %6253 = vmatprep.mubr.f32.mxu0 0.0
      %6254 = vmatmul.mubr.f32.gmra.mrb[0].mxu0 %v5367
      %v6255 = vpop.f32.mrb[0].mxu0
      %v6256 = vadd.f32 0.0, %v6255
      %v6257 = vpop.f32.mrb[0].mxu0
      %6258 = vmatprep.mubr.f32.mxu0 0.0
      %6259 = vmatmul.mubr.f32.gmra.mrb[0].mxu0 %v5370
      %v6260 = vpop.f32.mrb[0].mxu0
      %v6261 = vadd.f32 0.0, %v6260
      %v6262 = vpop.f32.mrb[0].mxu0
      %6263 = vmatprep.mubr.f32.mxu0 0.0
      %6264 = vmatmul.mubr.f32.gmra.mrb[0].mxu0 %v5373
      %v6265 = vpop.f32.mrb[0].mxu0
      %v6266 = vadd.f32 0.0, %v6265
      %v6267 = vpop.f32.mrb[0].mxu0
      %6268 = vmatprep.mubr.f32.mxu0 0.0
      %6269 = vmatmul.mubr.f32.gmra.mrb[0].mxu0 %v5376
      %v6270 = vpop.f32.mrb[0].mxu0
      %v6271 = vadd.f32 0.0, %v6270
      %v6272 = vpop.f32.mrb[0].mxu0
      %6273 = vmatprep.mubr.f32.mxu0 0.0
      %6274 = vmatmul.mubr.f32.gmra.mrb[0].mxu0 %v5379
      %v6275 = vpop.f32.mrb[0].mxu0
      %v6276 = vadd.f32 0.0, %v6275
      %v6277 = vpop.f32.mrb[0].mxu0
      %6278 = vmatprep.mubr.f32.mxu0 0.0
      %6279 = vmatmul.mubr.f32.gmra.mrb[0].mxu0 %v5382
      %v6280 = vpop.f32.mrb[0].mxu0
      %v6281 = vadd.f32 0.0, %v6280
      %v6282 = vpop.f32.mrb[0].mxu0
      %6283 = vmatprep.mubr.f32.mxu0 0.0
      %6284 = vmatmul.mubr.f32.gmra.mrb[0].mxu0 %v5385
      %v6285 = vpop.f32.mrb[0].mxu0
      %v6286 = vadd.f32 0.0, %v6285
      %v6287 = vpop.f32.mrb[0].mxu0
      %6288 = vmatprep.mubr.f32.mxu0 0.0
      %6289 = vmatmul.mubr.f32.gmra.mrb[0].mxu0 %v5388
      %v6290 = vpop.f32.mrb[0].mxu0
      %v6291 = vadd.f32 0.0, %v6290
      %v6292 = vpop.f32.mrb[0].mxu0
      %6293 = vmatprep.mubr.f32.mxu0 0.0
      %6294 = vmatmul.mubr.f32.gmra.mrb[0].mxu0 %v5504
      %v6295 = vpop.f32.mrb[0].mxu0
      %v6296 = vadd.f32 0.0, %v6295
      %v6297 = vpop.f32.mrb[0].mxu0
      %6298 = vmatprep.mubr.f32.mxu0 0.0
      %6299 = vmatmul.mubr.f32.gmra.mrb[0].mxu0 %v5507
      %v6300 = vpop.f32.mrb[0].mxu0
      %v6301 = vadd.f32 0.0, %v6300
      %v6302 = vpop.f32.mrb[0].mxu0
      %6303 = vmatprep.mubr.f32.mxu0 0.0
      %6304 = vmatmul.mubr.f32.gmra.mrb[0].mxu0 %v5510
      %v6305 = vpop.f32.mrb[0].mxu0
      %v6306 = vadd.f32 0.0, %v6305
      %v6307 = vpop.f32.mrb[0].mxu0
      %6308 = vmatprep.mubr.f32.mxu0 0.0
      %6309 = vmatmul.mubr.f32.gmra.mrb[0].mxu0 %v5513
      %v6310 = vpop.f32.mrb[0].mxu0
      %v6311 = vadd.f32 0.0, %v6310
      %v6312 = vpop.f32.mrb[0].mxu0
      %6313 = vmatprep.mubr.f32.mxu0 0.0
      %6314 = vmatmul.mubr.f32.gmra.mrb[0].mxu0 %v5516
      %v6315 = vpop.f32.mrb[0].mxu0
      %v6316 = vadd.f32 0.0, %v6315
      %v6317 = vpop.f32.mrb[0].mxu0
      %6318 = vmatprep.mubr.f32.mxu0 0.0
      %6319 = vmatmul.mubr.f32.gmra.mrb[0].mxu0 %v5519
      %v6320 = vpop.f32.mrb[0].mxu0
      %v6321 = vadd.f32 0.0, %v6320
      %v6322 = vpop.f32.mrb[0].mxu0
      %6323 = vmatprep.mubr.f32.mxu0 0.0
      %6324 = vmatmul.mubr.f32.gmra.mrb[0].mxu0 %v5522
      %v6325 = vpop.f32.mrb[0].mxu0
      %v6326 = vadd.f32 0.0, %v6325
      %v6327 = vpop.f32.mrb[0].mxu0
      %6328 = vmatprep.mubr.f32.mxu0 0.0
      %6329 = vmatmul.mubr.f32.gmra.mrb[0].mxu0 %v5525
      %v6330 = vpop.f32.mrb[0].mxu0
      %v6331 = vadd.f32 0.0, %v6330
      %v6332 = vpop.f32.mrb[0].mxu0
      %6333 = vdwg.mxu0
      %vm6334 = vcmask 64512
      %v6335 = vsel %vm6334, %v6016, 0.0
      %v6336 = vsel %vm6334, %v6021, 0.0
      %v6337 = vadd.f32 %v6335, %v6336
      %v6338 = vsel %vm6334, %v6026, 0.0
      %v6339 = vadd.f32 %v6337, %v6338
      %v6340 = vsel %vm6334, %v6031, 0.0
      %v6341 = vadd.f32 %v6339, %v6340
      %v6342 = vsel %vm6334, %v6036, 0.0
      %v6343 = vadd.f32 %v6341, %v6342
      %v6344 = vsel %vm6334, %v6041, 0.0
      %v6345 = vadd.f32 %v6343, %v6344
      %v6346 = vsel %vm6334, %v6046, 0.0
      %v6347 = vadd.f32 %v6345, %v6346
      %v6348 = vsel %vm6334, %v6051, 0.0
      %v6349 = vadd.f32 %v6347, %v6348
      %v6350 = vsel %vm6334, %v6056, 0.0
      %v6351 = vsel %vm6334, %v6061, 0.0
      %v6352 = vadd.f32 %v6350, %v6351
      %v6353 = vsel %vm6334, %v6066, 0.0
      %v6354 = vadd.f32 %v6352, %v6353
      %v6355 = vsel %vm6334, %v6071, 0.0
      %v6356 = vadd.f32 %v6354, %v6355
      %v6357 = vsel %vm6334, %v6076, 0.0
      %v6358 = vadd.f32 %v6356, %v6357
      %v6359 = vsel %vm6334, %v6081, 0.0
      %v6360 = vadd.f32 %v6358, %v6359
      %v6361 = vsel %vm6334, %v6086, 0.0
      %v6362 = vadd.f32 %v6360, %v6361
      %v6363 = vsel %vm6334, %v6091, 0.0
      %v6364 = vadd.f32 %v6362, %v6363
      %v6365 = vsel %vm6334, %v6096, 0.0
      %v6366 = vsel %vm6334, %v6101, 0.0
      %v6367 = vadd.f32 %v6365, %v6366
      %v6368 = vsel %vm6334, %v6106, 0.0
      %v6369 = vadd.f32 %v6367, %v6368
      %v6370 = vsel %vm6334, %v6111, 0.0
      %v6371 = vadd.f32 %v6369, %v6370
      %v6372 = vsel %vm6334, %v6116, 0.0
      %v6373 = vadd.f32 %v6371, %v6372
      %v6374 = vsel %vm6334, %v6121, 0.0
      %v6375 = vadd.f32 %v6373, %v6374
      %v6376 = vsel %vm6334, %v6126, 0.0
      %v6377 = vadd.f32 %v6375, %v6376
      %v6378 = vsel %vm6334, %v6131, 0.0
      %v6379 = vadd.f32 %v6377, %v6378
      %v6380 = vsel %vm6334, %v6136, 0.0
      %v6381 = vsel %vm6334, %v6141, 0.0
      %v6382 = vadd.f32 %v6380, %v6381
      %v6383 = vsel %vm6334, %v6146, 0.0
      %v6384 = vadd.f32 %v6382, %v6383
      %v6385 = vsel %vm6334, %v6151, 0.0
      %v6386 = vadd.f32 %v6384, %v6385
      %v6387 = vsel %vm6334, %v6156, 0.0
      %v6388 = vadd.f32 %v6386, %v6387
      %v6389 = vsel %vm6334, %v6161, 0.0
      %v6390 = vadd.f32 %v6388, %v6389
      %v6391 = vsel %vm6334, %v6166, 0.0
      %v6392 = vadd.f32 %v6390, %v6391
      %v6393 = vsel %vm6334, %v6171, 0.0
      %v6394 = vadd.f32 %v6392, %v6393
      %v6395 = vsel %vm6334, %v6176, 0.0
      %v6396 = vsel %vm6334, %v6181, 0.0
      %v6397 = vadd.f32 %v6395, %v6396
      %v6398 = vsel %vm6334, %v6186, 0.0
      %v6399 = vadd.f32 %v6397, %v6398
      %v6400 = vsel %vm6334, %v6191, 0.0
      %v6401 = vadd.f32 %v6399, %v6400
      %v6402 = vsel %vm6334, %v6196, 0.0
      %v6403 = vadd.f32 %v6401, %v6402
      %v6404 = vsel %vm6334, %v6201, 0.0
      %v6405 = vadd.f32 %v6403, %v6404
      %v6406 = vsel %vm6334, %v6206, 0.0
      %v6407 = vadd.f32 %v6405, %v6406
      %v6408 = vsel %vm6334, %v6211, 0.0
      %v6409 = vadd.f32 %v6407, %v6408
      %v6410 = vsel %vm6334, %v6216, 0.0
      %v6411 = vsel %vm6334, %v6221, 0.0
      %v6412 = vadd.f32 %v6410, %v6411
      %v6413 = vsel %vm6334, %v6226, 0.0
      %v6414 = vadd.f32 %v6412, %v6413
      %v6415 = vsel %vm6334, %v6231, 0.0
      %v6416 = vadd.f32 %v6414, %v6415
      %v6417 = vsel %vm6334, %v6236, 0.0
      %v6418 = vadd.f32 %v6416, %v6417
      %v6419 = vsel %vm6334, %v6241, 0.0
      %v6420 = vadd.f32 %v6418, %v6419
      %v6421 = vsel %vm6334, %v6246, 0.0
      %v6422 = vadd.f32 %v6420, %v6421
      %v6423 = vsel %vm6334, %v6251, 0.0
      %v6424 = vadd.f32 %v6422, %v6423
      %v6425 = vsel %vm6334, %v6256, 0.0
      %v6426 = vsel %vm6334, %v6261, 0.0
      %v6427 = vadd.f32 %v6425, %v6426
      %v6428 = vsel %vm6334, %v6266, 0.0
      %v6429 = vadd.f32 %v6427, %v6428
      %v6430 = vsel %vm6334, %v6271, 0.0
      %v6431 = vadd.f32 %v6429, %v6430
      %v6432 = vsel %vm6334, %v6276, 0.0
      %v6433 = vadd.f32 %v6431, %v6432
      %v6434 = vsel %vm6334, %v6281, 0.0
      %v6435 = vadd.f32 %v6433, %v6434
      %v6436 = vsel %vm6334, %v6286, 0.0
      %v6437 = vadd.f32 %v6435, %v6436
      %v6438 = vsel %vm6334, %v6291, 0.0
      %v6439 = vadd.f32 %v6437, %v6438
      %v6440 = vsel %vm6334, %v6296, 0.0
      %v6441 = vsel %vm6334, %v6301, 0.0
      %v6442 = vadd.f32 %v6440, %v6441
      %v6443 = vsel %vm6334, %v6306, 0.0
      %v6444 = vadd.f32 %v6442, %v6443
      %v6445 = vsel %vm6334, %v6311, 0.0
      %v6446 = vadd.f32 %v6444, %v6445
      %v6447 = vsel %vm6334, %v6316, 0.0
      %v6448 = vadd.f32 %v6446, %v6447
      %v6449 = vsel %vm6334, %v6321, 0.0
      %v6450 = vadd.f32 %v6448, %v6449
      %v6451 = vsel %vm6334, %v6326, 0.0
      %v6452 = vadd.f32 %v6450, %v6451
      %v6453 = vsel %vm6334, %v6331, 0.0
      %v6454 = vadd.f32 %v6452, %v6453
      %v6455 = vmul.f32 %v6349, 0.125
      %v6456 = vmul.f32 %v6364, 0.125
      %v6457 = vmul.f32 %v6379, 0.125
      %v6458 = vmul.f32 %v6394, 0.125
      %v6459 = vmul.f32 %v6409, 0.125
      %v6460 = vmul.f32 %v6424, 0.125
      %v6461 = vmul.f32 %v6439, 0.125
      %v6462 = vmul.f32 %v6454, 0.125
      %v6463 = vsel %vm6334, %v6455, 0.0
      %v6464 = vsel %vm6334, %v6456, 0.0
      %v6465 = vsel %vm6334, %v6457, 0.0
      %v6466 = vsel %vm6334, %v6458, 0.0
      %v6467 = vsel %vm6334, %v6459, 0.0
      %v6468 = vsel %vm6334, %v6460, 0.0
      %v6469 = vsel %vm6334, %v6461, 0.0
      %v6470 = vsel %vm6334, %v6462, 0.0
      %6471 = vst [vmem:[%s1148] sm:$0xff] %v6463
      %6472 = vst [vmem:[%s1148 + $0x8] sm:$0xff] %v6464
      %6473 = vst [vmem:[%s1148 + $0x10] sm:$0xff] %v6465
      %6474 = vst [vmem:[%s1148 + $0x18] sm:$0xff] %v6466
      %6475 = vst [vmem:[%s1148 + $0x20] sm:$0xff] %v6467
      %6476 = vst [vmem:[%s1148 + $0x28] sm:$0xff] %v6468
      %6477 = vst [vmem:[%s1148 + $0x30] sm:$0xff] %v6469
      %6478 = vst [vmem:[%s1148 + $0x38] sm:$0xff] %v6470
      %v6479 = vrot.slane %v5895, 4
      %v6480 = vadd.f32 %v5895, %v6479
      %v6481 = vrot.slane %v6480, 2
      %v6482 = vadd.f32 %v6480, %v6481
      %v6483 = vrot.slane %v6482, 1
      %v6484 = vadd.f32 %v6482, %v6483
      %v6485 = vrot.slane %v5897, 4
      %v6486 = vadd.f32 %v5897, %v6485
      %v6487 = vrot.slane %v6486, 2
      %v6488 = vadd.f32 %v6486, %v6487
      %v6489 = vrot.slane %v6488, 1
      %v6490 = vadd.f32 %v6488, %v6489
      %v6491 = vrot.slane %v5901, 4
      %v6492 = vadd.f32 %v5901, %v6491
      %v6493 = vrot.slane %v6492, 2
      %v6494 = vadd.f32 %v6492, %v6493
      %v6495 = vrot.slane %v6494, 1
      %v6496 = vadd.f32 %v6494, %v6495
      %v6497 = vrot.slane %v5903, 4
      %v6498 = vadd.f32 %v5903, %v6497
      %v6499 = vrot.slane %v6498, 2
      %v6500 = vadd.f32 %v6498, %v6499
      %v6501 = vrot.slane %v6500, 1
      %v6502 = vadd.f32 %v6500, %v6501
      %v6503 = vrot.slane %v5907, 4
      %v6504 = vadd.f32 %v5907, %v6503
      %v6505 = vrot.slane %v6504, 2
      %v6506 = vadd.f32 %v6504, %v6505
      %v6507 = vrot.slane %v6506, 1
      %v6508 = vadd.f32 %v6506, %v6507
      %v6509 = vrot.slane %v5909, 4
      %v6510 = vadd.f32 %v5909, %v6509
      %v6511 = vrot.slane %v6510, 2
      %v6512 = vadd.f32 %v6510, %v6511
      %v6513 = vrot.slane %v6512, 1
      %v6514 = vadd.f32 %v6512, %v6513
      %v6515 = vrot.slane %v5913, 4
      %v6516 = vadd.f32 %v5913, %v6515
      %v6517 = vrot.slane %v6516, 2
      %v6518 = vadd.f32 %v6516, %v6517
      %v6519 = vrot.slane %v6518, 1
      %v6520 = vadd.f32 %v6518, %v6519
      %v6521 = vrot.slane %v5915, 4
      %v6522 = vadd.f32 %v5915, %v6521
      %v6523 = vrot.slane %v6522, 2
      %v6524 = vadd.f32 %v6522, %v6523
      %v6525 = vrot.slane %v6524, 1
      %v6526 = vadd.f32 %v6524, %v6525
      %v6527 = vrot.slane %v5919, 4
      %v6528 = vadd.f32 %v5919, %v6527
      %v6529 = vrot.slane %v6528, 2
      %v6530 = vadd.f32 %v6528, %v6529
      %v6531 = vrot.slane %v6530, 1
      %v6532 = vadd.f32 %v6530, %v6531
      %v6533 = vrot.slane %v5921, 4
      %v6534 = vadd.f32 %v5921, %v6533
      %v6535 = vrot.slane %v6534, 2
      %v6536 = vadd.f32 %v6534, %v6535
      %v6537 = vrot.slane %v6536, 1
      %v6538 = vadd.f32 %v6536, %v6537
      %v6539 = vrot.slane %v5925, 4
      %v6540 = vadd.f32 %v5925, %v6539
      %v6541 = vrot.slane %v6540, 2
      %v6542 = vadd.f32 %v6540, %v6541
      %v6543 = vrot.slane %v6542, 1
      %v6544 = vadd.f32 %v6542, %v6543
      %v6545 = vrot.slane %v5927, 4
      %v6546 = vadd.f32 %v5927, %v6545
      %v6547 = vrot.slane %v6546, 2
      %v6548 = vadd.f32 %v6546, %v6547
      %v6549 = vrot.slane %v6548, 1
      %v6550 = vadd.f32 %v6548, %v6549
      %v6551 = vrot.slane %v5931, 4
      %v6552 = vadd.f32 %v5931, %v6551
      %v6553 = vrot.slane %v6552, 2
      %v6554 = vadd.f32 %v6552, %v6553
      %v6555 = vrot.slane %v6554, 1
      %v6556 = vadd.f32 %v6554, %v6555
      %v6557 = vrot.slane %v5933, 4
      %v6558 = vadd.f32 %v5933, %v6557
      %v6559 = vrot.slane %v6558, 2
      %v6560 = vadd.f32 %v6558, %v6559
      %v6561 = vrot.slane %v6560, 1
      %v6562 = vadd.f32 %v6560, %v6561
      %v6563 = vrot.slane %v5937, 4
      %v6564 = vadd.f32 %v5937, %v6563
      %v6565 = vrot.slane %v6564, 2
      %v6566 = vadd.f32 %v6564, %v6565
      %v6567 = vrot.slane %v6566, 1
      %v6568 = vadd.f32 %v6566, %v6567
      %v6569 = vrot.slane %v5939, 4
      %v6570 = vadd.f32 %v5939, %v6569
      %v6571 = vrot.slane %v6570, 2
      %v6572 = vadd.f32 %v6570, %v6571
      %v6573 = vrot.slane %v6572, 1
      %v6574 = vadd.f32 %v6572, %v6573
      %v6575 = vrcp.pop 8.0
      %v6576 = vmul.f32 %v6484, %v6575
      %v6577 = vmul.f32 %v6490, %v6575
      %v6578 = vmul.f32 %v6496, %v6575
      %v6579 = vmul.f32 %v6502, %v6575
      %v6580 = vmul.f32 %v6508, %v6575
      %v6581 = vmul.f32 %v6514, %v6575
      %v6582 = vmul.f32 %v6520, %v6575
      %v6583 = vmul.f32 %v6526, %v6575
      %v6584 = vmul.f32 %v6532, %v6575
      %v6585 = vmul.f32 %v6538, %v6575
      %v6586 = vmul.f32 %v6544, %v6575
      %v6587 = vmul.f32 %v6550, %v6575
      %v6588 = vmul.f32 %v6556, %v6575
      %v6589 = vmul.f32 %v6562, %v6575
      %v6590 = vmul.f32 %v6568, %v6575
      %v6591 = vmul.f32 %v6574, %v6575
      %v6592 = vrot.slane %v5895, 4
      %v6593 = vmax.f32 %v5895, %v6592
      %v6594 = vrot.slane %v6593, 2
      %v6595 = vmax.f32 %v6593, %v6594
      %v6596 = vrot.slane %v6595, 1
      %v6597 = vmax.f32 %v6595, %v6596
      %v6598 = vrot.slane %v5897, 4
      %v6599 = vmax.f32 %v5897, %v6598
      %v6600 = vrot.slane %v6599, 2
      %v6601 = vmax.f32 %v6599, %v6600
      %v6602 = vrot.slane %v6601, 1
      %v6603 = vmax.f32 %v6601, %v6602
      %v6604 = vrot.slane %v5901, 4
      %v6605 = vmax.f32 %v5901, %v6604
      %v6606 = vrot.slane %v6605, 2
      %v6607 = vmax.f32 %v6605, %v6606
      %v6608 = vrot.slane %v6607, 1
      %v6609 = vmax.f32 %v6607, %v6608
      %v6610 = vrot.slane %v5903, 4
      %v6611 = vmax.f32 %v5903, %v6610
      %v6612 = vrot.slane %v6611, 2
      %v6613 = vmax.f32 %v6611, %v6612
      %v6614 = vrot.slane %v6613, 1
      %v6615 = vmax.f32 %v6613, %v6614
      %v6616 = vrot.slane %v5907, 4
      %v6617 = vmax.f32 %v5907, %v6616
      %v6618 = vrot.slane %v6617, 2
      %v6619 = vmax.f32 %v6617, %v6618
      %v6620 = vrot.slane %v6619, 1
      %v6621 = vmax.f32 %v6619, %v6620
      %v6622 = vrot.slane %v5909, 4
      %v6623 = vmax.f32 %v5909, %v6622
      %v6624 = vrot.slane %v6623, 2
      %v6625 = vmax.f32 %v6623, %v6624
      %v6626 = vrot.slane %v6625, 1
      %v6627 = vmax.f32 %v6625, %v6626
      %v6628 = vrot.slane %v5913, 4
      %v6629 = vmax.f32 %v5913, %v6628
      %v6630 = vrot.slane %v6629, 2
      %v6631 = vmax.f32 %v6629, %v6630
      %v6632 = vrot.slane %v6631, 1
      %v6633 = vmax.f32 %v6631, %v6632
      %v6634 = vrot.slane %v5915, 4
      %v6635 = vmax.f32 %v5915, %v6634
      %v6636 = vrot.slane %v6635, 2
      %v6637 = vmax.f32 %v6635, %v6636
      %v6638 = vrot.slane %v6637, 1
      %v6639 = vmax.f32 %v6637, %v6638
      %v6640 = vrot.slane %v5919, 4
      %v6641 = vmax.f32 %v5919, %v6640
      %v6642 = vrot.slane %v6641, 2
      %v6643 = vmax.f32 %v6641, %v6642
      %v6644 = vrot.slane %v6643, 1
      %v6645 = vmax.f32 %v6643, %v6644
      %v6646 = vrot.slane %v5921, 4
      %v6647 = vmax.f32 %v5921, %v6646
      %v6648 = vrot.slane %v6647, 2
      %v6649 = vmax.f32 %v6647, %v6648
      %v6650 = vrot.slane %v6649, 1
      %v6651 = vmax.f32 %v6649, %v6650
      %v6652 = vrot.slane %v5925, 4
      %v6653 = vmax.f32 %v5925, %v6652
      %v6654 = vrot.slane %v6653, 2
      %v6655 = vmax.f32 %v6653, %v6654
      %v6656 = vrot.slane %v6655, 1
      %v6657 = vmax.f32 %v6655, %v6656
      %v6658 = vrot.slane %v5927, 4
      %v6659 = vmax.f32 %v5927, %v6658
      %v6660 = vrot.slane %v6659, 2
      %v6661 = vmax.f32 %v6659, %v6660
      %v6662 = vrot.slane %v6661, 1
      %v6663 = vmax.f32 %v6661, %v6662
      %v6664 = vrot.slane %v5931, 4
      %v6665 = vmax.f32 %v5931, %v6664
      %v6666 = vrot.slane %v6665, 2
      %v6667 = vmax.f32 %v6665, %v6666
      %v6668 = vrot.slane %v6667, 1
      %v6669 = vmax.f32 %v6667, %v6668
      %v6670 = vrot.slane %v5933, 4
      %v6671 = vmax.f32 %v5933, %v6670
      %v6672 = vrot.slane %v6671, 2
      %v6673 = vmax.f32 %v6671, %v6672
      %v6674 = vrot.slane %v6673, 1
      %v6675 = vmax.f32 %v6673, %v6674
      %v6676 = vrot.slane %v5937, 4
      %v6677 = vmax.f32 %v5937, %v6676
      %v6678 = vrot.slane %v6677, 2
      %v6679 = vmax.f32 %v6677, %v6678
      %v6680 = vrot.slane %v6679, 1
      %v6681 = vmax.f32 %v6679, %v6680
      %v6682 = vrot.slane %v5939, 4
      %v6683 = vmax.f32 %v5939, %v6682
      %v6684 = vrot.slane %v6683, 2
      %v6685 = vmax.f32 %v6683, %v6684
      %v6686 = vrot.slane %v6685, 1
      %v6687 = vmax.f32 %v6685, %v6686
      %vm6704 = vcmask 1041409
      %v6705 = vsel %vm6704, %v6578, %v6576
      %vm6706 = vcmask 1042434
      %v6707 = vsel %vm6706, %v6580, %v6705
      %vm6708 = vcmask 1043459
      %v6709 = vsel %vm6708, %v6582, %v6707
      %vm6710 = vcmask 1044484
      %v6711 = vsel %vm6710, %v6584, %v6709
      %vm6712 = vcmask 1045509
      %v6713 = vsel %vm6712, %v6586, %v6711
      %vm6714 = vcmask 1046534
      %v6715 = vsel %vm6714, %v6588, %v6713
      %vm6716 = vcmask 1047559
      %v6717 = vsel %vm6716, %v6590, %v6715
      %v6718 = vsel %vm6704, %v6579, %v6577
      %v6719 = vsel %vm6706, %v6581, %v6718
      %v6720 = vsel %vm6708, %v6583, %v6719
      %v6721 = vsel %vm6710, %v6585, %v6720
      %v6722 = vsel %vm6712, %v6587, %v6721
      %v6723 = vsel %vm6714, %v6589, %v6722
      %v6724 = vsel %vm6716, %v6591, %v6723
      %6727 = vst [vmem:[%s1154] sm:$0xff] %v6717
      %6728 = vst [vmem:[%s1154 + $0x8] sm:$0xff] %v6724
      %v6729 = vld [vmem:[%s33] sm:$0xff]
      %v6730 = vld [vmem:[%s33 + $0x8] sm:$0xff]
      %v6731 = vld [vmem:[%s33 + $0x10] sm:$0xff]
      %v6732 = vld [vmem:[%s33 + $0x18] sm:$0xff]
      %v6733 = vld [vmem:[%s33 + $0x20] sm:$0xff]
      %v6734 = vld [vmem:[%s33 + $0x28] sm:$0xff]
      %v6735 = vld [vmem:[%s33 + $0x30] sm:$0xff]
      %v6736 = vld [vmem:[%s33 + $0x38] sm:$0xff]
      %v6737 = vld [vmem:[%s33 + $0x40] sm:$0xff]
      %v6738 = vld [vmem:[%s33 + $0x48] sm:$0xff]
      %v6739 = vld [vmem:[%s33 + $0x50] sm:$0xff]
      %v6740 = vld [vmem:[%s33 + $0x58] sm:$0xff]
      %v6741 = vld [vmem:[%s33 + $0x60] sm:$0xff]
      %v6742 = vld [vmem:[%s33 + $0x68] sm:$0xff]
      %v6743 = vld [vmem:[%s33 + $0x70] sm:$0xff]
      %v6744 = vld [vmem:[%s33 + $0x78] sm:$0xff]
      %v6745 = vld [vmem:[%s33 + $0x80] sm:$0xff]
      %v6746 = vld [vmem:[%s33 + $0x88] sm:$0xff]
      %v6747 = vld [vmem:[%s33 + $0x90] sm:$0xff]
      %v6748 = vld [vmem:[%s33 + $0x98] sm:$0xff]
      %v6749 = vld [vmem:[%s33 + $0xa0] sm:$0xff]
      %v6750 = vld [vmem:[%s33 + $0xa8] sm:$0xff]
      %v6751 = vld [vmem:[%s33 + $0xb0] sm:$0xff]
      %v6752 = vld [vmem:[%s33 + $0xb8] sm:$0xff]
      %v6753 = vld [vmem:[%s33 + $0xc0] sm:$0xff]
      %v6754 = vld [vmem:[%s33 + $0xc8] sm:$0xff]
      %v6755 = vld [vmem:[%s33 + $0xd0] sm:$0xff]
      %v6756 = vld [vmem:[%s33 + $0xd8] sm:$0xff]
      %v6757 = vld [vmem:[%s33 + $0xe0] sm:$0xff]
      %v6758 = vld [vmem:[%s33 + $0xe8] sm:$0xff]
      %v6759 = vld [vmem:[%s33 + $0xf0] sm:$0xff]
      %v6760 = vld [vmem:[%s33 + $0xf8] sm:$0xff]
      %v6761 = vld [vmem:[%s33 + $0x100] sm:$0xff]
      %v6762 = vld [vmem:[%s33 + $0x108] sm:$0xff]
      %v6763 = vld [vmem:[%s33 + $0x110] sm:$0xff]
      %v6764 = vld [vmem:[%s33 + $0x118] sm:$0xff]
      %v6765 = vld [vmem:[%s33 + $0x120] sm:$0xff]
      %v6766 = vld [vmem:[%s33 + $0x128] sm:$0xff]
      %v6767 = vld [vmem:[%s33 + $0x130] sm:$0xff]
      %v6768 = vld [vmem:[%s33 + $0x138] sm:$0xff]
      %v6769 = vld [vmem:[%s33 + $0x140] sm:$0xff]
      %v6770 = vld [vmem:[%s33 + $0x148] sm:$0xff]
      %v6771 = vld [vmem:[%s33 + $0x150] sm:$0xff]
      %v6772 = vld [vmem:[%s33 + $0x158] sm:$0xff]
      %v6773 = vld [vmem:[%s33 + $0x160] sm:$0xff]
      %v6774 = vld [vmem:[%s33 + $0x168] sm:$0xff]
      %v6775 = vld [vmem:[%s33 + $0x170] sm:$0xff]
      %v6776 = vld [vmem:[%s33 + $0x178] sm:$0xff]
      %v6777 = vld [vmem:[%s33 + $0x180] sm:$0xff]
      %v6778 = vld [vmem:[%s33 + $0x188] sm:$0xff]
      %v6779 = vld [vmem:[%s33 + $0x190] sm:$0xff]
      %v6780 = vld [vmem:[%s33 + $0x198] sm:$0xff]
      %v6781 = vld [vmem:[%s33 + $0x1a0] sm:$0xff]
      %v6782 = vld [vmem:[%s33 + $0x1a8] sm:$0xff]
      %v6783 = vld [vmem:[%s33 + $0x1b0] sm:$0xff]
      %v6784 = vld [vmem:[%s33 + $0x1b8] sm:$0xff]
      %v6785 = vld [vmem:[%s33 + $0x1c0] sm:$0xff]
      %v6786 = vld [vmem:[%s33 + $0x1c8] sm:$0xff]
      %v6787 = vld [vmem:[%s33 + $0x1d0] sm:$0xff]
      %v6788 = vld [vmem:[%s33 + $0x1d8] sm:$0xff]
      %v6789 = vld [vmem:[%s33 + $0x1e0] sm:$0xff]
      %v6790 = vld [vmem:[%s33 + $0x1e8] sm:$0xff]
      %v6791 = vld [vmem:[%s33 + $0x1f0] sm:$0xff]
      %v6792 = vld [vmem:[%s33 + $0x1f8] sm:$0xff]
      %v6793 = vld [vmem:[%s33 + $0x200] sm:$0xff]
      %v6794 = vld [vmem:[%s33 + $0x208] sm:$0xff]
      %v6795 = vld [vmem:[%s33 + $0x210] sm:$0xff]
      %v6796 = vld [vmem:[%s33 + $0x218] sm:$0xff]
      %v6797 = vld [vmem:[%s33 + $0x220] sm:$0xff]
      %v6798 = vld [vmem:[%s33 + $0x228] sm:$0xff]
      %v6799 = vld [vmem:[%s33 + $0x230] sm:$0xff]
      %v6800 = vld [vmem:[%s33 + $0x238] sm:$0xff]
      %v6801 = vld [vmem:[%s33 + $0x240] sm:$0xff]
      %v6802 = vld [vmem:[%s33 + $0x248] sm:$0xff]
      %v6803 = vld [vmem:[%s33 + $0x250] sm:$0xff]
      %v6804 = vld [vmem:[%s33 + $0x258] sm:$0xff]
      %v6805 = vld [vmem:[%s33 + $0x260] sm:$0xff]
      %v6806 = vld [vmem:[%s33 + $0x268] sm:$0xff]
      %v6807 = vld [vmem:[%s33 + $0x270] sm:$0xff]
      %v6808 = vld [vmem:[%s33 + $0x278] sm:$0xff]
      %v6809 = vld [vmem:[%s33 + $0x280] sm:$0xff]
      %v6810 = vld [vmem:[%s33 + $0x288] sm:$0xff]
      %v6811 = vld [vmem:[%s33 + $0x290] sm:$0xff]
      %v6812 = vld [vmem:[%s33 + $0x298] sm:$0xff]
      %v6813 = vld [vmem:[%s33 + $0x2a0] sm:$0xff]
      %v6814 = vld [vmem:[%s33 + $0x2a8] sm:$0xff]
      %v6815 = vld [vmem:[%s33 + $0x2b0] sm:$0xff]
      %v6816 = vld [vmem:[%s33 + $0x2b8] sm:$0xff]
      %v6817 = vld [vmem:[%s33 + $0x2c0] sm:$0xff]
      %v6818 = vld [vmem:[%s33 + $0x2c8] sm:$0xff]
      %v6819 = vld [vmem:[%s33 + $0x2d0] sm:$0xff]
      %v6820 = vld [vmem:[%s33 + $0x2d8] sm:$0xff]
      %v6821 = vld [vmem:[%s33 + $0x2e0] sm:$0xff]
      %v6822 = vld [vmem:[%s33 + $0x2e8] sm:$0xff]
      %v6823 = vld [vmem:[%s33 + $0x2f0] sm:$0xff]
      %v6824 = vld [vmem:[%s33 + $0x2f8] sm:$0xff]
      %v6825 = vld [vmem:[%s33 + $0x300] sm:$0xff]
      %v6826 = vld [vmem:[%s33 + $0x308] sm:$0xff]
      %v6827 = vld [vmem:[%s33 + $0x310] sm:$0xff]
      %v6828 = vld [vmem:[%s33 + $0x318] sm:$0xff]
      %v6829 = vld [vmem:[%s33 + $0x320] sm:$0xff]
      %v6830 = vld [vmem:[%s33 + $0x328] sm:$0xff]
      %v6831 = vld [vmem:[%s33 + $0x330] sm:$0xff]
      %v6832 = vld [vmem:[%s33 + $0x338] sm:$0xff]
      %v6833 = vld [vmem:[%s33 + $0x340] sm:$0xff]
      %v6834 = vld [vmem:[%s33 + $0x348] sm:$0xff]
      %v6835 = vld [vmem:[%s33 + $0x350] sm:$0xff]
      %v6836 = vld [vmem:[%s33 + $0x358] sm:$0xff]
      %v6837 = vld [vmem:[%s33 + $0x360] sm:$0xff]
      %v6838 = vld [vmem:[%s33 + $0x368] sm:$0xff]
      %v6839 = vld [vmem:[%s33 + $0x370] sm:$0xff]
      %v6840 = vld [vmem:[%s33 + $0x378] sm:$0xff]
      %v6841 = vld [vmem:[%s33 + $0x380] sm:$0xff]
      %v6842 = vld [vmem:[%s33 + $0x388] sm:$0xff]
      %v6843 = vld [vmem:[%s33 + $0x390] sm:$0xff]
      %v6844 = vld [vmem:[%s33 + $0x398] sm:$0xff]
      %v6845 = vld [vmem:[%s33 + $0x3a0] sm:$0xff]
      %v6846 = vld [vmem:[%s33 + $0x3a8] sm:$0xff]
      %v6847 = vld [vmem:[%s33 + $0x3b0] sm:$0xff]
      %v6848 = vld [vmem:[%s33 + $0x3b8] sm:$0xff]
      %v6849 = vld [vmem:[%s33 + $0x3c0] sm:$0xff]
      %v6850 = vld [vmem:[%s33 + $0x3c8] sm:$0xff]
      %v6851 = vld [vmem:[%s33 + $0x3d0] sm:$0xff]
      %v6852 = vld [vmem:[%s33 + $0x3d8] sm:$0xff]
      %v6853 = vld [vmem:[%s33 + $0x3e0] sm:$0xff]
      %v6854 = vld [vmem:[%s33 + $0x3e8] sm:$0xff]
      %v6855 = vld [vmem:[%s33 + $0x3f0] sm:$0xff]
      %v6856 = vld [vmem:[%s33 + $0x3f8] sm:$0xff]
      %v6857 = vld [vmem:[%s35] sm:$0xf]
      %v6859 = vlaneseq
      %v6860 = vshrl.u32 %v6859, 7
      %v6861 = vsub.s32 0, %v6860
      %v6862 = vrot.slane %v6857, %v6861
      %v6863 = vlaneseq
      %v6864 = vshrl.u32 %v6863, 7
      %v6865 = vsub.s32 1, %v6864
      %v6866 = vrot.slane %v6857, %v6865
      %v6867 = vlaneseq
      %v6868 = vshrl.u32 %v6867, 7
      %v6869 = vsub.s32 2, %v6868
      %v6870 = vrot.slane %v6857, %v6869
      %v6871 = vlaneseq
      %v6872 = vshrl.u32 %v6871, 7
      %v6873 = vsub.s32 3, %v6872
      %v6874 = vrot.slane %v6857, %v6873
      %6879 = vmatprep.subr.mxu0 %v6730
      %6880 = vmatpush1.msra.mxu0 %v6729
      %6881 = vmatprep.subr.mxu0 %v6734
      %6882 = vmatpush1.msra.mxu0 %v6733
      %6883 = vmatprep.subr.mxu0 %v6738
      %6884 = vmatpush1.msra.mxu0 %v6737
      %6885 = vmatprep.subr.mxu0 %v6742
      %6886 = vmatpush1.msra.mxu0 %v6741
      %6887 = vmatprep.subr.mxu0 %v6746
      %6888 = vmatpush1.msra.mxu0 %v6745
      %6889 = vmatprep.subr.mxu0 %v6750
      %6890 = vmatpush1.msra.mxu0 %v6749
      %6891 = vmatprep.subr.mxu0 %v6754
      %6892 = vmatpush1.msra.mxu0 %v6753
      %6893 = vmatprep.subr.mxu0 %v6758
      %6894 = vmatpush1.msra.mxu0 %v6757
      %6895 = vmatprep.subr.mxu0 %v6762
      %6896 = vmatpush1.msra.mxu0 %v6761
      %6897 = vmatprep.subr.mxu0 %v6766
      %6898 = vmatpush1.msra.mxu0 %v6765
      %6899 = vmatprep.subr.mxu0 %v6770
      %6900 = vmatpush1.msra.mxu0 %v6769
      %6901 = vmatprep.subr.mxu0 %v6774
      %6902 = vmatpush1.msra.mxu0 %v6773
      %6903 = vmatprep.subr.mxu0 %v6778
      %6904 = vmatpush1.msra.mxu0 %v6777
      %6905 = vmatprep.subr.mxu0 %v6782
      %6906 = vmatpush1.msra.mxu0 %v6781
      %6907 = vmatprep.subr.mxu0 %v6786
      %6908 = vmatpush1.msra.mxu0 %v6785
      %6909 = vmatprep.subr.mxu0 %v6790
      %6910 = vmatpush1.msra.mxu0 %v6789
      %6911 = vmatprep.subr.mxu0 %v6794
      %6912 = vmatpush1.msra.mxu0 %v6793
      %6913 = vmatprep.subr.mxu0 %v6798
      %6914 = vmatpush1.msra.mxu0 %v6797
      %6915 = vmatprep.subr.mxu0 %v6802
      %6916 = vmatpush1.msra.mxu0 %v6801
      %6917 = vmatprep.subr.mxu0 %v6806
      %6918 = vmatpush1.msra.mxu0 %v6805
      %6919 = vmatprep.subr.mxu0 %v6810
      %6920 = vmatpush1.msra.mxu0 %v6809
      %6921 = vmatprep.subr.mxu0 %v6814
      %6922 = vmatpush1.msra.mxu0 %v6813
      %6923 = vmatprep.subr.mxu0 %v6818
      %6924 = vmatpush1.msra.mxu0 %v6817
      %6925 = vmatprep.subr.mxu0 %v6822
      %6926 = vmatpush1.msra.mxu0 %v6821
      %6927 = vmatprep.subr.mxu0 %v6826
      %6928 = vmatpush1.msra.mxu0 %v6825
      %6929 = vmatprep.subr.mxu0 %v6830
      %6930 = vmatpush1.msra.mxu0 %v6829
      %6931 = vmatprep.subr.mxu0 %v6834
      %6932 = vmatpush1.msra.mxu0 %v6833
      %6933 = vmatprep.subr.mxu0 %v6838
      %6934 = vmatpush1.msra.mxu0 %v6837
      %6935 = vmatprep.subr.mxu0 %v6842
      %6936 = vmatpush1.msra.mxu0 %v6841
      %6937 = vmatprep.subr.mxu0 %v6846
      %6938 = vmatpush1.msra.mxu0 %v6845
      %6939 = vmatprep.subr.mxu0 %v6850
      %6940 = vmatpush1.msra.mxu0 %v6849
      %6941 = vmatprep.subr.mxu0 %v6854
      %6942 = vmatpush1.msra.mxu0 %v6853
      %6943 = vmatprep.mubr.f32.mxu0 %v6724
      %6944 = vmatmul.mubr.f32.gmra.mrb[0].mxu0 %v6717
      %v6945 = vpop.f32.mrb[0].mxu0
      %v6946 = vadd.f32 %v6862, %v6945
      %v6947 = vpop.f32.mrb[0].mxu0
      %v6948 = vadd.f32 %v6866, %v6947
      %6949 = vdwg.mxu0
      %6950 = vmatprep.subr.mxu0 %v6732
      %6951 = vmatpush1.msra.mxu0 %v6731
      %6952 = vmatprep.subr.mxu0 %v6736
      %6953 = vmatpush1.msra.mxu0 %v6735
      %6954 = vmatprep.subr.mxu0 %v6740
      %6955 = vmatpush1.msra.mxu0 %v6739
      %6956 = vmatprep.subr.mxu0 %v6744
      %6957 = vmatpush1.msra.mxu0 %v6743
      %6958 = vmatprep.subr.mxu0 %v6748
      %6959 = vmatpush1.msra.mxu0 %v6747
      %6960 = vmatprep.subr.mxu0 %v6752
      %6961 = vmatpush1.msra.mxu0 %v6751
      %6962 = vmatprep.subr.mxu0 %v6756
      %6963 = vmatpush1.msra.mxu0 %v6755
      %6964 = vmatprep.subr.mxu0 %v6760
      %6965 = vmatpush1.msra.mxu0 %v6759
      %6966 = vmatprep.subr.mxu0 %v6764
      %6967 = vmatpush1.msra.mxu0 %v6763
      %6968 = vmatprep.subr.mxu0 %v6768
      %6969 = vmatpush1.msra.mxu0 %v6767
      %6970 = vmatprep.subr.mxu0 %v6772
      %6971 = vmatpush1.msra.mxu0 %v6771
      %6972 = vmatprep.subr.mxu0 %v6776
      %6973 = vmatpush1.msra.mxu0 %v6775
      %6974 = vmatprep.subr.mxu0 %v6780
      %6975 = vmatpush1.msra.mxu0 %v6779
      %6976 = vmatprep.subr.mxu0 %v6784
      %6977 = vmatpush1.msra.mxu0 %v6783
      %6978 = vmatprep.subr.mxu0 %v6788
      %6979 = vmatpush1.msra.mxu0 %v6787
      %6980 = vmatprep.subr.mxu0 %v6792
      %6981 = vmatpush1.msra.mxu0 %v6791
      %6982 = vmatprep.subr.mxu0 %v6796
      %6983 = vmatpush1.msra.mxu0 %v6795
      %6984 = vmatprep.subr.mxu0 %v6800
      %6985 = vmatpush1.msra.mxu0 %v6799
      %6986 = vmatprep.subr.mxu0 %v6804
      %6987 = vmatpush1.msra.mxu0 %v6803
      %6988 = vmatprep.subr.mxu0 %v6808
      %6989 = vmatpush1.msra.mxu0 %v6807
      %6990 = vmatprep.subr.mxu0 %v6812
      %6991 = vmatpush1.msra.mxu0 %v6811
      %6992 = vmatprep.subr.mxu0 %v6816
      %6993 = vmatpush1.msra.mxu0 %v6815
      %6994 = vmatprep.subr.mxu0 %v6820
      %6995 = vmatpush1.msra.mxu0 %v6819
      %6996 = vmatprep.subr.mxu0 %v6824
      %6997 = vmatpush1.msra.mxu0 %v6823
      %6998 = vmatprep.subr.mxu0 %v6828
      %6999 = vmatpush1.msra.mxu0 %v6827
      %7000 = vmatprep.subr.mxu0 %v6832
      %7001 = vmatpush1.msra.mxu0 %v6831
      %7002 = vmatprep.subr.mxu0 %v6836
      %7003 = vmatpush1.msra.mxu0 %v6835
      %7004 = vmatprep.subr.mxu0 %v6840
      %7005 = vmatpush1.msra.mxu0 %v6839
      %7006 = vmatprep.subr.mxu0 %v6844
      %7007 = vmatpush1.msra.mxu0 %v6843
      %7008 = vmatprep.subr.mxu0 %v6848
      %7009 = vmatpush1.msra.mxu0 %v6847
      %7010 = vmatprep.subr.mxu0 %v6852
      %7011 = vmatpush1.msra.mxu0 %v6851
      %7012 = vmatprep.subr.mxu0 %v6856
      %7013 = vmatpush1.msra.mxu0 %v6855
      %7014 = vmatprep.mubr.f32.mxu0 %v6724
      %7015 = vmatmul.mubr.f32.gmra.mrb[0].mxu0 %v6717
      %v7016 = vpop.f32.mrb[0].mxu0
      %v7017 = vadd.f32 %v6870, %v7016
      %v7018 = vpop.f32.mrb[0].mxu0
      %v7019 = vadd.f32 %v6874, %v7018
      %7020 = vdwg.mxu0
      %v7021 = vmul.f32 %v6946, 0.5
      %v7022 = vmul.f32 %v6948, 0.5
      %v7023 = vmul.f32 %v7017, 0.5
      %v7024 = vmul.f32 %v7019, 0.5
      %v7025 = vmul.f32 %v6946, 0.70710677
      %v7026 = vmul.f32 %v6948, 0.70710677
      %v7027 = vmul.f32 %v7017, 0.70710677
      %v7028 = vmul.f32 %v7019, 0.70710677
      %v7029 = verf.f32.pop %v7025
      %v7030 = verf.f32.pop %v7026
      %v7031 = verf.f32.pop %v7027
      %v7032 = verf.f32.pop %v7028
      %v7033 = vadd.f32 %v7029, 1.0
      %v7034 = vadd.f32 %v7030, 1.0
      %v7035 = vadd.f32 %v7031, 1.0
      %v7036 = vadd.f32 %v7032, 1.0
      %v7037 = vmul.f32 %v7021, %v7033
      %v7038 = vmul.f32 %v7022, %v7034
      %v7039 = vmul.f32 %v7023, %v7035
      %v7040 = vmul.f32 %v7024, %v7036
      %v7041 = vld [vmem:[%s37] sm:$0xff]
      %v7042 = vld [vmem:[%s37 + $0x8] sm:$0xff]
      %v7043 = vld [vmem:[%s37 + $0x10] sm:$0xff]
      %v7044 = vld [vmem:[%s37 + $0x18] sm:$0xff]
      %v7045 = vld [vmem:[%s37 + $0x20] sm:$0xff]
      %v7046 = vld [vmem:[%s37 + $0x28] sm:$0xff]
      %v7047 = vld [vmem:[%s37 + $0x30] sm:$0xff]
      %v7048 = vld [vmem:[%s37 + $0x38] sm:$0xff]
      %v7049 = vld [vmem:[%s37 + $0x40] sm:$0xff]
      %v7050 = vld [vmem:[%s37 + $0x48] sm:$0xff]
      %v7051 = vld [vmem:[%s37 + $0x50] sm:$0xff]
      %v7052 = vld [vmem:[%s37 + $0x58] sm:$0xff]
      %v7053 = vld [vmem:[%s37 + $0x60] sm:$0xff]
      %v7054 = vld [vmem:[%s37 + $0x68] sm:$0xff]
      %v7055 = vld [vmem:[%s37 + $0x70] sm:$0xff]
      %v7056 = vld [vmem:[%s37 + $0x78] sm:$0xff]
      %v7057 = vld [vmem:[%s37 + $0x80] sm:$0xff]
      %v7058 = vld [vmem:[%s37 + $0x88] sm:$0xff]
      %v7059 = vld [vmem:[%s37 + $0x90] sm:$0xff]
      %v7060 = vld [vmem:[%s37 + $0x98] sm:$0xff]
      %v7061 = vld [vmem:[%s37 + $0xa0] sm:$0xff]
      %v7062 = vld [vmem:[%s37 + $0xa8] sm:$0xff]
      %v7063 = vld [vmem:[%s37 + $0xb0] sm:$0xff]
      %v7064 = vld [vmem:[%s37 + $0xb8] sm:$0xff]
      %v7065 = vld [vmem:[%s37 + $0xc0] sm:$0xff]
      %v7066 = vld [vmem:[%s37 + $0xc8] sm:$0xff]
      %v7067 = vld [vmem:[%s37 + $0xd0] sm:$0xff]
      %v7068 = vld [vmem:[%s37 + $0xd8] sm:$0xff]
      %v7069 = vld [vmem:[%s37 + $0xe0] sm:$0xff]
      %v7070 = vld [vmem:[%s37 + $0xe8] sm:$0xff]
      %v7071 = vld [vmem:[%s37 + $0xf0] sm:$0xff]
      %v7072 = vld [vmem:[%s37 + $0xf8] sm:$0xff]
      %v7073 = vld [vmem:[%s37 + $0x100] sm:$0xff]
      %v7074 = vld [vmem:[%s37 + $0x108] sm:$0xff]
      %v7075 = vld [vmem:[%s37 + $0x110] sm:$0xff]
      %v7076 = vld [vmem:[%s37 + $0x118] sm:$0xff]
      %v7077 = vld [vmem:[%s37 + $0x120] sm:$0xff]
      %v7078 = vld [vmem:[%s37 + $0x128] sm:$0xff]
      %v7079 = vld [vmem:[%s37 + $0x130] sm:$0xff]
      %v7080 = vld [vmem:[%s37 + $0x138] sm:$0xff]
      %v7081 = vld [vmem:[%s37 + $0x140] sm:$0xff]
      %v7082 = vld [vmem:[%s37 + $0x148] sm:$0xff]
      %v7083 = vld [vmem:[%s37 + $0x150] sm:$0xff]
      %v7084 = vld [vmem:[%s37 + $0x158] sm:$0xff]
      %v7085 = vld [vmem:[%s37 + $0x160] sm:$0xff]
      %v7086 = vld [vmem:[%s37 + $0x168] sm:$0xff]
      %v7087 = vld [vmem:[%s37 + $0x170] sm:$0xff]
      %v7088 = vld [vmem:[%s37 + $0x178] sm:$0xff]
      %v7089 = vld [vmem:[%s37 + $0x180] sm:$0xff]
      %v7090 = vld [vmem:[%s37 + $0x188] sm:$0xff]
      %v7091 = vld [vmem:[%s37 + $0x190] sm:$0xff]
      %v7092 = vld [vmem:[%s37 + $0x198] sm:$0xff]
      %v7093 = vld [vmem:[%s37 + $0x1a0] sm:$0xff]
      %v7094 = vld [vmem:[%s37 + $0x1a8] sm:$0xff]
      %v7095 = vld [vmem:[%s37 + $0x1b0] sm:$0xff]
      %v7096 = vld [vmem:[%s37 + $0x1b8] sm:$0xff]
      %v7097 = vld [vmem:[%s37 + $0x1c0] sm:$0xff]
      %v7098 = vld [vmem:[%s37 + $0x1c8] sm:$0xff]
      %v7099 = vld [vmem:[%s37 + $0x1d0] sm:$0xff]
      %v7100 = vld [vmem:[%s37 + $0x1d8] sm:$0xff]
      %v7101 = vld [vmem:[%s37 + $0x1e0] sm:$0xff]
      %v7102 = vld [vmem:[%s37 + $0x1e8] sm:$0xff]
      %v7103 = vld [vmem:[%s37 + $0x1f0] sm:$0xff]
      %v7104 = vld [vmem:[%s37 + $0x1f8] sm:$0xff]
      %v7105 = vld [vmem:[%s39] sm:$0x1]
      %v7107 = vlaneseq
      %v7108 = vshrl.u32 %v7107, 7
      %v7109 = vsub.s32 0, %v7108
      %v7110 = vrot.slane %v7105, %v7109
      %7112 = vmatprep.subr.mxu0 0.0
      %7113 = vmatpush1.msra.mxu0 %v7041
      %7114 = vmatprep.subr.mxu0 0.0
      %7115 = vmatpush1.msra.mxu0 %v7042
      %7116 = vmatprep.subr.mxu0 0.0
      %7117 = vmatpush1.msra.mxu0 %v7043
      %7118 = vmatprep.subr.mxu0 0.0
      %7119 = vmatpush1.msra.mxu0 %v7044
      %7120 = vmatprep.subr.mxu0 0.0
      %7121 = vmatpush1.msra.mxu0 %v7045
      %7122 = vmatprep.subr.mxu0 0.0
      %7123 = vmatpush1.msra.mxu0 %v7046
      %7124 = vmatprep.subr.mxu0 0.0
      %7125 = vmatpush1.msra.mxu0 %v7047
      %7126 = vmatprep.subr.mxu0 0.0
      %7127 = vmatpush1.msra.mxu0 %v7048
      %7128 = vmatprep.subr.mxu0 0.0
      %7129 = vmatpush1.msra.mxu0 %v7049
      %7130 = vmatprep.subr.mxu0 0.0
      %7131 = vmatpush1.msra.mxu0 %v7050
      %7132 = vmatprep.subr.mxu0 0.0
      %7133 = vmatpush1.msra.mxu0 %v7051
      %7134 = vmatprep.subr.mxu0 0.0
      %7135 = vmatpush1.msra.mxu0 %v7052
      %7136 = vmatprep.subr.mxu0 0.0
      %7137 = vmatpush1.msra.mxu0 %v7053
      %7138 = vmatprep.subr.mxu0 0.0
      %7139 = vmatpush1.msra.mxu0 %v7054
      %7140 = vmatprep.subr.mxu0 0.0
      %7141 = vmatpush1.msra.mxu0 %v7055
      %7142 = vmatprep.subr.mxu0 0.0
      %7143 = vmatpush1.msra.mxu0 %v7056
      %7144 = vmatprep.subr.mxu0 0.0
      %7145 = vmatpush1.msra.mxu0 %v7057
      %7146 = vmatprep.subr.mxu0 0.0
      %7147 = vmatpush1.msra.mxu0 %v7058
      %7148 = vmatprep.subr.mxu0 0.0
      %7149 = vmatpush1.msra.mxu0 %v7059
      %7150 = vmatprep.subr.mxu0 0.0
      %7151 = vmatpush1.msra.mxu0 %v7060
      %7152 = vmatprep.subr.mxu0 0.0
      %7153 = vmatpush1.msra.mxu0 %v7061
      %7154 = vmatprep.subr.mxu0 0.0
      %7155 = vmatpush1.msra.mxu0 %v7062
      %7156 = vmatprep.subr.mxu0 0.0
      %7157 = vmatpush1.msra.mxu0 %v7063
      %7158 = vmatprep.subr.mxu0 0.0
      %7159 = vmatpush1.msra.mxu0 %v7064
      %7160 = vmatprep.subr.mxu0 0.0
      %7161 = vmatpush1.msra.mxu0 %v7065
      %7162 = vmatprep.subr.mxu0 0.0
      %7163 = vmatpush1.msra.mxu0 %v7066
      %7164 = vmatprep.subr.mxu0 0.0
      %7165 = vmatpush1.msra.mxu0 %v7067
      %7166 = vmatprep.subr.mxu0 0.0
      %7167 = vmatpush1.msra.mxu0 %v7068
      %7168 = vmatprep.subr.mxu0 0.0
      %7169 = vmatpush1.msra.mxu0 %v7069
      %7170 = vmatprep.subr.mxu0 0.0
      %7171 = vmatpush1.msra.mxu0 %v7070
      %7172 = vmatprep.subr.mxu0 0.0
      %7173 = vmatpush1.msra.mxu0 %v7071
      %7174 = vmatprep.subr.mxu0 0.0
      %7175 = vmatpush1.msra.mxu0 %v7072
      %7176 = vmatprep.mubr.f32.mxu0 %v7038
      %7177 = vmatmul.mubr.f32.gmra.mrb[0].mxu0 %v7037
      %v7178 = vpop.f32.mrb[0].mxu0
      %v7179 = vadd.f32 %v7110, %v7178
      %v7180 = vpop.f32.mrb[0].mxu0
      %7181 = vdwg.mxu0
      %7182 = vmatprep.subr.mxu0 0.0
      %7183 = vmatpush1.msra.mxu0 %v7073
      %7184 = vmatprep.subr.mxu0 0.0
      %7185 = vmatpush1.msra.mxu0 %v7074
      %7186 = vmatprep.subr.mxu0 0.0
      %7187 = vmatpush1.msra.mxu0 %v7075
      %7188 = vmatprep.subr.mxu0 0.0
      %7189 = vmatpush1.msra.mxu0 %v7076
      %7190 = vmatprep.subr.mxu0 0.0
      %7191 = vmatpush1.msra.mxu0 %v7077
      %7192 = vmatprep.subr.mxu0 0.0
      %7193 = vmatpush1.msra.mxu0 %v7078
      %7194 = vmatprep.subr.mxu0 0.0
      %7195 = vmatpush1.msra.mxu0 %v7079
      %7196 = vmatprep.subr.mxu0 0.0
      %7197 = vmatpush1.msra.mxu0 %v7080
      %7198 = vmatprep.subr.mxu0 0.0
      %7199 = vmatpush1.msra.mxu0 %v7081
      %7200 = vmatprep.subr.mxu0 0.0
      %7201 = vmatpush1.msra.mxu0 %v7082
      %7202 = vmatprep.subr.mxu0 0.0
      %7203 = vmatpush1.msra.mxu0 %v7083
      %7204 = vmatprep.subr.mxu0 0.0
      %7205 = vmatpush1.msra.mxu0 %v7084
      %7206 = vmatprep.subr.mxu0 0.0
      %7207 = vmatpush1.msra.mxu0 %v7085
      %7208 = vmatprep.subr.mxu0 0.0
      %7209 = vmatpush1.msra.mxu0 %v7086
      %7210 = vmatprep.subr.mxu0 0.0
      %7211 = vmatpush1.msra.mxu0 %v7087
      %7212 = vmatprep.subr.mxu0 0.0
      %7213 = vmatpush1.msra.mxu0 %v7088
      %7214 = vmatprep.subr.mxu0 0.0
      %7215 = vmatpush1.msra.mxu0 %v7089
      %7216 = vmatprep.subr.mxu0 0.0
      %7217 = vmatpush1.msra.mxu0 %v7090
      %7218 = vmatprep.subr.mxu0 0.0
      %7219 = vmatpush1.msra.mxu0 %v7091
      %7220 = vmatprep.subr.mxu0 0.0
      %7221 = vmatpush1.msra.mxu0 %v7092
      %7222 = vmatprep.subr.mxu0 0.0
      %7223 = vmatpush1.msra.mxu0 %v7093
      %7224 = vmatprep.subr.mxu0 0.0
      %7225 = vmatpush1.msra.mxu0 %v7094
      %7226 = vmatprep.subr.mxu0 0.0
      %7227 = vmatpush1.msra.mxu0 %v7095
      %7228 = vmatprep.subr.mxu0 0.0
      %7229 = vmatpush1.msra.mxu0 %v7096
      %7230 = vmatprep.subr.mxu0 0.0
      %7231 = vmatpush1.msra.mxu0 %v7097
      %7232 = vmatprep.subr.mxu0 0.0
      %7233 = vmatpush1.msra.mxu0 %v7098
      %7234 = vmatprep.subr.mxu0 0.0
      %7235 = vmatpush1.msra.mxu0 %v7099
      %7236 = vmatprep.subr.mxu0 0.0
      %7237 = vmatpush1.msra.mxu0 %v7100
      %7238 = vmatprep.subr.mxu0 0.0
      %7239 = vmatpush1.msra.mxu0 %v7101
      %7240 = vmatprep.subr.mxu0 0.0
      %7241 = vmatpush1.msra.mxu0 %v7102
      %7242 = vmatprep.subr.mxu0 0.0
      %7243 = vmatpush1.msra.mxu0 %v7103
      %7244 = vmatprep.subr.mxu0 0.0
      %7245 = vmatpush1.msra.mxu0 %v7104
      %7246 = vmatprep.mubr.f32.mxu0 %v7040
      %7247 = vmatmul.mubr.f32.gmra.mrb[0].mxu0 %v7039
      %v7248 = vpop.f32.mrb[0].mxu0
      %v7249 = vadd.f32 %v7179, %v7248
      %v7250 = vpop.f32.mrb[0].mxu0
      %7251 = vdwg.mxu0
      %v7253 = vcombine.high %v7249, %v7249
      %v7255 = vunpack.c.l.s4 1966171168
      %v7256 = vunpack.c.0.s8 %v7255
      %v7257 = vlaneseq
      %v7258 = vshrl.u32 %v7257, 7
      %v7259 = vsub.s32 %v7256, %v7258
      %v7260 = vrot.slane %v7249, %v7259
      %v7262 = vunpack.c.l.s4 1966171168
      %v7263 = vunpack.c.0.s8 %v7262
      %v7264 = vlaneseq
      %v7265 = vshrl.u32 %v7264, 7
      %v7266 = vsub.s32 %v7263, %v7265
      %v7267 = vrot.slane %v7253, %v7266
      %v7268 = vcombine.high %v7260, %v7260
      %v7269 = vcombine.high %v7267, %v7267
      %v7271 = vunpack.c.l.s4 1966171168
      %v7272 = vunpack.c.0.s8 %v7271
      %v7273 = vlaneseq
      %v7274 = vshrl.u32 %v7273, 7
      %v7275 = vsub.s32 %v7272, %v7274
      %v7276 = vrot.slane %v7260, %v7275
      %v7278 = vunpack.c.l.s4 1966171168
      %v7279 = vunpack.c.0.s8 %v7278
      %v7280 = vlaneseq
      %v7281 = vshrl.u32 %v7280, 7
      %v7282 = vsub.s32 %v7279, %v7281
      %v7283 = vrot.slane %v7267, %v7282
      %v7285 = vunpack.c.l.s4 1966171168
      %v7286 = vunpack.c.0.s8 %v7285
      %v7287 = vlaneseq
      %v7288 = vshrl.u32 %v7287, 7
      %v7289 = vsub.s32 %v7286, %v7288
      %v7290 = vrot.slane %v7268, %v7289
      %v7292 = vunpack.c.l.s4 1966171168
      %v7293 = vunpack.c.0.s8 %v7292
      %v7294 = vlaneseq
      %v7295 = vshrl.u32 %v7294, 7
      %v7296 = vsub.s32 %v7293, %v7295
      %v7297 = vrot.slane %v7269, %v7296
      %v7298 = vcombine.high %v7276, %v7276
      %v7299 = vcombine.high %v7283, %v7283
      %v7300 = vcombine.high %v7290, %v7290
      %v7301 = vcombine.high %v7297, %v7297
      %v7302 = vld [vmem:[%s43] sm:$0xff]
      %v7303 = vld [vmem:[%s43 + $0x8] sm:$0xff]
      %v7304 = vld [vmem:[%s43 + $0x10] sm:$0x3]
      %v7305 = vlaneseq
      %v7306 = vshrl.u32 %v7305, 7
      %v7307 = vsub.s32 0, %v7306
      %v7308 = vrot.slane %v7276, %v7307
      %v7309 = vlaneseq
      %v7310 = vshrl.u32 %v7309, 7
      %v7311 = vsub.s32 0, %v7310
      %v7312 = vrot.slane %v7290, %v7311
      %v7313 = vlaneseq
      %v7314 = vshrl.u32 %v7313, 7
      %v7315 = vsub.s32 0, %v7314
      %v7316 = vrot.slane %v7298, %v7315
      %v7317 = vlaneseq
      %v7318 = vshrl.u32 %v7317, 7
      %v7319 = vsub.s32 0, %v7318
      %v7320 = vrot.slane %v7300, %v7319
      %v7321 = vlaneseq
      %v7322 = vshrl.u32 %v7321, 7
      %v7323 = vsub.s32 0, %v7322
      %v7324 = vrot.slane %v7283, %v7323
      %v7325 = vlaneseq
      %v7326 = vshrl.u32 %v7325, 7
      %v7327 = vsub.s32 0, %v7326
      %v7328 = vrot.slane %v7297, %v7327
      %v7329 = vlaneseq
      %v7330 = vshrl.u32 %v7329, 7
      %v7331 = vsub.s32 0, %v7330
      %v7332 = vrot.slane %v7299, %v7331
      %v7333 = vlaneseq
      %v7334 = vshrl.u32 %v7333, 7
      %v7335 = vsub.s32 0, %v7334
      %v7336 = vrot.slane %v7301, %v7335
      %v7345 = vadd.f32 %v7308, %v7302
      %v7346 = vadd.f32 %v7308, %v7303
      %v7347 = vadd.f32 %v7308, %v7304
      %v7348 = vadd.f32 %v7312, %v7302
      %v7349 = vadd.f32 %v7312, %v7303
      %v7350 = vadd.f32 %v7312, %v7304
      %v7351 = vadd.f32 %v7316, %v7302
      %v7352 = vadd.f32 %v7316, %v7303
      %v7353 = vadd.f32 %v7316, %v7304
      %v7354 = vadd.f32 %v7320, %v7302
      %v7355 = vadd.f32 %v7320, %v7303
      %v7356 = vadd.f32 %v7320, %v7304
      %v7357 = vadd.f32 %v7324, %v7302
      %v7358 = vadd.f32 %v7324, %v7303
      %v7359 = vadd.f32 %v7324, %v7304
      %v7360 = vadd.f32 %v7328, %v7302
      %v7361 = vadd.f32 %v7328, %v7303
      %v7362 = vadd.f32 %v7328, %v7304
      %v7363 = vadd.f32 %v7332, %v7302
      %v7364 = vadd.f32 %v7332, %v7303
      %v7365 = vadd.f32 %v7332, %v7304
      %v7366 = vadd.f32 %v7336, %v7302
      %v7367 = vadd.f32 %v7336, %v7303
      %v7368 = vadd.f32 %v7336, %v7304
      %vm7369 = vcmask 146432
      %v7370 = vsel %vm7369, %v7345, -inf
      %7371 = vmax.xlane.f32.xlu0 %v7370
      %v7372 = vpop.xlane.xlu0 %7371
      %v7373 = vsel %vm7369, %v7346, -inf
      %7374 = vmax.xlane.f32.xlu0 %v7373
      %v7375 = vpop.xlane.xlu0 %7374
      %vm7376 = vcmask 140288
      %v7377 = vsel %vm7376, %v7347, -inf
      %7378 = vmax.xlane.f32.xlu0 %v7377
      %v7379 = vpop.xlane.xlu0 %7378
      %v7380 = vsel %vm7369, %v7348, -inf
      %7381 = vmax.xlane.f32.xlu0 %v7380
      %v7382 = vpop.xlane.xlu0 %7381
      %v7383 = vsel %vm7369, %v7349, -inf
      %7384 = vmax.xlane.f32.xlu0 %v7383
      %v7385 = vpop.xlane.xlu0 %7384
      %v7386 = vsel %vm7376, %v7350, -inf
      %7387 = vmax.xlane.f32.xlu0 %v7386
      %v7388 = vpop.xlane.xlu0 %7387
      %v7389 = vsel %vm7369, %v7351, -inf
      %7390 = vmax.xlane.f32.xlu0 %v7389
      %v7391 = vpop.xlane.xlu0 %7390
      %v7392 = vsel %vm7369, %v7352, -inf
      %7393 = vmax.xlane.f32.xlu0 %v7392
      %v7394 = vpop.xlane.xlu0 %7393
      %v7395 = vsel %vm7376, %v7353, -inf
      %7396 = vmax.xlane.f32.xlu0 %v7395
      %v7397 = vpop.xlane.xlu0 %7396
      %v7398 = vsel %vm7369, %v7354, -inf
      %7399 = vmax.xlane.f32.xlu0 %v7398
      %v7400 = vpop.xlane.xlu0 %7399
      %v7401 = vsel %vm7369, %v7355, -inf
      %7402 = vmax.xlane.f32.xlu0 %v7401
      %v7403 = vpop.xlane.xlu0 %7402
      %v7404 = vsel %vm7376, %v7356, -inf
      %7405 = vmax.xlane.f32.xlu0 %v7404
      %v7406 = vpop.xlane.xlu0 %7405
      %v7407 = vsel %vm7369, %v7357, -inf
      %7408 = vmax.xlane.f32.xlu0 %v7407
      %v7409 = vpop.xlane.xlu0 %7408
      %v7410 = vsel %vm7369, %v7358, -inf
      %7411 = vmax.xlane.f32.xlu0 %v7410
      %v7412 = vpop.xlane.xlu0 %7411
      %v7413 = vsel %vm7376, %v7359, -inf
      %7414 = vmax.xlane.f32.xlu0 %v7413
      %v7415 = vpop.xlane.xlu0 %7414
      %v7416 = vsel %vm7369, %v7360, -inf
      %7417 = vmax.xlane.f32.xlu0 %v7416
      %v7418 = vpop.xlane.xlu0 %7417
      %v7419 = vsel %vm7369, %v7361, -inf
      %7420 = vmax.xlane.f32.xlu0 %v7419
      %v7421 = vpop.xlane.xlu0 %7420
      %v7422 = vsel %vm7376, %v7362, -inf
      %7423 = vmax.xlane.f32.xlu0 %v7422
      %v7424 = vpop.xlane.xlu0 %7423
      %v7425 = vsel %vm7369, %v7363, -inf
      %7426 = vmax.xlane.f32.xlu0 %v7425
      %v7427 = vpop.xlane.xlu0 %7426
      %v7428 = vsel %vm7369, %v7364, -inf
      %7429 = vmax.xlane.f32.xlu0 %v7428
      %v7430 = vpop.xlane.xlu0 %7429
      %v7431 = vsel %vm7376, %v7365, -inf
      %7432 = vmax.xlane.f32.xlu0 %v7431
      %v7433 = vpop.xlane.xlu0 %7432
      %v7434 = vsel %vm7369, %v7366, -inf
      %7435 = vmax.xlane.f32.xlu0 %v7434
      %v7436 = vpop.xlane.xlu0 %7435
      %v7437 = vsel %vm7369, %v7367, -inf
      %7438 = vmax.xlane.f32.xlu0 %v7437
      %v7439 = vpop.xlane.xlu0 %7438
      %v7440 = vsel %vm7376, %v7368, -inf
      %7441 = vmax.xlane.f32.xlu0 %v7440
      %v7442 = vpop.xlane.xlu0 %7441
      %v7467 = vlaneseq
      %v7468 = vand.u32 %v7467, 127
      %v7469 = vlaneseq
      %v7470 = vshrl.u32 %v7469, 7
      %v7471 = vsub.s32 %v7468, %v7470
      %v7472 = vrot.slane %v7372, %v7471
      %v7473 = vadd.s32 %v7468, 4294967288
      %v7474 = vlaneseq
      %v7475 = vshrl.u32 %v7474, 7
      %v7476 = vsub.s32 %v7473, %v7475
      %v7477 = vrot.slane %v7375, %v7476
      %vm7478 = vcmask 130112
      %v7479 = vsel %vm7478, %v7477, %v7472
      %v7480 = vadd.s32 %v7468, 4294967280
      %v7481 = vlaneseq
      %v7482 = vshrl.u32 %v7481, 7
      %v7483 = vsub.s32 %v7480, %v7482
      %v7484 = vrot.slane %v7379, %v7483
      %vm7485 = vcmask 195712
      %v7486 = vsel %vm7485, %v7484, %v7479
      %v7487 = vlaneseq
      %v7488 = vshrl.u32 %v7487, 7
      %v7489 = vsub.s32 %v7468, %v7488
      %v7490 = vrot.slane %v7382, %v7489
      %v7491 = vlaneseq
      %v7492 = vshrl.u32 %v7491, 7
      %v7493 = vsub.s32 %v7473, %v7492
      %v7494 = vrot.slane %v7385, %v7493
      %v7495 = vsel %vm7478, %v7494, %v7490
      %v7496 = vlaneseq
      %v7497 = vshrl.u32 %v7496, 7
      %v7498 = vsub.s32 %v7480, %v7497
      %v7499 = vrot.slane %v7388, %v7498
      %v7500 = vsel %vm7485, %v7499, %v7495
      %v7501 = vlaneseq
      %v7502 = vshrl.u32 %v7501, 7
      %v7503 = vsub.s32 %v7468, %v7502
      %v7504 = vrot.slane %v7391, %v7503
      %v7505 = vlaneseq
      %v7506 = vshrl.u32 %v7505, 7
      %v7507 = vsub.s32 %v7473, %v7506
      %v7508 = vrot.slane %v7394, %v7507
      %v7509 = vsel %vm7478, %v7508, %v7504
      %v7510 = vlaneseq
      %v7511 = vshrl.u32 %v7510, 7
      %v7512 = vsub.s32 %v7480, %v7511
      %v7513 = vrot.slane %v7397, %v7512
      %v7514 = vsel %vm7485, %v7513, %v7509
      %v7515 = vlaneseq
      %v7516 = vshrl.u32 %v7515, 7
      %v7517 = vsub.s32 %v7468, %v7516
      %v7518 = vrot.slane %v7400, %v7517
      %v7519 = vlaneseq
      %v7520 = vshrl.u32 %v7519, 7
      %v7521 = vsub.s32 %v7473, %v7520
      %v7522 = vrot.slane %v7403, %v7521
      %v7523 = vsel %vm7478, %v7522, %v7518
      %v7524 = vlaneseq
      %v7525 = vshrl.u32 %v7524, 7
      %v7526 = vsub.s32 %v7480, %v7525
      %v7527 = vrot.slane %v7406, %v7526
      %v7528 = vsel %vm7485, %v7527, %v7523
      %v7529 = vlaneseq
      %v7530 = vshrl.u32 %v7529, 7
      %v7531 = vsub.s32 %v7468, %v7530
      %v7532 = vrot.slane %v7409, %v7531
      %v7533 = vlaneseq
      %v7534 = vshrl.u32 %v7533, 7
      %v7535 = vsub.s32 %v7473, %v7534
      %v7536 = vrot.slane %v7412, %v7535
      %v7537 = vsel %vm7478, %v7536, %v7532
      %v7538 = vlaneseq
      %v7539 = vshrl.u32 %v7538, 7
      %v7540 = vsub.s32 %v7480, %v7539
      %v7541 = vrot.slane %v7415, %v7540
      %v7542 = vsel %vm7485, %v7541, %v7537
      %v7543 = vlaneseq
      %v7544 = vshrl.u32 %v7543, 7
      %v7545 = vsub.s32 %v7468, %v7544
      %v7546 = vrot.slane %v7418, %v7545
      %v7547 = vlaneseq
      %v7548 = vshrl.u32 %v7547, 7
      %v7549 = vsub.s32 %v7473, %v7548
      %v7550 = vrot.slane %v7421, %v7549
      %v7551 = vsel %vm7478, %v7550, %v7546
      %v7552 = vlaneseq
      %v7553 = vshrl.u32 %v7552, 7
      %v7554 = vsub.s32 %v7480, %v7553
      %v7555 = vrot.slane %v7424, %v7554
      %v7556 = vsel %vm7485, %v7555, %v7551
      %v7557 = vlaneseq
      %v7558 = vshrl.u32 %v7557, 7
      %v7559 = vsub.s32 %v7468, %v7558
      %v7560 = vrot.slane %v7427, %v7559
      %v7561 = vlaneseq
      %v7562 = vshrl.u32 %v7561, 7
      %v7563 = vsub.s32 %v7473, %v7562
      %v7564 = vrot.slane %v7430, %v7563
      %v7565 = vsel %vm7478, %v7564, %v7560
      %v7566 = vlaneseq
      %v7567 = vshrl.u32 %v7566, 7
      %v7568 = vsub.s32 %v7480, %v7567
      %v7569 = vrot.slane %v7433, %v7568
      %v7570 = vsel %vm7485, %v7569, %v7565
      %v7571 = vlaneseq
      %v7572 = vshrl.u32 %v7571, 7
      %v7573 = vsub.s32 %v7468, %v7572
      %v7574 = vrot.slane %v7436, %v7573
      %v7575 = vlaneseq
      %v7576 = vshrl.u32 %v7575, 7
      %v7577 = vsub.s32 %v7473, %v7576
      %v7578 = vrot.slane %v7439, %v7577
      %v7579 = vsel %vm7478, %v7578, %v7574
      %v7580 = vlaneseq
      %v7581 = vshrl.u32 %v7580, 7
      %v7582 = vsub.s32 %v7480, %v7581
      %v7583 = vrot.slane %v7442, %v7582
      %v7584 = vsel %vm7485, %v7583, %v7579
      %v7585 = vsel %vm6704, %v7500, %v7486
      %v7586 = vsel %vm6706, %v7514, %v7585
      %v7587 = vsel %vm6708, %v7528, %v7586
      %v7588 = vsel %vm6710, %v7542, %v7587
      %v7589 = vsel %vm6712, %v7556, %v7588
      %v7590 = vsel %vm6714, %v7570, %v7589
      %v7591 = vsel %vm6716, %v7584, %v7590
      %v7593 = vsub.f32 %v7249, %v7591
      %v7594 = vmul.f32 %v7593, 1.442695
      %v7595 = vpow.pop %v7594
      %v7596 = vld [vmem:[%s41] sm:$0xff]
      %v7597 = vld [vmem:[%s41 + $0x8] sm:$0xff]
      %v7598 = vld [vmem:[%s41 + $0x10] sm:$0x3]
      %v7600 = vsel %vm7369, %v7595, 0
      %vm7602 = vcmask 1041408
      %v7604 = vsel %vm7602, %v7598, 0
      %7606 = vmatprep.subr.mxu0 0.0
      %7607 = vmatpush1.msra.mxu0 %v7596
      %7608 = vmatprep.subr.mxu0 0.0
      %7609 = vmatpush1.msra.mxu0 %v7597
      %7610 = vmatprep.subr.mxu0 0.0
      %7611 = vmatpush1.msra.mxu0 %v7604
      %7612 = vmatprep.subr.mxu0 0.0
      %7613 = vmatpush1.msra.mxu0 0.0
      %7614 = vmatprep.subr.mxu0 0.0
      %7615 = vmatpush1.msra.mxu0 0.0
      %7616 = vmatprep.subr.mxu0 0.0
      %7617 = vmatpush1.msra.mxu0 0.0
      %7618 = vmatprep.subr.mxu0 0.0
      %7619 = vmatpush1.msra.mxu0 0.0
      %7620 = vmatprep.subr.mxu0 0.0
      %7621 = vmatpush1.msra.mxu0 0.0
      %7622 = vmatprep.subr.mxu0 0.0
      %7623 = vmatpush1.msra.mxu0 0.0
      %7624 = vmatprep.subr.mxu0 0.0
      %7625 = vmatpush1.msra.mxu0 0.0
      %7626 = vmatprep.subr.mxu0 0.0
      %7627 = vmatpush1.msra.mxu0 0.0
      %7628 = vmatprep.subr.mxu0 0.0
      %7629 = vmatpush1.msra.mxu0 0.0
      %7630 = vmatprep.subr.mxu0 0.0
      %7631 = vmatpush1.msra.mxu0 0.0
      %7632 = vmatprep.subr.mxu0 0.0
      %7633 = vmatpush1.msra.mxu0 0.0
      %7634 = vmatprep.subr.mxu0 0.0
      %7635 = vmatpush1.msra.mxu0 0.0
      %7636 = vmatprep.subr.mxu0 0.0
      %7637 = vmatpush1.msra.mxu0 0.0
      %7638 = vmatprep.subr.mxu0 0.0
      %7639 = vmatpush1.msra.mxu0 0.0
      %7640 = vmatprep.subr.mxu0 0.0
      %7641 = vmatpush1.msra.mxu0 0.0
      %7642 = vmatprep.subr.mxu0 0.0
      %7643 = vmatpush1.msra.mxu0 0.0
      %7644 = vmatprep.subr.mxu0 0.0
      %7645 = vmatpush1.msra.mxu0 0.0
      %7646 = vmatprep.subr.mxu0 0.0
      %7647 = vmatpush1.msra.mxu0 0.0
      %7648 = vmatprep.subr.mxu0 0.0
      %7649 = vmatpush1.msra.mxu0 0.0
      %7650 = vmatprep.subr.mxu0 0.0
      %7651 = vmatpush1.msra.mxu0 0.0
      %7652 = vmatprep.subr.mxu0 0.0
      %7653 = vmatpush1.msra.mxu0 0.0
      %7654 = vmatprep.subr.mxu0 0.0
      %7655 = vmatpush1.msra.mxu0 0.0
      %7656 = vmatprep.subr.mxu0 0.0
      %7657 = vmatpush1.msra.mxu0 0.0
      %7658 = vmatprep.subr.mxu0 0.0
      %7659 = vmatpush1.msra.mxu0 0.0
      %7660 = vmatprep.subr.mxu0 0.0
      %7661 = vmatpush1.msra.mxu0 0.0
      %7662 = vmatprep.subr.mxu0 0.0
      %7663 = vmatpush1.msra.mxu0 0.0
      %7664 = vmatprep.subr.mxu0 0.0
      %7665 = vmatpush1.msra.mxu0 0.0
      %7666 = vmatprep.subr.mxu0 0.0
      %7667 = vmatpush1.msra.mxu0 0.0
      %7668 = vmatprep.subr.mxu0 0.0
      %7669 = vmatpush1.msra.mxu0 0.0
      %7670 = vmatprep.mubr.f32.mxu0 0.0
      %7671 = vmatmul.mubr.f32.gmra.mrb[0].mxu0 %v7600
      %v7672 = vpop.f32.mrb[0].mxu0
      %v7673 = vadd.f32 0.0, %v7672
      %v7674 = vpop.f32.mrb[0].mxu0
      %7675 = vdwg.mxu0
      %v7676 = vrcp.pop %v7673
      %v7677 = vmul.f32 %v7595, %v7676
      %v7678 = vld [vmem:[%s45] sm:$0xff]
      %v7679 = vld [vmem:[%s45 + $0x8] sm:$0xff]
      %v7680 = vld [vmem:[%s45 + $0x10] sm:$0xff]
      %v7681 = vld [vmem:[%s45 + $0x18] sm:$0xff]
      %v7682 = vld [vmem:[%s45 + $0x20] sm:$0xff]
      %v7683 = vld [vmem:[%s45 + $0x28] sm:$0xff]
      %v7684 = vld [vmem:[%s45 + $0x30] sm:$0xff]
      %v7685 = vld [vmem:[%s45 + $0x38] sm:$0xff]
      %v7686 = vld [vmem:[%s45 + $0x40] sm:$0xff]
      %v7687 = vld [vmem:[%s45 + $0x48] sm:$0xff]
      %v7688 = vld [vmem:[%s45 + $0x50] sm:$0xff]
      %v7689 = vld [vmem:[%s45 + $0x58] sm:$0xff]
      %v7690 = vld [vmem:[%s45 + $0x60] sm:$0xff]
      %v7691 = vld [vmem:[%s45 + $0x68] sm:$0xff]
      %v7692 = vld [vmem:[%s45 + $0x70] sm:$0xff]
      %v7693 = vld [vmem:[%s45 + $0x78] sm:$0xff]
      %v7694 = vld [vmem:[%s45 + $0x80] sm:$0xff]
      %v7695 = vld [vmem:[%s45 + $0x88] sm:$0xff]
      %v7696 = vld [vmem:[%s45 + $0x90] sm:$0xff]
      %v7697 = vld [vmem:[%s45 + $0x98] sm:$0xff]
      %v7698 = vld [vmem:[%s45 + $0xa0] sm:$0xff]
      %v7699 = vld [vmem:[%s45 + $0xa8] sm:$0xff]
      %v7700 = vld [vmem:[%s45 + $0xb0] sm:$0xff]
      %v7701 = vld [vmem:[%s45 + $0xb8] sm:$0xff]
      %v7702 = vld [vmem:[%s45 + $0xc0] sm:$0xff]
      %v7703 = vld [vmem:[%s45 + $0xc8] sm:$0xff]
      %v7704 = vld [vmem:[%s45 + $0xd0] sm:$0xff]
      %v7705 = vld [vmem:[%s45 + $0xd8] sm:$0xff]
      %v7706 = vld [vmem:[%s45 + $0xe0] sm:$0xff]
      %v7707 = vld [vmem:[%s45 + $0xe8] sm:$0xff]
      %v7708 = vld [vmem:[%s45 + $0xf0] sm:$0xff]
      %v7709 = vld [vmem:[%s45 + $0xf8] sm:$0xff]
      %v7710 = vld [vmem:[%s45 + $0x100] sm:$0xff]
      %v7711 = vld [vmem:[%s45 + $0x108] sm:$0xff]
      %v7712 = vld [vmem:[%s45 + $0x110] sm:$0xff]
      %v7713 = vld [vmem:[%s45 + $0x118] sm:$0xff]
      %v7714 = vld [vmem:[%s45 + $0x120] sm:$0xff]
      %v7715 = vld [vmem:[%s45 + $0x128] sm:$0xff]
      %v7716 = vld [vmem:[%s45 + $0x130] sm:$0xff]
      %v7717 = vld [vmem:[%s45 + $0x138] sm:$0xff]
      %v7718 = vld [vmem:[%s45 + $0x140] sm:$0xff]
      %v7719 = vld [vmem:[%s45 + $0x148] sm:$0xff]
      %v7720 = vld [vmem:[%s45 + $0x150] sm:$0xff]
      %v7721 = vld [vmem:[%s45 + $0x158] sm:$0xff]
      %v7722 = vld [vmem:[%s45 + $0x160] sm:$0xff]
      %v7723 = vld [vmem:[%s45 + $0x168] sm:$0xff]
      %v7724 = vld [vmem:[%s45 + $0x170] sm:$0xff]
      %v7725 = vld [vmem:[%s45 + $0x178] sm:$0xff]
      %v7726 = vld [vmem:[%s45 + $0x180] sm:$0xff]
      %v7727 = vld [vmem:[%s45 + $0x188] sm:$0xff]
      %v7728 = vld [vmem:[%s45 + $0x190] sm:$0xff]
      %v7729 = vld [vmem:[%s45 + $0x198] sm:$0xff]
      %v7730 = vld [vmem:[%s45 + $0x1a0] sm:$0xff]
      %v7731 = vld [vmem:[%s45 + $0x1a8] sm:$0xff]
      %v7732 = vld [vmem:[%s45 + $0x1b0] sm:$0xff]
      %v7733 = vld [vmem:[%s45 + $0x1b8] sm:$0xff]
      %v7734 = vld [vmem:[%s45 + $0x1c0] sm:$0xff]
      %v7735 = vld [vmem:[%s45 + $0x1c8] sm:$0xff]
      %v7736 = vld [vmem:[%s45 + $0x1d0] sm:$0xff]
      %v7737 = vld [vmem:[%s45 + $0x1d8] sm:$0xff]
      %v7738 = vld [vmem:[%s45 + $0x1e0] sm:$0xff]
      %v7739 = vld [vmem:[%s45 + $0x1e8] sm:$0xff]
      %v7740 = vld [vmem:[%s45 + $0x1f0] sm:$0xff]
      %v7741 = vld [vmem:[%s45 + $0x1f8] sm:$0xff]
      %v7742 = vld [vmem:[%s47] sm:$0xff]
      %v7743 = vld [vmem:[%s47 + $0x8] sm:$0xff]
      %v7744 = vld [vmem:[%s47 + $0x10] sm:$0xff]
      %v7745 = vld [vmem:[%s47 + $0x18] sm:$0xff]
      %v7746 = vld [vmem:[%s47 + $0x20] sm:$0xff]
      %v7747 = vld [vmem:[%s47 + $0x28] sm:$0xff]
      %v7748 = vld [vmem:[%s47 + $0x30] sm:$0xff]
      %v7749 = vld [vmem:[%s47 + $0x38] sm:$0xff]
      %v7750 = vld [vmem:[%s47 + $0x40] sm:$0xff]
      %v7751 = vld [vmem:[%s47 + $0x48] sm:$0xff]
      %v7752 = vld [vmem:[%s47 + $0x50] sm:$0xff]
      %v7753 = vld [vmem:[%s47 + $0x58] sm:$0xff]
      %v7754 = vld [vmem:[%s47 + $0x60] sm:$0xff]
      %v7755 = vld [vmem:[%s47 + $0x68] sm:$0xff]
      %v7756 = vld [vmem:[%s47 + $0x70] sm:$0xff]
      %v7757 = vld [vmem:[%s47 + $0x78] sm:$0xff]
      %v7758 = vld [vmem:[%s47 + $0x80] sm:$0xff]
      %v7759 = vld [vmem:[%s47 + $0x88] sm:$0xff]
      %v7760 = vld [vmem:[%s47 + $0x90] sm:$0xff]
      %v7761 = vld [vmem:[%s47 + $0x98] sm:$0xff]
      %v7762 = vld [vmem:[%s47 + $0xa0] sm:$0xff]
      %v7763 = vld [vmem:[%s47 + $0xa8] sm:$0xff]
      %v7764 = vld [vmem:[%s47 + $0xb0] sm:$0xff]
      %v7765 = vld [vmem:[%s47 + $0xb8] sm:$0xff]
      %v7766 = vld [vmem:[%s47 + $0xc0] sm:$0xff]
      %v7767 = vld [vmem:[%s47 + $0xc8] sm:$0xff]
      %v7768 = vld [vmem:[%s47 + $0xd0] sm:$0xff]
      %v7769 = vld [vmem:[%s47 + $0xd8] sm:$0xff]
      %v7770 = vld [vmem:[%s47 + $0xe0] sm:$0xff]
      %v7771 = vld [vmem:[%s47 + $0xe8] sm:$0xff]
      %v7772 = vld [vmem:[%s47 + $0xf0] sm:$0xff]
      %v7773 = vld [vmem:[%s47 + $0xf8] sm:$0xff]
      %v7774 = vld [vmem:[%s47 + $0x100] sm:$0xff]
      %v7775 = vld [vmem:[%s47 + $0x108] sm:$0xff]
      %v7776 = vld [vmem:[%s47 + $0x110] sm:$0xff]
      %v7777 = vld [vmem:[%s47 + $0x118] sm:$0xff]
      %v7778 = vld [vmem:[%s47 + $0x120] sm:$0xff]
      %v7779 = vld [vmem:[%s47 + $0x128] sm:$0xff]
      %v7780 = vld [vmem:[%s47 + $0x130] sm:$0xff]
      %v7781 = vld [vmem:[%s47 + $0x138] sm:$0xff]
      %v7782 = vld [vmem:[%s47 + $0x140] sm:$0xff]
      %v7783 = vld [vmem:[%s47 + $0x148] sm:$0xff]
      %v7784 = vld [vmem:[%s47 + $0x150] sm:$0xff]
      %v7785 = vld [vmem:[%s47 + $0x158] sm:$0xff]
      %v7786 = vld [vmem:[%s47 + $0x160] sm:$0xff]
      %v7787 = vld [vmem:[%s47 + $0x168] sm:$0xff]
      %v7788 = vld [vmem:[%s47 + $0x170] sm:$0xff]
      %v7789 = vld [vmem:[%s47 + $0x178] sm:$0xff]
      %v7790 = vld [vmem:[%s47 + $0x180] sm:$0xff]
      %v7791 = vld [vmem:[%s47 + $0x188] sm:$0xff]
      %v7792 = vld [vmem:[%s47 + $0x190] sm:$0xff]
      %v7793 = vld [vmem:[%s47 + $0x198] sm:$0xff]
      %v7794 = vld [vmem:[%s47 + $0x1a0] sm:$0xff]
      %v7795 = vld [vmem:[%s47 + $0x1a8] sm:$0xff]
      %v7796 = vld [vmem:[%s47 + $0x1b0] sm:$0xff]
      %v7797 = vld [vmem:[%s47 + $0x1b8] sm:$0xff]
      %v7798 = vld [vmem:[%s47 + $0x1c0] sm:$0xff]
      %v7799 = vld [vmem:[%s47 + $0x1c8] sm:$0xff]
      %v7800 = vld [vmem:[%s47 + $0x1d0] sm:$0xff]
      %v7801 = vld [vmem:[%s47 + $0x1d8] sm:$0xff]
      %v7802 = vld [vmem:[%s47 + $0x1e0] sm:$0xff]
      %v7803 = vld [vmem:[%s47 + $0x1e8] sm:$0xff]
      %v7804 = vld [vmem:[%s47 + $0x1f0] sm:$0xff]
      %v7805 = vld [vmem:[%s47 + $0x1f8] sm:$0xff]
      %v7822 = vsel %vm6704, %v6609, %v6597
      %v7823 = vsel %vm6706, %v6621, %v7822
      %v7824 = vsel %vm6708, %v6633, %v7823
      %v7825 = vsel %vm6710, %v6645, %v7824
      %v7826 = vsel %vm6712, %v6657, %v7825
      %v7827 = vsel %vm6714, %v6669, %v7826
      %v7828 = vsel %vm6716, %v6681, %v7827
      %v7829 = vsel %vm6704, %v6615, %v6603
      %v7830 = vsel %vm6706, %v6627, %v7829
      %v7831 = vsel %vm6708, %v6639, %v7830
      %v7832 = vsel %vm6710, %v6651, %v7831
      %v7833 = vsel %vm6712, %v6663, %v7832
      %v7834 = vsel %vm6714, %v6675, %v7833
      %v7835 = vsel %vm6716, %v6687, %v7834
      %7838 = vmatprep.subr.mxu0 %v7743
      %7839 = vmatpush1.msra.mxu0 %v7742
      %7840 = vmatprep.subr.mxu0 %v7745
      %7841 = vmatpush1.msra.mxu0 %v7744
      %7842 = vmatprep.subr.mxu0 %v7747
      %7843 = vmatpush1.msra.mxu0 %v7746
      %7844 = vmatprep.subr.mxu0 %v7749
      %7845 = vmatpush1.msra.mxu0 %v7748
      %7846 = vmatprep.subr.mxu0 %v7751
      %7847 = vmatpush1.msra.mxu0 %v7750
      %7848 = vmatprep.subr.mxu0 %v7753
      %7849 = vmatpush1.msra.mxu0 %v7752
      %7850 = vmatprep.subr.mxu0 %v7755
      %7851 = vmatpush1.msra.mxu0 %v7754
      %7852 = vmatprep.subr.mxu0 %v7757
      %7853 = vmatpush1.msra.mxu0 %v7756
      %7854 = vmatprep.subr.mxu0 %v7759
      %7855 = vmatpush1.msra.mxu0 %v7758
      %7856 = vmatprep.subr.mxu0 %v7761
      %7857 = vmatpush1.msra.mxu0 %v7760
      %7858 = vmatprep.subr.mxu0 %v7763
      %7859 = vmatpush1.msra.mxu0 %v7762
      %7860 = vmatprep.subr.mxu0 %v7765
      %7861 = vmatpush1.msra.mxu0 %v7764
      %7862 = vmatprep.subr.mxu0 %v7767
      %7863 = vmatpush1.msra.mxu0 %v7766
      %7864 = vmatprep.subr.mxu0 %v7769
      %7865 = vmatpush1.msra.mxu0 %v7768
      %7866 = vmatprep.subr.mxu0 %v7771
      %7867 = vmatpush1.msra.mxu0 %v7770
      %7868 = vmatprep.subr.mxu0 %v7773
      %7869 = vmatpush1.msra.mxu0 %v7772
      %7870 = vmatprep.subr.mxu0 %v7775
      %7871 = vmatpush1.msra.mxu0 %v7774
      %7872 = vmatprep.subr.mxu0 %v7777
      %7873 = vmatpush1.msra.mxu0 %v7776
      %7874 = vmatprep.subr.mxu0 %v7779
      %7875 = vmatpush1.msra.mxu0 %v7778
      %7876 = vmatprep.subr.mxu0 %v7781
      %7877 = vmatpush1.msra.mxu0 %v7780
      %7878 = vmatprep.subr.mxu0 %v7783
      %7879 = vmatpush1.msra.mxu0 %v7782
      %7880 = vmatprep.subr.mxu0 %v7785
      %7881 = vmatpush1.msra.mxu0 %v7784
      %7882 = vmatprep.subr.mxu0 %v7787
      %7883 = vmatpush1.msra.mxu0 %v7786
      %7884 = vmatprep.subr.mxu0 %v7789
      %7885 = vmatpush1.msra.mxu0 %v7788
      %7886 = vmatprep.subr.mxu0 %v7791
      %7887 = vmatpush1.msra.mxu0 %v7790
      %7888 = vmatprep.subr.mxu0 %v7793
      %7889 = vmatpush1.msra.mxu0 %v7792
      %7890 = vmatprep.subr.mxu0 %v7795
      %7891 = vmatpush1.msra.mxu0 %v7794
      %7892 = vmatprep.subr.mxu0 %v7797
      %7893 = vmatpush1.msra.mxu0 %v7796
      %7894 = vmatprep.subr.mxu0 %v7799
      %7895 = vmatpush1.msra.mxu0 %v7798
      %7896 = vmatprep.subr.mxu0 %v7801
      %7897 = vmatpush1.msra.mxu0 %v7800
      %7898 = vmatprep.subr.mxu0 %v7803
      %7899 = vmatpush1.msra.mxu0 %v7802
      %7900 = vmatprep.subr.mxu0 %v7805
      %7901 = vmatpush1.msra.mxu0 %v7804
      %7902 = vmatprep.mubr.f32.mxu0 %v7835
      %7903 = vmatmul.mubr.f32.gmra.mrb[0].mxu0 %v7828
      %v7904 = vpop.f32.mrb[0].mxu0
      %v7905 = vadd.f32 0.0, %v7904
      %v7906 = vpop.f32.mrb[0].mxu0
      %v7907 = vadd.f32 0.0, %v7906
      %7908 = vdwg.mxu0
      %7909 = vmatprep.subr.mxu0 %v7679
      %7910 = vmatpush1.msra.mxu0 %v7678
      %7911 = vmatprep.subr.mxu0 %v7681
      %7912 = vmatpush1.msra.mxu0 %v7680
      %7913 = vmatprep.subr.mxu0 %v7683
      %7914 = vmatpush1.msra.mxu0 %v7682
      %7915 = vmatprep.subr.mxu0 %v7685
      %7916 = vmatpush1.msra.mxu0 %v7684
      %7917 = vmatprep.subr.mxu0 %v7687
      %7918 = vmatpush1.msra.mxu0 %v7686
      %7919 = vmatprep.subr.mxu0 %v7689
      %7920 = vmatpush1.msra.mxu0 %v7688
      %7921 = vmatprep.subr.mxu0 %v7691
      %7922 = vmatpush1.msra.mxu0 %v7690
      %7923 = vmatprep.subr.mxu0 %v7693
      %7924 = vmatpush1.msra.mxu0 %v7692
      %7925 = vmatprep.subr.mxu0 %v7695
      %7926 = vmatpush1.msra.mxu0 %v7694
      %7927 = vmatprep.subr.mxu0 %v7697
      %7928 = vmatpush1.msra.mxu0 %v7696
      %7929 = vmatprep.subr.mxu0 %v7699
      %7930 = vmatpush1.msra.mxu0 %v7698
      %7931 = vmatprep.subr.mxu0 %v7701
      %7932 = vmatpush1.msra.mxu0 %v7700
      %7933 = vmatprep.subr.mxu0 %v7703
      %7934 = vmatpush1.msra.mxu0 %v7702
      %7935 = vmatprep.subr.mxu0 %v7705
      %7936 = vmatpush1.msra.mxu0 %v7704
      %7937 = vmatprep.subr.mxu0 %v7707
      %7938 = vmatpush1.msra.mxu0 %v7706
      %7939 = vmatprep.subr.mxu0 %v7709
      %7940 = vmatpush1.msra.mxu0 %v7708
      %7941 = vmatprep.subr.mxu0 %v7711
      %7942 = vmatpush1.msra.mxu0 %v7710
      %7943 = vmatprep.subr.mxu0 %v7713
      %7944 = vmatpush1.msra.mxu0 %v7712
      %7945 = vmatprep.subr.mxu0 %v7715
      %7946 = vmatpush1.msra.mxu0 %v7714
      %7947 = vmatprep.subr.mxu0 %v7717
      %7948 = vmatpush1.msra.mxu0 %v7716
      %7949 = vmatprep.subr.mxu0 %v7719
      %7950 = vmatpush1.msra.mxu0 %v7718
      %7951 = vmatprep.subr.mxu0 %v7721
      %7952 = vmatpush1.msra.mxu0 %v7720
      %7953 = vmatprep.subr.mxu0 %v7723
      %7954 = vmatpush1.msra.mxu0 %v7722
      %7955 = vmatprep.subr.mxu0 %v7725
      %7956 = vmatpush1.msra.mxu0 %v7724
      %7957 = vmatprep.subr.mxu0 %v7727
      %7958 = vmatpush1.msra.mxu0 %v7726
      %7959 = vmatprep.subr.mxu0 %v7729
      %7960 = vmatpush1.msra.mxu0 %v7728
      %7961 = vmatprep.subr.mxu0 %v7731
      %7962 = vmatpush1.msra.mxu0 %v7730
      %7963 = vmatprep.subr.mxu0 %v7733
      %7964 = vmatpush1.msra.mxu0 %v7732
      %7965 = vmatprep.subr.mxu0 %v7735
      %7966 = vmatpush1.msra.mxu0 %v7734
      %7967 = vmatprep.subr.mxu0 %v7737
      %7968 = vmatpush1.msra.mxu0 %v7736
      %7969 = vmatprep.subr.mxu0 %v7739
      %7970 = vmatpush1.msra.mxu0 %v7738
      %7971 = vmatprep.subr.mxu0 %v7741
      %7972 = vmatpush1.msra.mxu0 %v7740
      %7973 = vmatprep.mubr.f32.mxu0 %v6724
      %7974 = vmatmul.mubr.f32.gmra.mrb[0].mxu0 %v6717
      %v7975 = vpop.f32.mrb[0].mxu0
      %v7976 = vadd.f32 %v7905, %v7975
      %v7977 = vpop.f32.mrb[0].mxu0
      %v7978 = vadd.f32 %v7907, %v7977
      %7979 = vdwg.mxu0
      %v7980 = vld [vmem:[%s49] sm:$0x3]
      %v7982 = vlaneseq
      %v7983 = vshrl.u32 %v7982, 7
      %v7984 = vsub.s32 0, %v7983
      %v7985 = vrot.slane %v7980, %v7984
      %v7986 = vlaneseq
      %v7987 = vshrl.u32 %v7986, 7
      %v7988 = vsub.s32 1, %v7987
      %v7989 = vrot.slane %v7980, %v7988
      %v7992 = vadd.f32 %v7976, %v7985
      %v7993 = vadd.f32 %v7978, %v7989
      %v7994 = vld [vmem:[%s51] sm:$0x3]
      %v7995 = vld [vmem:[%s53] sm:$0x3]
      %v7996 = vadd.f32 %v7992, %v7993
      %7997 = vadd.xlane.f32.xlu0 %v7996
      %v7998 = vpop.xlane.xlu0 %7997
      %v7999 = vmul.f32 %v7998, %v1346
      %v8000 = vsub.f32 %v7992, %v7999
      %v8001 = vsub.f32 %v7993, %v7999
      %v8002 = vmul.f32 %v8000, %v8000
      %v8003 = vmul.f32 %v8001, %v8001
      %v8004 = vadd.f32 %v8002, %v8003
      %8005 = vadd.xlane.f32.xlu0 %v8004
      %v8006 = vpop.xlane.xlu0 %8005
      %v8007 = vmul.f32 %v8006, %v1346
      %v8008 = vadd.f32 %v8007, 1e-05
      %v8009 = vrsqrt.pop %v8008
      %v8010 = vmul.f32 %v8000, %v8009
      %v8011 = vmul.f32 %v8001, %v8009
      %v8013 = vlaneseq
      %v8014 = vshrl.u32 %v8013, 7
      %v8015 = vsub.s32 0, %v8014
      %v8016 = vrot.slane %v7994, %v8015
      %v8017 = vlaneseq
      %v8018 = vshrl.u32 %v8017, 7
      %v8019 = vsub.s32 1, %v8018
      %v8020 = vrot.slane %v7994, %v8019
      %v8023 = vmul.f32 %v8010, %v8016
      %v8024 = vmul.f32 %v8011, %v8020
      %v8026 = vlaneseq
      %v8027 = vshrl.u32 %v8026, 7
      %v8028 = vsub.s32 0, %v8027
      %v8029 = vrot.slane %v7995, %v8028
      %v8030 = vlaneseq
      %v8031 = vshrl.u32 %v8030, 7
      %v8032 = vsub.s32 1, %v8031
      %v8033 = vrot.slane %v7995, %v8032
      %v8036 = vadd.f32 %v8023, %v8029
      %v8037 = vadd.f32 %v8024, %v8033
      %v8038 = vmul.f32 %v8036, 0.5
      %v8039 = vmul.f32 %v8037, 0.5
      %v8040 = vmul.f32 %v8036, 0.70710677
      %v8041 = vmul.f32 %v8037, 0.70710677
      %v8042 = verf.f32.pop %v8040
      %v8043 = verf.f32.pop %v8041
      %v8044 = vadd.f32 %v8042, 1.0
      %v8045 = vadd.f32 %v8043, 1.0
      %v8046 = vmul.f32 %v8038, %v8044
      %v8047 = vmul.f32 %v8039, %v8045
      %v8048 = vld [vmem:[%s55] sm:$0xff]
      %v8049 = vld [vmem:[%s55 + $0x8] sm:$0xff]
      %v8050 = vld [vmem:[%s55 + $0x10] sm:$0xff]
      %v8051 = vld [vmem:[%s55 + $0x18] sm:$0xff]
      %v8052 = vld [vmem:[%s55 + $0x20] sm:$0xff]
      %v8053 = vld [vmem:[%s55 + $0x28] sm:$0xff]
      %v8054 = vld [vmem:[%s55 + $0x30] sm:$0xff]
      %v8055 = vld [vmem:[%s55 + $0x38] sm:$0xff]
      %v8056 = vld [vmem:[%s55 + $0x40] sm:$0xff]
      %v8057 = vld [vmem:[%s55 + $0x48] sm:$0xff]
      %v8058 = vld [vmem:[%s55 + $0x50] sm:$0xff]
      %v8059 = vld [vmem:[%s55 + $0x58] sm:$0xff]
      %v8060 = vld [vmem:[%s55 + $0x60] sm:$0xff]
      %v8061 = vld [vmem:[%s55 + $0x68] sm:$0xff]
      %v8062 = vld [vmem:[%s55 + $0x70] sm:$0xff]
      %v8063 = vld [vmem:[%s55 + $0x78] sm:$0xff]
      %v8064 = vld [vmem:[%s55 + $0x80] sm:$0xff]
      %v8065 = vld [vmem:[%s55 + $0x88] sm:$0xff]
      %v8066 = vld [vmem:[%s55 + $0x90] sm:$0xff]
      %v8067 = vld [vmem:[%s55 + $0x98] sm:$0xff]
      %v8068 = vld [vmem:[%s55 + $0xa0] sm:$0xff]
      %v8069 = vld [vmem:[%s55 + $0xa8] sm:$0xff]
      %v8070 = vld [vmem:[%s55 + $0xb0] sm:$0xff]
      %v8071 = vld [vmem:[%s55 + $0xb8] sm:$0xff]
      %v8072 = vld [vmem:[%s55 + $0xc0] sm:$0xff]
      %v8073 = vld [vmem:[%s55 + $0xc8] sm:$0xff]
      %v8074 = vld [vmem:[%s55 + $0xd0] sm:$0xff]
      %v8075 = vld [vmem:[%s55 + $0xd8] sm:$0xff]
      %v8076 = vld [vmem:[%s55 + $0xe0] sm:$0xff]
      %v8077 = vld [vmem:[%s55 + $0xe8] sm:$0xff]
      %v8078 = vld [vmem:[%s55 + $0xf0] sm:$0xff]
      %v8079 = vld [vmem:[%s55 + $0xf8] sm:$0xff]
      %v8080 = vld [vmem:[%s57] sm:$0x1]
      %v8082 = vlaneseq
      %v8083 = vshrl.u32 %v8082, 7
      %v8084 = vsub.s32 0, %v8083
      %v8085 = vrot.slane %v8080, %v8084
      %8087 = vmatprep.subr.mxu0 0.0
      %8088 = vmatpush1.msra.mxu0 %v8048
      %8089 = vmatprep.subr.mxu0 0.0
      %8090 = vmatpush1.msra.mxu0 %v8049
      %8091 = vmatprep.subr.mxu0 0.0
      %8092 = vmatpush1.msra.mxu0 %v8050
      %8093 = vmatprep.subr.mxu0 0.0
      %8094 = vmatpush1.msra.mxu0 %v8051
      %8095 = vmatprep.subr.mxu0 0.0
      %8096 = vmatpush1.msra.mxu0 %v8052
      %8097 = vmatprep.subr.mxu0 0.0
      %8098 = vmatpush1.msra.mxu0 %v8053
      %8099 = vmatprep.subr.mxu0 0.0
      %8100 = vmatpush1.msra.mxu0 %v8054
      %8101 = vmatprep.subr.mxu0 0.0
      %8102 = vmatpush1.msra.mxu0 %v8055
      %8103 = vmatprep.subr.mxu0 0.0
      %8104 = vmatpush1.msra.mxu0 %v8056
      %8105 = vmatprep.subr.mxu0 0.0
      %8106 = vmatpush1.msra.mxu0 %v8057
      %8107 = vmatprep.subr.mxu0 0.0
      %8108 = vmatpush1.msra.mxu0 %v8058
      %8109 = vmatprep.subr.mxu0 0.0
      %8110 = vmatpush1.msra.mxu0 %v8059
      %8111 = vmatprep.subr.mxu0 0.0
      %8112 = vmatpush1.msra.mxu0 %v8060
      %8113 = vmatprep.subr.mxu0 0.0
      %8114 = vmatpush1.msra.mxu0 %v8061
      %8115 = vmatprep.subr.mxu0 0.0
      %8116 = vmatpush1.msra.mxu0 %v8062
      %8117 = vmatprep.subr.mxu0 0.0
      %8118 = vmatpush1.msra.mxu0 %v8063
      %8119 = vmatprep.subr.mxu0 0.0
      %8120 = vmatpush1.msra.mxu0 %v8064
      %8121 = vmatprep.subr.mxu0 0.0
      %8122 = vmatpush1.msra.mxu0 %v8065
      %8123 = vmatprep.subr.mxu0 0.0
      %8124 = vmatpush1.msra.mxu0 %v8066
      %8125 = vmatprep.subr.mxu0 0.0
      %8126 = vmatpush1.msra.mxu0 %v8067
      %8127 = vmatprep.subr.mxu0 0.0
      %8128 = vmatpush1.msra.mxu0 %v8068
      %8129 = vmatprep.subr.mxu0 0.0
      %8130 = vmatpush1.msra.mxu0 %v8069
      %8131 = vmatprep.subr.mxu0 0.0
      %8132 = vmatpush1.msra.mxu0 %v8070
      %8133 = vmatprep.subr.mxu0 0.0
      %8134 = vmatpush1.msra.mxu0 %v8071
      %8135 = vmatprep.subr.mxu0 0.0
      %8136 = vmatpush1.msra.mxu0 %v8072
      %8137 = vmatprep.subr.mxu0 0.0
      %8138 = vmatpush1.msra.mxu0 %v8073
      %8139 = vmatprep.subr.mxu0 0.0
      %8140 = vmatpush1.msra.mxu0 %v8074
      %8141 = vmatprep.subr.mxu0 0.0
      %8142 = vmatpush1.msra.mxu0 %v8075
      %8143 = vmatprep.subr.mxu0 0.0
      %8144 = vmatpush1.msra.mxu0 %v8076
      %8145 = vmatprep.subr.mxu0 0.0
      %8146 = vmatpush1.msra.mxu0 %v8077
      %8147 = vmatprep.subr.mxu0 0.0
      %8148 = vmatpush1.msra.mxu0 %v8078
      %8149 = vmatprep.subr.mxu0 0.0
      %8150 = vmatpush1.msra.mxu0 %v8079
      %8151 = vmatprep.mubr.f32.mxu0 %v8047
      %8152 = vmatmul.mubr.f32.gmra.mrb[0].mxu0 %v8046
      %v8153 = vpop.f32.mrb[0].mxu0
      %v8154 = vadd.f32 %v8085, %v8153
      %v8155 = vpop.f32.mrb[0].mxu0
      %8156 = vdwg.mxu0
      %v8157 = vmul.f32 %v8154, 0.5
      %v8158 = vmul.f32 %v8154, 0.70710677
      %v8159 = verf.f32.pop %v8158
      %v8160 = vadd.f32 %v8159, 1.0
      %v8161 = vmul.f32 %v8157, %v8160
      %v8162 = vld [vmem:[%s59] sm:$0xff]
      %v8163 = vld [vmem:[%s59 + $0x8] sm:$0xff]
      %v8164 = vld [vmem:[%s59 + $0x10] sm:$0xff]
      %v8165 = vld [vmem:[%s59 + $0x18] sm:$0xff]
      %v8166 = vld [vmem:[%s59 + $0x20] sm:$0xff]
      %v8167 = vld [vmem:[%s59 + $0x28] sm:$0xff]
      %v8168 = vld [vmem:[%s59 + $0x30] sm:$0xff]
      %v8169 = vld [vmem:[%s59 + $0x38] sm:$0xff]
      %v8170 = vld [vmem:[%s59 + $0x40] sm:$0xff]
      %v8171 = vld [vmem:[%s59 + $0x48] sm:$0xff]
      %v8172 = vld [vmem:[%s59 + $0x50] sm:$0xff]
      %v8173 = vld [vmem:[%s59 + $0x58] sm:$0xff]
      %v8174 = vld [vmem:[%s59 + $0x60] sm:$0xff]
      %v8175 = vld [vmem:[%s59 + $0x68] sm:$0xff]
      %v8176 = vld [vmem:[%s59 + $0x70] sm:$0xff]
      %v8177 = vld [vmem:[%s59 + $0x78] sm:$0xff]
      %v8178 = vld [vmem:[%s61] sm:$0x1]
      %v8180 = vlaneseq
      %v8181 = vshrl.u32 %v8180, 7
      %v8182 = vsub.s32 0, %v8181
      %v8183 = vrot.slane %v8178, %v8182
      %8185 = vmatprep.subr.mxu0 0.0
      %8186 = vmatpush1.msra.mxu0 %v8162
      %8187 = vmatprep.subr.mxu0 0.0
      %8188 = vmatpush1.msra.mxu0 %v8163
      %8189 = vmatprep.subr.mxu0 0.0
      %8190 = vmatpush1.msra.mxu0 %v8164
      %8191 = vmatprep.subr.mxu0 0.0
      %8192 = vmatpush1.msra.mxu0 %v8165
      %8193 = vmatprep.subr.mxu0 0.0
      %8194 = vmatpush1.msra.mxu0 %v8166
      %8195 = vmatprep.subr.mxu0 0.0
      %8196 = vmatpush1.msra.mxu0 %v8167
      %8197 = vmatprep.subr.mxu0 0.0
      %8198 = vmatpush1.msra.mxu0 %v8168
      %8199 = vmatprep.subr.mxu0 0.0
      %8200 = vmatpush1.msra.mxu0 %v8169
      %8201 = vmatprep.subr.mxu0 0.0
      %8202 = vmatpush1.msra.mxu0 %v8170
      %8203 = vmatprep.subr.mxu0 0.0
      %8204 = vmatpush1.msra.mxu0 %v8171
      %8205 = vmatprep.subr.mxu0 0.0
      %8206 = vmatpush1.msra.mxu0 %v8172
      %8207 = vmatprep.subr.mxu0 0.0
      %8208 = vmatpush1.msra.mxu0 %v8173
      %8209 = vmatprep.subr.mxu0 0.0
      %8210 = vmatpush1.msra.mxu0 %v8174
      %8211 = vmatprep.subr.mxu0 0.0
      %8212 = vmatpush1.msra.mxu0 %v8175
      %8213 = vmatprep.subr.mxu0 0.0
      %8214 = vmatpush1.msra.mxu0 %v8176
      %8215 = vmatprep.subr.mxu0 0.0
      %8216 = vmatpush1.msra.mxu0 %v8177
      %8217 = vmatprep.subr.mxu0 0.0
      %8218 = vmatpush1.msra.mxu0 0.0
      %8219 = vmatprep.subr.mxu0 0.0
      %8220 = vmatpush1.msra.mxu0 0.0
      %8221 = vmatprep.subr.mxu0 0.0
      %8222 = vmatpush1.msra.mxu0 0.0
      %8223 = vmatprep.subr.mxu0 0.0
      %8224 = vmatpush1.msra.mxu0 0.0
      %8225 = vmatprep.subr.mxu0 0.0
      %8226 = vmatpush1.msra.mxu0 0.0
      %8227 = vmatprep.subr.mxu0 0.0
      %8228 = vmatpush1.msra.mxu0 0.0
      %8229 = vmatprep.subr.mxu0 0.0
      %8230 = vmatpush1.msra.mxu0 0.0
      %8231 = vmatprep.subr.mxu0 0.0
      %8232 = vmatpush1.msra.mxu0 0.0
      %8233 = vmatprep.subr.mxu0 0.0
      %8234 = vmatpush1.msra.mxu0 0.0
      %8235 = vmatprep.subr.mxu0 0.0
      %8236 = vmatpush1.msra.mxu0 0.0
      %8237 = vmatprep.subr.mxu0 0.0
      %8238 = vmatpush1.msra.mxu0 0.0
      %8239 = vmatprep.subr.mxu0 0.0
      %8240 = vmatpush1.msra.mxu0 0.0
      %8241 = vmatprep.subr.mxu0 0.0
      %8242 = vmatpush1.msra.mxu0 0.0
      %8243 = vmatprep.subr.mxu0 0.0
      %8244 = vmatpush1.msra.mxu0 0.0
      %8245 = vmatprep.subr.mxu0 0.0
      %8246 = vmatpush1.msra.mxu0 0.0
      %8247 = vmatprep.subr.mxu0 0.0
      %8248 = vmatpush1.msra.mxu0 0.0
      %8249 = vmatprep.mubr.f32.mxu0 0.0
      %8250 = vmatmul.mubr.f32.gmra.mrb[0].mxu0 %v8161
      %v8251 = vpop.f32.mrb[0].mxu0
      %v8252 = vadd.f32 %v8183, %v8251
      %v8253 = vpop.f32.mrb[0].mxu0
      %8254 = vdwg.mxu0
      %v8255 = vsel %vm6334, %v8252, -inf
      %8256 = vmax.xlane.f32.xlu0 %v8255
      %v8257 = vpop.xlane.xlu0 %8256
      %v8258 = vsub.f32 %v8252, %v8257
      %v8259 = vmul.f32 %v8258, 1.442695
      %v8260 = vpow.pop %v8259
      %v8261 = vsel %vm6334, %v8260, 0.0
      %8262 = vadd.xlane.f32.xlu0 %v8261
      %v8263 = vpop.xlane.xlu0 %8262
      %v8264 = vrcp.pop %v8263
      %v8265 = vmul.f32 %v8260, %v8264
      %v8266 = vld [vmem:[%s63] sm:$0xff]
      %v8267 = vld [vmem:[%s63 + $0x8] sm:$0xff]
      %v8268 = vld [vmem:[%s63 + $0x10] sm:$0xff]
      %v8269 = vld [vmem:[%s63 + $0x18] sm:$0xff]
      %v8270 = vld [vmem:[%s63 + $0x20] sm:$0xff]
      %v8271 = vld [vmem:[%s63 + $0x28] sm:$0xff]
      %v8272 = vld [vmem:[%s63 + $0x30] sm:$0xff]
      %v8273 = vld [vmem:[%s63 + $0x38] sm:$0xff]
      %v8274 = vld [vmem:[%s63 + $0x40] sm:$0xff]
      %v8275 = vld [vmem:[%s63 + $0x48] sm:$0xff]
      %v8276 = vld [vmem:[%s63 + $0x50] sm:$0xff]
      %v8277 = vld [vmem:[%s63 + $0x58] sm:$0xff]
      %v8278 = vld [vmem:[%s63 + $0x60] sm:$0xff]
      %v8279 = vld [vmem:[%s63 + $0x68] sm:$0xff]
      %v8280 = vld [vmem:[%s63 + $0x70] sm:$0xff]
      %v8281 = vld [vmem:[%s63 + $0x78] sm:$0xff]
      %v8282 = vld [vmem:[%s63 + $0x80] sm:$0xff]
      %v8283 = vld [vmem:[%s63 + $0x88] sm:$0xff]
      %v8284 = vld [vmem:[%s63 + $0x90] sm:$0xff]
      %v8285 = vld [vmem:[%s63 + $0x98] sm:$0xff]
      %v8286 = vld [vmem:[%s63 + $0xa0] sm:$0xff]
      %v8287 = vld [vmem:[%s63 + $0xa8] sm:$0xff]
      %v8288 = vld [vmem:[%s63 + $0xb0] sm:$0xff]
      %v8289 = vld [vmem:[%s63 + $0xb8] sm:$0xff]
      %v8290 = vld [vmem:[%s63 + $0xc0] sm:$0xff]
      %v8291 = vld [vmem:[%s63 + $0xc8] sm:$0xff]
      %v8292 = vld [vmem:[%s63 + $0xd0] sm:$0xff]
      %v8293 = vld [vmem:[%s63 + $0xd8] sm:$0xff]
      %v8294 = vld [vmem:[%s63 + $0xe0] sm:$0xff]
      %v8295 = vld [vmem:[%s63 + $0xe8] sm:$0xff]
      %v8296 = vld [vmem:[%s63 + $0xf0] sm:$0xff]
      %v8297 = vld [vmem:[%s63 + $0xf8] sm:$0xff]
      %v8298 = vld [vmem:[%s65] sm:$0x1]
      %v8300 = vlaneseq
      %v8301 = vshrl.u32 %v8300, 7
      %v8302 = vsub.s32 0, %v8301
      %v8303 = vrot.slane %v8298, %v8302
      %8305 = vmatprep.subr.mxu0 0.0
      %8306 = vmatpush1.msra.mxu0 %v8266
      %8307 = vmatprep.subr.mxu0 0.0
      %8308 = vmatpush1.msra.mxu0 %v8267
      %8309 = vmatprep.subr.mxu0 0.0
      %8310 = vmatpush1.msra.mxu0 %v8268
      %8311 = vmatprep.subr.mxu0 0.0
      %8312 = vmatpush1.msra.mxu0 %v8269
      %8313 = vmatprep.subr.mxu0 0.0
      %8314 = vmatpush1.msra.mxu0 %v8270
      %8315 = vmatprep.subr.mxu0 0.0
      %8316 = vmatpush1.msra.mxu0 %v8271
      %8317 = vmatprep.subr.mxu0 0.0
      %8318 = vmatpush1.msra.mxu0 %v8272
      %8319 = vmatprep.subr.mxu0 0.0
      %8320 = vmatpush1.msra.mxu0 %v8273
      %8321 = vmatprep.subr.mxu0 0.0
      %8322 = vmatpush1.msra.mxu0 %v8274
      %8323 = vmatprep.subr.mxu0 0.0
      %8324 = vmatpush1.msra.mxu0 %v8275
      %8325 = vmatprep.subr.mxu0 0.0
      %8326 = vmatpush1.msra.mxu0 %v8276
      %8327 = vmatprep.subr.mxu0 0.0
      %8328 = vmatpush1.msra.mxu0 %v8277
      %8329 = vmatprep.subr.mxu0 0.0
      %8330 = vmatpush1.msra.mxu0 %v8278
      %8331 = vmatprep.subr.mxu0 0.0
      %8332 = vmatpush1.msra.mxu0 %v8279
      %8333 = vmatprep.subr.mxu0 0.0
      %8334 = vmatpush1.msra.mxu0 %v8280
      %8335 = vmatprep.subr.mxu0 0.0
      %8336 = vmatpush1.msra.mxu0 %v8281
      %8337 = vmatprep.subr.mxu0 0.0
      %8338 = vmatpush1.msra.mxu0 %v8282
      %8339 = vmatprep.subr.mxu0 0.0
      %8340 = vmatpush1.msra.mxu0 %v8283
      %8341 = vmatprep.subr.mxu0 0.0
      %8342 = vmatpush1.msra.mxu0 %v8284
      %8343 = vmatprep.subr.mxu0 0.0
      %8344 = vmatpush1.msra.mxu0 %v8285
      %8345 = vmatprep.subr.mxu0 0.0
      %8346 = vmatpush1.msra.mxu0 %v8286
      %8347 = vmatprep.subr.mxu0 0.0
      %8348 = vmatpush1.msra.mxu0 %v8287
      %8349 = vmatprep.subr.mxu0 0.0
      %8350 = vmatpush1.msra.mxu0 %v8288
      %8351 = vmatprep.subr.mxu0 0.0
      %8352 = vmatpush1.msra.mxu0 %v8289
      %8353 = vmatprep.subr.mxu0 0.0
      %8354 = vmatpush1.msra.mxu0 %v8290
      %8355 = vmatprep.subr.mxu0 0.0
      %8356 = vmatpush1.msra.mxu0 %v8291
      %8357 = vmatprep.subr.mxu0 0.0
      %8358 = vmatpush1.msra.mxu0 %v8292
      %8359 = vmatprep.subr.mxu0 0.0
      %8360 = vmatpush1.msra.mxu0 %v8293
      %8361 = vmatprep.subr.mxu0 0.0
      %8362 = vmatpush1.msra.mxu0 %v8294
      %8363 = vmatprep.subr.mxu0 0.0
      %8364 = vmatpush1.msra.mxu0 %v8295
      %8365 = vmatprep.subr.mxu0 0.0
      %8366 = vmatpush1.msra.mxu0 %v8296
      %8367 = vmatprep.subr.mxu0 0.0
      %8368 = vmatpush1.msra.mxu0 %v8297
      %8369 = vmatprep.mubr.f32.mxu0 %v6724
      %8370 = vmatmul.mubr.f32.gmra.mrb[0].mxu0 %v6717
      %v8371 = vpop.f32.mrb[0].mxu0
      %v8372 = vadd.f32 %v8303, %v8371
      %v8373 = vpop.f32.mrb[0].mxu0
      %8374 = vdwg.mxu0
      %v8375 = vmul.f32 %v8372, 0.5
      %v8376 = vmul.f32 %v8372, 0.70710677
      %v8377 = verf.f32.pop %v8376
      %v8378 = vadd.f32 %v8377, 1.0
      %v8379 = vmul.f32 %v8375, %v8378
      %v8380 = vld [vmem:[%s67] sm:$0xff]
      %v8381 = vld [vmem:[%s67 + $0x8] sm:$0xff]
      %v8382 = vld [vmem:[%s67 + $0x10] sm:$0xff]
      %v8383 = vld [vmem:[%s67 + $0x18] sm:$0xff]
      %v8384 = vld [vmem:[%s67 + $0x20] sm:$0xff]
      %v8385 = vld [vmem:[%s67 + $0x28] sm:$0xff]
      %v8386 = vld [vmem:[%s67 + $0x30] sm:$0xff]
      %v8387 = vld [vmem:[%s67 + $0x38] sm:$0xff]
      %v8388 = vld [vmem:[#allocation2] sm:$0x1]
      %v8390 = vlaneseq
      %v8391 = vshrl.u32 %v8390, 7
      %v8392 = vsub.s32 0, %v8391
      %v8393 = vrot.slane %v8388, %v8392
      %v8396 = vsel %vm3839, %v8379, 0
      %8398 = vmatprep.subr.mxu0 0.0
      %8399 = vmatpush1.msra.mxu0 %v8380
      %8400 = vmatprep.subr.mxu0 0.0
      %8401 = vmatpush1.msra.mxu0 %v8381
      %8402 = vmatprep.subr.mxu0 0.0
      %8403 = vmatpush1.msra.mxu0 %v8382
      %8404 = vmatprep.subr.mxu0 0.0
      %8405 = vmatpush1.msra.mxu0 %v8383
      %8406 = vmatprep.subr.mxu0 0.0
      %8407 = vmatpush1.msra.mxu0 %v8384
      %8408 = vmatprep.subr.mxu0 0.0
      %8409 = vmatpush1.msra.mxu0 %v8385
      %8410 = vmatprep.subr.mxu0 0.0
      %8411 = vmatpush1.msra.mxu0 %v8386
      %8412 = vmatprep.subr.mxu0 0.0
      %8413 = vmatpush1.msra.mxu0 %v8387
      %8414 = vmatprep.subr.mxu0 0.0
      %8415 = vmatpush1.msra.mxu0 0.0
      %8416 = vmatprep.subr.mxu0 0.0
      %8417 = vmatpush1.msra.mxu0 0.0
      %8418 = vmatprep.subr.mxu0 0.0
      %8419 = vmatpush1.msra.mxu0 0.0
      %8420 = vmatprep.subr.mxu0 0.0
      %8421 = vmatpush1.msra.mxu0 0.0
      %8422 = vmatprep.subr.mxu0 0.0
      %8423 = vmatpush1.msra.mxu0 0.0
      %8424 = vmatprep.subr.mxu0 0.0
      %8425 = vmatpush1.msra.mxu0 0.0
      %8426 = vmatprep.subr.mxu0 0.0
      %8427 = vmatpush1.msra.mxu0 0.0
      %8428 = vmatprep.subr.mxu0 0.0
      %8429 = vmatpush1.msra.mxu0 0.0
      %8430 = vmatprep.subr.mxu0 0.0
      %8431 = vmatpush1.msra.mxu0 0.0
      %8432 = vmatprep.subr.mxu0 0.0
      %8433 = vmatpush1.msra.mxu0 0.0
      %8434 = vmatprep.subr.mxu0 0.0
      %8435 = vmatpush1.msra.mxu0 0.0
      %8436 = vmatprep.subr.mxu0 0.0
      %8437 = vmatpush1.msra.mxu0 0.0
      %8438 = vmatprep.subr.mxu0 0.0
      %8439 = vmatpush1.msra.mxu0 0.0
      %8440 = vmatprep.subr.mxu0 0.0
      %8441 = vmatpush1.msra.mxu0 0.0
      %8442 = vmatprep.subr.mxu0 0.0
      %8443 = vmatpush1.msra.mxu0 0.0
      %8444 = vmatprep.subr.mxu0 0.0
      %8445 = vmatpush1.msra.mxu0 0.0
      %8446 = vmatprep.subr.mxu0 0.0
      %8447 = vmatpush1.msra.mxu0 0.0
      %8448 = vmatprep.subr.mxu0 0.0
      %8449 = vmatpush1.msra.mxu0 0.0
      %8450 = vmatprep.subr.mxu0 0.0
      %8451 = vmatpush1.msra.mxu0 0.0
      %8452 = vmatprep.subr.mxu0 0.0
      %8453 = vmatpush1.msra.mxu0 0.0
      %8454 = vmatprep.subr.mxu0 0.0
      %8455 = vmatpush1.msra.mxu0 0.0
      %8456 = vmatprep.subr.mxu0 0.0
      %8457 = vmatpush1.msra.mxu0 0.0
      %8458 = vmatprep.subr.mxu0 0.0
      %8459 = vmatpush1.msra.mxu0 0.0
      %8460 = vmatprep.subr.mxu0 0.0
      %8461 = vmatpush1.msra.mxu0 0.0
      %8462 = vmatprep.mubr.f32.mxu0 0.0
      %8463 = vmatmul.mubr.f32.gmra.mrb[0].mxu0 %v8396
      %v8464 = vpop.f32.mrb[0].mxu0
      %v8465 = vadd.f32 %v8393, %v8464
      %v8466 = vpop.f32.mrb[0].mxu0
      %8467 = vdwg.mxu0
      %v8468 = vxor.u32 %v8465, 2147483648
      %v8469 = vmul.f32 %v8468, 1.442695
      %v8470 = vpow.pop %v8469
      %v8471 = vadd.f32 %v8470, 1.0
      %v8472 = vrcp.pop %v8471
      %v8473 = vmul.f32 1.0, %v8472
      %8475 = vrot.lane.b32.xlu0 %v7677, 8
      %v8476 = vpop.permute.xlu0 %8475
      %8479 = vrot.lane.b32.xlu0 %v8473, 26
      %v8480 = vpop.permute.xlu0 %8479
      %v8482 = vsel %vm6334, %v8265, %v8476
      %vm8483 = vcmask 211968
      %v8484 = vsel %vm8483, %v8482, %v8480
      %vm8485 = vcmask 220160
      %v8486 = vsel %vm8485, %v8484, 0.0
      %8487 = vst [vmem:[%s1143] sm:$0xff] %v8486
      %p8488 = scmp.lt.s32.totalorder %s89, 1
      %s8489 = scalar_select %p8488, %s89, 1
      %s8490 = smul.addr %s8489, 8
      %s8491 = scalar_lea.vmem %s71, %s8490
      %s8492 = smul.u32 8, %s89
      %p8493 = scmp.lt.s32.totalorder %s8492, 15
      %s8494 = scalar_select %p8493, %s8492, 15
      %s8495 = smul.addr %s8494, 8
      %s8496 = scalar_lea.vmem %s73, %s8495
      %p8497 = scmp.lt.s32.totalorder %s89, 1
      %s8498 = scalar_select %p8497, %s89, 1
      %s8499 = smul.addr %s8498, 2
      %s8500 = smul.addr %s8499, 8
      %s8501 = scalar_lea.vmem %s75, %s8500
      // Predicated region
      $region161: #{market_state_classifier_forward.1} parent=159 // pred_check
        %p8502 = pneg %p847
      $region162: #{market_state_classifier_forward.1} parent=159 // pred_check_branch
        %8504 = sbr.rel (%p8502) target = $region164
      $region163: #{market_state_classifier_forward.1} parent=159 // pred_region
        _
      $region164: #{market_state_classifier_forward.1} parent=159 // pred_fallthru
        _
      // Predicated region
      $region165: #{market_state_classifier_forward.1} parent=159 // pred_check
        %p8505 = pneg %p873
      $region166: #{market_state_classifier_forward.1} parent=159 // pred_check_branch
        %8507 = sbr.rel (%p8505) target = $region168
      $region167: #{market_state_classifier_forward.1} parent=159 // pred_region
        %s8508 = smul.u32 8, %s89
      $region168: #{market_state_classifier_forward.1} parent=159 // pred_fallthru
        _
      // Predicated region
      $region169: #{market_state_classifier_forward.1} parent=159 // pred_check
        %p8509 = pneg %p899
      $region170: #{market_state_classifier_forward.1} parent=159 // pred_check_branch
        %8511 = sbr.rel (%p8509) target = $region172
      $region171: #{market_state_classifier_forward.1} parent=159 // pred_region
        _
      $region172: #{market_state_classifier_forward.1} parent=159 // pred_fallthru
        _
    $region160: #{market_state_classifier_forward.1} parent=5 // pred_fallthru
      _
    %p8512 = scmp.le.s32.totalorder 2, %s84
    // Predicated region
    $region173: #{market_state_classifier_forward.1} parent=5 // pred_check
      %p8513 = pneg %p8512
    $region174: #{market_state_classifier_forward.1} parent=5 // pred_check_branch
      %8515 = sbr.rel (%p8513) target = $region176
    $region175: #{market_state_classifier_forward.1} parent=5 // pred_region
      %s8516 = ssub.s32 %s84, 2
      // Predicated region
      $region177: #{market_state_classifier_forward.1} parent=175 // pred_check
        %p8517 = pneg %p853
      $region178: #{market_state_classifier_forward.1} parent=175 // pred_check_branch
        %8519 = sbr.rel (%p8517) target = $region180
      $region179: #{market_state_classifier_forward.1} parent=175 // pred_region
        %p8520 = scmp.lt.s32.totalorder %s90, 1
        %s8521 = scalar_select %p8520, %s90, 1
        %s8522 = smul.addr %s8521, 8
        %s8523 = scalar_lea.vmem %s71, %s8522
      $region180: #{market_state_classifier_forward.1} parent=175 // pred_fallthru
        _
      // Predicated region
      $region181: #{market_state_classifier_forward.1} parent=175 // pred_check
        %p8524 = pneg %p879
      $region182: #{market_state_classifier_forward.1} parent=175 // pred_check_branch
        %8526 = sbr.rel (%p8524) target = $region184
      $region183: #{market_state_classifier_forward.1} parent=175 // pred_region
        %s8527 = smul.u32 8, %s90
        %p8528 = scmp.lt.s32.totalorder %s8527, 15
        %s8529 = scalar_select %p8528, %s8527, 15
        %s8530 = smul.addr %s8529, 8
        %s8531 = scalar_lea.vmem %s73, %s8530
      $region184: #{market_state_classifier_forward.1} parent=175 // pred_fallthru
        _
      // Predicated region
      $region185: #{market_state_classifier_forward.1} parent=175 // pred_check
        %p8532 = pneg %p905
      $region186: #{market_state_classifier_forward.1} parent=175 // pred_check_branch
        %8534 = sbr.rel (%p8532) target = $region188
      $region187: #{market_state_classifier_forward.1} parent=175 // pred_region
        %p8535 = scmp.lt.s32.totalorder %s90, 1
        %s8536 = scalar_select %p8535, %s90, 1
        %s8537 = smul.addr %s8536, 2
        %s8538 = smul.addr %s8537, 8
        %s8539 = scalar_lea.vmem %s75, %s8538
      $region188: #{market_state_classifier_forward.1} parent=175 // pred_fallthru
        _
    $region176: #{market_state_classifier_forward.1} parent=5 // pred_fallthru
      _
  $region6: #{market_state_classifier_forward.1} parent=0 // loop_footer
    %s88 = sadd.s32 1, %s84
  $region7: #{market_state_classifier_forward.1} parent=0 // loop_footer_branch
    %83 = sbr.rel target = $region3
  $region8: #{market_state_classifier_forward.1} parent=0 // loop_exit
    _

</llo_original>
